<compile_context>
chip_gen: v7x
topology: tpu7x:2x2x1
jax: 0.10.0
libtpu: 0.0.40
codegen_flags: <defaults>
</compile_context>

<pallas_src>
import jax
import jax.numpy as jnp
from jax.experimental import pallas as pl
from jax.experimental.pallas import tpu as pltpu


# ----------------------------- Pallas kernels ------------------------------ #

def _mm_bias_kernel(x_ref, w_ref, b_ref, o_ref):
    acc = jnp.dot(x_ref[...].astype(jnp.bfloat16),
                  w_ref[...],                      # weights pre-cast to bf16 in the wrapper
                  preferred_element_type=jnp.float32)
    o_ref[...] = acc + b_ref[...]


def _mm_bias_add_kernel(x_ref, w_ref, b_ref, add_ref, o_ref):
    acc = jnp.dot(x_ref[...].astype(jnp.bfloat16),
                  w_ref[...],
                  preferred_element_type=jnp.float32)
    o_ref[...] = acc + b_ref[...] + add_ref[...]


def matmul_bias_pallas(x, w, b, add=None, tile_m=512):
    """y = x @ w + b (+ add).  x: (M, K) f32, w: (K, N) f32, b: (N,) f32, add: (M, N) f32."""
    M, K = x.shape
    N = w.shape[1]
    w_bf16 = w.astype(jnp.bfloat16)                # cast once (XLA), resident across the grid
    tm = tile_m if M >= tile_m else M              # row tile; weights/bias stay resident
    grid = (pl.cdiv(M, tm),)

    in_specs = [
        pl.BlockSpec((tm, K), lambda i: (i, 0)),   # activation rows: tiled + pipelined
        pl.BlockSpec((K, N), lambda i: (0, 0)),    # weight resident
        pl.BlockSpec((1, N), lambda i: (0, 0)),    # bias resident
    ]
    args = [x, w_bf16, b.reshape(1, N)]
    if add is not None:
        in_specs.append(pl.BlockSpec((tm, N), lambda i: (i, 0)))
        args.append(add)
        kernel = _mm_bias_add_kernel
    else:
        kernel = _mm_bias_kernel

    return pl.pallas_call(
        kernel,
        out_shape=jax.ShapeDtypeStruct((M, N), jnp.float32),
        grid=grid,
        in_specs=in_specs,
        out_specs=pl.BlockSpec((tm, N), lambda i: (i, 0)),
        compiler_params=pltpu.CompilerParams(
            dimension_semantics=("parallel",),
            vmem_limit_bytes=64 << 20),
    )(*args)


# --------------------------- conv wrappers (NHWC) --------------------------- #

def conv1x1_pallas(x_nhwc, w, b, add_nhwc=None):
    """1x1 conv (== per-pixel matmul) with optional fused elementwise add."""
    B, H, W, Cin = x_nhwc.shape
    Cout = w.shape[1]
    x2 = x_nhwc.reshape(B * H * W, Cin)
    add2 = None if add_nhwc is None else add_nhwc.reshape(B * H * W, Cout)
    y = matmul_bias_pallas(x2, w, b, add=add2)
    return y.reshape(B, H, W, Cout)


def conv3x3_pallas(x_nhwc, w, b):
    """3x3 same-padding conv via im2col (XLA) + one lane-dense Pallas matmul.

    w: (3, 3, Cin, Cout); cross-correlation, like nn.Conv2d.
    """
    B, H, W, Cin = x_nhwc.shape
    Cout = w.shape[-1]
    xp = jnp.pad(x_nhwc, ((0, 0), (1, 1), (1, 1), (0, 0)))
    # TODO(synk): im2col patch extraction is pure data movement; done with XLA slicing.
    patches = jnp.concatenate(
        [xp[:, dh:dh + H, dw:dw + W, :] for dh in range(3) for dw in range(3)],
        axis=-1)                                        # (B, H, W, 9*Cin), (kh, kw, cin) order
    y = matmul_bias_pallas(patches.reshape(B * H * W, 9 * Cin),
                           w.reshape(9 * Cin, Cout), b)
    return y.reshape(B, H, W, Cout)


def upsample2x_nearest(x_nhwc):
    # TODO(synk): nearest-2x upsample is pure data movement (XLA); its add is fused
    #             into the next level's lateral-conv kernel.
    return jnp.repeat(jnp.repeat(x_nhwc, 2, axis=1), 2, axis=2)


# ------------------------------ SOLOFPN forward ------------------------------ #

def init_params(key, in_channels, out_channels):
    n = len(in_channels)
    keys = jax.random.split(key, 4 * n)

    def nrm(k, shape, std=0.05):
        return (std * jax.random.normal(k, shape)).astype(jnp.float32)

    lateral_w = [nrm(keys[i], (in_channels[i], out_channels)) for i in range(n)]
    lateral_b = [nrm(keys[n + i], (out_channels,), std=0.01) for i in range(n)]
    fpn_w = [nrm(keys[2 * n + i], (3, 3, out_channels, out_channels)) for i in range(n)]
    fpn_b = [nrm(keys[3 * n + i], (out_channels,), std=0.01) for i in range(n)]
    return dict(lateral_w=lateral_w, lateral_b=lateral_b, fpn_w=fpn_w, fpn_b=fpn_b)


def solo_fpn_forward(params, inputs_nchw, num_outs):
    """inputs_nchw: list of (B, Cin_i, H_i, W_i); returns tuple of (B, Cout, H, W) NCHW."""
    num_ins = len(inputs_nchw)
    xs = [jnp.transpose(x, (0, 2, 3, 1)) for x in inputs_nchw]        # -> NHWC

    # laterals + top-down path:  laterals[i] = conv1x1(x_i) (+ upsample(laterals[i+1])),
    # walking coarse -> fine exactly matches the reference's in-place `+=` loop.
    laterals = [None] * num_ins
    laterals[-1] = conv1x1_pallas(xs[-1], params["lateral_w"][-1], params["lateral_b"][-1])
    for i in range(num_ins - 2, -1, -1):
        up = upsample2x_nearest(laterals[i + 1])
        laterals[i] = conv1x1_pallas(xs[i], params["lateral_w"][i], params["lateral_b"][i],
                                     add_nhwc=up)

    outs = [conv3x3_pallas(laterals[i], params["fpn_w"][i], params["fpn_b"][i])
            for i in range(num_ins)]

    # extra levels: F.max_pool2d(kernel=1, stride=2) == stride-2 subsample.
    # TODO(synk): stride-2 subsample is a pure strided view, done with an XLA slice.
    for _ in range(num_outs - num_ins):
        outs.append(outs[-1][:, ::2, ::2, :])

    return tuple(jnp.transpose(o, (0, 3, 1, 2)) for o in outs)        # -> NCHW


# --------------------------- pure-JAX reference ------------------------------ #

def solo_fpn_reference(params, inputs_nchw, num_outs):
    num_ins = len(inputs_nchw)
    xs = [jnp.transpose(x, (0, 2, 3, 1)) for x in inputs_nchw]
    hi = jax.lax.Precision.HIGHEST
    laterals = [jnp.einsum("bhwc,cd->bhwd", xs[i], params["lateral_w"][i], precision=hi)
                + params["lateral_b"][i] for i in range(num_ins)]
    for i in range(num_ins - 1, 0, -1):
        up = jnp.repeat(jnp.repeat(laterals[i], 2, axis=1), 2, axis=2)
        laterals[i - 1] = laterals[i - 1] + up
    outs = []
    for i in range(num_ins):
        y = jax.lax.conv_general_dilated(
            laterals[i], params["fpn_w"][i], (1, 1), "SAME",
            dimension_numbers=("NHWC", "HWIO", "NHWC"), precision=hi)
        outs.append(y + params["fpn_b"][i])
    for _ in range(num_outs - num_ins):
        outs.append(outs[-1][:, ::2, ::2, :])
    return tuple(jnp.transpose(o, (0, 3, 1, 2)) for o in outs)


# --------------------------------- driver ----------------------------------- #

if __name__ == "__main__":
    B = 2
    IN_CHANNELS = [16, 32, 64, 128]
    OUT_CHANNELS = 128
    NUM_OUTS = 5
    SPATIAL = [16, 8, 4, 2]          # 1/4, 1/8, 1/16, 1/32 pyramid levels

    key = jax.random.PRNGKey(0)
    kp, *kx = jax.random.split(key, 1 + len(IN_CHANNELS))

    params = init_params(kp, IN_CHANNELS, OUT_CHANNELS)
    inputs = [jax.random.normal(kx[i], (B, IN_CHANNELS[i], SPATIAL[i], SPATIAL[i]),
                                dtype=jnp.float32)
              for i in range(len(IN_CHANNELS))]

    fwd = jax.jit(lambda *xs: solo_fpn_forward(params, list(xs), NUM_OUTS))
    outs = fwd(*inputs)
    jax.block_until_ready(outs)

    # shape / sanity checks
    expected = [(B, OUT_CHANNELS, s, s) for s in SPATIAL] + [(B, OUT_CHANNELS, 1, 1)]
    assert len(outs) == NUM_OUTS, len(outs)
    for o, es in zip(outs, expected):
        assert o.shape == es, (o.shape, es)
        assert bool(jnp.all(jnp.isfinite(o)))

    # numerical check vs. pure-JAX reference (kernel matmuls run bf16-in / f32-acc)
    ref_fwd = jax.jit(lambda *xs: solo_fpn_reference(params, list(xs), NUM_OUTS))
    ref_outs = ref_fwd(*inputs)
    jax.block_until_ready(ref_outs)
    for o, r in zip(outs, ref_outs):
        err = float(jnp.max(jnp.abs(o - r)))
        assert err < 0.15, f"max abs diff {err}"

    print("KERNEL_OK")
</pallas_src>

<mosaic_0001>
module attributes {stable_mosaic.version = 11 : i64} {
  func.func @_mm_bias_add_kernel(%arg0: i32, %arg1: memref<32x64xf32, #tpu.memory_space<vmem>>, %arg2: memref<64x128xbf16, #tpu.memory_space<vmem>>, %arg3: memref<1x128xf32, #tpu.memory_space<vmem>>, %arg4: memref<32x128xf32, #tpu.memory_space<vmem>>, %arg5: memref<32x128xf32, #tpu.memory_space<vmem>>) attributes {dimension_semantics = [#tpu.dimension_semantics<parallel>], iteration_bounds = array<i64: 1>, scalar_prefetch = 0 : i64, scratch_operands = 0 : i64, tpu.core_type = #tpu.core_type<tc>, window_params = [{transform_indices = @transform_0, window_bounds = array<i64: 32, 64>}, {pipeline_mode = #tpu.pipeline_mode<synchronous>, transform_indices = @transform_1, window_bounds = array<i64: 64, 128>}, {pipeline_mode = #tpu.pipeline_mode<synchronous>, transform_indices = @transform_2, window_bounds = array<i64: 1, 128>}, {transform_indices = @transform_3, window_bounds = array<i64: 32, 128>}, {transform_indices = @transform_4, window_bounds = array<i64: 32, 128>}]} {
    %c0 = arith.constant 0 : index
    %c0_0 = arith.constant 0 : index
    %0 = vector.load %arg1[%c0, %c0_0] : memref<32x64xf32, #tpu.memory_space<vmem>>, vector<32x64xf32>
    %1 = arith.truncf %0 : vector<32x64xf32> to vector<32x64xbf16>
    %c0_1 = arith.constant 0 : index
    %c0_2 = arith.constant 0 : index
    %2 = vector.load %arg2[%c0_1, %c0_2] : memref<64x128xbf16, #tpu.memory_space<vmem>>, vector<64x128xbf16>
    %cst = arith.constant dense<0.000000e+00> : vector<32x128xf32>
    %3 = tpu.matmul %1, %2, %cst {dimension_numbers = #tpu.dot_dimension_numbers<[1], [0], [0], [1], [0, 0, 1, 1], [], []>} : vector<32x64xbf16>, vector<64x128xbf16>, vector<32x128xf32> -> vector<32x128xf32>
    %c0_3 = arith.constant 0 : index
    %c0_4 = arith.constant 0 : index
    %4 = vector.load %arg3[%c0_3, %c0_4] : memref<1x128xf32, #tpu.memory_space<vmem>>, vector<1x128xf32>
    %5 = vector.broadcast %4 : vector<1x128xf32> to vector<32x128xf32>
    %6 = arith.addf %3, %5 : vector<32x128xf32>
    %c0_5 = arith.constant 0 : index
    %c0_6 = arith.constant 0 : index
    %7 = vector.load %arg4[%c0_5, %c0_6] : memref<32x128xf32, #tpu.memory_space<vmem>>, vector<32x128xf32>
    %8 = arith.addf %6, %7 : vector<32x128xf32>
    %c0_7 = arith.constant 0 : index
    %c0_8 = arith.constant 0 : index
    %9 = vector.load %arg5[%c0_7, %c0_8] : memref<32x128xf32, #tpu.memory_space<vmem>>, vector<32x128xf32>
    tpu.vector_store %arg5[%c0_7, %c0_8], %8 {strides = array<i32>} : memref<32x128xf32, #tpu.memory_space<vmem>>, vector<32x128xf32>,
    return
  }
  func.func @transform_0(%arg0: i32) -> (i32, i32) {
    %c0_i32 = arith.constant 0 : i32
    %c0_i32_0 = arith.constant 0 : i32
    return %arg0, %c0_i32 : i32, i32
  }
  func.func @transform_1(%arg0: i32) -> (i32, i32) {
    %c0_i32 = arith.constant 0 : i32
    %c0_i32_0 = arith.constant 0 : i32
    %c0_i32_1 = arith.constant 0 : i32
    return %c0_i32, %c0_i32_0 : i32, i32
  }
  func.func @transform_2(%arg0: i32) -> (i32, i32) {
    %c0_i32 = arith.constant 0 : i32
    %c0_i32_0 = arith.constant 0 : i32
    %c0_i32_1 = arith.constant 0 : i32
    return %c0_i32, %c0_i32_0 : i32, i32
  }
  func.func @transform_3(%arg0: i32) -> (i32, i32) {
    %c0_i32 = arith.constant 0 : i32
    %c0_i32_0 = arith.constant 0 : i32
    return %arg0, %c0_i32 : i32, i32
  }
  func.func @transform_4(%arg0: i32) -> (i32, i32) {
    %c0_i32 = arith.constant 0 : i32
    %c0_i32_0 = arith.constant 0 : i32
    return %arg0, %c0_i32 : i32, i32
  }
}

module attributes {stable_mosaic.version = 11 : i64} {
  func.func @_mm_bias_kernel(%arg0: i32, %arg1: memref<8x128xf32, #tpu.memory_space<vmem>>, %arg2: memref<128x128xbf16, #tpu.memory_space<vmem>>, %arg3: memref<1x128xf32, #tpu.memory_space<vmem>>, %arg4: memref<8x128xf32, #tpu.memory_space<vmem>>) attributes {dimension_semantics = [#tpu.dimension_semantics<parallel>], iteration_bounds = array<i64: 1>, scalar_prefetch = 0 : i64, scratch_operands = 0 : i64, tpu.core_type = #tpu.core_type<tc>, window_params = [{transform_indices = @transform_0, window_bounds = array<i64: 8, 128>}, {pipeline_mode = #tpu.pipeline_mode<synchronous>, transform_indices = @transform_1, window_bounds = array<i64: 128, 128>}, {pipeline_mode = #tpu.pipeline_mode<synchronous>, transform_indices = @transform_2, window_bounds = array<i64: 1, 128>}, {transform_indices = @transform_3, window_bounds = array<i64: 8, 128>}]} {
    %c0 = arith.constant 0 : index
    %c0_0 = arith.constant 0 : index
    %0 = vector.load %arg1[%c0, %c0_0] : memref<8x128xf32, #tpu.memory_space<vmem>>, vector<8x128xf32>
    %1 = arith.truncf %0 : vector<8x128xf32> to vector<8x128xbf16>
    %c0_1 = arith.constant 0 : index
    %c0_2 = arith.constant 0 : index
    %2 = vector.load %arg2[%c0_1, %c0_2] : memref<128x128xbf16, #tpu.memory_space<vmem>>, vector<128x128xbf16>
    %cst = arith.constant dense<0.000000e+00> : vector<8x128xf32>
    %3 = tpu.matmul %1, %2, %cst {dimension_numbers = #tpu.dot_dimension_numbers<[1], [0], [0], [1], [0, 0, 1, 1], [], []>} : vector<8x128xbf16>, vector<128x128xbf16>, vector<8x128xf32> -> vector<8x128xf32>
    %c0_3 = arith.constant 0 : index
    %c0_4 = arith.constant 0 : index
    %4 = vector.load %arg3[%c0_3, %c0_4] : memref<1x128xf32, #tpu.memory_space<vmem>>, vector<1x128xf32>
    %5 = vector.broadcast %4 : vector<1x128xf32> to vector<8x128xf32>
    %6 = arith.addf %3, %5 : vector<8x128xf32>
    %c0_5 = arith.constant 0 : index
    %c0_6 = arith.constant 0 : index
    %7 = vector.load %arg4[%c0_5, %c0_6] : memref<8x128xf32, #tpu.memory_space<vmem>>, vector<8x128xf32>
    tpu.vector_store %arg4[%c0_5, %c0_6], %6 {strides = array<i32>} : memref<8x128xf32, #tpu.memory_space<vmem>>, vector<8x128xf32>,
    return
  }
  func.func @transform_0(%arg0: i32) -> (i32, i32) {
    %c0_i32 = arith.constant 0 : i32
    %c0_i32_0 = arith.constant 0 : i32
    return %arg0, %c0_i32 : i32, i32
  }
  func.func @transform_1(%arg0: i32) -> (i32, i32) {
    %c0_i32 = arith.constant 0 : i32
    %c0_i32_0 = arith.constant 0 : i32
    %c0_i32_1 = arith.constant 0 : i32
    return %c0_i32, %c0_i32_0 : i32, i32
  }
  func.func @transform_2(%arg0: i32) -> (i32, i32) {
    %c0_i32 = arith.constant 0 : i32
    %c0_i32_0 = arith.constant 0 : i32
    %c0_i32_1 = arith.constant 0 : i32
    return %c0_i32, %c0_i32_0 : i32, i32
  }
  func.func @transform_3(%arg0: i32) -> (i32, i32) {
    %c0_i32 = arith.constant 0 : i32
    %c0_i32_0 = arith.constant 0 : i32
    return %arg0, %c0_i32 : i32, i32
  }
}

module attributes {stable_mosaic.version = 11 : i64} {
  func.func @_mm_bias_add_kernel(%arg0: i32, %arg1: memref<128x32xf32, #tpu.memory_space<vmem>>, %arg2: memref<32x128xbf16, #tpu.memory_space<vmem>>, %arg3: memref<1x128xf32, #tpu.memory_space<vmem>>, %arg4: memref<128x128xf32, #tpu.memory_space<vmem>>, %arg5: memref<128x128xf32, #tpu.memory_space<vmem>>) attributes {dimension_semantics = [#tpu.dimension_semantics<parallel>], iteration_bounds = array<i64: 1>, scalar_prefetch = 0 : i64, scratch_operands = 0 : i64, tpu.core_type = #tpu.core_type<tc>, window_params = [{transform_indices = @transform_0, window_bounds = array<i64: 128, 32>}, {pipeline_mode = #tpu.pipeline_mode<synchronous>, transform_indices = @transform_1, window_bounds = array<i64: 32, 128>}, {pipeline_mode = #tpu.pipeline_mode<synchronous>, transform_indices = @transform_2, window_bounds = array<i64: 1, 128>}, {transform_indices = @transform_3, window_bounds = array<i64: 128, 128>}, {transform_indices = @transform_4, window_bounds = array<i64: 128, 128>}]} {
    %c0 = arith.constant 0 : index
    %c0_0 = arith.constant 0 : index
    %0 = vector.load %arg1[%c0, %c0_0] : memref<128x32xf32, #tpu.memory_space<vmem>>, vector<128x32xf32>
    %1 = arith.truncf %0 : vector<128x32xf32> to vector<128x32xbf16>
    %c0_1 = arith.constant 0 : index
    %c0_2 = arith.constant 0 : index
    %2 = vector.load %arg2[%c0_1, %c0_2] : memref<32x128xbf16, #tpu.memory_space<vmem>>, vector<32x128xbf16>
    %cst = arith.constant dense<0.000000e+00> : vector<128x128xf32>
    %3 = tpu.matmul %1, %2, %cst {dimension_numbers = #tpu.dot_dimension_numbers<[1], [0], [0], [1], [0, 0, 1, 1], [], []>} : vector<128x32xbf16>, vector<32x128xbf16>, vector<128x128xf32> -> vector<128x128xf32>
    %c0_3 = arith.constant 0 : index
    %c0_4 = arith.constant 0 : index
    %4 = vector.load %arg3[%c0_3, %c0_4] : memref<1x128xf32, #tpu.memory_space<vmem>>, vector<1x128xf32>
    %5 = vector.broadcast %4 : vector<1x128xf32> to vector<128x128xf32>
    %6 = arith.addf %3, %5 : vector<128x128xf32>
    %c0_5 = arith.constant 0 : index
    %c0_6 = arith.constant 0 : index
    %7 = vector.load %arg4[%c0_5, %c0_6] : memref<128x128xf32, #tpu.memory_space<vmem>>, vector<128x128xf32>
    %8 = arith.addf %6, %7 : vector<128x128xf32>
    %c0_7 = arith.constant 0 : index
    %c0_8 = arith.constant 0 : index
    %9 = vector.load %arg5[%c0_7, %c0_8] : memref<128x128xf32, #tpu.memory_space<vmem>>, vector<128x128xf32>
    tpu.vector_store %arg5[%c0_7, %c0_8], %8 {strides = array<i32>} : memref<128x128xf32, #tpu.memory_space<vmem>>, vector<128x128xf32>,
    return
  }
  func.func @transform_0(%arg0: i32) -> (i32, i32) {
    %c0_i32 = arith.constant 0 : i32
    %c0_i32_0 = arith.constant 0 : i32
    return %arg0, %c0_i32 : i32, i32
  }
  func.func @transform_1(%arg0: i32) -> (i32, i32) {
    %c0_i32 = arith.constant 0 : i32
    %c0_i32_0 = arith.constant 0 : i32
    %c0_i32_1 = arith.constant 0 : i32
    return %c0_i32, %c0_i32_0 : i32, i32
  }
  func.func @transform_2(%arg0: i32) -> (i32, i32) {
    %c0_i32 = arith.constant 0 : i32
    %c0_i32_0 = arith.constant 0 : i32
    %c0_i32_1 = arith.constant 0 : i32
    return %c0_i32, %c0_i32_0 : i32, i32
  }
  func.func @transform_3(%arg0: i32) -> (i32, i32) {
    %c0_i32 = arith.constant 0 : i32
    %c0_i32_0 = arith.constant 0 : i32
    return %arg0, %c0_i32 : i32, i32
  }
  func.func @transform_4(%arg0: i32) -> (i32, i32) {
    %c0_i32 = arith.constant 0 : i32
    %c0_i32_0 = arith.constant 0 : i32
    return %arg0, %c0_i32 : i32, i32
  }
}

module attributes {stable_mosaic.version = 11 : i64} {
  func.func @_mm_bias_add_kernel(%arg0: i32, %arg1: memref<512x16xf32, #tpu.memory_space<vmem>>, %arg2: memref<16x128xbf16, #tpu.memory_space<vmem>>, %arg3: memref<1x128xf32, #tpu.memory_space<vmem>>, %arg4: memref<512x128xf32, #tpu.memory_space<vmem>>, %arg5: memref<512x128xf32, #tpu.memory_space<vmem>>) attributes {dimension_semantics = [#tpu.dimension_semantics<parallel>], iteration_bounds = array<i64: 1>, scalar_prefetch = 0 : i64, scratch_operands = 0 : i64, tpu.core_type = #tpu.core_type<tc>, window_params = [{transform_indices = @transform_0, window_bounds = array<i64: 512, 16>}, {pipeline_mode = #tpu.pipeline_mode<synchronous>, transform_indices = @transform_1, window_bounds = array<i64: 16, 128>}, {pipeline_mode = #tpu.pipeline_mode<synchronous>, transform_indices = @transform_2, window_bounds = array<i64: 1, 128>}, {transform_indices = @transform_3, window_bounds = array<i64: 512, 128>}, {transform_indices = @transform_4, window_bounds = array<i64: 512, 128>}]} {
    %c0 = arith.constant 0 : index
    %c0_0 = arith.constant 0 : index
    %0 = vector.load %arg1[%c0, %c0_0] : memref<512x16xf32, #tpu.memory_space<vmem>>, vector<512x16xf32>
    %1 = arith.truncf %0 : vector<512x16xf32> to vector<512x16xbf16>
    %c0_1 = arith.constant 0 : index
    %c0_2 = arith.constant 0 : index
    %2 = vector.load %arg2[%c0_1, %c0_2] : memref<16x128xbf16, #tpu.memory_space<vmem>>, vector<16x128xbf16>
    %cst = arith.constant dense<0.000000e+00> : vector<512x128xf32>
    %3 = tpu.matmul %1, %2, %cst {dimension_numbers = #tpu.dot_dimension_numbers<[1], [0], [0], [1], [0, 0, 1, 1], [], []>} : vector<512x16xbf16>, vector<16x128xbf16>, vector<512x128xf32> -> vector<512x128xf32>
    %c0_3 = arith.constant 0 : index
    %c0_4 = arith.constant 0 : index
    %4 = vector.load %arg3[%c0_3, %c0_4] : memref<1x128xf32, #tpu.memory_space<vmem>>, vector<1x128xf32>
    %5 = vector.broadcast %4 : vector<1x128xf32> to vector<512x128xf32>
    %6 = arith.addf %3, %5 : vector<512x128xf32>
    %c0_5 = arith.constant 0 : index
    %c0_6 = arith.constant 0 : index
    %7 = vector.load %arg4[%c0_5, %c0_6] : memref<512x128xf32, #tpu.memory_space<vmem>>, vector<512x128xf32>
    %8 = arith.addf %6, %7 : vector<512x128xf32>
    %c0_7 = arith.constant 0 : index
    %c0_8 = arith.constant 0 : index
    %9 = vector.load %arg5[%c0_7, %c0_8] : memref<512x128xf32, #tpu.memory_space<vmem>>, vector<512x128xf32>
    tpu.vector_store %arg5[%c0_7, %c0_8], %8 {strides = array<i32>} : memref<512x128xf32, #tpu.memory_space<vmem>>, vector<512x128xf32>,
    return
  }
  func.func @transform_0(%arg0: i32) -> (i32, i32) {
    %c0_i32 = arith.constant 0 : i32
    %c0_i32_0 = arith.constant 0 : i32
    return %arg0, %c0_i32 : i32, i32
  }
  func.func @transform_1(%arg0: i32) -> (i32, i32) {
    %c0_i32 = arith.constant 0 : i32
    %c0_i32_0 = arith.constant 0 : i32
    %c0_i32_1 = arith.constant 0 : i32
    return %c0_i32, %c0_i32_0 : i32, i32
  }
  func.func @transform_2(%arg0: i32) -> (i32, i32) {
    %c0_i32 = arith.constant 0 : i32
    %c0_i32_0 = arith.constant 0 : i32
    %c0_i32_1 = arith.constant 0 : i32
    return %c0_i32, %c0_i32_0 : i32, i32
  }
  func.func @transform_3(%arg0: i32) -> (i32, i32) {
    %c0_i32 = arith.constant 0 : i32
    %c0_i32_0 = arith.constant 0 : i32
    return %arg0, %c0_i32 : i32, i32
  }
  func.func @transform_4(%arg0: i32) -> (i32, i32) {
    %c0_i32 = arith.constant 0 : i32
    %c0_i32_0 = arith.constant 0 : i32
    return %arg0, %c0_i32 : i32, i32
  }
}

module attributes {stable_mosaic.version = 11 : i64} {
  func.func @_mm_bias_kernel(%arg0: i32, %arg1: memref<512x1152xf32, #tpu.memory_space<vmem>>, %arg2: memref<1152x128xbf16, #tpu.memory_space<vmem>>, %arg3: memref<1x128xf32, #tpu.memory_space<vmem>>, %arg4: memref<512x128xf32, #tpu.memory_space<vmem>>) attributes {dimension_semantics = [#tpu.dimension_semantics<parallel>], iteration_bounds = array<i64: 1>, scalar_prefetch = 0 : i64, scratch_operands = 0 : i64, tpu.core_type = #tpu.core_type<tc>, window_params = [{transform_indices = @transform_0, window_bounds = array<i64: 512, 1152>}, {pipeline_mode = #tpu.pipeline_mode<synchronous>, transform_indices = @transform_1, window_bounds = array<i64: 1152, 128>}, {pipeline_mode = #tpu.pipeline_mode<synchronous>, transform_indices = @transform_2, window_bounds = array<i64: 1, 128>}, {transform_indices = @transform_3, window_bounds = array<i64: 512, 128>}]} {
    %c0 = arith.constant 0 : index
    %c0_0 = arith.constant 0 : index
    %0 = vector.load %arg1[%c0, %c0_0] : memref<512x1152xf32, #tpu.memory_space<vmem>>, vector<512x1152xf32>
    %1 = arith.truncf %0 : vector<512x1152xf32> to vector<512x1152xbf16>
    %c0_1 = arith.constant 0 : index
    %c0_2 = arith.constant 0 : index
    %2 = vector.load %arg2[%c0_1, %c0_2] : memref<1152x128xbf16, #tpu.memory_space<vmem>>, vector<1152x128xbf16>
    %cst = arith.constant dense<0.000000e+00> : vector<512x128xf32>
    %3 = tpu.matmul %1, %2, %cst {dimension_numbers = #tpu.dot_dimension_numbers<[1], [0], [0], [1], [0, 0, 1, 1], [], []>} : vector<512x1152xbf16>, vector<1152x128xbf16>, vector<512x128xf32> -> vector<512x128xf32>
    %c0_3 = arith.constant 0 : index
    %c0_4 = arith.constant 0 : index
    %4 = vector.load %arg3[%c0_3, %c0_4] : memref<1x128xf32, #tpu.memory_space<vmem>>, vector<1x128xf32>
    %5 = vector.broadcast %4 : vector<1x128xf32> to vector<512x128xf32>
    %6 = arith.addf %3, %5 : vector<512x128xf32>
    %c0_5 = arith.constant 0 : index
    %c0_6 = arith.constant 0 : index
    %7 = vector.load %arg4[%c0_5, %c0_6] : memref<512x128xf32, #tpu.memory_space<vmem>>, vector<512x128xf32>
    tpu.vector_store %arg4[%c0_5, %c0_6], %6 {strides = array<i32>} : memref<512x128xf32, #tpu.memory_space<vmem>>, vector<512x128xf32>,
    return
  }
  func.func @transform_0(%arg0: i32) -> (i32, i32) {
    %c0_i32 = arith.constant 0 : i32
    %c0_i32_0 = arith.constant 0 : i32
    return %arg0, %c0_i32 : i32, i32
  }
  func.func @transform_1(%arg0: i32) -> (i32, i32) {
    %c0_i32 = arith.constant 0 : i32
    %c0_i32_0 = arith.constant 0 : i32
    %c0_i32_1 = arith.constant 0 : i32
    return %c0_i32, %c0_i32_0 : i32, i32
  }
  func.func @transform_2(%arg0: i32) -> (i32, i32) {
    %c0_i32 = arith.constant 0 : i32
    %c0_i32_0 = arith.constant 0 : i32
    %c0_i32_1 = arith.constant 0 : i32
    return %c0_i32, %c0_i32_0 : i32, i32
  }
  func.func @transform_3(%arg0: i32) -> (i32, i32) {
    %c0_i32 = arith.constant 0 : i32
    %c0_i32_0 = arith.constant 0 : i32
    return %arg0, %c0_i32 : i32, i32
  }
}

module attributes {stable_mosaic.version = 11 : i64} {
  func.func @_mm_bias_kernel(%arg0: i32, %arg1: memref<128x1152xf32, #tpu.memory_space<vmem>>, %arg2: memref<1152x128xbf16, #tpu.memory_space<vmem>>, %arg3: memref<1x128xf32, #tpu.memory_space<vmem>>, %arg4: memref<128x128xf32, #tpu.memory_space<vmem>>) attributes {dimension_semantics = [#tpu.dimension_semantics<parallel>], iteration_bounds = array<i64: 1>, scalar_prefetch = 0 : i64, scratch_operands = 0 : i64, tpu.core_type = #tpu.core_type<tc>, window_params = [{transform_indices = @transform_0, window_bounds = array<i64: 128, 1152>}, {pipeline_mode = #tpu.pipeline_mode<synchronous>, transform_indices = @transform_1, window_bounds = array<i64: 1152, 128>}, {pipeline_mode = #tpu.pipeline_mode<synchronous>, transform_indices = @transform_2, window_bounds = array<i64: 1, 128>}, {transform_indices = @transform_3, window_bounds = array<i64: 128, 128>}]} {
    %c0 = arith.constant 0 : index
    %c0_0 = arith.constant 0 : index
    %0 = vector.load %arg1[%c0, %c0_0] : memref<128x1152xf32, #tpu.memory_space<vmem>>, vector<128x1152xf32>
    %1 = arith.truncf %0 : vector<128x1152xf32> to vector<128x1152xbf16>
    %c0_1 = arith.constant 0 : index
    %c0_2 = arith.constant 0 : index
    %2 = vector.load %arg2[%c0_1, %c0_2] : memref<1152x128xbf16, #tpu.memory_space<vmem>>, vector<1152x128xbf16>
    %cst = arith.constant dense<0.000000e+00> : vector<128x128xf32>
    %3 = tpu.matmul %1, %2, %cst {dimension_numbers = #tpu.dot_dimension_numbers<[1], [0], [0], [1], [0, 0, 1, 1], [], []>} : vector<128x1152xbf16>, vector<1152x128xbf16>, vector<128x128xf32> -> vector<128x128xf32>
    %c0_3 = arith.constant 0 : index
    %c0_4 = arith.constant 0 : index
    %4 = vector.load %arg3[%c0_3, %c0_4] : memref<1x128xf32, #tpu.memory_space<vmem>>, vector<1x128xf32>
    %5 = vector.broadcast %4 : vector<1x128xf32> to vector<128x128xf32>
    %6 = arith.addf %3, %5 : vector<128x128xf32>
    %c0_5 = arith.constant 0 : index
    %c0_6 = arith.constant 0 : index
    %7 = vector.load %arg4[%c0_5, %c0_6] : memref<128x128xf32, #tpu.memory_space<vmem>>, vector<128x128xf32>
    tpu.vector_store %arg4[%c0_5, %c0_6], %6 {strides = array<i32>} : memref<128x128xf32, #tpu.memory_space<vmem>>, vector<128x128xf32>,
    return
  }
  func.func @transform_0(%arg0: i32) -> (i32, i32) {
    %c0_i32 = arith.constant 0 : i32
    %c0_i32_0 = arith.constant 0 : i32
    return %arg0, %c0_i32 : i32, i32
  }
  func.func @transform_1(%arg0: i32) -> (i32, i32) {
    %c0_i32 = arith.constant 0 : i32
    %c0_i32_0 = arith.constant 0 : i32
    %c0_i32_1 = arith.constant 0 : i32
    return %c0_i32, %c0_i32_0 : i32, i32
  }
  func.func @transform_2(%arg0: i32) -> (i32, i32) {
    %c0_i32 = arith.constant 0 : i32
    %c0_i32_0 = arith.constant 0 : i32
    %c0_i32_1 = arith.constant 0 : i32
    return %c0_i32, %c0_i32_0 : i32, i32
  }
  func.func @transform_3(%arg0: i32) -> (i32, i32) {
    %c0_i32 = arith.constant 0 : i32
    %c0_i32_0 = arith.constant 0 : i32
    return %arg0, %c0_i32 : i32, i32
  }
}

module attributes {stable_mosaic.version = 11 : i64} {
  func.func @_mm_bias_kernel(%arg0: i32, %arg1: memref<32x1152xf32, #tpu.memory_space<vmem>>, %arg2: memref<1152x128xbf16, #tpu.memory_space<vmem>>, %arg3: memref<1x128xf32, #tpu.memory_space<vmem>>, %arg4: memref<32x128xf32, #tpu.memory_space<vmem>>) attributes {dimension_semantics = [#tpu.dimension_semantics<parallel>], iteration_bounds = array<i64: 1>, scalar_prefetch = 0 : i64, scratch_operands = 0 : i64, tpu.core_type = #tpu.core_type<tc>, window_params = [{transform_indices = @transform_0, window_bounds = array<i64: 32, 1152>}, {pipeline_mode = #tpu.pipeline_mode<synchronous>, transform_indices = @transform_1, window_bounds = array<i64: 1152, 128>}, {pipeline_mode = #tpu.pipeline_mode<synchronous>, transform_indices = @transform_2, window_bounds = array<i64: 1, 128>}, {transform_indices = @transform_3, window_bounds = array<i64: 32, 128>}]} {
    %c0 = arith.constant 0 : index
    %c0_0 = arith.constant 0 : index
    %0 = vector.load %arg1[%c0, %c0_0] : memref<32x1152xf32, #tpu.memory_space<vmem>>, vector<32x1152xf32>
    %1 = arith.truncf %0 : vector<32x1152xf32> to vector<32x1152xbf16>
    %c0_1 = arith.constant 0 : index
    %c0_2 = arith.constant 0 : index
    %2 = vector.load %arg2[%c0_1, %c0_2] : memref<1152x128xbf16, #tpu.memory_space<vmem>>, vector<1152x128xbf16>
    %cst = arith.constant dense<0.000000e+00> : vector<32x128xf32>
    %3 = tpu.matmul %1, %2, %cst {dimension_numbers = #tpu.dot_dimension_numbers<[1], [0], [0], [1], [0, 0, 1, 1], [], []>} : vector<32x1152xbf16>, vector<1152x128xbf16>, vector<32x128xf32> -> vector<32x128xf32>
    %c0_3 = arith.constant 0 : index
    %c0_4 = arith.constant 0 : index
    %4 = vector.load %arg3[%c0_3, %c0_4] : memref<1x128xf32, #tpu.memory_space<vmem>>, vector<1x128xf32>
    %5 = vector.broadcast %4 : vector<1x128xf32> to vector<32x128xf32>
    %6 = arith.addf %3, %5 : vector<32x128xf32>
    %c0_5 = arith.constant 0 : index
    %c0_6 = arith.constant 0 : index
    %7 = vector.load %arg4[%c0_5, %c0_6] : memref<32x128xf32, #tpu.memory_space<vmem>>, vector<32x128xf32>
    tpu.vector_store %arg4[%c0_5, %c0_6], %6 {strides = array<i32>} : memref<32x128xf32, #tpu.memory_space<vmem>>, vector<32x128xf32>,
    return
  }
  func.func @transform_0(%arg0: i32) -> (i32, i32) {
    %c0_i32 = arith.constant 0 : i32
    %c0_i32_0 = arith.constant 0 : i32
    return %arg0, %c0_i32 : i32, i32
  }
  func.func @transform_1(%arg0: i32) -> (i32, i32) {
    %c0_i32 = arith.constant 0 : i32
    %c0_i32_0 = arith.constant 0 : i32
    %c0_i32_1 = arith.constant 0 : i32
    return %c0_i32, %c0_i32_0 : i32, i32
  }
  func.func @transform_2(%arg0: i32) -> (i32, i32) {
    %c0_i32 = arith.constant 0 : i32
    %c0_i32_0 = arith.constant 0 : i32
    %c0_i32_1 = arith.constant 0 : i32
    return %c0_i32, %c0_i32_0 : i32, i32
  }
  func.func @transform_3(%arg0: i32) -> (i32, i32) {
    %c0_i32 = arith.constant 0 : i32
    %c0_i32_0 = arith.constant 0 : i32
    return %arg0, %c0_i32 : i32, i32
  }
}

module attributes {stable_mosaic.version = 11 : i64} {
  func.func @_mm_bias_kernel(%arg0: i32, %arg1: memref<8x1152xf32, #tpu.memory_space<vmem>>, %arg2: memref<1152x128xbf16, #tpu.memory_space<vmem>>, %arg3: memref<1x128xf32, #tpu.memory_space<vmem>>, %arg4: memref<8x128xf32, #tpu.memory_space<vmem>>) attributes {dimension_semantics = [#tpu.dimension_semantics<parallel>], iteration_bounds = array<i64: 1>, scalar_prefetch = 0 : i64, scratch_operands = 0 : i64, tpu.core_type = #tpu.core_type<tc>, window_params = [{transform_indices = @transform_0, window_bounds = array<i64: 8, 1152>}, {pipeline_mode = #tpu.pipeline_mode<synchronous>, transform_indices = @transform_1, window_bounds = array<i64: 1152, 128>}, {pipeline_mode = #tpu.pipeline_mode<synchronous>, transform_indices = @transform_2, window_bounds = array<i64: 1, 128>}, {transform_indices = @transform_3, window_bounds = array<i64: 8, 128>}]} {
    %c0 = arith.constant 0 : index
    %c0_0 = arith.constant 0 : index
    %0 = vector.load %arg1[%c0, %c0_0] : memref<8x1152xf32, #tpu.memory_space<vmem>>, vector<8x1152xf32>
    %1 = arith.truncf %0 : vector<8x1152xf32> to vector<8x1152xbf16>
    %c0_1 = arith.constant 0 : index
    %c0_2 = arith.constant 0 : index
    %2 = vector.load %arg2[%c0_1, %c0_2] : memref<1152x128xbf16, #tpu.memory_space<vmem>>, vector<1152x128xbf16>
    %cst = arith.constant dense<0.000000e+00> : vector<8x128xf32>
    %3 = tpu.matmul %1, %2, %cst {dimension_numbers = #tpu.dot_dimension_numbers<[1], [0], [0], [1], [0, 0, 1, 1], [], []>} : vector<8x1152xbf16>, vector<1152x128xbf16>, vector<8x128xf32> -> vector<8x128xf32>
    %c0_3 = arith.constant 0 : index
    %c0_4 = arith.constant 0 : index
    %4 = vector.load %arg3[%c0_3, %c0_4] : memref<1x128xf32, #tpu.memory_space<vmem>>, vector<1x128xf32>
    %5 = vector.broadcast %4 : vector<1x128xf32> to vector<8x128xf32>
    %6 = arith.addf %3, %5 : vector<8x128xf32>
    %c0_5 = arith.constant 0 : index
    %c0_6 = arith.constant 0 : index
    %7 = vector.load %arg4[%c0_5, %c0_6] : memref<8x128xf32, #tpu.memory_space<vmem>>, vector<8x128xf32>
    tpu.vector_store %arg4[%c0_5, %c0_6], %6 {strides = array<i32>} : memref<8x128xf32, #tpu.memory_space<vmem>>, vector<8x128xf32>,
    return
  }
  func.func @transform_0(%arg0: i32) -> (i32, i32) {
    %c0_i32 = arith.constant 0 : i32
    %c0_i32_0 = arith.constant 0 : i32
    return %arg0, %c0_i32 : i32, i32
  }
  func.func @transform_1(%arg0: i32) -> (i32, i32) {
    %c0_i32 = arith.constant 0 : i32
    %c0_i32_0 = arith.constant 0 : i32
    %c0_i32_1 = arith.constant 0 : i32
    return %c0_i32, %c0_i32_0 : i32, i32
  }
  func.func @transform_2(%arg0: i32) -> (i32, i32) {
    %c0_i32 = arith.constant 0 : i32
    %c0_i32_0 = arith.constant 0 : i32
    %c0_i32_1 = arith.constant 0 : i32
    return %c0_i32, %c0_i32_0 : i32, i32
  }
  func.func @transform_3(%arg0: i32) -> (i32, i32) {
    %c0_i32 = arith.constant 0 : i32
    %c0_i32_0 = arith.constant 0 : i32
    return %arg0, %c0_i32 : i32, i32
  }
}

</mosaic_0001>

<llo_original>
// kernel: _lambda_.9
$region0: #{_lambda_.9}
  #allocation0 [shape = 'u32[]', space=smem, size = 0x4, offset = 0x4, fixed_abs, tag = 'smem constant byte address 0x4 - core index']
  #allocation1 [shape = 'u32[144,128]{1,0:T(1,128)}', space=vmem, size = 0x12000, scoped, tag = 'internal scratch']
  %s0 = inlined_call_operand.hbm [shape: f32[32,64], index: 0, kind: input, shape index: {}]
  %s1 = inlined_call_operand.hbm [shape: bf16[64,128], index: 1, kind: input, shape index: {}]
  %s2 = inlined_call_operand.hbm [shape: f32[1,128], index: 2, kind: input, shape index: {}]
  %s3 = inlined_call_operand.hbm [shape: f32[32,128], index: 3, kind: input, shape index: {}]
  %s4 = inlined_call_operand.hbm [shape: f32[32,128], index: 4, kind: output, shape index: {}]
  %s5 = sld [smem:[#allocation0]]
  $region42: #{_lambda_.9} parent=0
    _
  %s7 = ssub.s32 1, %s5
  %s8 = scalar_select 0, %s7, %s5
  $region1: #{_lambda_.9} parent=0
    #allocation2 [shape = 'u8[16384]{0}', space=vmem, size = 0x4000, scoped, tag = 'input window, operand 0, single buffered']
    #allocation3 [shape = 's32[1]{0}', space=sflag, size = 0x4, scoped, tag = 'scoped memory for _lambda_.9']
    #allocation4 [shape = 's32[1]{0}', space=sflag, size = 0x4, scoped, tag = 'scoped memory for _lambda_.9']
    #allocation5 [shape = 'u8[16384]{0}', space=vmem, size = 0x4000, scoped, tag = 'input window, operand 1, single buffered']
    #allocation6 [shape = 's32[1]{0}', space=sflag, size = 0x4, scoped, tag = 'scoped memory for _lambda_.9']
    #allocation7 [shape = 'u8[512]{0}', space=vmem, size = 0x400, scoped, tag = 'input window, operand 2, single buffered']
    #allocation8 [shape = 'u8[16384]{0}', space=vmem, size = 0x4000, scoped, tag = 'input window, operand 3, single buffered']
    #allocation9 [shape = 's32[1]{0}', space=sflag, size = 0x4, scoped, tag = 'scoped memory for _lambda_.9']
    #allocation10 [shape = 'u8[16384]{0}', space=vmem, size = 0x4000, scoped, tag = 'output window, operand 0, single buffered']
    %9 = vsyncpa [#allocation3], 0
    %10 = vsyncpa [#allocation6], 0
    %11 = vsyncpa [#allocation9], 0
    %12 = vsyncpa [#allocation4], 0
    // Predicated region
    $region2: #{_lambda_.9} parent=1 // pred_check
      _
    $region3: #{_lambda_.9} parent=1 // pred_check_branch
      %14 = sbr.rel (0) target = $region5
    $region4: #{_lambda_.9} parent=1 // pred_region
      %s16 = ssub.s32 512, 512
      %17 = vsyncadd [#allocation3], %s16
      %s18 = sshll.u32 [#allocation2], 4
      %s19 = int_to_ptr.vmem [resolvable:$true] %s18
      %24 = dma.hbm_to_vmem [thread:$0]  %s0, 512, %s19, [#allocation3], 128, 128, 8
    $region5: #{_lambda_.9} parent=1 // pred_fallthru
      _
    // Predicated region
    $region6: #{_lambda_.9} parent=1 // pred_check
      _
    $region7: #{_lambda_.9} parent=1 // pred_check_branch
      %26 = sbr.rel (0) target = $region9
    $region8: #{_lambda_.9} parent=1 // pred_region
      %s28 = ssub.s32 512, 512
      %29 = vsyncadd [#allocation6], %s28
      %s30 = sshll.u32 [#allocation5], 4
      %s31 = int_to_ptr.vmem [resolvable:$true] %s30
      %36 = dma.hbm_to_vmem [thread:$0]  %s1, 512, %s31, [#allocation6], 64, 64, 4
    $region9: #{_lambda_.9} parent=1 // pred_fallthru
      _
    // Predicated region
    $region10: #{_lambda_.9} parent=1 // pred_check
      _
    $region11: #{_lambda_.9} parent=1 // pred_check_branch
      %38 = sbr.rel (0) target = $region13
    $region12: #{_lambda_.9} parent=1 // pred_region
      %s40 = ssub.s32 16, 16
      %41 = vsyncadd [#allocation6], %s40
      %s43 = sshll.u32 [#allocation7], 4
      %s44 = int_to_ptr.vmem [resolvable:$true] %s43
      %46 = dma.hbm_to_vmem [thread:$0]  %s2, 16, %s44, [#allocation6]
    $region13: #{_lambda_.9} parent=1 // pred_fallthru
      _
    // Predicated region
    $region14: #{_lambda_.9} parent=1 // pred_check
      _
    $region15: #{_lambda_.9} parent=1 // pred_check_branch
      %48 = sbr.rel (0) target = $region17
    $region16: #{_lambda_.9} parent=1 // pred_region
      %s50 = ssub.s32 512, 512
      %51 = vsyncadd [#allocation9], %s50
      %s52 = sshll.u32 [#allocation8], 4
      %s53 = int_to_ptr.vmem [resolvable:$true] %s52
      %58 = dma.hbm_to_vmem [thread:$0]  %s3, 512, %s53, [#allocation9], 128, 128, 8
    $region17: #{_lambda_.9} parent=1 // pred_fallthru
      _
    // Predicated region
    $region18: #{_lambda_.9} parent=1 // pred_check
      _
    $region19: #{_lambda_.9} parent=1 // pred_check_branch
      %60 = sbr.rel (0) target = $region21
    $region20: #{_lambda_.9} parent=1 // pred_region
      %61 = dma.done [#allocation3], 512
    $region21: #{_lambda_.9} parent=1 // pred_fallthru
      _
    // Predicated region
    $region22: #{_lambda_.9} parent=1 // pred_check
      _
    $region23: #{_lambda_.9} parent=1 // pred_check_branch
      %63 = sbr.rel (0) target = $region25
    $region24: #{_lambda_.9} parent=1 // pred_region
      %64 = dma.done [#allocation6], 512
    $region25: #{_lambda_.9} parent=1 // pred_fallthru
      _
    // Predicated region
    $region26: #{_lambda_.9} parent=1 // pred_check
      _
    $region27: #{_lambda_.9} parent=1 // pred_check_branch
      %66 = sbr.rel (0) target = $region29
    $region28: #{_lambda_.9} parent=1 // pred_region
      %67 = dma.done [#allocation6], 16
    $region29: #{_lambda_.9} parent=1 // pred_fallthru
      _
    // Predicated region
    $region30: #{_lambda_.9} parent=1 // pred_check
      _
    $region31: #{_lambda_.9} parent=1 // pred_check_branch
      %69 = sbr.rel (0) target = $region33
    $region32: #{_lambda_.9} parent=1 // pred_region
      %70 = dma.done [#allocation9], 512
    $region33: #{_lambda_.9} parent=1 // pred_fallthru
      _
    %v72 = vld [vmem:[#allocation2] sm:$0xff]
    %v73 = vld [vmem:[#allocation2 + $0x8] sm:$0xff]
    %v74 = vld [vmem:[#allocation2 + $0x10] sm:$0xff]
    %v75 = vld [vmem:[#allocation2 + $0x18] sm:$0xff]
    %v76 = vpack.c.bf16 %v73, %v72
    %v77 = vpack.c.bf16 %v75, %v74
    %v78 = vld [vmem:[#allocation5] sm:$0xf]
    %v79 = vld [vmem:[#allocation5 + $0x4] sm:$0xf]
    %v80 = vld [vmem:[#allocation5 + $0x8] sm:$0xf]
    %v81 = vld [vmem:[#allocation5 + $0xc] sm:$0xf]
    %v82 = vld [vmem:[#allocation5 + $0x10] sm:$0xf]
    %v83 = vld [vmem:[#allocation5 + $0x14] sm:$0xf]
    %v84 = vld [vmem:[#allocation5 + $0x18] sm:$0xf]
    %v85 = vld [vmem:[#allocation5 + $0x1c] sm:$0xf]
    %v86 = vld [vmem:[#allocation7] sm:$0x1]
    %v88 = vlaneseq
    %v89 = vshrl.u32 %v88, 7
    %v90 = vsub.s32 0, %v89
    %v91 = vrot.slane %v86, %v90
    %v101 = vunpack.c.l.b16 %v78
    %v102 = vunpack.c.l.b16 %v79
    %v103 = vunpack.c.l.b16 %v80
    %v104 = vunpack.c.l.b16 %v81
    %v105 = vunpack.c.l.b16 %v82
    %v106 = vunpack.c.l.b16 %v83
    %v107 = vunpack.c.l.b16 %v84
    %v108 = vunpack.c.l.b16 %v85
    %v109 = vpack.c.b16 %v102, %v101
    %v110 = vpack.c.b16 %v104, %v103
    %v111 = vpack.c.b16 %v106, %v105
    %v112 = vpack.c.b16 %v108, %v107
    %vm117 = vcmask 523264
    %v119 = vsel %vm117, %v76, 0
    %v122 = vsel %vm117, %v77, 0
    %124 = vmatprep.subr.bf16.mxu0 0
    %125 = vmatpush1.bf16.msra.mxu0 %v109
    %126 = vmatprep.subr.bf16.mxu0 0
    %127 = vmatpush1.bf16.msra.mxu0 %v110
    %128 = vmatprep.subr.bf16.mxu0 0
    %129 = vmatpush1.bf16.msra.mxu0 %v111
    %130 = vmatprep.subr.bf16.mxu0 0
    %131 = vmatpush1.bf16.msra.mxu0 %v112
    %132 = vmatprep.subr.bf16.mxu0 0
    %133 = vmatpush1.bf16.msra.mxu0 0
    %134 = vmatprep.subr.bf16.mxu0 0
    %135 = vmatpush1.bf16.msra.mxu0 0
    %136 = vmatprep.subr.bf16.mxu0 0
    %137 = vmatpush1.bf16.msra.mxu0 0
    %138 = vmatprep.subr.bf16.mxu0 0
    %139 = vmatpush1.bf16.msra.mxu0 0
    %140 = vmatprep.subr.bf16.mxu0 0
    %141 = vmatpush1.bf16.msra.mxu0 0
    %142 = vmatprep.subr.bf16.mxu0 0
    %143 = vmatpush1.bf16.msra.mxu0 0
    %144 = vmatprep.subr.bf16.mxu0 0
    %145 = vmatpush1.bf16.msra.mxu0 0
    %146 = vmatprep.subr.bf16.mxu0 0
    %147 = vmatpush1.bf16.msra.mxu0 0
    %148 = vmatprep.subr.bf16.mxu0 0
    %149 = vmatpush1.bf16.msra.mxu0 0
    %150 = vmatprep.subr.bf16.mxu0 0
    %151 = vmatpush1.bf16.msra.mxu0 0
    %152 = vmatprep.subr.bf16.mxu0 0
    %153 = vmatpush1.bf16.msra.mxu0 0
    %154 = vmatprep.subr.bf16.mxu0 0
    %155 = vmatpush1.bf16.msra.mxu0 0
    %156 = vmatprep.mubr.bf16.mxu0 0
    %157 = vmatmul.mubr.bf16.gmra.mrb[0].mxu0 %v119
    %v158 = vpop.f32.mrb[0].mxu0
    %v159 = vadd.f32 %v91, %v158
    %v160 = vpop.f32.mrb[0].mxu0
    %v161 = vpop.f32.mrb[0].mxu0
    %v162 = vadd.f32 %v91, %v161
    %v163 = vpop.f32.mrb[0].mxu0
    %164 = vmatprep.mubr.bf16.mxu0 0
    %165 = vmatmul.mubr.bf16.gmra.mrb[0].mxu0 %v122
    %v166 = vpop.f32.mrb[0].mxu0
    %v167 = vadd.f32 %v91, %v166
    %v168 = vpop.f32.mrb[0].mxu0
    %v169 = vpop.f32.mrb[0].mxu0
    %v170 = vadd.f32 %v91, %v169
    %v171 = vpop.f32.mrb[0].mxu0
    %172 = vdwg.mxu0
    %v173 = vld [vmem:[#allocation8] sm:$0xff]
    %v174 = vld [vmem:[#allocation8 + $0x8] sm:$0xff]
    %v175 = vld [vmem:[#allocation8 + $0x10] sm:$0xff]
    %v176 = vld [vmem:[#allocation8 + $0x18] sm:$0xff]
    %v177 = vadd.f32 %v159, %v173
    %v178 = vadd.f32 %v162, %v174
    %v179 = vadd.f32 %v167, %v175
    %v180 = vadd.f32 %v170, %v176
    %181 = vst [vmem:[#allocation10] sm:$0xff] %v177
    %182 = vst [vmem:[#allocation10 + $0x8] sm:$0xff] %v178
    %183 = vst [vmem:[#allocation10 + $0x10] sm:$0xff] %v179
    %184 = vst [vmem:[#allocation10 + $0x18] sm:$0xff] %v180
    // Predicated region
    $region34: #{_lambda_.9} parent=1 // pred_check
      _
    $region35: #{_lambda_.9} parent=1 // pred_check_branch
      %186 = sbr.rel (0) target = $region37
    $region36: #{_lambda_.9} parent=1 // pred_region
      %s188 = ssub.s32 512, 512
      %189 = vsyncadd [#allocation4], %s188
      %s190 = sshll.u32 [#allocation10], 4
      %s191 = int_to_ptr.vmem [resolvable:$true] %s190
      %196 = dma.vmem_to_hbm [thread:$0]  %s191, 512, %s4, [#allocation4], 128, 128, 8
    $region37: #{_lambda_.9} parent=1 // pred_fallthru
      _
    // Predicated region
    $region38: #{_lambda_.9} parent=1 // pred_check
      _
    $region39: #{_lambda_.9} parent=1 // pred_check_branch
      %198 = sbr.rel (0) target = $region41
    $region40: #{_lambda_.9} parent=1 // pred_region
      %199 = dma.done [#allocation4], 512
    $region41: #{_lambda_.9} parent=1 // pred_fallthru
      _
    %200 = vsyncpa [#allocation3], 1
    %201 = vsyncpa [#allocation6], 1
    %202 = vsyncpa [#allocation9], 1
    %203 = vsyncpa [#allocation4], 1

// kernel: _lambda_.8
$region0: #{_lambda_.8}
  #allocation0 [shape = 'u32[]', space=smem, size = 0x4, offset = 0x4, fixed_abs, tag = 'smem constant byte address 0x4 - core index']
  #allocation1 [shape = 'u32[144,128]{1,0:T(1,128)}', space=vmem, size = 0x12000, scoped, tag = 'internal scratch']
  %s0 = inlined_call_operand.hbm [shape: f32[8,128], index: 0, kind: input, shape index: {}]
  %s1 = inlined_call_operand.hbm [shape: bf16[128,128], index: 1, kind: input, shape index: {}]
  %s2 = inlined_call_operand.hbm [shape: f32[1,128], index: 2, kind: input, shape index: {}]
  %s3 = inlined_call_operand.hbm [shape: f32[8,128], index: 3, kind: output, shape index: {}]
  %s4 = sld [smem:[#allocation0]]
  $region34: #{_lambda_.8} parent=0
    _
  %s6 = ssub.s32 1, %s4
  %s7 = scalar_select 0, %s6, %s4
  $region1: #{_lambda_.8} parent=0
    #allocation2 [shape = 'u8[4096]{0}', space=vmem, size = 0x1000, scoped, tag = 'input window, operand 0, single buffered']
    #allocation3 [shape = 's32[1]{0}', space=sflag, size = 0x4, scoped, tag = 'scoped memory for _lambda_.8']
    #allocation4 [shape = 's32[1]{0}', space=sflag, size = 0x4, scoped, tag = 'scoped memory for _lambda_.8']
    #allocation5 [shape = 'u8[32768]{0}', space=vmem, size = 0x8000, scoped, tag = 'input window, operand 1, single buffered']
    #allocation6 [shape = 's32[1]{0}', space=sflag, size = 0x4, scoped, tag = 'scoped memory for _lambda_.8']
    #allocation7 [shape = 'u8[512]{0}', space=vmem, size = 0x400, scoped, tag = 'input window, operand 2, single buffered']
    #allocation8 [shape = 'u8[4096]{0}', space=vmem, size = 0x1000, scoped, tag = 'output window, operand 0, single buffered']
    %8 = vsyncpa [#allocation3], 0
    %9 = vsyncpa [#allocation6], 0
    %10 = vsyncpa [#allocation4], 0
    // Predicated region
    $region2: #{_lambda_.8} parent=1 // pred_check
      _
    $region3: #{_lambda_.8} parent=1 // pred_check_branch
      %12 = sbr.rel (0) target = $region5
    $region4: #{_lambda_.8} parent=1 // pred_region
      %s14 = ssub.s32 128, 128
      %15 = vsyncadd [#allocation3], %s14
      %s17 = sshll.u32 [#allocation2], 4
      %s18 = int_to_ptr.vmem [resolvable:$true] %s17
      %20 = dma.hbm_to_vmem [thread:$0]  %s0, 128, %s18, [#allocation3]
    $region5: #{_lambda_.8} parent=1 // pred_fallthru
      _
    // Predicated region
    $region6: #{_lambda_.8} parent=1 // pred_check
      _
    $region7: #{_lambda_.8} parent=1 // pred_check_branch
      %22 = sbr.rel (0) target = $region9
    $region8: #{_lambda_.8} parent=1 // pred_region
      %s24 = ssub.s32 1024, 1024
      %25 = vsyncadd [#allocation6], %s24
      %s26 = sshll.u32 [#allocation5], 4
      %s27 = int_to_ptr.vmem [resolvable:$true] %s26
      %32 = dma.hbm_to_vmem [thread:$0]  %s1, 1024, %s27, [#allocation6], 64, 64, 4
    $region9: #{_lambda_.8} parent=1 // pred_fallthru
      _
    // Predicated region
    $region10: #{_lambda_.8} parent=1 // pred_check
      _
    $region11: #{_lambda_.8} parent=1 // pred_check_branch
      %34 = sbr.rel (0) target = $region13
    $region12: #{_lambda_.8} parent=1 // pred_region
      %s36 = ssub.s32 16, 16
      %37 = vsyncadd [#allocation6], %s36
      %s39 = sshll.u32 [#allocation7], 4
      %s40 = int_to_ptr.vmem [resolvable:$true] %s39
      %42 = dma.hbm_to_vmem [thread:$0]  %s2, 16, %s40, [#allocation6]
    $region13: #{_lambda_.8} parent=1 // pred_fallthru
      _
    // Predicated region
    $region14: #{_lambda_.8} parent=1 // pred_check
      _
    $region15: #{_lambda_.8} parent=1 // pred_check_branch
      %44 = sbr.rel (0) target = $region17
    $region16: #{_lambda_.8} parent=1 // pred_region
      %45 = dma.done [#allocation3], 128
    $region17: #{_lambda_.8} parent=1 // pred_fallthru
      _
    // Predicated region
    $region18: #{_lambda_.8} parent=1 // pred_check
      _
    $region19: #{_lambda_.8} parent=1 // pred_check_branch
      %47 = sbr.rel (0) target = $region21
    $region20: #{_lambda_.8} parent=1 // pred_region
      %48 = dma.done [#allocation6], 1024
    $region21: #{_lambda_.8} parent=1 // pred_fallthru
      _
    // Predicated region
    $region22: #{_lambda_.8} parent=1 // pred_check
      _
    $region23: #{_lambda_.8} parent=1 // pred_check_branch
      %50 = sbr.rel (0) target = $region25
    $region24: #{_lambda_.8} parent=1 // pred_region
      %51 = dma.done [#allocation6], 16
    $region25: #{_lambda_.8} parent=1 // pred_fallthru
      _
    %v53 = vld [vmem:[#allocation2] sm:$0xff]
    %v54 = vpack.c.bf16 %v53, %v53
    %v55 = vld [vmem:[#allocation5] sm:$0xf]
    %v56 = vld [vmem:[#allocation5 + $0x4] sm:$0xf]
    %v57 = vld [vmem:[#allocation5 + $0x8] sm:$0xf]
    %v58 = vld [vmem:[#allocation5 + $0xc] sm:$0xf]
    %v59 = vld [vmem:[#allocation5 + $0x10] sm:$0xf]
    %v60 = vld [vmem:[#allocation5 + $0x14] sm:$0xf]
    %v61 = vld [vmem:[#allocation5 + $0x18] sm:$0xf]
    %v62 = vld [vmem:[#allocation5 + $0x1c] sm:$0xf]
    %v63 = vld [vmem:[#allocation5 + $0x20] sm:$0xf]
    %v64 = vld [vmem:[#allocation5 + $0x24] sm:$0xf]
    %v65 = vld [vmem:[#allocation5 + $0x28] sm:$0xf]
    %v66 = vld [vmem:[#allocation5 + $0x2c] sm:$0xf]
    %v67 = vld [vmem:[#allocation5 + $0x30] sm:$0xf]
    %v68 = vld [vmem:[#allocation5 + $0x34] sm:$0xf]
    %v69 = vld [vmem:[#allocation5 + $0x38] sm:$0xf]
    %v70 = vld [vmem:[#allocation5 + $0x3c] sm:$0xf]
    %v71 = vld [vmem:[#allocation7] sm:$0x1]
    %v73 = vlaneseq
    %v74 = vshrl.u32 %v73, 7
    %v75 = vsub.s32 0, %v74
    %v76 = vrot.slane %v71, %v75
    %v94 = vunpack.c.l.b16 %v55
    %v95 = vunpack.c.l.b16 %v56
    %v96 = vunpack.c.l.b16 %v57
    %v97 = vunpack.c.l.b16 %v58
    %v98 = vunpack.c.l.b16 %v59
    %v99 = vunpack.c.l.b16 %v60
    %v100 = vunpack.c.l.b16 %v61
    %v101 = vunpack.c.l.b16 %v62
    %v102 = vunpack.c.l.b16 %v63
    %v103 = vunpack.c.l.b16 %v64
    %v104 = vunpack.c.l.b16 %v65
    %v105 = vunpack.c.l.b16 %v66
    %v106 = vunpack.c.l.b16 %v67
    %v107 = vunpack.c.l.b16 %v68
    %v108 = vunpack.c.l.b16 %v69
    %v109 = vunpack.c.l.b16 %v70
    %v110 = vpack.c.b16 %v95, %v94
    %v111 = vpack.c.b16 %v97, %v96
    %v112 = vpack.c.b16 %v99, %v98
    %v113 = vpack.c.b16 %v101, %v100
    %v114 = vpack.c.b16 %v103, %v102
    %v115 = vpack.c.b16 %v105, %v104
    %v116 = vpack.c.b16 %v107, %v106
    %v117 = vpack.c.b16 %v109, %v108
    %126 = vmatprep.subr.bf16.mxu0 0
    %127 = vmatpush1.bf16.msra.mxu0 %v110
    %128 = vmatprep.subr.bf16.mxu0 0
    %129 = vmatpush1.bf16.msra.mxu0 %v111
    %130 = vmatprep.subr.bf16.mxu0 0
    %131 = vmatpush1.bf16.msra.mxu0 %v112
    %132 = vmatprep.subr.bf16.mxu0 0
    %133 = vmatpush1.bf16.msra.mxu0 %v113
    %134 = vmatprep.subr.bf16.mxu0 0
    %135 = vmatpush1.bf16.msra.mxu0 %v114
    %136 = vmatprep.subr.bf16.mxu0 0
    %137 = vmatpush1.bf16.msra.mxu0 %v115
    %138 = vmatprep.subr.bf16.mxu0 0
    %139 = vmatpush1.bf16.msra.mxu0 %v116
    %140 = vmatprep.subr.bf16.mxu0 0
    %141 = vmatpush1.bf16.msra.mxu0 %v117
    %142 = vmatprep.subr.bf16.mxu0 0
    %143 = vmatpush1.bf16.msra.mxu0 0
    %144 = vmatprep.subr.bf16.mxu0 0
    %145 = vmatpush1.bf16.msra.mxu0 0
    %146 = vmatprep.subr.bf16.mxu0 0
    %147 = vmatpush1.bf16.msra.mxu0 0
    %148 = vmatprep.subr.bf16.mxu0 0
    %149 = vmatpush1.bf16.msra.mxu0 0
    %150 = vmatprep.subr.bf16.mxu0 0
    %151 = vmatpush1.bf16.msra.mxu0 0
    %152 = vmatprep.subr.bf16.mxu0 0
    %153 = vmatpush1.bf16.msra.mxu0 0
    %154 = vmatprep.subr.bf16.mxu0 0
    %155 = vmatpush1.bf16.msra.mxu0 0
    %156 = vmatprep.subr.bf16.mxu0 0
    %157 = vmatpush1.bf16.msra.mxu0 0
    %158 = vmatprep.mubr.bf16.mxu0 0
    %159 = vmatmul.mubr.bf16.gmra.mrb[0].mxu0 %v54
    %v160 = vpop.f32.mrb[0].mxu0
    %v161 = vadd.f32 %v76, %v160
    %v162 = vpop.f32.mrb[0].mxu0
    %v163 = vpop.f32.mrb[0].mxu0
    %v164 = vpop.f32.mrb[0].mxu0
    %165 = vdwg.mxu0
    %166 = vst [vmem:[#allocation8] sm:$0xff] %v161
    // Predicated region
    $region26: #{_lambda_.8} parent=1 // pred_check
      _
    $region27: #{_lambda_.8} parent=1 // pred_check_branch
      %168 = sbr.rel (0) target = $region29
    $region28: #{_lambda_.8} parent=1 // pred_region
      %s170 = ssub.s32 128, 128
      %171 = vsyncadd [#allocation4], %s170
      %s173 = sshll.u32 [#allocation8], 4
      %s174 = int_to_ptr.vmem [resolvable:$true] %s173
      %176 = dma.vmem_to_hbm [thread:$0]  %s174, 128, %s3, [#allocation4]
    $region29: #{_lambda_.8} parent=1 // pred_fallthru
      _
    // Predicated region
    $region30: #{_lambda_.8} parent=1 // pred_check
      _
    $region31: #{_lambda_.8} parent=1 // pred_check_branch
      %178 = sbr.rel (0) target = $region33
    $region32: #{_lambda_.8} parent=1 // pred_region
      %179 = dma.done [#allocation4], 128
    $region33: #{_lambda_.8} parent=1 // pred_fallthru
      _
    %180 = vsyncpa [#allocation3], 1
    %181 = vsyncpa [#allocation6], 1
    %182 = vsyncpa [#allocation4], 1

// kernel: _lambda_.10
$region0: #{_lambda_.10}
  #allocation0 [shape = 'u32[]', space=smem, size = 0x4, offset = 0x4, fixed_abs, tag = 'smem constant byte address 0x4 - core index']
  #allocation1 [shape = 'u32[144,128]{1,0:T(1,128)}', space=vmem, size = 0x12000, scoped, tag = 'internal scratch']
  %s0 = inlined_call_operand.hbm [shape: f32[128,32], index: 0, kind: input, shape index: {}]
  %s1 = inlined_call_operand.hbm [shape: bf16[32,128], index: 1, kind: input, shape index: {}]
  %s2 = inlined_call_operand.hbm [shape: f32[1,128], index: 2, kind: input, shape index: {}]
  %s3 = inlined_call_operand.hbm [shape: f32[128,128], index: 3, kind: input, shape index: {}]
  %s4 = inlined_call_operand.hbm [shape: f32[128,128], index: 4, kind: output, shape index: {}]
  %s5 = sld [smem:[#allocation0]]
  $region42: #{_lambda_.10} parent=0
    _
  %s7 = ssub.s32 1, %s5
  %s8 = scalar_select 0, %s7, %s5
  $region1: #{_lambda_.10} parent=0
    #allocation2 [shape = 'u8[65536]{0}', space=vmem, size = 0x10000, scoped, tag = 'input window, operand 0, single buffered']
    #allocation3 [shape = 's32[1]{0}', space=sflag, size = 0x4, scoped, tag = 'scoped memory for _lambda_.10']
    #allocation4 [shape = 's32[1]{0}', space=sflag, size = 0x4, scoped, tag = 'scoped memory for _lambda_.10']
    #allocation5 [shape = 'u8[8192]{0}', space=vmem, size = 0x2000, scoped, tag = 'input window, operand 1, single buffered']
    #allocation6 [shape = 's32[1]{0}', space=sflag, size = 0x4, scoped, tag = 'scoped memory for _lambda_.10']
    #allocation7 [shape = 'u8[512]{0}', space=vmem, size = 0x400, scoped, tag = 'input window, operand 2, single buffered']
    #allocation8 [shape = 'u8[65536]{0}', space=vmem, size = 0x10000, scoped, tag = 'input window, operand 3, single buffered']
    #allocation9 [shape = 's32[1]{0}', space=sflag, size = 0x4, scoped, tag = 'scoped memory for _lambda_.10']
    #allocation10 [shape = 'u8[65536]{0}', space=vmem, size = 0x10000, scoped, tag = 'output window, operand 0, single buffered']
    %9 = vsyncpa [#allocation3], 0
    %10 = vsyncpa [#allocation6], 0
    %11 = vsyncpa [#allocation9], 0
    %12 = vsyncpa [#allocation4], 0
    // Predicated region
    $region2: #{_lambda_.10} parent=1 // pred_check
      _
    $region3: #{_lambda_.10} parent=1 // pred_check_branch
      %14 = sbr.rel (0) target = $region5
    $region4: #{_lambda_.10} parent=1 // pred_region
      %s16 = ssub.s32 2048, 2048
      %17 = vsyncadd [#allocation3], %s16
      %s18 = sshll.u32 [#allocation2], 4
      %s19 = int_to_ptr.vmem [resolvable:$true] %s18
      %24 = dma.hbm_to_vmem [thread:$0]  %s0, 2048, %s19, [#allocation3], 128, 128, 8
    $region5: #{_lambda_.10} parent=1 // pred_fallthru
      _
    // Predicated region
    $region6: #{_lambda_.10} parent=1 // pred_check
      _
    $region7: #{_lambda_.10} parent=1 // pred_check_branch
      %26 = sbr.rel (0) target = $region9
    $region8: #{_lambda_.10} parent=1 // pred_region
      %s28 = ssub.s32 256, 256
      %29 = vsyncadd [#allocation6], %s28
      %s30 = sshll.u32 [#allocation5], 4
      %s31 = int_to_ptr.vmem [resolvable:$true] %s30
      %36 = dma.hbm_to_vmem [thread:$0]  %s1, 256, %s31, [#allocation6], 64, 64, 4
    $region9: #{_lambda_.10} parent=1 // pred_fallthru
      _
    // Predicated region
    $region10: #{_lambda_.10} parent=1 // pred_check
      _
    $region11: #{_lambda_.10} parent=1 // pred_check_branch
      %38 = sbr.rel (0) target = $region13
    $region12: #{_lambda_.10} parent=1 // pred_region
      %s40 = ssub.s32 16, 16
      %41 = vsyncadd [#allocation6], %s40
      %s43 = sshll.u32 [#allocation7], 4
      %s44 = int_to_ptr.vmem [resolvable:$true] %s43
      %46 = dma.hbm_to_vmem [thread:$0]  %s2, 16, %s44, [#allocation6]
    $region13: #{_lambda_.10} parent=1 // pred_fallthru
      _
    // Predicated region
    $region14: #{_lambda_.10} parent=1 // pred_check
      _
    $region15: #{_lambda_.10} parent=1 // pred_check_branch
      %48 = sbr.rel (0) target = $region17
    $region16: #{_lambda_.10} parent=1 // pred_region
      %s50 = ssub.s32 2048, 2048
      %51 = vsyncadd [#allocation9], %s50
      %s52 = sshll.u32 [#allocation8], 4
      %s53 = int_to_ptr.vmem [resolvable:$true] %s52
      %58 = dma.hbm_to_vmem [thread:$0]  %s3, 2048, %s53, [#allocation9], 128, 128, 8
    $region17: #{_lambda_.10} parent=1 // pred_fallthru
      _
    // Predicated region
    $region18: #{_lambda_.10} parent=1 // pred_check
      _
    $region19: #{_lambda_.10} parent=1 // pred_check_branch
      %60 = sbr.rel (0) target = $region21
    $region20: #{_lambda_.10} parent=1 // pred_region
      %61 = dma.done [#allocation3], 2048
    $region21: #{_lambda_.10} parent=1 // pred_fallthru
      _
    // Predicated region
    $region22: #{_lambda_.10} parent=1 // pred_check
      _
    $region23: #{_lambda_.10} parent=1 // pred_check_branch
      %63 = sbr.rel (0) target = $region25
    $region24: #{_lambda_.10} parent=1 // pred_region
      %64 = dma.done [#allocation6], 256
    $region25: #{_lambda_.10} parent=1 // pred_fallthru
      _
    // Predicated region
    $region26: #{_lambda_.10} parent=1 // pred_check
      _
    $region27: #{_lambda_.10} parent=1 // pred_check_branch
      %66 = sbr.rel (0) target = $region29
    $region28: #{_lambda_.10} parent=1 // pred_region
      %67 = dma.done [#allocation6], 16
    $region29: #{_lambda_.10} parent=1 // pred_fallthru
      _
    // Predicated region
    $region30: #{_lambda_.10} parent=1 // pred_check
      _
    $region31: #{_lambda_.10} parent=1 // pred_check_branch
      %69 = sbr.rel (0) target = $region33
    $region32: #{_lambda_.10} parent=1 // pred_region
      %70 = dma.done [#allocation9], 2048
    $region33: #{_lambda_.10} parent=1 // pred_fallthru
      _
    %v72 = vld [vmem:[#allocation2] sm:$0xff]
    %v73 = vld [vmem:[#allocation2 + $0x8] sm:$0xff]
    %v74 = vld [vmem:[#allocation2 + $0x10] sm:$0xff]
    %v75 = vld [vmem:[#allocation2 + $0x18] sm:$0xff]
    %v76 = vld [vmem:[#allocation2 + $0x20] sm:$0xff]
    %v77 = vld [vmem:[#allocation2 + $0x28] sm:$0xff]
    %v78 = vld [vmem:[#allocation2 + $0x30] sm:$0xff]
    %v79 = vld [vmem:[#allocation2 + $0x38] sm:$0xff]
    %v80 = vld [vmem:[#allocation2 + $0x40] sm:$0xff]
    %v81 = vld [vmem:[#allocation2 + $0x48] sm:$0xff]
    %v82 = vld [vmem:[#allocation2 + $0x50] sm:$0xff]
    %v83 = vld [vmem:[#allocation2 + $0x58] sm:$0xff]
    %v84 = vld [vmem:[#allocation2 + $0x60] sm:$0xff]
    %v85 = vld [vmem:[#allocation2 + $0x68] sm:$0xff]
    %v86 = vld [vmem:[#allocation2 + $0x70] sm:$0xff]
    %v87 = vld [vmem:[#allocation2 + $0x78] sm:$0xff]
    %v88 = vpack.c.bf16 %v73, %v72
    %v89 = vpack.c.bf16 %v75, %v74
    %v90 = vpack.c.bf16 %v77, %v76
    %v91 = vpack.c.bf16 %v79, %v78
    %v92 = vpack.c.bf16 %v81, %v80
    %v93 = vpack.c.bf16 %v83, %v82
    %v94 = vpack.c.bf16 %v85, %v84
    %v95 = vpack.c.bf16 %v87, %v86
    %v96 = vld [vmem:[#allocation5] sm:$0xf]
    %v97 = vld [vmem:[#allocation5 + $0x4] sm:$0xf]
    %v98 = vld [vmem:[#allocation5 + $0x8] sm:$0xf]
    %v99 = vld [vmem:[#allocation5 + $0xc] sm:$0xf]
    %v100 = vld [vmem:[#allocation7] sm:$0x1]
    %v102 = vlaneseq
    %v103 = vshrl.u32 %v102, 7
    %v104 = vsub.s32 0, %v103
    %v105 = vrot.slane %v100, %v104
    %v111 = vunpack.c.l.b16 %v96
    %v112 = vunpack.c.l.b16 %v97
    %v113 = vunpack.c.l.b16 %v98
    %v114 = vunpack.c.l.b16 %v99
    %v115 = vpack.c.b16 %v112, %v111
    %v116 = vpack.c.b16 %v114, %v113
    %vm119 = vcmask 261120
    %v121 = vsel %vm119, %v88, 0
    %v124 = vsel %vm119, %v89, 0
    %v127 = vsel %vm119, %v90, 0
    %v130 = vsel %vm119, %v91, 0
    %v133 = vsel %vm119, %v92, 0
    %v136 = vsel %vm119, %v93, 0
    %v139 = vsel %vm119, %v94, 0
    %v142 = vsel %vm119, %v95, 0
    %144 = vmatprep.subr.bf16.mxu0 0
    %145 = vmatpush1.bf16.msra.mxu0 %v115
    %146 = vmatprep.subr.bf16.mxu0 0
    %147 = vmatpush1.bf16.msra.mxu0 %v116
    %148 = vmatprep.subr.bf16.mxu0 0
    %149 = vmatpush1.bf16.msra.mxu0 0
    %150 = vmatprep.subr.bf16.mxu0 0
    %151 = vmatpush1.bf16.msra.mxu0 0
    %152 = vmatprep.subr.bf16.mxu0 0
    %153 = vmatpush1.bf16.msra.mxu0 0
    %154 = vmatprep.subr.bf16.mxu0 0
    %155 = vmatpush1.bf16.msra.mxu0 0
    %156 = vmatprep.subr.bf16.mxu0 0
    %157 = vmatpush1.bf16.msra.mxu0 0
    %158 = vmatprep.subr.bf16.mxu0 0
    %159 = vmatpush1.bf16.msra.mxu0 0
    %160 = vmatprep.subr.bf16.mxu0 0
    %161 = vmatpush1.bf16.msra.mxu0 0
    %162 = vmatprep.subr.bf16.mxu0 0
    %163 = vmatpush1.bf16.msra.mxu0 0
    %164 = vmatprep.subr.bf16.mxu0 0
    %165 = vmatpush1.bf16.msra.mxu0 0
    %166 = vmatprep.subr.bf16.mxu0 0
    %167 = vmatpush1.bf16.msra.mxu0 0
    %168 = vmatprep.subr.bf16.mxu0 0
    %169 = vmatpush1.bf16.msra.mxu0 0
    %170 = vmatprep.subr.bf16.mxu0 0
    %171 = vmatpush1.bf16.msra.mxu0 0
    %172 = vmatprep.subr.bf16.mxu0 0
    %173 = vmatpush1.bf16.msra.mxu0 0
    %174 = vmatprep.subr.bf16.mxu0 0
    %175 = vmatpush1.bf16.msra.mxu0 0
    %176 = vmatprep.mubr.bf16.mxu0 0
    %177 = vmatmul.mubr.bf16.gmra.mrb[0].mxu0 %v121
    %v178 = vpop.f32.mrb[0].mxu0
    %v179 = vadd.f32 %v105, %v178
    %v180 = vpop.f32.mrb[0].mxu0
    %v181 = vpop.f32.mrb[0].mxu0
    %v182 = vadd.f32 %v105, %v181
    %v183 = vpop.f32.mrb[0].mxu0
    %184 = vmatprep.mubr.bf16.mxu0 0
    %185 = vmatmul.mubr.bf16.gmra.mrb[0].mxu0 %v124
    %v186 = vpop.f32.mrb[0].mxu0
    %v187 = vadd.f32 %v105, %v186
    %v188 = vpop.f32.mrb[0].mxu0
    %v189 = vpop.f32.mrb[0].mxu0
    %v190 = vadd.f32 %v105, %v189
    %v191 = vpop.f32.mrb[0].mxu0
    %192 = vmatprep.mubr.bf16.mxu0 0
    %193 = vmatmul.mubr.bf16.gmra.mrb[0].mxu0 %v127
    %v194 = vpop.f32.mrb[0].mxu0
    %v195 = vadd.f32 %v105, %v194
    %v196 = vpop.f32.mrb[0].mxu0
    %v197 = vpop.f32.mrb[0].mxu0
    %v198 = vadd.f32 %v105, %v197
    %v199 = vpop.f32.mrb[0].mxu0
    %200 = vmatprep.mubr.bf16.mxu0 0
    %201 = vmatmul.mubr.bf16.gmra.mrb[0].mxu0 %v130
    %v202 = vpop.f32.mrb[0].mxu0
    %v203 = vadd.f32 %v105, %v202
    %v204 = vpop.f32.mrb[0].mxu0
    %v205 = vpop.f32.mrb[0].mxu0
    %v206 = vadd.f32 %v105, %v205
    %v207 = vpop.f32.mrb[0].mxu0
    %208 = vmatprep.mubr.bf16.mxu0 0
    %209 = vmatmul.mubr.bf16.gmra.mrb[0].mxu0 %v133
    %v210 = vpop.f32.mrb[0].mxu0
    %v211 = vadd.f32 %v105, %v210
    %v212 = vpop.f32.mrb[0].mxu0
    %v213 = vpop.f32.mrb[0].mxu0
    %v214 = vadd.f32 %v105, %v213
    %v215 = vpop.f32.mrb[0].mxu0
    %216 = vmatprep.mubr.bf16.mxu0 0
    %217 = vmatmul.mubr.bf16.gmra.mrb[0].mxu0 %v136
    %v218 = vpop.f32.mrb[0].mxu0
    %v219 = vadd.f32 %v105, %v218
    %v220 = vpop.f32.mrb[0].mxu0
    %v221 = vpop.f32.mrb[0].mxu0
    %v222 = vadd.f32 %v105, %v221
    %v223 = vpop.f32.mrb[0].mxu0
    %224 = vmatprep.mubr.bf16.mxu0 0
    %225 = vmatmul.mubr.bf16.gmra.mrb[0].mxu0 %v139
    %v226 = vpop.f32.mrb[0].mxu0
    %v227 = vadd.f32 %v105, %v226
    %v228 = vpop.f32.mrb[0].mxu0
    %v229 = vpop.f32.mrb[0].mxu0
    %v230 = vadd.f32 %v105, %v229
    %v231 = vpop.f32.mrb[0].mxu0
    %232 = vmatprep.mubr.bf16.mxu0 0
    %233 = vmatmul.mubr.bf16.gmra.mrb[0].mxu0 %v142
    %v234 = vpop.f32.mrb[0].mxu0
    %v235 = vadd.f32 %v105, %v234
    %v236 = vpop.f32.mrb[0].mxu0
    %v237 = vpop.f32.mrb[0].mxu0
    %v238 = vadd.f32 %v105, %v237
    %v239 = vpop.f32.mrb[0].mxu0
    %240 = vdwg.mxu0
    %v241 = vld [vmem:[#allocation8] sm:$0xff]
    %v242 = vld [vmem:[#allocation8 + $0x8] sm:$0xff]
    %v243 = vld [vmem:[#allocation8 + $0x10] sm:$0xff]
    %v244 = vld [vmem:[#allocation8 + $0x18] sm:$0xff]
    %v245 = vld [vmem:[#allocation8 + $0x20] sm:$0xff]
    %v246 = vld [vmem:[#allocation8 + $0x28] sm:$0xff]
    %v247 = vld [vmem:[#allocation8 + $0x30] sm:$0xff]
    %v248 = vld [vmem:[#allocation8 + $0x38] sm:$0xff]
    %v249 = vld [vmem:[#allocation8 + $0x40] sm:$0xff]
    %v250 = vld [vmem:[#allocation8 + $0x48] sm:$0xff]
    %v251 = vld [vmem:[#allocation8 + $0x50] sm:$0xff]
    %v252 = vld [vmem:[#allocation8 + $0x58] sm:$0xff]
    %v253 = vld [vmem:[#allocation8 + $0x60] sm:$0xff]
    %v254 = vld [vmem:[#allocation8 + $0x68] sm:$0xff]
    %v255 = vld [vmem:[#allocation8 + $0x70] sm:$0xff]
    %v256 = vld [vmem:[#allocation8 + $0x78] sm:$0xff]
    %v257 = vadd.f32 %v179, %v241
    %v258 = vadd.f32 %v182, %v242
    %v259 = vadd.f32 %v187, %v243
    %v260 = vadd.f32 %v190, %v244
    %v261 = vadd.f32 %v195, %v245
    %v262 = vadd.f32 %v198, %v246
    %v263 = vadd.f32 %v203, %v247
    %v264 = vadd.f32 %v206, %v248
    %v265 = vadd.f32 %v211, %v249
    %v266 = vadd.f32 %v214, %v250
    %v267 = vadd.f32 %v219, %v251
    %v268 = vadd.f32 %v222, %v252
    %v269 = vadd.f32 %v227, %v253
    %v270 = vadd.f32 %v230, %v254
    %v271 = vadd.f32 %v235, %v255
    %v272 = vadd.f32 %v238, %v256
    %273 = vst [vmem:[#allocation10] sm:$0xff] %v257
    %274 = vst [vmem:[#allocation10 + $0x8] sm:$0xff] %v258
    %275 = vst [vmem:[#allocation10 + $0x10] sm:$0xff] %v259
    %276 = vst [vmem:[#allocation10 + $0x18] sm:$0xff] %v260
    %277 = vst [vmem:[#allocation10 + $0x20] sm:$0xff] %v261
    %278 = vst [vmem:[#allocation10 + $0x28] sm:$0xff] %v262
    %279 = vst [vmem:[#allocation10 + $0x30] sm:$0xff] %v263
    %280 = vst [vmem:[#allocation10 + $0x38] sm:$0xff] %v264
    %281 = vst [vmem:[#allocation10 + $0x40] sm:$0xff] %v265
    %282 = vst [vmem:[#allocation10 + $0x48] sm:$0xff] %v266
    %283 = vst [vmem:[#allocation10 + $0x50] sm:$0xff] %v267
    %284 = vst [vmem:[#allocation10 + $0x58] sm:$0xff] %v268
    %285 = vst [vmem:[#allocation10 + $0x60] sm:$0xff] %v269
    %286 = vst [vmem:[#allocation10 + $0x68] sm:$0xff] %v270
    %287 = vst [vmem:[#allocation10 + $0x70] sm:$0xff] %v271
    %288 = vst [vmem:[#allocation10 + $0x78] sm:$0xff] %v272
    // Predicated region
    $region34: #{_lambda_.10} parent=1 // pred_check
      _
    $region35: #{_lambda_.10} parent=1 // pred_check_branch
      %290 = sbr.rel (0) target = $region37
    $region36: #{_lambda_.10} parent=1 // pred_region
      %s292 = ssub.s32 2048, 2048
      %293 = vsyncadd [#allocation4], %s292
      %s294 = sshll.u32 [#allocation10], 4
      %s295 = int_to_ptr.vmem [resolvable:$true] %s294
      %300 = dma.vmem_to_hbm [thread:$0]  %s295, 2048, %s4, [#allocation4], 128, 128, 8
    $region37: #{_lambda_.10} parent=1 // pred_fallthru
      _
    // Predicated region
    $region38: #{_lambda_.10} parent=1 // pred_check
      _
    $region39: #{_lambda_.10} parent=1 // pred_check_branch
      %302 = sbr.rel (0) target = $region41
    $region40: #{_lambda_.10} parent=1 // pred_region
      %303 = dma.done [#allocation4], 2048
    $region41: #{_lambda_.10} parent=1 // pred_fallthru
      _
    %304 = vsyncpa [#allocation3], 1
    %305 = vsyncpa [#allocation6], 1
    %306 = vsyncpa [#allocation9], 1
    %307 = vsyncpa [#allocation4], 1

// kernel: _lambda_.11
$region0: #{_lambda_.11}
  #allocation0 [shape = 'u32[]', space=smem, size = 0x4, offset = 0x4, fixed_abs, tag = 'smem constant byte address 0x4 - core index']
  #allocation1 [shape = 'u32[144,128]{1,0:T(1,128)}', space=vmem, size = 0x12000, scoped, tag = 'internal scratch']
  %s0 = inlined_call_operand.hbm [shape: f32[512,16], index: 0, kind: input, shape index: {}]
  %s1 = inlined_call_operand.hbm [shape: bf16[16,128], index: 1, kind: input, shape index: {}]
  %s2 = inlined_call_operand.hbm [shape: f32[1,128], index: 2, kind: input, shape index: {}]
  %s3 = inlined_call_operand.hbm [shape: f32[512,128], index: 3, kind: input, shape index: {}]
  %s4 = inlined_call_operand.hbm [shape: f32[512,128], index: 4, kind: output, shape index: {}]
  %s5 = sld [smem:[#allocation0]]
  $region42: #{_lambda_.11} parent=0
    _
  %s7 = ssub.s32 1, %s5
  %s8 = scalar_select 0, %s7, %s5
  $region1: #{_lambda_.11} parent=0
    #allocation2 [shape = 'u8[262144]{0}', space=vmem, size = 0x40000, scoped, tag = 'input window, operand 0, single buffered']
    #allocation3 [shape = 's32[1]{0}', space=sflag, size = 0x4, scoped, tag = 'scoped memory for _lambda_.11']
    #allocation4 [shape = 's32[1]{0}', space=sflag, size = 0x4, scoped, tag = 'scoped memory for _lambda_.11']
    #allocation5 [shape = 'u8[4096]{0}', space=vmem, size = 0x1000, scoped, tag = 'input window, operand 1, single buffered']
    #allocation6 [shape = 's32[1]{0}', space=sflag, size = 0x4, scoped, tag = 'scoped memory for _lambda_.11']
    #allocation7 [shape = 'u8[512]{0}', space=vmem, size = 0x400, scoped, tag = 'input window, operand 2, single buffered']
    #allocation8 [shape = 'u8[262144]{0}', space=vmem, size = 0x40000, scoped, tag = 'input window, operand 3, single buffered']
    #allocation9 [shape = 's32[1]{0}', space=sflag, size = 0x4, scoped, tag = 'scoped memory for _lambda_.11']
    #allocation10 [shape = 'u8[262144]{0}', space=vmem, size = 0x40000, scoped, tag = 'output window, operand 0, single buffered']
    %9 = vsyncpa [#allocation3], 0
    %10 = vsyncpa [#allocation6], 0
    %11 = vsyncpa [#allocation9], 0
    %12 = vsyncpa [#allocation4], 0
    // Predicated region
    $region2: #{_lambda_.11} parent=1 // pred_check
      _
    $region3: #{_lambda_.11} parent=1 // pred_check_branch
      %14 = sbr.rel (0) target = $region5
    $region4: #{_lambda_.11} parent=1 // pred_region
      %s16 = ssub.s32 8192, 8192
      %17 = vsyncadd [#allocation3], %s16
      %s18 = sshll.u32 [#allocation2], 4
      %s19 = int_to_ptr.vmem [resolvable:$true] %s18
      %24 = dma.hbm_to_vmem [thread:$0]  %s0, 8192, %s19, [#allocation3], 128, 128, 8
    $region5: #{_lambda_.11} parent=1 // pred_fallthru
      _
    // Predicated region
    $region6: #{_lambda_.11} parent=1 // pred_check
      _
    $region7: #{_lambda_.11} parent=1 // pred_check_branch
      %26 = sbr.rel (0) target = $region9
    $region8: #{_lambda_.11} parent=1 // pred_region
      %s28 = ssub.s32 128, 128
      %29 = vsyncadd [#allocation6], %s28
      %s30 = sshll.u32 [#allocation5], 4
      %s31 = int_to_ptr.vmem [resolvable:$true] %s30
      %36 = dma.hbm_to_vmem [thread:$0]  %s1, 128, %s31, [#allocation6], 64, 64, 4
    $region9: #{_lambda_.11} parent=1 // pred_fallthru
      _
    // Predicated region
    $region10: #{_lambda_.11} parent=1 // pred_check
      _
    $region11: #{_lambda_.11} parent=1 // pred_check_branch
      %38 = sbr.rel (0) target = $region13
    $region12: #{_lambda_.11} parent=1 // pred_region
      %s40 = ssub.s32 16, 16
      %41 = vsyncadd [#allocation6], %s40
      %s43 = sshll.u32 [#allocation7], 4
      %s44 = int_to_ptr.vmem [resolvable:$true] %s43
      %46 = dma.hbm_to_vmem [thread:$0]  %s2, 16, %s44, [#allocation6]
    $region13: #{_lambda_.11} parent=1 // pred_fallthru
      _
    // Predicated region
    $region14: #{_lambda_.11} parent=1 // pred_check
      _
    $region15: #{_lambda_.11} parent=1 // pred_check_branch
      %48 = sbr.rel (0) target = $region17
    $region16: #{_lambda_.11} parent=1 // pred_region
      %s50 = ssub.s32 8192, 8192
      %51 = vsyncadd [#allocation9], %s50
      %s52 = sshll.u32 [#allocation8], 4
      %s53 = int_to_ptr.vmem [resolvable:$true] %s52
      %58 = dma.hbm_to_vmem [thread:$0]  %s3, 8192, %s53, [#allocation9], 128, 128, 8
    $region17: #{_lambda_.11} parent=1 // pred_fallthru
      _
    // Predicated region
    $region18: #{_lambda_.11} parent=1 // pred_check
      _
    $region19: #{_lambda_.11} parent=1 // pred_check_branch
      %60 = sbr.rel (0) target = $region21
    $region20: #{_lambda_.11} parent=1 // pred_region
      %61 = dma.done [#allocation3], 8192
    $region21: #{_lambda_.11} parent=1 // pred_fallthru
      _
    // Predicated region
    $region22: #{_lambda_.11} parent=1 // pred_check
      _
    $region23: #{_lambda_.11} parent=1 // pred_check_branch
      %63 = sbr.rel (0) target = $region25
    $region24: #{_lambda_.11} parent=1 // pred_region
      %64 = dma.done [#allocation6], 128
    $region25: #{_lambda_.11} parent=1 // pred_fallthru
      _
    // Predicated region
    $region26: #{_lambda_.11} parent=1 // pred_check
      _
    $region27: #{_lambda_.11} parent=1 // pred_check_branch
      %66 = sbr.rel (0) target = $region29
    $region28: #{_lambda_.11} parent=1 // pred_region
      %67 = dma.done [#allocation6], 16
    $region29: #{_lambda_.11} parent=1 // pred_fallthru
      _
    // Predicated region
    $region30: #{_lambda_.11} parent=1 // pred_check
      _
    $region31: #{_lambda_.11} parent=1 // pred_check_branch
      %69 = sbr.rel (0) target = $region33
    $region32: #{_lambda_.11} parent=1 // pred_region
      %70 = dma.done [#allocation9], 8192
    $region33: #{_lambda_.11} parent=1 // pred_fallthru
      _
    %v72 = vld [vmem:[#allocation2] sm:$0xff]
    %v73 = vld [vmem:[#allocation2 + $0x8] sm:$0xff]
    %v74 = vld [vmem:[#allocation2 + $0x10] sm:$0xff]
    %v75 = vld [vmem:[#allocation2 + $0x18] sm:$0xff]
    %v76 = vld [vmem:[#allocation2 + $0x20] sm:$0xff]
    %v77 = vld [vmem:[#allocation2 + $0x28] sm:$0xff]
    %v78 = vld [vmem:[#allocation2 + $0x30] sm:$0xff]
    %v79 = vld [vmem:[#allocation2 + $0x38] sm:$0xff]
    %v80 = vld [vmem:[#allocation2 + $0x40] sm:$0xff]
    %v81 = vld [vmem:[#allocation2 + $0x48] sm:$0xff]
    %v82 = vld [vmem:[#allocation2 + $0x50] sm:$0xff]
    %v83 = vld [vmem:[#allocation2 + $0x58] sm:$0xff]
    %v84 = vld [vmem:[#allocation2 + $0x60] sm:$0xff]
    %v85 = vld [vmem:[#allocation2 + $0x68] sm:$0xff]
    %v86 = vld [vmem:[#allocation2 + $0x70] sm:$0xff]
    %v87 = vld [vmem:[#allocation2 + $0x78] sm:$0xff]
    %v88 = vld [vmem:[#allocation2 + $0x80] sm:$0xff]
    %v89 = vld [vmem:[#allocation2 + $0x88] sm:$0xff]
    %v90 = vld [vmem:[#allocation2 + $0x90] sm:$0xff]
    %v91 = vld [vmem:[#allocation2 + $0x98] sm:$0xff]
    %v92 = vld [vmem:[#allocation2 + $0xa0] sm:$0xff]
    %v93 = vld [vmem:[#allocation2 + $0xa8] sm:$0xff]
    %v94 = vld [vmem:[#allocation2 + $0xb0] sm:$0xff]
    %v95 = vld [vmem:[#allocation2 + $0xb8] sm:$0xff]
    %v96 = vld [vmem:[#allocation2 + $0xc0] sm:$0xff]
    %v97 = vld [vmem:[#allocation2 + $0xc8] sm:$0xff]
    %v98 = vld [vmem:[#allocation2 + $0xd0] sm:$0xff]
    %v99 = vld [vmem:[#allocation2 + $0xd8] sm:$0xff]
    %v100 = vld [vmem:[#allocation2 + $0xe0] sm:$0xff]
    %v101 = vld [vmem:[#allocation2 + $0xe8] sm:$0xff]
    %v102 = vld [vmem:[#allocation2 + $0xf0] sm:$0xff]
    %v103 = vld [vmem:[#allocation2 + $0xf8] sm:$0xff]
    %v104 = vld [vmem:[#allocation2 + $0x100] sm:$0xff]
    %v105 = vld [vmem:[#allocation2 + $0x108] sm:$0xff]
    %v106 = vld [vmem:[#allocation2 + $0x110] sm:$0xff]
    %v107 = vld [vmem:[#allocation2 + $0x118] sm:$0xff]
    %v108 = vld [vmem:[#allocation2 + $0x120] sm:$0xff]
    %v109 = vld [vmem:[#allocation2 + $0x128] sm:$0xff]
    %v110 = vld [vmem:[#allocation2 + $0x130] sm:$0xff]
    %v111 = vld [vmem:[#allocation2 + $0x138] sm:$0xff]
    %v112 = vld [vmem:[#allocation2 + $0x140] sm:$0xff]
    %v113 = vld [vmem:[#allocation2 + $0x148] sm:$0xff]
    %v114 = vld [vmem:[#allocation2 + $0x150] sm:$0xff]
    %v115 = vld [vmem:[#allocation2 + $0x158] sm:$0xff]
    %v116 = vld [vmem:[#allocation2 + $0x160] sm:$0xff]
    %v117 = vld [vmem:[#allocation2 + $0x168] sm:$0xff]
    %v118 = vld [vmem:[#allocation2 + $0x170] sm:$0xff]
    %v119 = vld [vmem:[#allocation2 + $0x178] sm:$0xff]
    %v120 = vld [vmem:[#allocation2 + $0x180] sm:$0xff]
    %v121 = vld [vmem:[#allocation2 + $0x188] sm:$0xff]
    %v122 = vld [vmem:[#allocation2 + $0x190] sm:$0xff]
    %v123 = vld [vmem:[#allocation2 + $0x198] sm:$0xff]
    %v124 = vld [vmem:[#allocation2 + $0x1a0] sm:$0xff]
    %v125 = vld [vmem:[#allocation2 + $0x1a8] sm:$0xff]
    %v126 = vld [vmem:[#allocation2 + $0x1b0] sm:$0xff]
    %v127 = vld [vmem:[#allocation2 + $0x1b8] sm:$0xff]
    %v128 = vld [vmem:[#allocation2 + $0x1c0] sm:$0xff]
    %v129 = vld [vmem:[#allocation2 + $0x1c8] sm:$0xff]
    %v130 = vld [vmem:[#allocation2 + $0x1d0] sm:$0xff]
    %v131 = vld [vmem:[#allocation2 + $0x1d8] sm:$0xff]
    %v132 = vld [vmem:[#allocation2 + $0x1e0] sm:$0xff]
    %v133 = vld [vmem:[#allocation2 + $0x1e8] sm:$0xff]
    %v134 = vld [vmem:[#allocation2 + $0x1f0] sm:$0xff]
    %v135 = vld [vmem:[#allocation2 + $0x1f8] sm:$0xff]
    %v136 = vpack.c.bf16 %v73, %v72
    %v137 = vpack.c.bf16 %v75, %v74
    %v138 = vpack.c.bf16 %v77, %v76
    %v139 = vpack.c.bf16 %v79, %v78
    %v140 = vpack.c.bf16 %v81, %v80
    %v141 = vpack.c.bf16 %v83, %v82
    %v142 = vpack.c.bf16 %v85, %v84
    %v143 = vpack.c.bf16 %v87, %v86
    %v144 = vpack.c.bf16 %v89, %v88
    %v145 = vpack.c.bf16 %v91, %v90
    %v146 = vpack.c.bf16 %v93, %v92
    %v147 = vpack.c.bf16 %v95, %v94
    %v148 = vpack.c.bf16 %v97, %v96
    %v149 = vpack.c.bf16 %v99, %v98
    %v150 = vpack.c.bf16 %v101, %v100
    %v151 = vpack.c.bf16 %v103, %v102
    %v152 = vpack.c.bf16 %v105, %v104
    %v153 = vpack.c.bf16 %v107, %v106
    %v154 = vpack.c.bf16 %v109, %v108
    %v155 = vpack.c.bf16 %v111, %v110
    %v156 = vpack.c.bf16 %v113, %v112
    %v157 = vpack.c.bf16 %v115, %v114
    %v158 = vpack.c.bf16 %v117, %v116
    %v159 = vpack.c.bf16 %v119, %v118
    %v160 = vpack.c.bf16 %v121, %v120
    %v161 = vpack.c.bf16 %v123, %v122
    %v162 = vpack.c.bf16 %v125, %v124
    %v163 = vpack.c.bf16 %v127, %v126
    %v164 = vpack.c.bf16 %v129, %v128
    %v165 = vpack.c.bf16 %v131, %v130
    %v166 = vpack.c.bf16 %v133, %v132
    %v167 = vpack.c.bf16 %v135, %v134
    %v168 = vld [vmem:[#allocation5] sm:$0xf]
    %v169 = vld [vmem:[#allocation5 + $0x4] sm:$0xf]
    %v170 = vld [vmem:[#allocation7] sm:$0x1]
    %v172 = vlaneseq
    %v173 = vshrl.u32 %v172, 7
    %v174 = vsub.s32 0, %v173
    %v175 = vrot.slane %v170, %v174
    %v179 = vunpack.c.l.b16 %v168
    %v180 = vunpack.c.l.b16 %v169
    %v181 = vpack.c.b16 %v180, %v179
    %vm183 = vcmask 130048
    %v185 = vsel %vm183, %v136, 0
    %v188 = vsel %vm183, %v137, 0
    %v191 = vsel %vm183, %v138, 0
    %v194 = vsel %vm183, %v139, 0
    %v197 = vsel %vm183, %v140, 0
    %v200 = vsel %vm183, %v141, 0
    %v203 = vsel %vm183, %v142, 0
    %v206 = vsel %vm183, %v143, 0
    %v209 = vsel %vm183, %v144, 0
    %v212 = vsel %vm183, %v145, 0
    %v215 = vsel %vm183, %v146, 0
    %v218 = vsel %vm183, %v147, 0
    %v221 = vsel %vm183, %v148, 0
    %v224 = vsel %vm183, %v149, 0
    %v227 = vsel %vm183, %v150, 0
    %v230 = vsel %vm183, %v151, 0
    %v233 = vsel %vm183, %v152, 0
    %v236 = vsel %vm183, %v153, 0
    %v239 = vsel %vm183, %v154, 0
    %v242 = vsel %vm183, %v155, 0
    %v245 = vsel %vm183, %v156, 0
    %v248 = vsel %vm183, %v157, 0
    %v251 = vsel %vm183, %v158, 0
    %v254 = vsel %vm183, %v159, 0
    %v257 = vsel %vm183, %v160, 0
    %v260 = vsel %vm183, %v161, 0
    %v263 = vsel %vm183, %v162, 0
    %v266 = vsel %vm183, %v163, 0
    %v269 = vsel %vm183, %v164, 0
    %v272 = vsel %vm183, %v165, 0
    %v275 = vsel %vm183, %v166, 0
    %v278 = vsel %vm183, %v167, 0
    %280 = vmatprep.subr.bf16.mxu0 0
    %281 = vmatpush1.bf16.msra.mxu0 %v181
    %282 = vmatprep.subr.bf16.mxu0 0
    %283 = vmatpush1.bf16.msra.mxu0 0
    %284 = vmatprep.subr.bf16.mxu0 0
    %285 = vmatpush1.bf16.msra.mxu0 0
    %286 = vmatprep.subr.bf16.mxu0 0
    %287 = vmatpush1.bf16.msra.mxu0 0
    %288 = vmatprep.subr.bf16.mxu0 0
    %289 = vmatpush1.bf16.msra.mxu0 0
    %290 = vmatprep.subr.bf16.mxu0 0
    %291 = vmatpush1.bf16.msra.mxu0 0
    %292 = vmatprep.subr.bf16.mxu0 0
    %293 = vmatpush1.bf16.msra.mxu0 0
    %294 = vmatprep.subr.bf16.mxu0 0
    %295 = vmatpush1.bf16.msra.mxu0 0
    %296 = vmatprep.subr.bf16.mxu0 0
    %297 = vmatpush1.bf16.msra.mxu0 0
    %298 = vmatprep.subr.bf16.mxu0 0
    %299 = vmatpush1.bf16.msra.mxu0 0
    %300 = vmatprep.subr.bf16.mxu0 0
    %301 = vmatpush1.bf16.msra.mxu0 0
    %302 = vmatprep.subr.bf16.mxu0 0
    %303 = vmatpush1.bf16.msra.mxu0 0
    %304 = vmatprep.subr.bf16.mxu0 0
    %305 = vmatpush1.bf16.msra.mxu0 0
    %306 = vmatprep.subr.bf16.mxu0 0
    %307 = vmatpush1.bf16.msra.mxu0 0
    %308 = vmatprep.subr.bf16.mxu0 0
    %309 = vmatpush1.bf16.msra.mxu0 0
    %310 = vmatprep.subr.bf16.mxu0 0
    %311 = vmatpush1.bf16.msra.mxu0 0
    %312 = vmatprep.mubr.bf16.mxu0 0
    %313 = vmatmul.mubr.bf16.gmra.mrb[0].mxu0 %v185
    %v314 = vpop.f32.mrb[0].mxu0
    %v315 = vadd.f32 %v175, %v314
    %v316 = vpop.f32.mrb[0].mxu0
    %v317 = vpop.f32.mrb[0].mxu0
    %v318 = vadd.f32 %v175, %v317
    %v319 = vpop.f32.mrb[0].mxu0
    %320 = vmatprep.mubr.bf16.mxu0 0
    %321 = vmatmul.mubr.bf16.gmra.mrb[0].mxu0 %v188
    %v322 = vpop.f32.mrb[0].mxu0
    %v323 = vadd.f32 %v175, %v322
    %v324 = vpop.f32.mrb[0].mxu0
    %v325 = vpop.f32.mrb[0].mxu0
    %v326 = vadd.f32 %v175, %v325
    %v327 = vpop.f32.mrb[0].mxu0
    %328 = vmatprep.mubr.bf16.mxu0 0
    %329 = vmatmul.mubr.bf16.gmra.mrb[0].mxu0 %v191
    %v330 = vpop.f32.mrb[0].mxu0
    %v331 = vadd.f32 %v175, %v330
    %v332 = vpop.f32.mrb[0].mxu0
    %v333 = vpop.f32.mrb[0].mxu0
    %v334 = vadd.f32 %v175, %v333
    %v335 = vpop.f32.mrb[0].mxu0
    %336 = vmatprep.mubr.bf16.mxu0 0
    %337 = vmatmul.mubr.bf16.gmra.mrb[0].mxu0 %v194
    %v338 = vpop.f32.mrb[0].mxu0
    %v339 = vadd.f32 %v175, %v338
    %v340 = vpop.f32.mrb[0].mxu0
    %v341 = vpop.f32.mrb[0].mxu0
    %v342 = vadd.f32 %v175, %v341
    %v343 = vpop.f32.mrb[0].mxu0
    %344 = vmatprep.mubr.bf16.mxu0 0
    %345 = vmatmul.mubr.bf16.gmra.mrb[0].mxu0 %v197
    %v346 = vpop.f32.mrb[0].mxu0
    %v347 = vadd.f32 %v175, %v346
    %v348 = vpop.f32.mrb[0].mxu0
    %v349 = vpop.f32.mrb[0].mxu0
    %v350 = vadd.f32 %v175, %v349
    %v351 = vpop.f32.mrb[0].mxu0
    %352 = vmatprep.mubr.bf16.mxu0 0
    %353 = vmatmul.mubr.bf16.gmra.mrb[0].mxu0 %v200
    %v354 = vpop.f32.mrb[0].mxu0
    %v355 = vadd.f32 %v175, %v354
    %v356 = vpop.f32.mrb[0].mxu0
    %v357 = vpop.f32.mrb[0].mxu0
    %v358 = vadd.f32 %v175, %v357
    %v359 = vpop.f32.mrb[0].mxu0
    %360 = vmatprep.mubr.bf16.mxu0 0
    %361 = vmatmul.mubr.bf16.gmra.mrb[0].mxu0 %v203
    %v362 = vpop.f32.mrb[0].mxu0
    %v363 = vadd.f32 %v175, %v362
    %v364 = vpop.f32.mrb[0].mxu0
    %v365 = vpop.f32.mrb[0].mxu0
    %v366 = vadd.f32 %v175, %v365
    %v367 = vpop.f32.mrb[0].mxu0
    %368 = vmatprep.mubr.bf16.mxu0 0
    %369 = vmatmul.mubr.bf16.gmra.mrb[0].mxu0 %v206
    %v370 = vpop.f32.mrb[0].mxu0
    %v371 = vadd.f32 %v175, %v370
    %v372 = vpop.f32.mrb[0].mxu0
    %v373 = vpop.f32.mrb[0].mxu0
    %v374 = vadd.f32 %v175, %v373
    %v375 = vpop.f32.mrb[0].mxu0
    %376 = vmatprep.mubr.bf16.mxu0 0
    %377 = vmatmul.mubr.bf16.gmra.mrb[0].mxu0 %v209
    %v378 = vpop.f32.mrb[0].mxu0
    %v379 = vadd.f32 %v175, %v378
    %v380 = vpop.f32.mrb[0].mxu0
    %v381 = vpop.f32.mrb[0].mxu0
    %v382 = vadd.f32 %v175, %v381
    %v383 = vpop.f32.mrb[0].mxu0
    %384 = vmatprep.mubr.bf16.mxu0 0
    %385 = vmatmul.mubr.bf16.gmra.mrb[0].mxu0 %v212
    %v386 = vpop.f32.mrb[0].mxu0
    %v387 = vadd.f32 %v175, %v386
    %v388 = vpop.f32.mrb[0].mxu0
    %v389 = vpop.f32.mrb[0].mxu0
    %v390 = vadd.f32 %v175, %v389
    %v391 = vpop.f32.mrb[0].mxu0
    %392 = vmatprep.mubr.bf16.mxu0 0
    %393 = vmatmul.mubr.bf16.gmra.mrb[0].mxu0 %v215
    %v394 = vpop.f32.mrb[0].mxu0
    %v395 = vadd.f32 %v175, %v394
    %v396 = vpop.f32.mrb[0].mxu0
    %v397 = vpop.f32.mrb[0].mxu0
    %v398 = vadd.f32 %v175, %v397
    %v399 = vpop.f32.mrb[0].mxu0
    %400 = vmatprep.mubr.bf16.mxu0 0
    %401 = vmatmul.mubr.bf16.gmra.mrb[0].mxu0 %v218
    %v402 = vpop.f32.mrb[0].mxu0
    %v403 = vadd.f32 %v175, %v402
    %v404 = vpop.f32.mrb[0].mxu0
    %v405 = vpop.f32.mrb[0].mxu0
    %v406 = vadd.f32 %v175, %v405
    %v407 = vpop.f32.mrb[0].mxu0
    %408 = vmatprep.mubr.bf16.mxu0 0
    %409 = vmatmul.mubr.bf16.gmra.mrb[0].mxu0 %v221
    %v410 = vpop.f32.mrb[0].mxu0
    %v411 = vadd.f32 %v175, %v410
    %v412 = vpop.f32.mrb[0].mxu0
    %v413 = vpop.f32.mrb[0].mxu0
    %v414 = vadd.f32 %v175, %v413
    %v415 = vpop.f32.mrb[0].mxu0
    %416 = vmatprep.mubr.bf16.mxu0 0
    %417 = vmatmul.mubr.bf16.gmra.mrb[0].mxu0 %v224
    %v418 = vpop.f32.mrb[0].mxu0
    %v419 = vadd.f32 %v175, %v418
    %v420 = vpop.f32.mrb[0].mxu0
    %v421 = vpop.f32.mrb[0].mxu0
    %v422 = vadd.f32 %v175, %v421
    %v423 = vpop.f32.mrb[0].mxu0
    %424 = vmatprep.mubr.bf16.mxu0 0
    %425 = vmatmul.mubr.bf16.gmra.mrb[0].mxu0 %v227
    %v426 = vpop.f32.mrb[0].mxu0
    %v427 = vadd.f32 %v175, %v426
    %v428 = vpop.f32.mrb[0].mxu0
    %v429 = vpop.f32.mrb[0].mxu0
    %v430 = vadd.f32 %v175, %v429
    %v431 = vpop.f32.mrb[0].mxu0
    %432 = vmatprep.mubr.bf16.mxu0 0
    %433 = vmatmul.mubr.bf16.gmra.mrb[0].mxu0 %v230
    %v434 = vpop.f32.mrb[0].mxu0
    %v435 = vadd.f32 %v175, %v434
    %v436 = vpop.f32.mrb[0].mxu0
    %v437 = vpop.f32.mrb[0].mxu0
    %v438 = vadd.f32 %v175, %v437
    %v439 = vpop.f32.mrb[0].mxu0
    %440 = vmatprep.mubr.bf16.mxu0 0
    %441 = vmatmul.mubr.bf16.gmra.mrb[0].mxu0 %v233
    %v442 = vpop.f32.mrb[0].mxu0
    %v443 = vadd.f32 %v175, %v442
    %v444 = vpop.f32.mrb[0].mxu0
    %v445 = vpop.f32.mrb[0].mxu0
    %v446 = vadd.f32 %v175, %v445
    %v447 = vpop.f32.mrb[0].mxu0
    %448 = vmatprep.mubr.bf16.mxu0 0
    %449 = vmatmul.mubr.bf16.gmra.mrb[0].mxu0 %v236
    %v450 = vpop.f32.mrb[0].mxu0
    %v451 = vadd.f32 %v175, %v450
    %v452 = vpop.f32.mrb[0].mxu0
    %v453 = vpop.f32.mrb[0].mxu0
    %v454 = vadd.f32 %v175, %v453
    %v455 = vpop.f32.mrb[0].mxu0
    %456 = vmatprep.mubr.bf16.mxu0 0
    %457 = vmatmul.mubr.bf16.gmra.mrb[0].mxu0 %v239
    %v458 = vpop.f32.mrb[0].mxu0
    %v459 = vadd.f32 %v175, %v458
    %v460 = vpop.f32.mrb[0].mxu0
    %v461 = vpop.f32.mrb[0].mxu0
    %v462 = vadd.f32 %v175, %v461
    %v463 = vpop.f32.mrb[0].mxu0
    %464 = vmatprep.mubr.bf16.mxu0 0
    %465 = vmatmul.mubr.bf16.gmra.mrb[0].mxu0 %v242
    %v466 = vpop.f32.mrb[0].mxu0
    %v467 = vadd.f32 %v175, %v466
    %v468 = vpop.f32.mrb[0].mxu0
    %v469 = vpop.f32.mrb[0].mxu0
    %v470 = vadd.f32 %v175, %v469
    %v471 = vpop.f32.mrb[0].mxu0
    %472 = vmatprep.mubr.bf16.mxu0 0
    %473 = vmatmul.mubr.bf16.gmra.mrb[0].mxu0 %v245
    %v474 = vpop.f32.mrb[0].mxu0
    %v475 = vadd.f32 %v175, %v474
    %v476 = vpop.f32.mrb[0].mxu0
    %v477 = vpop.f32.mrb[0].mxu0
    %v478 = vadd.f32 %v175, %v477
    %v479 = vpop.f32.mrb[0].mxu0
    %480 = vmatprep.mubr.bf16.mxu0 0
    %481 = vmatmul.mubr.bf16.gmra.mrb[0].mxu0 %v248
    %v482 = vpop.f32.mrb[0].mxu0
    %v483 = vadd.f32 %v175, %v482
    %v484 = vpop.f32.mrb[0].mxu0
    %v485 = vpop.f32.mrb[0].mxu0
    %v486 = vadd.f32 %v175, %v485
    %v487 = vpop.f32.mrb[0].mxu0
    %488 = vmatprep.mubr.bf16.mxu0 0
    %489 = vmatmul.mubr.bf16.gmra.mrb[0].mxu0 %v251
    %v490 = vpop.f32.mrb[0].mxu0
    %v491 = vadd.f32 %v175, %v490
    %v492 = vpop.f32.mrb[0].mxu0
    %v493 = vpop.f32.mrb[0].mxu0
    %v494 = vadd.f32 %v175, %v493
    %v495 = vpop.f32.mrb[0].mxu0
    %496 = vmatprep.mubr.bf16.mxu0 0
    %497 = vmatmul.mubr.bf16.gmra.mrb[0].mxu0 %v254
    %v498 = vpop.f32.mrb[0].mxu0
    %v499 = vadd.f32 %v175, %v498
    %v500 = vpop.f32.mrb[0].mxu0
    %v501 = vpop.f32.mrb[0].mxu0
    %v502 = vadd.f32 %v175, %v501
    %v503 = vpop.f32.mrb[0].mxu0
    %504 = vmatprep.mubr.bf16.mxu0 0
    %505 = vmatmul.mubr.bf16.gmra.mrb[0].mxu0 %v257
    %v506 = vpop.f32.mrb[0].mxu0
    %v507 = vadd.f32 %v175, %v506
    %v508 = vpop.f32.mrb[0].mxu0
    %v509 = vpop.f32.mrb[0].mxu0
    %v510 = vadd.f32 %v175, %v509
    %v511 = vpop.f32.mrb[0].mxu0
    %512 = vmatprep.mubr.bf16.mxu0 0
    %513 = vmatmul.mubr.bf16.gmra.mrb[0].mxu0 %v260
    %v514 = vpop.f32.mrb[0].mxu0
    %v515 = vadd.f32 %v175, %v514
    %v516 = vpop.f32.mrb[0].mxu0
    %v517 = vpop.f32.mrb[0].mxu0
    %v518 = vadd.f32 %v175, %v517
    %v519 = vpop.f32.mrb[0].mxu0
    %520 = vmatprep.mubr.bf16.mxu0 0
    %521 = vmatmul.mubr.bf16.gmra.mrb[0].mxu0 %v263
    %v522 = vpop.f32.mrb[0].mxu0
    %v523 = vadd.f32 %v175, %v522
    %v524 = vpop.f32.mrb[0].mxu0
    %v525 = vpop.f32.mrb[0].mxu0
    %v526 = vadd.f32 %v175, %v525
    %v527 = vpop.f32.mrb[0].mxu0
    %528 = vmatprep.mubr.bf16.mxu0 0
    %529 = vmatmul.mubr.bf16.gmra.mrb[0].mxu0 %v266
    %v530 = vpop.f32.mrb[0].mxu0
    %v531 = vadd.f32 %v175, %v530
    %v532 = vpop.f32.mrb[0].mxu0
    %v533 = vpop.f32.mrb[0].mxu0
    %v534 = vadd.f32 %v175, %v533
    %v535 = vpop.f32.mrb[0].mxu0
    %536 = vmatprep.mubr.bf16.mxu0 0
    %537 = vmatmul.mubr.bf16.gmra.mrb[0].mxu0 %v269
    %v538 = vpop.f32.mrb[0].mxu0
    %v539 = vadd.f32 %v175, %v538
    %v540 = vpop.f32.mrb[0].mxu0
    %v541 = vpop.f32.mrb[0].mxu0
    %v542 = vadd.f32 %v175, %v541
    %v543 = vpop.f32.mrb[0].mxu0
    %544 = vmatprep.mubr.bf16.mxu0 0
    %545 = vmatmul.mubr.bf16.gmra.mrb[0].mxu0 %v272
    %v546 = vpop.f32.mrb[0].mxu0
    %v547 = vadd.f32 %v175, %v546
    %v548 = vpop.f32.mrb[0].mxu0
    %v549 = vpop.f32.mrb[0].mxu0
    %v550 = vadd.f32 %v175, %v549
    %v551 = vpop.f32.mrb[0].mxu0
    %552 = vmatprep.mubr.bf16.mxu0 0
    %553 = vmatmul.mubr.bf16.gmra.mrb[0].mxu0 %v275
    %v554 = vpop.f32.mrb[0].mxu0
    %v555 = vadd.f32 %v175, %v554
    %v556 = vpop.f32.mrb[0].mxu0
    %v557 = vpop.f32.mrb[0].mxu0
    %v558 = vadd.f32 %v175, %v557
    %v559 = vpop.f32.mrb[0].mxu0
    %560 = vmatprep.mubr.bf16.mxu0 0
    %561 = vmatmul.mubr.bf16.gmra.mrb[0].mxu0 %v278
    %v562 = vpop.f32.mrb[0].mxu0
    %v563 = vadd.f32 %v175, %v562
    %v564 = vpop.f32.mrb[0].mxu0
    %v565 = vpop.f32.mrb[0].mxu0
    %v566 = vadd.f32 %v175, %v565
    %v567 = vpop.f32.mrb[0].mxu0
    %568 = vdwg.mxu0
    %v569 = vld [vmem:[#allocation8] sm:$0xff]
    %v570 = vld [vmem:[#allocation8 + $0x8] sm:$0xff]
    %v571 = vld [vmem:[#allocation8 + $0x10] sm:$0xff]
    %v572 = vld [vmem:[#allocation8 + $0x18] sm:$0xff]
    %v573 = vld [vmem:[#allocation8 + $0x20] sm:$0xff]
    %v574 = vld [vmem:[#allocation8 + $0x28] sm:$0xff]
    %v575 = vld [vmem:[#allocation8 + $0x30] sm:$0xff]
    %v576 = vld [vmem:[#allocation8 + $0x38] sm:$0xff]
    %v577 = vld [vmem:[#allocation8 + $0x40] sm:$0xff]
    %v578 = vld [vmem:[#allocation8 + $0x48] sm:$0xff]
    %v579 = vld [vmem:[#allocation8 + $0x50] sm:$0xff]
    %v580 = vld [vmem:[#allocation8 + $0x58] sm:$0xff]
    %v581 = vld [vmem:[#allocation8 + $0x60] sm:$0xff]
    %v582 = vld [vmem:[#allocation8 + $0x68] sm:$0xff]
    %v583 = vld [vmem:[#allocation8 + $0x70] sm:$0xff]
    %v584 = vld [vmem:[#allocation8 + $0x78] sm:$0xff]
    %v585 = vld [vmem:[#allocation8 + $0x80] sm:$0xff]
    %v586 = vld [vmem:[#allocation8 + $0x88] sm:$0xff]
    %v587 = vld [vmem:[#allocation8 + $0x90] sm:$0xff]
    %v588 = vld [vmem:[#allocation8 + $0x98] sm:$0xff]
    %v589 = vld [vmem:[#allocation8 + $0xa0] sm:$0xff]
    %v590 = vld [vmem:[#allocation8 + $0xa8] sm:$0xff]
    %v591 = vld [vmem:[#allocation8 + $0xb0] sm:$0xff]
    %v592 = vld [vmem:[#allocation8 + $0xb8] sm:$0xff]
    %v593 = vld [vmem:[#allocation8 + $0xc0] sm:$0xff]
    %v594 = vld [vmem:[#allocation8 + $0xc8] sm:$0xff]
    %v595 = vld [vmem:[#allocation8 + $0xd0] sm:$0xff]
    %v596 = vld [vmem:[#allocation8 + $0xd8] sm:$0xff]
    %v597 = vld [vmem:[#allocation8 + $0xe0] sm:$0xff]
    %v598 = vld [vmem:[#allocation8 + $0xe8] sm:$0xff]
    %v599 = vld [vmem:[#allocation8 + $0xf0] sm:$0xff]
    %v600 = vld [vmem:[#allocation8 + $0xf8] sm:$0xff]
    %v601 = vld [vmem:[#allocation8 + $0x100] sm:$0xff]
    %v602 = vld [vmem:[#allocation8 + $0x108] sm:$0xff]
    %v603 = vld [vmem:[#allocation8 + $0x110] sm:$0xff]
    %v604 = vld [vmem:[#allocation8 + $0x118] sm:$0xff]
    %v605 = vld [vmem:[#allocation8 + $0x120] sm:$0xff]
    %v606 = vld [vmem:[#allocation8 + $0x128] sm:$0xff]
    %v607 = vld [vmem:[#allocation8 + $0x130] sm:$0xff]
    %v608 = vld [vmem:[#allocation8 + $0x138] sm:$0xff]
    %v609 = vld [vmem:[#allocation8 + $0x140] sm:$0xff]
    %v610 = vld [vmem:[#allocation8 + $0x148] sm:$0xff]
    %v611 = vld [vmem:[#allocation8 + $0x150] sm:$0xff]
    %v612 = vld [vmem:[#allocation8 + $0x158] sm:$0xff]
    %v613 = vld [vmem:[#allocation8 + $0x160] sm:$0xff]
    %v614 = vld [vmem:[#allocation8 + $0x168] sm:$0xff]
    %v615 = vld [vmem:[#allocation8 + $0x170] sm:$0xff]
    %v616 = vld [vmem:[#allocation8 + $0x178] sm:$0xff]
    %v617 = vld [vmem:[#allocation8 + $0x180] sm:$0xff]
    %v618 = vld [vmem:[#allocation8 + $0x188] sm:$0xff]
    %v619 = vld [vmem:[#allocation8 + $0x190] sm:$0xff]
    %v620 = vld [vmem:[#allocation8 + $0x198] sm:$0xff]
    %v621 = vld [vmem:[#allocation8 + $0x1a0] sm:$0xff]
    %v622 = vld [vmem:[#allocation8 + $0x1a8] sm:$0xff]
    %v623 = vld [vmem:[#allocation8 + $0x1b0] sm:$0xff]
    %v624 = vld [vmem:[#allocation8 + $0x1b8] sm:$0xff]
    %v625 = vld [vmem:[#allocation8 + $0x1c0] sm:$0xff]
    %v626 = vld [vmem:[#allocation8 + $0x1c8] sm:$0xff]
    %v627 = vld [vmem:[#allocation8 + $0x1d0] sm:$0xff]
    %v628 = vld [vmem:[#allocation8 + $0x1d8] sm:$0xff]
    %v629 = vld [vmem:[#allocation8 + $0x1e0] sm:$0xff]
    %v630 = vld [vmem:[#allocation8 + $0x1e8] sm:$0xff]
    %v631 = vld [vmem:[#allocation8 + $0x1f0] sm:$0xff]
    %v632 = vld [vmem:[#allocation8 + $0x1f8] sm:$0xff]
    %v633 = vadd.f32 %v315, %v569
    %v634 = vadd.f32 %v318, %v570
    %v635 = vadd.f32 %v323, %v571
    %v636 = vadd.f32 %v326, %v572
    %v637 = vadd.f32 %v331, %v573
    %v638 = vadd.f32 %v334, %v574
    %v639 = vadd.f32 %v339, %v575
    %v640 = vadd.f32 %v342, %v576
    %v641 = vadd.f32 %v347, %v577
    %v642 = vadd.f32 %v350, %v578
    %v643 = vadd.f32 %v355, %v579
    %v644 = vadd.f32 %v358, %v580
    %v645 = vadd.f32 %v363, %v581
    %v646 = vadd.f32 %v366, %v582
    %v647 = vadd.f32 %v371, %v583
    %v648 = vadd.f32 %v374, %v584
    %v649 = vadd.f32 %v379, %v585
    %v650 = vadd.f32 %v382, %v586
    %v651 = vadd.f32 %v387, %v587
    %v652 = vadd.f32 %v390, %v588
    %v653 = vadd.f32 %v395, %v589
    %v654 = vadd.f32 %v398, %v590
    %v655 = vadd.f32 %v403, %v591
    %v656 = vadd.f32 %v406, %v592
    %v657 = vadd.f32 %v411, %v593
    %v658 = vadd.f32 %v414, %v594
    %v659 = vadd.f32 %v419, %v595
    %v660 = vadd.f32 %v422, %v596
    %v661 = vadd.f32 %v427, %v597
    %v662 = vadd.f32 %v430, %v598
    %v663 = vadd.f32 %v435, %v599
    %v664 = vadd.f32 %v438, %v600
    %v665 = vadd.f32 %v443, %v601
    %v666 = vadd.f32 %v446, %v602
    %v667 = vadd.f32 %v451, %v603
    %v668 = vadd.f32 %v454, %v604
    %v669 = vadd.f32 %v459, %v605
    %v670 = vadd.f32 %v462, %v606
    %v671 = vadd.f32 %v467, %v607
    %v672 = vadd.f32 %v470, %v608
    %v673 = vadd.f32 %v475, %v609
    %v674 = vadd.f32 %v478, %v610
    %v675 = vadd.f32 %v483, %v611
    %v676 = vadd.f32 %v486, %v612
    %v677 = vadd.f32 %v491, %v613
    %v678 = vadd.f32 %v494, %v614
    %v679 = vadd.f32 %v499, %v615
    %v680 = vadd.f32 %v502, %v616
    %v681 = vadd.f32 %v507, %v617
    %v682 = vadd.f32 %v510, %v618
    %v683 = vadd.f32 %v515, %v619
    %v684 = vadd.f32 %v518, %v620
    %v685 = vadd.f32 %v523, %v621
    %v686 = vadd.f32 %v526, %v622
    %v687 = vadd.f32 %v531, %v623
    %v688 = vadd.f32 %v534, %v624
    %v689 = vadd.f32 %v539, %v625
    %v690 = vadd.f32 %v542, %v626
    %v691 = vadd.f32 %v547, %v627
    %v692 = vadd.f32 %v550, %v628
    %v693 = vadd.f32 %v555, %v629
    %v694 = vadd.f32 %v558, %v630
    %v695 = vadd.f32 %v563, %v631
    %v696 = vadd.f32 %v566, %v632
    %697 = vst [vmem:[#allocation10] sm:$0xff] %v633
    %698 = vst [vmem:[#allocation10 + $0x8] sm:$0xff] %v634
    %699 = vst [vmem:[#allocation10 + $0x10] sm:$0xff] %v635
    %700 = vst [vmem:[#allocation10 + $0x18] sm:$0xff] %v636
    %701 = vst [vmem:[#allocation10 + $0x20] sm:$0xff] %v637
    %702 = vst [vmem:[#allocation10 + $0x28] sm:$0xff] %v638
    %703 = vst [vmem:[#allocation10 + $0x30] sm:$0xff] %v639
    %704 = vst [vmem:[#allocation10 + $0x38] sm:$0xff] %v640
    %705 = vst [vmem:[#allocation10 + $0x40] sm:$0xff] %v641
    %706 = vst [vmem:[#allocation10 + $0x48] sm:$0xff] %v642
    %707 = vst [vmem:[#allocation10 + $0x50] sm:$0xff] %v643
    %708 = vst [vmem:[#allocation10 + $0x58] sm:$0xff] %v644
    %709 = vst [vmem:[#allocation10 + $0x60] sm:$0xff] %v645
    %710 = vst [vmem:[#allocation10 + $0x68] sm:$0xff] %v646
    %711 = vst [vmem:[#allocation10 + $0x70] sm:$0xff] %v647
    %712 = vst [vmem:[#allocation10 + $0x78] sm:$0xff] %v648
    %713 = vst [vmem:[#allocation10 + $0x80] sm:$0xff] %v649
    %714 = vst [vmem:[#allocation10 + $0x88] sm:$0xff] %v650
    %715 = vst [vmem:[#allocation10 + $0x90] sm:$0xff] %v651
    %716 = vst [vmem:[#allocation10 + $0x98] sm:$0xff] %v652
    %717 = vst [vmem:[#allocation10 + $0xa0] sm:$0xff] %v653
    %718 = vst [vmem:[#allocation10 + $0xa8] sm:$0xff] %v654
    %719 = vst [vmem:[#allocation10 + $0xb0] sm:$0xff] %v655
    %720 = vst [vmem:[#allocation10 + $0xb8] sm:$0xff] %v656
    %721 = vst [vmem:[#allocation10 + $0xc0] sm:$0xff] %v657
    %722 = vst [vmem:[#allocation10 + $0xc8] sm:$0xff] %v658
    %723 = vst [vmem:[#allocation10 + $0xd0] sm:$0xff] %v659
    %724 = vst [vmem:[#allocation10 + $0xd8] sm:$0xff] %v660
    %725 = vst [vmem:[#allocation10 + $0xe0] sm:$0xff] %v661
    %726 = vst [vmem:[#allocation10 + $0xe8] sm:$0xff] %v662
    %727 = vst [vmem:[#allocation10 + $0xf0] sm:$0xff] %v663
    %728 = vst [vmem:[#allocation10 + $0xf8] sm:$0xff] %v664
    %729 = vst [vmem:[#allocation10 + $0x100] sm:$0xff] %v665
    %730 = vst [vmem:[#allocation10 + $0x108] sm:$0xff] %v666
    %731 = vst [vmem:[#allocation10 + $0x110] sm:$0xff] %v667
    %732 = vst [vmem:[#allocation10 + $0x118] sm:$0xff] %v668
    %733 = vst [vmem:[#allocation10 + $0x120] sm:$0xff] %v669
    %734 = vst [vmem:[#allocation10 + $0x128] sm:$0xff] %v670
    %735 = vst [vmem:[#allocation10 + $0x130] sm:$0xff] %v671
    %736 = vst [vmem:[#allocation10 + $0x138] sm:$0xff] %v672
    %737 = vst [vmem:[#allocation10 + $0x140] sm:$0xff] %v673
    %738 = vst [vmem:[#allocation10 + $0x148] sm:$0xff] %v674
    %739 = vst [vmem:[#allocation10 + $0x150] sm:$0xff] %v675
    %740 = vst [vmem:[#allocation10 + $0x158] sm:$0xff] %v676
    %741 = vst [vmem:[#allocation10 + $0x160] sm:$0xff] %v677
    %742 = vst [vmem:[#allocation10 + $0x168] sm:$0xff] %v678
    %743 = vst [vmem:[#allocation10 + $0x170] sm:$0xff] %v679
    %744 = vst [vmem:[#allocation10 + $0x178] sm:$0xff] %v680
    %745 = vst [vmem:[#allocation10 + $0x180] sm:$0xff] %v681
    %746 = vst [vmem:[#allocation10 + $0x188] sm:$0xff] %v682
    %747 = vst [vmem:[#allocation10 + $0x190] sm:$0xff] %v683
    %748 = vst [vmem:[#allocation10 + $0x198] sm:$0xff] %v684
    %749 = vst [vmem:[#allocation10 + $0x1a0] sm:$0xff] %v685
    %750 = vst [vmem:[#allocation10 + $0x1a8] sm:$0xff] %v686
    %751 = vst [vmem:[#allocation10 + $0x1b0] sm:$0xff] %v687
    %752 = vst [vmem:[#allocation10 + $0x1b8] sm:$0xff] %v688
    %753 = vst [vmem:[#allocation10 + $0x1c0] sm:$0xff] %v689
    %754 = vst [vmem:[#allocation10 + $0x1c8] sm:$0xff] %v690
    %755 = vst [vmem:[#allocation10 + $0x1d0] sm:$0xff] %v691
    %756 = vst [vmem:[#allocation10 + $0x1d8] sm:$0xff] %v692
    %757 = vst [vmem:[#allocation10 + $0x1e0] sm:$0xff] %v693
    %758 = vst [vmem:[#allocation10 + $0x1e8] sm:$0xff] %v694
    %759 = vst [vmem:[#allocation10 + $0x1f0] sm:$0xff] %v695
    %760 = vst [vmem:[#allocation10 + $0x1f8] sm:$0xff] %v696
    // Predicated region
    $region34: #{_lambda_.11} parent=1 // pred_check
      _
    $region35: #{_lambda_.11} parent=1 // pred_check_branch
      %762 = sbr.rel (0) target = $region37
    $region36: #{_lambda_.11} parent=1 // pred_region
      %s764 = ssub.s32 8192, 8192
      %765 = vsyncadd [#allocation4], %s764
      %s766 = sshll.u32 [#allocation10], 4
      %s767 = int_to_ptr.vmem [resolvable:$true] %s766
      %772 = dma.vmem_to_hbm [thread:$0]  %s767, 8192, %s4, [#allocation4], 128, 128, 8
    $region37: #{_lambda_.11} parent=1 // pred_fallthru
      _
    // Predicated region
    $region38: #{_lambda_.11} parent=1 // pred_check
      _
    $region39: #{_lambda_.11} parent=1 // pred_check_branch
      %774 = sbr.rel (0) target = $region41
    $region40: #{_lambda_.11} parent=1 // pred_region
      %775 = dma.done [#allocation4], 8192
    $region41: #{_lambda_.11} parent=1 // pred_fallthru
      _
    %776 = vsyncpa [#allocation3], 1
    %777 = vsyncpa [#allocation6], 1
    %778 = vsyncpa [#allocation9], 1
    %779 = vsyncpa [#allocation4], 1

// kernel: _lambda_.13
$region0: #{_lambda_.13}
  #allocation0 [shape = 'u32[]', space=smem, size = 0x4, offset = 0x4, fixed_abs, tag = 'smem constant byte address 0x4 - core index']
  #allocation1 [shape = 'u32[144,128]{1,0:T(1,128)}', space=vmem, size = 0x12000, scoped, tag = 'internal scratch']
  %s0 = inlined_call_operand.hbm [shape: f32[128,1152], index: 0, kind: input, shape index: {}]
  %s1 = inlined_call_operand.hbm [shape: bf16[1152,128], index: 1, kind: input, shape index: {}]
  %s2 = inlined_call_operand.hbm [shape: f32[1,128], index: 2, kind: input, shape index: {}]
  %s3 = inlined_call_operand.hbm [shape: f32[128,128], index: 3, kind: output, shape index: {}]
  %s4 = sld [smem:[#allocation0]]
  $region34: #{_lambda_.13} parent=0
    _
  %s6 = ssub.s32 1, %s4
  %s7 = scalar_select 0, %s6, %s4
  $region1: #{_lambda_.13} parent=0
    #allocation2 [shape = 'u8[589824]{0}', space=vmem, size = 0x90000, scoped, tag = 'input window, operand 0, single buffered']
    #allocation3 [shape = 's32[1]{0}', space=sflag, size = 0x4, scoped, tag = 'scoped memory for _lambda_.13']
    #allocation4 [shape = 's32[1]{0}', space=sflag, size = 0x4, scoped, tag = 'scoped memory for _lambda_.13']
    #allocation5 [shape = 'u8[294912]{0}', space=vmem, size = 0x48000, scoped, tag = 'input window, operand 1, single buffered']
    #allocation6 [shape = 's32[1]{0}', space=sflag, size = 0x4, scoped, tag = 'scoped memory for _lambda_.13']
    #allocation7 [shape = 'u8[512]{0}', space=vmem, size = 0x400, scoped, tag = 'input window, operand 2, single buffered']
    #allocation8 [shape = 'u8[65536]{0}', space=vmem, size = 0x10000, scoped, tag = 'output window, operand 0, single buffered']
    %8 = vsyncpa [#allocation3], 0
    %9 = vsyncpa [#allocation6], 0
    %10 = vsyncpa [#allocation4], 0
    // Predicated region
    $region2: #{_lambda_.13} parent=1 // pred_check
      _
    $region3: #{_lambda_.13} parent=1 // pred_check_branch
      %12 = sbr.rel (0) target = $region5
    $region4: #{_lambda_.13} parent=1 // pred_region
      %s14 = ssub.s32 18432, 18432
      %15 = vsyncadd [#allocation3], %s14
      %s16 = sshll.u32 [#allocation2], 4
      %s17 = int_to_ptr.vmem [resolvable:$true] %s16
      %22 = dma.hbm_to_vmem [thread:$0]  %s0, 18432, %s17, [#allocation3], 1152, 1152, 72
    $region5: #{_lambda_.13} parent=1 // pred_fallthru
      _
    // Predicated region
    $region6: #{_lambda_.13} parent=1 // pred_check
      _
    $region7: #{_lambda_.13} parent=1 // pred_check_branch
      %24 = sbr.rel (0) target = $region9
    $region8: #{_lambda_.13} parent=1 // pred_region
      %s26 = ssub.s32 9216, 9216
      %27 = vsyncadd [#allocation6], %s26
      %s28 = sshll.u32 [#allocation5], 4
      %s29 = int_to_ptr.vmem [resolvable:$true] %s28
      %34 = dma.hbm_to_vmem [thread:$0]  %s1, 9216, %s29, [#allocation6], 64, 64, 4
    $region9: #{_lambda_.13} parent=1 // pred_fallthru
      _
    // Predicated region
    $region10: #{_lambda_.13} parent=1 // pred_check
      _
    $region11: #{_lambda_.13} parent=1 // pred_check_branch
      %36 = sbr.rel (0) target = $region13
    $region12: #{_lambda_.13} parent=1 // pred_region
      %s38 = ssub.s32 16, 16
      %39 = vsyncadd [#allocation6], %s38
      %s41 = sshll.u32 [#allocation7], 4
      %s42 = int_to_ptr.vmem [resolvable:$true] %s41
      %44 = dma.hbm_to_vmem [thread:$0]  %s2, 16, %s42, [#allocation6]
    $region13: #{_lambda_.13} parent=1 // pred_fallthru
      _
    // Predicated region
    $region14: #{_lambda_.13} parent=1 // pred_check
      _
    $region15: #{_lambda_.13} parent=1 // pred_check_branch
      %46 = sbr.rel (0) target = $region17
    $region16: #{_lambda_.13} parent=1 // pred_region
      %47 = dma.done [#allocation3], 18432
    $region17: #{_lambda_.13} parent=1 // pred_fallthru
      _
    // Predicated region
    $region18: #{_lambda_.13} parent=1 // pred_check
      _
    $region19: #{_lambda_.13} parent=1 // pred_check_branch
      %49 = sbr.rel (0) target = $region21
    $region20: #{_lambda_.13} parent=1 // pred_region
      %50 = dma.done [#allocation6], 9216
    $region21: #{_lambda_.13} parent=1 // pred_fallthru
      _
    // Predicated region
    $region22: #{_lambda_.13} parent=1 // pred_check
      _
    $region23: #{_lambda_.13} parent=1 // pred_check_branch
      %52 = sbr.rel (0) target = $region25
    $region24: #{_lambda_.13} parent=1 // pred_region
      %53 = dma.done [#allocation6], 16
    $region25: #{_lambda_.13} parent=1 // pred_fallthru
      _
    %v55 = vld [vmem:[#allocation2] sm:$0xff]
    %v56 = vld [vmem:[#allocation2 + $0x8] sm:$0xff]
    %v57 = vld [vmem:[#allocation2 + $0x10] sm:$0xff]
    %v58 = vld [vmem:[#allocation2 + $0x18] sm:$0xff]
    %v59 = vld [vmem:[#allocation2 + $0x20] sm:$0xff]
    %v60 = vld [vmem:[#allocation2 + $0x28] sm:$0xff]
    %v61 = vld [vmem:[#allocation2 + $0x30] sm:$0xff]
    %v62 = vld [vmem:[#allocation2 + $0x38] sm:$0xff]
    %v63 = vld [vmem:[#allocation2 + $0x40] sm:$0xff]
    %v64 = vld [vmem:[#allocation2 + $0x48] sm:$0xff]
    %v65 = vld [vmem:[#allocation2 + $0x50] sm:$0xff]
    %v66 = vld [vmem:[#allocation2 + $0x58] sm:$0xff]
    %v67 = vld [vmem:[#allocation2 + $0x60] sm:$0xff]
    %v68 = vld [vmem:[#allocation2 + $0x68] sm:$0xff]
    %v69 = vld [vmem:[#allocation2 + $0x70] sm:$0xff]
    %v70 = vld [vmem:[#allocation2 + $0x78] sm:$0xff]
    %v71 = vld [vmem:[#allocation2 + $0x80] sm:$0xff]
    %v72 = vld [vmem:[#allocation2 + $0x88] sm:$0xff]
    %v73 = vld [vmem:[#allocation2 + $0x90] sm:$0xff]
    %v74 = vld [vmem:[#allocation2 + $0x98] sm:$0xff]
    %v75 = vld [vmem:[#allocation2 + $0xa0] sm:$0xff]
    %v76 = vld [vmem:[#allocation2 + $0xa8] sm:$0xff]
    %v77 = vld [vmem:[#allocation2 + $0xb0] sm:$0xff]
    %v78 = vld [vmem:[#allocation2 + $0xb8] sm:$0xff]
    %v79 = vld [vmem:[#allocation2 + $0xc0] sm:$0xff]
    %v80 = vld [vmem:[#allocation2 + $0xc8] sm:$0xff]
    %v81 = vld [vmem:[#allocation2 + $0xd0] sm:$0xff]
    %v82 = vld [vmem:[#allocation2 + $0xd8] sm:$0xff]
    %v83 = vld [vmem:[#allocation2 + $0xe0] sm:$0xff]
    %v84 = vld [vmem:[#allocation2 + $0xe8] sm:$0xff]
    %v85 = vld [vmem:[#allocation2 + $0xf0] sm:$0xff]
    %v86 = vld [vmem:[#allocation2 + $0xf8] sm:$0xff]
    %v87 = vld [vmem:[#allocation2 + $0x100] sm:$0xff]
    %v88 = vld [vmem:[#allocation2 + $0x108] sm:$0xff]
    %v89 = vld [vmem:[#allocation2 + $0x110] sm:$0xff]
    %v90 = vld [vmem:[#allocation2 + $0x118] sm:$0xff]
    %v91 = vld [vmem:[#allocation2 + $0x120] sm:$0xff]
    %v92 = vld [vmem:[#allocation2 + $0x128] sm:$0xff]
    %v93 = vld [vmem:[#allocation2 + $0x130] sm:$0xff]
    %v94 = vld [vmem:[#allocation2 + $0x138] sm:$0xff]
    %v95 = vld [vmem:[#allocation2 + $0x140] sm:$0xff]
    %v96 = vld [vmem:[#allocation2 + $0x148] sm:$0xff]
    %v97 = vld [vmem:[#allocation2 + $0x150] sm:$0xff]
    %v98 = vld [vmem:[#allocation2 + $0x158] sm:$0xff]
    %v99 = vld [vmem:[#allocation2 + $0x160] sm:$0xff]
    %v100 = vld [vmem:[#allocation2 + $0x168] sm:$0xff]
    %v101 = vld [vmem:[#allocation2 + $0x170] sm:$0xff]
    %v102 = vld [vmem:[#allocation2 + $0x178] sm:$0xff]
    %v103 = vld [vmem:[#allocation2 + $0x180] sm:$0xff]
    %v104 = vld [vmem:[#allocation2 + $0x188] sm:$0xff]
    %v105 = vld [vmem:[#allocation2 + $0x190] sm:$0xff]
    %v106 = vld [vmem:[#allocation2 + $0x198] sm:$0xff]
    %v107 = vld [vmem:[#allocation2 + $0x1a0] sm:$0xff]
    %v108 = vld [vmem:[#allocation2 + $0x1a8] sm:$0xff]
    %v109 = vld [vmem:[#allocation2 + $0x1b0] sm:$0xff]
    %v110 = vld [vmem:[#allocation2 + $0x1b8] sm:$0xff]
    %v111 = vld [vmem:[#allocation2 + $0x1c0] sm:$0xff]
    %v112 = vld [vmem:[#allocation2 + $0x1c8] sm:$0xff]
    %v113 = vld [vmem:[#allocation2 + $0x1d0] sm:$0xff]
    %v114 = vld [vmem:[#allocation2 + $0x1d8] sm:$0xff]
    %v115 = vld [vmem:[#allocation2 + $0x1e0] sm:$0xff]
    %v116 = vld [vmem:[#allocation2 + $0x1e8] sm:$0xff]
    %v117 = vld [vmem:[#allocation2 + $0x1f0] sm:$0xff]
    %v118 = vld [vmem:[#allocation2 + $0x1f8] sm:$0xff]
    %v119 = vld [vmem:[#allocation2 + $0x200] sm:$0xff]
    %v120 = vld [vmem:[#allocation2 + $0x208] sm:$0xff]
    %v121 = vld [vmem:[#allocation2 + $0x210] sm:$0xff]
    %v122 = vld [vmem:[#allocation2 + $0x218] sm:$0xff]
    %v123 = vld [vmem:[#allocation2 + $0x220] sm:$0xff]
    %v124 = vld [vmem:[#allocation2 + $0x228] sm:$0xff]
    %v125 = vld [vmem:[#allocation2 + $0x230] sm:$0xff]
    %v126 = vld [vmem:[#allocation2 + $0x238] sm:$0xff]
    %v127 = vld [vmem:[#allocation2 + $0x240] sm:$0xff]
    %v128 = vld [vmem:[#allocation2 + $0x248] sm:$0xff]
    %v129 = vld [vmem:[#allocation2 + $0x250] sm:$0xff]
    %v130 = vld [vmem:[#allocation2 + $0x258] sm:$0xff]
    %v131 = vld [vmem:[#allocation2 + $0x260] sm:$0xff]
    %v132 = vld [vmem:[#allocation2 + $0x268] sm:$0xff]
    %v133 = vld [vmem:[#allocation2 + $0x270] sm:$0xff]
    %v134 = vld [vmem:[#allocation2 + $0x278] sm:$0xff]
    %v135 = vld [vmem:[#allocation2 + $0x280] sm:$0xff]
    %v136 = vld [vmem:[#allocation2 + $0x288] sm:$0xff]
    %v137 = vld [vmem:[#allocation2 + $0x290] sm:$0xff]
    %v138 = vld [vmem:[#allocation2 + $0x298] sm:$0xff]
    %v139 = vld [vmem:[#allocation2 + $0x2a0] sm:$0xff]
    %v140 = vld [vmem:[#allocation2 + $0x2a8] sm:$0xff]
    %v141 = vld [vmem:[#allocation2 + $0x2b0] sm:$0xff]
    %v142 = vld [vmem:[#allocation2 + $0x2b8] sm:$0xff]
    %v143 = vld [vmem:[#allocation2 + $0x2c0] sm:$0xff]
    %v144 = vld [vmem:[#allocation2 + $0x2c8] sm:$0xff]
    %v145 = vld [vmem:[#allocation2 + $0x2d0] sm:$0xff]
    %v146 = vld [vmem:[#allocation2 + $0x2d8] sm:$0xff]
    %v147 = vld [vmem:[#allocation2 + $0x2e0] sm:$0xff]
    %v148 = vld [vmem:[#allocation2 + $0x2e8] sm:$0xff]
    %v149 = vld [vmem:[#allocation2 + $0x2f0] sm:$0xff]
    %v150 = vld [vmem:[#allocation2 + $0x2f8] sm:$0xff]
    %v151 = vld [vmem:[#allocation2 + $0x300] sm:$0xff]
    %v152 = vld [vmem:[#allocation2 + $0x308] sm:$0xff]
    %v153 = vld [vmem:[#allocation2 + $0x310] sm:$0xff]
    %v154 = vld [vmem:[#allocation2 + $0x318] sm:$0xff]
    %v155 = vld [vmem:[#allocation2 + $0x320] sm:$0xff]
    %v156 = vld [vmem:[#allocation2 + $0x328] sm:$0xff]
    %v157 = vld [vmem:[#allocation2 + $0x330] sm:$0xff]
    %v158 = vld [vmem:[#allocation2 + $0x338] sm:$0xff]
    %v159 = vld [vmem:[#allocation2 + $0x340] sm:$0xff]
    %v160 = vld [vmem:[#allocation2 + $0x348] sm:$0xff]
    %v161 = vld [vmem:[#allocation2 + $0x350] sm:$0xff]
    %v162 = vld [vmem:[#allocation2 + $0x358] sm:$0xff]
    %v163 = vld [vmem:[#allocation2 + $0x360] sm:$0xff]
    %v164 = vld [vmem:[#allocation2 + $0x368] sm:$0xff]
    %v165 = vld [vmem:[#allocation2 + $0x370] sm:$0xff]
    %v166 = vld [vmem:[#allocation2 + $0x378] sm:$0xff]
    %v167 = vld [vmem:[#allocation2 + $0x380] sm:$0xff]
    %v168 = vld [vmem:[#allocation2 + $0x388] sm:$0xff]
    %v169 = vld [vmem:[#allocation2 + $0x390] sm:$0xff]
    %v170 = vld [vmem:[#allocation2 + $0x398] sm:$0xff]
    %v171 = vld [vmem:[#allocation2 + $0x3a0] sm:$0xff]
    %v172 = vld [vmem:[#allocation2 + $0x3a8] sm:$0xff]
    %v173 = vld [vmem:[#allocation2 + $0x3b0] sm:$0xff]
    %v174 = vld [vmem:[#allocation2 + $0x3b8] sm:$0xff]
    %v175 = vld [vmem:[#allocation2 + $0x3c0] sm:$0xff]
    %v176 = vld [vmem:[#allocation2 + $0x3c8] sm:$0xff]
    %v177 = vld [vmem:[#allocation2 + $0x3d0] sm:$0xff]
    %v178 = vld [vmem:[#allocation2 + $0x3d8] sm:$0xff]
    %v179 = vld [vmem:[#allocation2 + $0x3e0] sm:$0xff]
    %v180 = vld [vmem:[#allocation2 + $0x3e8] sm:$0xff]
    %v181 = vld [vmem:[#allocation2 + $0x3f0] sm:$0xff]
    %v182 = vld [vmem:[#allocation2 + $0x3f8] sm:$0xff]
    %v183 = vld [vmem:[#allocation2 + $0x400] sm:$0xff]
    %v184 = vld [vmem:[#allocation2 + $0x408] sm:$0xff]
    %v185 = vld [vmem:[#allocation2 + $0x410] sm:$0xff]
    %v186 = vld [vmem:[#allocation2 + $0x418] sm:$0xff]
    %v187 = vld [vmem:[#allocation2 + $0x420] sm:$0xff]
    %v188 = vld [vmem:[#allocation2 + $0x428] sm:$0xff]
    %v189 = vld [vmem:[#allocation2 + $0x430] sm:$0xff]
    %v190 = vld [vmem:[#allocation2 + $0x438] sm:$0xff]
    %v191 = vld [vmem:[#allocation2 + $0x440] sm:$0xff]
    %v192 = vld [vmem:[#allocation2 + $0x448] sm:$0xff]
    %v193 = vld [vmem:[#allocation2 + $0x450] sm:$0xff]
    %v194 = vld [vmem:[#allocation2 + $0x458] sm:$0xff]
    %v195 = vld [vmem:[#allocation2 + $0x460] sm:$0xff]
    %v196 = vld [vmem:[#allocation2 + $0x468] sm:$0xff]
    %v197 = vld [vmem:[#allocation2 + $0x470] sm:$0xff]
    %v198 = vld [vmem:[#allocation2 + $0x478] sm:$0xff]
    %v199 = vpack.c.bf16 %v64, %v55
    %v200 = vpack.c.bf16 %v65, %v56
    %v201 = vpack.c.bf16 %v66, %v57
    %v202 = vpack.c.bf16 %v67, %v58
    %v203 = vpack.c.bf16 %v68, %v59
    %v204 = vpack.c.bf16 %v69, %v60
    %v205 = vpack.c.bf16 %v70, %v61
    %v206 = vpack.c.bf16 %v71, %v62
    %v207 = vpack.c.bf16 %v72, %v63
    %v208 = vpack.c.bf16 %v82, %v73
    %v209 = vpack.c.bf16 %v83, %v74
    %v210 = vpack.c.bf16 %v84, %v75
    %v211 = vpack.c.bf16 %v85, %v76
    %v212 = vpack.c.bf16 %v86, %v77
    %v213 = vpack.c.bf16 %v87, %v78
    %v214 = vpack.c.bf16 %v88, %v79
    %v215 = vpack.c.bf16 %v89, %v80
    %v216 = vpack.c.bf16 %v90, %v81
    %v217 = vpack.c.bf16 %v100, %v91
    %v218 = vpack.c.bf16 %v101, %v92
    %v219 = vpack.c.bf16 %v102, %v93
    %v220 = vpack.c.bf16 %v103, %v94
    %v221 = vpack.c.bf16 %v104, %v95
    %v222 = vpack.c.bf16 %v105, %v96
    %v223 = vpack.c.bf16 %v106, %v97
    %v224 = vpack.c.bf16 %v107, %v98
    %v225 = vpack.c.bf16 %v108, %v99
    %v226 = vpack.c.bf16 %v118, %v109
    %v227 = vpack.c.bf16 %v119, %v110
    %v228 = vpack.c.bf16 %v120, %v111
    %v229 = vpack.c.bf16 %v121, %v112
    %v230 = vpack.c.bf16 %v122, %v113
    %v231 = vpack.c.bf16 %v123, %v114
    %v232 = vpack.c.bf16 %v124, %v115
    %v233 = vpack.c.bf16 %v125, %v116
    %v234 = vpack.c.bf16 %v126, %v117
    %v235 = vpack.c.bf16 %v136, %v127
    %v236 = vpack.c.bf16 %v137, %v128
    %v237 = vpack.c.bf16 %v138, %v129
    %v238 = vpack.c.bf16 %v139, %v130
    %v239 = vpack.c.bf16 %v140, %v131
    %v240 = vpack.c.bf16 %v141, %v132
    %v241 = vpack.c.bf16 %v142, %v133
    %v242 = vpack.c.bf16 %v143, %v134
    %v243 = vpack.c.bf16 %v144, %v135
    %v244 = vpack.c.bf16 %v154, %v145
    %v245 = vpack.c.bf16 %v155, %v146
    %v246 = vpack.c.bf16 %v156, %v147
    %v247 = vpack.c.bf16 %v157, %v148
    %v248 = vpack.c.bf16 %v158, %v149
    %v249 = vpack.c.bf16 %v159, %v150
    %v250 = vpack.c.bf16 %v160, %v151
    %v251 = vpack.c.bf16 %v161, %v152
    %v252 = vpack.c.bf16 %v162, %v153
    %v253 = vpack.c.bf16 %v172, %v163
    %v254 = vpack.c.bf16 %v173, %v164
    %v255 = vpack.c.bf16 %v174, %v165
    %v256 = vpack.c.bf16 %v175, %v166
    %v257 = vpack.c.bf16 %v176, %v167
    %v258 = vpack.c.bf16 %v177, %v168
    %v259 = vpack.c.bf16 %v178, %v169
    %v260 = vpack.c.bf16 %v179, %v170
    %v261 = vpack.c.bf16 %v180, %v171
    %v262 = vpack.c.bf16 %v190, %v181
    %v263 = vpack.c.bf16 %v191, %v182
    %v264 = vpack.c.bf16 %v192, %v183
    %v265 = vpack.c.bf16 %v193, %v184
    %v266 = vpack.c.bf16 %v194, %v185
    %v267 = vpack.c.bf16 %v195, %v186
    %v268 = vpack.c.bf16 %v196, %v187
    %v269 = vpack.c.bf16 %v197, %v188
    %v270 = vpack.c.bf16 %v198, %v189
    %v271 = vld [vmem:[#allocation5] sm:$0xf]
    %v272 = vld [vmem:[#allocation5 + $0x4] sm:$0xf]
    %v273 = vld [vmem:[#allocation5 + $0x8] sm:$0xf]
    %v274 = vld [vmem:[#allocation5 + $0xc] sm:$0xf]
    %v275 = vld [vmem:[#allocation5 + $0x10] sm:$0xf]
    %v276 = vld [vmem:[#allocation5 + $0x14] sm:$0xf]
    %v277 = vld [vmem:[#allocation5 + $0x18] sm:$0xf]
    %v278 = vld [vmem:[#allocation5 + $0x1c] sm:$0xf]
    %v279 = vld [vmem:[#allocation5 + $0x20] sm:$0xf]
    %v280 = vld [vmem:[#allocation5 + $0x24] sm:$0xf]
    %v281 = vld [vmem:[#allocation5 + $0x28] sm:$0xf]
    %v282 = vld [vmem:[#allocation5 + $0x2c] sm:$0xf]
    %v283 = vld [vmem:[#allocation5 + $0x30] sm:$0xf]
    %v284 = vld [vmem:[#allocation5 + $0x34] sm:$0xf]
    %v285 = vld [vmem:[#allocation5 + $0x38] sm:$0xf]
    %v286 = vld [vmem:[#allocation5 + $0x3c] sm:$0xf]
    %v287 = vld [vmem:[#allocation5 + $0x40] sm:$0xf]
    %v288 = vld [vmem:[#allocation5 + $0x44] sm:$0xf]
    %v289 = vld [vmem:[#allocation5 + $0x48] sm:$0xf]
    %v290 = vld [vmem:[#allocation5 + $0x4c] sm:$0xf]
    %v291 = vld [vmem:[#allocation5 + $0x50] sm:$0xf]
    %v292 = vld [vmem:[#allocation5 + $0x54] sm:$0xf]
    %v293 = vld [vmem:[#allocation5 + $0x58] sm:$0xf]
    %v294 = vld [vmem:[#allocation5 + $0x5c] sm:$0xf]
    %v295 = vld [vmem:[#allocation5 + $0x60] sm:$0xf]
    %v296 = vld [vmem:[#allocation5 + $0x64] sm:$0xf]
    %v297 = vld [vmem:[#allocation5 + $0x68] sm:$0xf]
    %v298 = vld [vmem:[#allocation5 + $0x6c] sm:$0xf]
    %v299 = vld [vmem:[#allocation5 + $0x70] sm:$0xf]
    %v300 = vld [vmem:[#allocation5 + $0x74] sm:$0xf]
    %v301 = vld [vmem:[#allocation5 + $0x78] sm:$0xf]
    %v302 = vld [vmem:[#allocation5 + $0x7c] sm:$0xf]
    %v303 = vld [vmem:[#allocation5 + $0x80] sm:$0xf]
    %v304 = vld [vmem:[#allocation5 + $0x84] sm:$0xf]
    %v305 = vld [vmem:[#allocation5 + $0x88] sm:$0xf]
    %v306 = vld [vmem:[#allocation5 + $0x8c] sm:$0xf]
    %v307 = vld [vmem:[#allocation5 + $0x90] sm:$0xf]
    %v308 = vld [vmem:[#allocation5 + $0x94] sm:$0xf]
    %v309 = vld [vmem:[#allocation5 + $0x98] sm:$0xf]
    %v310 = vld [vmem:[#allocation5 + $0x9c] sm:$0xf]
    %v311 = vld [vmem:[#allocation5 + $0xa0] sm:$0xf]
    %v312 = vld [vmem:[#allocation5 + $0xa4] sm:$0xf]
    %v313 = vld [vmem:[#allocation5 + $0xa8] sm:$0xf]
    %v314 = vld [vmem:[#allocation5 + $0xac] sm:$0xf]
    %v315 = vld [vmem:[#allocation5 + $0xb0] sm:$0xf]
    %v316 = vld [vmem:[#allocation5 + $0xb4] sm:$0xf]
    %v317 = vld [vmem:[#allocation5 + $0xb8] sm:$0xf]
    %v318 = vld [vmem:[#allocation5 + $0xbc] sm:$0xf]
    %v319 = vld [vmem:[#allocation5 + $0xc0] sm:$0xf]
    %v320 = vld [vmem:[#allocation5 + $0xc4] sm:$0xf]
    %v321 = vld [vmem:[#allocation5 + $0xc8] sm:$0xf]
    %v322 = vld [vmem:[#allocation5 + $0xcc] sm:$0xf]
    %v323 = vld [vmem:[#allocation5 + $0xd0] sm:$0xf]
    %v324 = vld [vmem:[#allocation5 + $0xd4] sm:$0xf]
    %v325 = vld [vmem:[#allocation5 + $0xd8] sm:$0xf]
    %v326 = vld [vmem:[#allocation5 + $0xdc] sm:$0xf]
    %v327 = vld [vmem:[#allocation5 + $0xe0] sm:$0xf]
    %v328 = vld [vmem:[#allocation5 + $0xe4] sm:$0xf]
    %v329 = vld [vmem:[#allocation5 + $0xe8] sm:$0xf]
    %v330 = vld [vmem:[#allocation5 + $0xec] sm:$0xf]
    %v331 = vld [vmem:[#allocation5 + $0xf0] sm:$0xf]
    %v332 = vld [vmem:[#allocation5 + $0xf4] sm:$0xf]
    %v333 = vld [vmem:[#allocation5 + $0xf8] sm:$0xf]
    %v334 = vld [vmem:[#allocation5 + $0xfc] sm:$0xf]
    %v335 = vld [vmem:[#allocation5 + $0x100] sm:$0xf]
    %v336 = vld [vmem:[#allocation5 + $0x104] sm:$0xf]
    %v337 = vld [vmem:[#allocation5 + $0x108] sm:$0xf]
    %v338 = vld [vmem:[#allocation5 + $0x10c] sm:$0xf]
    %v339 = vld [vmem:[#allocation5 + $0x110] sm:$0xf]
    %v340 = vld [vmem:[#allocation5 + $0x114] sm:$0xf]
    %v341 = vld [vmem:[#allocation5 + $0x118] sm:$0xf]
    %v342 = vld [vmem:[#allocation5 + $0x11c] sm:$0xf]
    %v343 = vld [vmem:[#allocation5 + $0x120] sm:$0xf]
    %v344 = vld [vmem:[#allocation5 + $0x124] sm:$0xf]
    %v345 = vld [vmem:[#allocation5 + $0x128] sm:$0xf]
    %v346 = vld [vmem:[#allocation5 + $0x12c] sm:$0xf]
    %v347 = vld [vmem:[#allocation5 + $0x130] sm:$0xf]
    %v348 = vld [vmem:[#allocation5 + $0x134] sm:$0xf]
    %v349 = vld [vmem:[#allocation5 + $0x138] sm:$0xf]
    %v350 = vld [vmem:[#allocation5 + $0x13c] sm:$0xf]
    %v351 = vld [vmem:[#allocation5 + $0x140] sm:$0xf]
    %v352 = vld [vmem:[#allocation5 + $0x144] sm:$0xf]
    %v353 = vld [vmem:[#allocation5 + $0x148] sm:$0xf]
    %v354 = vld [vmem:[#allocation5 + $0x14c] sm:$0xf]
    %v355 = vld [vmem:[#allocation5 + $0x150] sm:$0xf]
    %v356 = vld [vmem:[#allocation5 + $0x154] sm:$0xf]
    %v357 = vld [vmem:[#allocation5 + $0x158] sm:$0xf]
    %v358 = vld [vmem:[#allocation5 + $0x15c] sm:$0xf]
    %v359 = vld [vmem:[#allocation5 + $0x160] sm:$0xf]
    %v360 = vld [vmem:[#allocation5 + $0x164] sm:$0xf]
    %v361 = vld [vmem:[#allocation5 + $0x168] sm:$0xf]
    %v362 = vld [vmem:[#allocation5 + $0x16c] sm:$0xf]
    %v363 = vld [vmem:[#allocation5 + $0x170] sm:$0xf]
    %v364 = vld [vmem:[#allocation5 + $0x174] sm:$0xf]
    %v365 = vld [vmem:[#allocation5 + $0x178] sm:$0xf]
    %v366 = vld [vmem:[#allocation5 + $0x17c] sm:$0xf]
    %v367 = vld [vmem:[#allocation5 + $0x180] sm:$0xf]
    %v368 = vld [vmem:[#allocation5 + $0x184] sm:$0xf]
    %v369 = vld [vmem:[#allocation5 + $0x188] sm:$0xf]
    %v370 = vld [vmem:[#allocation5 + $0x18c] sm:$0xf]
    %v371 = vld [vmem:[#allocation5 + $0x190] sm:$0xf]
    %v372 = vld [vmem:[#allocation5 + $0x194] sm:$0xf]
    %v373 = vld [vmem:[#allocation5 + $0x198] sm:$0xf]
    %v374 = vld [vmem:[#allocation5 + $0x19c] sm:$0xf]
    %v375 = vld [vmem:[#allocation5 + $0x1a0] sm:$0xf]
    %v376 = vld [vmem:[#allocation5 + $0x1a4] sm:$0xf]
    %v377 = vld [vmem:[#allocation5 + $0x1a8] sm:$0xf]
    %v378 = vld [vmem:[#allocation5 + $0x1ac] sm:$0xf]
    %v379 = vld [vmem:[#allocation5 + $0x1b0] sm:$0xf]
    %v380 = vld [vmem:[#allocation5 + $0x1b4] sm:$0xf]
    %v381 = vld [vmem:[#allocation5 + $0x1b8] sm:$0xf]
    %v382 = vld [vmem:[#allocation5 + $0x1bc] sm:$0xf]
    %v383 = vld [vmem:[#allocation5 + $0x1c0] sm:$0xf]
    %v384 = vld [vmem:[#allocation5 + $0x1c4] sm:$0xf]
    %v385 = vld [vmem:[#allocation5 + $0x1c8] sm:$0xf]
    %v386 = vld [vmem:[#allocation5 + $0x1cc] sm:$0xf]
    %v387 = vld [vmem:[#allocation5 + $0x1d0] sm:$0xf]
    %v388 = vld [vmem:[#allocation5 + $0x1d4] sm:$0xf]
    %v389 = vld [vmem:[#allocation5 + $0x1d8] sm:$0xf]
    %v390 = vld [vmem:[#allocation5 + $0x1dc] sm:$0xf]
    %v391 = vld [vmem:[#allocation5 + $0x1e0] sm:$0xf]
    %v392 = vld [vmem:[#allocation5 + $0x1e4] sm:$0xf]
    %v393 = vld [vmem:[#allocation5 + $0x1e8] sm:$0xf]
    %v394 = vld [vmem:[#allocation5 + $0x1ec] sm:$0xf]
    %v395 = vld [vmem:[#allocation5 + $0x1f0] sm:$0xf]
    %v396 = vld [vmem:[#allocation5 + $0x1f4] sm:$0xf]
    %v397 = vld [vmem:[#allocation5 + $0x1f8] sm:$0xf]
    %v398 = vld [vmem:[#allocation5 + $0x1fc] sm:$0xf]
    %v399 = vld [vmem:[#allocation5 + $0x200] sm:$0xf]
    %v400 = vld [vmem:[#allocation5 + $0x204] sm:$0xf]
    %v401 = vld [vmem:[#allocation5 + $0x208] sm:$0xf]
    %v402 = vld [vmem:[#allocation5 + $0x20c] sm:$0xf]
    %v403 = vld [vmem:[#allocation5 + $0x210] sm:$0xf]
    %v404 = vld [vmem:[#allocation5 + $0x214] sm:$0xf]
    %v405 = vld [vmem:[#allocation5 + $0x218] sm:$0xf]
    %v406 = vld [vmem:[#allocation5 + $0x21c] sm:$0xf]
    %v407 = vld [vmem:[#allocation5 + $0x220] sm:$0xf]
    %v408 = vld [vmem:[#allocation5 + $0x224] sm:$0xf]
    %v409 = vld [vmem:[#allocation5 + $0x228] sm:$0xf]
    %v410 = vld [vmem:[#allocation5 + $0x22c] sm:$0xf]
    %v411 = vld [vmem:[#allocation5 + $0x230] sm:$0xf]
    %v412 = vld [vmem:[#allocation5 + $0x234] sm:$0xf]
    %v413 = vld [vmem:[#allocation5 + $0x238] sm:$0xf]
    %v414 = vld [vmem:[#allocation5 + $0x23c] sm:$0xf]
    %v415 = vld [vmem:[#allocation7] sm:$0x1]
    %v417 = vlaneseq
    %v418 = vshrl.u32 %v417, 7
    %v419 = vsub.s32 0, %v418
    %v420 = vrot.slane %v415, %v419
    %v566 = vunpack.c.l.b16 %v271
    %v567 = vunpack.c.l.b16 %v272
    %v568 = vunpack.c.l.b16 %v273
    %v569 = vunpack.c.l.b16 %v274
    %v570 = vunpack.c.l.b16 %v275
    %v571 = vunpack.c.l.b16 %v276
    %v572 = vunpack.c.l.b16 %v277
    %v573 = vunpack.c.l.b16 %v278
    %v574 = vunpack.c.l.b16 %v279
    %v575 = vunpack.c.l.b16 %v280
    %v576 = vunpack.c.l.b16 %v281
    %v577 = vunpack.c.l.b16 %v282
    %v578 = vunpack.c.l.b16 %v283
    %v579 = vunpack.c.l.b16 %v284
    %v580 = vunpack.c.l.b16 %v285
    %v581 = vunpack.c.l.b16 %v286
    %v582 = vunpack.c.l.b16 %v287
    %v583 = vunpack.c.l.b16 %v288
    %v584 = vunpack.c.l.b16 %v289
    %v585 = vunpack.c.l.b16 %v290
    %v586 = vunpack.c.l.b16 %v291
    %v587 = vunpack.c.l.b16 %v292
    %v588 = vunpack.c.l.b16 %v293
    %v589 = vunpack.c.l.b16 %v294
    %v590 = vunpack.c.l.b16 %v295
    %v591 = vunpack.c.l.b16 %v296
    %v592 = vunpack.c.l.b16 %v297
    %v593 = vunpack.c.l.b16 %v298
    %v594 = vunpack.c.l.b16 %v299
    %v595 = vunpack.c.l.b16 %v300
    %v596 = vunpack.c.l.b16 %v301
    %v597 = vunpack.c.l.b16 %v302
    %v598 = vunpack.c.l.b16 %v303
    %v599 = vunpack.c.l.b16 %v304
    %v600 = vunpack.c.l.b16 %v305
    %v601 = vunpack.c.l.b16 %v306
    %v602 = vunpack.c.l.b16 %v307
    %v603 = vunpack.c.l.b16 %v308
    %v604 = vunpack.c.l.b16 %v309
    %v605 = vunpack.c.l.b16 %v310
    %v606 = vunpack.c.l.b16 %v311
    %v607 = vunpack.c.l.b16 %v312
    %v608 = vunpack.c.l.b16 %v313
    %v609 = vunpack.c.l.b16 %v314
    %v610 = vunpack.c.l.b16 %v315
    %v611 = vunpack.c.l.b16 %v316
    %v612 = vunpack.c.l.b16 %v317
    %v613 = vunpack.c.l.b16 %v318
    %v614 = vunpack.c.l.b16 %v319
    %v615 = vunpack.c.l.b16 %v320
    %v616 = vunpack.c.l.b16 %v321
    %v617 = vunpack.c.l.b16 %v322
    %v618 = vunpack.c.l.b16 %v323
    %v619 = vunpack.c.l.b16 %v324
    %v620 = vunpack.c.l.b16 %v325
    %v621 = vunpack.c.l.b16 %v326
    %v622 = vunpack.c.l.b16 %v327
    %v623 = vunpack.c.l.b16 %v328
    %v624 = vunpack.c.l.b16 %v329
    %v625 = vunpack.c.l.b16 %v330
    %v626 = vunpack.c.l.b16 %v331
    %v627 = vunpack.c.l.b16 %v332
    %v628 = vunpack.c.l.b16 %v333
    %v629 = vunpack.c.l.b16 %v334
    %v630 = vunpack.c.l.b16 %v335
    %v631 = vunpack.c.l.b16 %v336
    %v632 = vunpack.c.l.b16 %v337
    %v633 = vunpack.c.l.b16 %v338
    %v634 = vunpack.c.l.b16 %v339
    %v635 = vunpack.c.l.b16 %v340
    %v636 = vunpack.c.l.b16 %v341
    %v637 = vunpack.c.l.b16 %v342
    %v638 = vunpack.c.l.b16 %v343
    %v639 = vunpack.c.l.b16 %v344
    %v640 = vunpack.c.l.b16 %v345
    %v641 = vunpack.c.l.b16 %v346
    %v642 = vunpack.c.l.b16 %v347
    %v643 = vunpack.c.l.b16 %v348
    %v644 = vunpack.c.l.b16 %v349
    %v645 = vunpack.c.l.b16 %v350
    %v646 = vunpack.c.l.b16 %v351
    %v647 = vunpack.c.l.b16 %v352
    %v648 = vunpack.c.l.b16 %v353
    %v649 = vunpack.c.l.b16 %v354
    %v650 = vunpack.c.l.b16 %v355
    %v651 = vunpack.c.l.b16 %v356
    %v652 = vunpack.c.l.b16 %v357
    %v653 = vunpack.c.l.b16 %v358
    %v654 = vunpack.c.l.b16 %v359
    %v655 = vunpack.c.l.b16 %v360
    %v656 = vunpack.c.l.b16 %v361
    %v657 = vunpack.c.l.b16 %v362
    %v658 = vunpack.c.l.b16 %v363
    %v659 = vunpack.c.l.b16 %v364
    %v660 = vunpack.c.l.b16 %v365
    %v661 = vunpack.c.l.b16 %v366
    %v662 = vunpack.c.l.b16 %v367
    %v663 = vunpack.c.l.b16 %v368
    %v664 = vunpack.c.l.b16 %v369
    %v665 = vunpack.c.l.b16 %v370
    %v666 = vunpack.c.l.b16 %v371
    %v667 = vunpack.c.l.b16 %v372
    %v668 = vunpack.c.l.b16 %v373
    %v669 = vunpack.c.l.b16 %v374
    %v670 = vunpack.c.l.b16 %v375
    %v671 = vunpack.c.l.b16 %v376
    %v672 = vunpack.c.l.b16 %v377
    %v673 = vunpack.c.l.b16 %v378
    %v674 = vunpack.c.l.b16 %v379
    %v675 = vunpack.c.l.b16 %v380
    %v676 = vunpack.c.l.b16 %v381
    %v677 = vunpack.c.l.b16 %v382
    %v678 = vunpack.c.l.b16 %v383
    %v679 = vunpack.c.l.b16 %v384
    %v680 = vunpack.c.l.b16 %v385
    %v681 = vunpack.c.l.b16 %v386
    %v682 = vunpack.c.l.b16 %v387
    %v683 = vunpack.c.l.b16 %v388
    %v684 = vunpack.c.l.b16 %v389
    %v685 = vunpack.c.l.b16 %v390
    %v686 = vunpack.c.l.b16 %v391
    %v687 = vunpack.c.l.b16 %v392
    %v688 = vunpack.c.l.b16 %v393
    %v689 = vunpack.c.l.b16 %v394
    %v690 = vunpack.c.l.b16 %v395
    %v691 = vunpack.c.l.b16 %v396
    %v692 = vunpack.c.l.b16 %v397
    %v693 = vunpack.c.l.b16 %v398
    %v694 = vunpack.c.l.b16 %v399
    %v695 = vunpack.c.l.b16 %v400
    %v696 = vunpack.c.l.b16 %v401
    %v697 = vunpack.c.l.b16 %v402
    %v698 = vunpack.c.l.b16 %v403
    %v699 = vunpack.c.l.b16 %v404
    %v700 = vunpack.c.l.b16 %v405
    %v701 = vunpack.c.l.b16 %v406
    %v702 = vunpack.c.l.b16 %v407
    %v703 = vunpack.c.l.b16 %v408
    %v704 = vunpack.c.l.b16 %v409
    %v705 = vunpack.c.l.b16 %v410
    %v706 = vunpack.c.l.b16 %v411
    %v707 = vunpack.c.l.b16 %v412
    %v708 = vunpack.c.l.b16 %v413
    %v709 = vunpack.c.l.b16 %v414
    %v710 = vpack.c.b16 %v567, %v566
    %v711 = vpack.c.b16 %v569, %v568
    %v712 = vpack.c.b16 %v571, %v570
    %v713 = vpack.c.b16 %v573, %v572
    %v714 = vpack.c.b16 %v575, %v574
    %v715 = vpack.c.b16 %v577, %v576
    %v716 = vpack.c.b16 %v579, %v578
    %v717 = vpack.c.b16 %v581, %v580
    %v718 = vpack.c.b16 %v583, %v582
    %v719 = vpack.c.b16 %v585, %v584
    %v720 = vpack.c.b16 %v587, %v586
    %v721 = vpack.c.b16 %v589, %v588
    %v722 = vpack.c.b16 %v591, %v590
    %v723 = vpack.c.b16 %v593, %v592
    %v724 = vpack.c.b16 %v595, %v594
    %v725 = vpack.c.b16 %v597, %v596
    %v726 = vpack.c.b16 %v599, %v598
    %v727 = vpack.c.b16 %v601, %v600
    %v728 = vpack.c.b16 %v603, %v602
    %v729 = vpack.c.b16 %v605, %v604
    %v730 = vpack.c.b16 %v607, %v606
    %v731 = vpack.c.b16 %v609, %v608
    %v732 = vpack.c.b16 %v611, %v610
    %v733 = vpack.c.b16 %v613, %v612
    %v734 = vpack.c.b16 %v615, %v614
    %v735 = vpack.c.b16 %v617, %v616
    %v736 = vpack.c.b16 %v619, %v618
    %v737 = vpack.c.b16 %v621, %v620
    %v738 = vpack.c.b16 %v623, %v622
    %v739 = vpack.c.b16 %v625, %v624
    %v740 = vpack.c.b16 %v627, %v626
    %v741 = vpack.c.b16 %v629, %v628
    %v742 = vpack.c.b16 %v631, %v630
    %v743 = vpack.c.b16 %v633, %v632
    %v744 = vpack.c.b16 %v635, %v634
    %v745 = vpack.c.b16 %v637, %v636
    %v746 = vpack.c.b16 %v639, %v638
    %v747 = vpack.c.b16 %v641, %v640
    %v748 = vpack.c.b16 %v643, %v642
    %v749 = vpack.c.b16 %v645, %v644
    %v750 = vpack.c.b16 %v647, %v646
    %v751 = vpack.c.b16 %v649, %v648
    %v752 = vpack.c.b16 %v651, %v650
    %v753 = vpack.c.b16 %v653, %v652
    %v754 = vpack.c.b16 %v655, %v654
    %v755 = vpack.c.b16 %v657, %v656
    %v756 = vpack.c.b16 %v659, %v658
    %v757 = vpack.c.b16 %v661, %v660
    %v758 = vpack.c.b16 %v663, %v662
    %v759 = vpack.c.b16 %v665, %v664
    %v760 = vpack.c.b16 %v667, %v666
    %v761 = vpack.c.b16 %v669, %v668
    %v762 = vpack.c.b16 %v671, %v670
    %v763 = vpack.c.b16 %v673, %v672
    %v764 = vpack.c.b16 %v675, %v674
    %v765 = vpack.c.b16 %v677, %v676
    %v766 = vpack.c.b16 %v679, %v678
    %v767 = vpack.c.b16 %v681, %v680
    %v768 = vpack.c.b16 %v683, %v682
    %v769 = vpack.c.b16 %v685, %v684
    %v770 = vpack.c.b16 %v687, %v686
    %v771 = vpack.c.b16 %v689, %v688
    %v772 = vpack.c.b16 %v691, %v690
    %v773 = vpack.c.b16 %v693, %v692
    %v774 = vpack.c.b16 %v695, %v694
    %v775 = vpack.c.b16 %v697, %v696
    %v776 = vpack.c.b16 %v699, %v698
    %v777 = vpack.c.b16 %v701, %v700
    %v778 = vpack.c.b16 %v703, %v702
    %v779 = vpack.c.b16 %v705, %v704
    %v780 = vpack.c.b16 %v707, %v706
    %v781 = vpack.c.b16 %v709, %v708
    %854 = vmatprep.subr.bf16.mxu0 0
    %855 = vmatpush1.bf16.msra.mxu0 %v710
    %856 = vmatprep.subr.bf16.mxu0 0
    %857 = vmatpush1.bf16.msra.mxu0 %v711
    %858 = vmatprep.subr.bf16.mxu0 0
    %859 = vmatpush1.bf16.msra.mxu0 %v712
    %860 = vmatprep.subr.bf16.mxu0 0
    %861 = vmatpush1.bf16.msra.mxu0 %v713
    %862 = vmatprep.subr.bf16.mxu0 0
    %863 = vmatpush1.bf16.msra.mxu0 %v714
    %864 = vmatprep.subr.bf16.mxu0 0
    %865 = vmatpush1.bf16.msra.mxu0 %v715
    %866 = vmatprep.subr.bf16.mxu0 0
    %867 = vmatpush1.bf16.msra.mxu0 %v716
    %868 = vmatprep.subr.bf16.mxu0 0
    %869 = vmatpush1.bf16.msra.mxu0 %v717
    %870 = vmatprep.subr.bf16.mxu0 0
    %871 = vmatpush1.bf16.msra.mxu0 %v718
    %872 = vmatprep.subr.bf16.mxu0 0
    %873 = vmatpush1.bf16.msra.mxu0 %v719
    %874 = vmatprep.subr.bf16.mxu0 0
    %875 = vmatpush1.bf16.msra.mxu0 %v720
    %876 = vmatprep.subr.bf16.mxu0 0
    %877 = vmatpush1.bf16.msra.mxu0 %v721
    %878 = vmatprep.subr.bf16.mxu0 0
    %879 = vmatpush1.bf16.msra.mxu0 %v722
    %880 = vmatprep.subr.bf16.mxu0 0
    %881 = vmatpush1.bf16.msra.mxu0 %v723
    %882 = vmatprep.subr.bf16.mxu0 0
    %883 = vmatpush1.bf16.msra.mxu0 %v724
    %884 = vmatprep.subr.bf16.mxu0 0
    %885 = vmatpush1.bf16.msra.mxu0 %v725
    %886 = vmatprep.mubr.bf16.mxu0 %v200
    %887 = vmatmul.mubr.bf16.gmra.mrb[0].mxu0 %v199
    %v888 = vpop.f32.mrb[0].mxu0
    %v889 = vadd.f32 %v420, %v888
    %v890 = vpop.f32.mrb[0].mxu0
    %v891 = vpop.f32.mrb[0].mxu0
    %v892 = vadd.f32 %v420, %v891
    %v893 = vpop.f32.mrb[0].mxu0
    %894 = vmatprep.mubr.bf16.mxu0 %v209
    %895 = vmatmul.mubr.bf16.gmra.mrb[0].mxu0 %v208
    %v896 = vpop.f32.mrb[0].mxu0
    %v897 = vadd.f32 %v420, %v896
    %v898 = vpop.f32.mrb[0].mxu0
    %v899 = vpop.f32.mrb[0].mxu0
    %v900 = vadd.f32 %v420, %v899
    %v901 = vpop.f32.mrb[0].mxu0
    %902 = vmatprep.mubr.bf16.mxu0 %v218
    %903 = vmatmul.mubr.bf16.gmra.mrb[0].mxu0 %v217
    %v904 = vpop.f32.mrb[0].mxu0
    %v905 = vadd.f32 %v420, %v904
    %v906 = vpop.f32.mrb[0].mxu0
    %v907 = vpop.f32.mrb[0].mxu0
    %v908 = vadd.f32 %v420, %v907
    %v909 = vpop.f32.mrb[0].mxu0
    %910 = vmatprep.mubr.bf16.mxu0 %v227
    %911 = vmatmul.mubr.bf16.gmra.mrb[0].mxu0 %v226
    %v912 = vpop.f32.mrb[0].mxu0
    %v913 = vadd.f32 %v420, %v912
    %v914 = vpop.f32.mrb[0].mxu0
    %v915 = vpop.f32.mrb[0].mxu0
    %v916 = vadd.f32 %v420, %v915
    %v917 = vpop.f32.mrb[0].mxu0
    %918 = vmatprep.mubr.bf16.mxu0 %v236
    %919 = vmatmul.mubr.bf16.gmra.mrb[0].mxu0 %v235
    %v920 = vpop.f32.mrb[0].mxu0
    %v921 = vadd.f32 %v420, %v920
    %v922 = vpop.f32.mrb[0].mxu0
    %v923 = vpop.f32.mrb[0].mxu0
    %v924 = vadd.f32 %v420, %v923
    %v925 = vpop.f32.mrb[0].mxu0
    %926 = vmatprep.mubr.bf16.mxu0 %v245
    %927 = vmatmul.mubr.bf16.gmra.mrb[0].mxu0 %v244
    %v928 = vpop.f32.mrb[0].mxu0
    %v929 = vadd.f32 %v420, %v928
    %v930 = vpop.f32.mrb[0].mxu0
    %v931 = vpop.f32.mrb[0].mxu0
    %v932 = vadd.f32 %v420, %v931
    %v933 = vpop.f32.mrb[0].mxu0
    %934 = vmatprep.mubr.bf16.mxu0 %v254
    %935 = vmatmul.mubr.bf16.gmra.mrb[0].mxu0 %v253
    %v936 = vpop.f32.mrb[0].mxu0
    %v937 = vadd.f32 %v420, %v936
    %v938 = vpop.f32.mrb[0].mxu0
    %v939 = vpop.f32.mrb[0].mxu0
    %v940 = vadd.f32 %v420, %v939
    %v941 = vpop.f32.mrb[0].mxu0
    %942 = vmatprep.mubr.bf16.mxu0 %v263
    %943 = vmatmul.mubr.bf16.gmra.mrb[0].mxu0 %v262
    %v944 = vpop.f32.mrb[0].mxu0
    %v945 = vadd.f32 %v420, %v944
    %v946 = vpop.f32.mrb[0].mxu0
    %v947 = vpop.f32.mrb[0].mxu0
    %v948 = vadd.f32 %v420, %v947
    %v949 = vpop.f32.mrb[0].mxu0
    %950 = vdwg.mxu0
    %951 = vmatprep.subr.bf16.mxu0 0
    %952 = vmatpush1.bf16.msra.mxu0 %v726
    %953 = vmatprep.subr.bf16.mxu0 0
    %954 = vmatpush1.bf16.msra.mxu0 %v727
    %955 = vmatprep.subr.bf16.mxu0 0
    %956 = vmatpush1.bf16.msra.mxu0 %v728
    %957 = vmatprep.subr.bf16.mxu0 0
    %958 = vmatpush1.bf16.msra.mxu0 %v729
    %959 = vmatprep.subr.bf16.mxu0 0
    %960 = vmatpush1.bf16.msra.mxu0 %v730
    %961 = vmatprep.subr.bf16.mxu0 0
    %962 = vmatpush1.bf16.msra.mxu0 %v731
    %963 = vmatprep.subr.bf16.mxu0 0
    %964 = vmatpush1.bf16.msra.mxu0 %v732
    %965 = vmatprep.subr.bf16.mxu0 0
    %966 = vmatpush1.bf16.msra.mxu0 %v733
    %967 = vmatprep.subr.bf16.mxu0 0
    %968 = vmatpush1.bf16.msra.mxu0 %v734
    %969 = vmatprep.subr.bf16.mxu0 0
    %970 = vmatpush1.bf16.msra.mxu0 %v735
    %971 = vmatprep.subr.bf16.mxu0 0
    %972 = vmatpush1.bf16.msra.mxu0 %v736
    %973 = vmatprep.subr.bf16.mxu0 0
    %974 = vmatpush1.bf16.msra.mxu0 %v737
    %975 = vmatprep.subr.bf16.mxu0 0
    %976 = vmatpush1.bf16.msra.mxu0 %v738
    %977 = vmatprep.subr.bf16.mxu0 0
    %978 = vmatpush1.bf16.msra.mxu0 %v739
    %979 = vmatprep.subr.bf16.mxu0 0
    %980 = vmatpush1.bf16.msra.mxu0 %v740
    %981 = vmatprep.subr.bf16.mxu0 0
    %982 = vmatpush1.bf16.msra.mxu0 %v741
    %983 = vmatprep.mubr.bf16.mxu0 %v202
    %984 = vmatmul.mubr.bf16.gmra.mrb[0].mxu0 %v201
    %v985 = vpop.f32.mrb[0].mxu0
    %v986 = vadd.f32 %v889, %v985
    %v987 = vpop.f32.mrb[0].mxu0
    %v988 = vpop.f32.mrb[0].mxu0
    %v989 = vadd.f32 %v892, %v988
    %v990 = vpop.f32.mrb[0].mxu0
    %991 = vmatprep.mubr.bf16.mxu0 %v211
    %992 = vmatmul.mubr.bf16.gmra.mrb[0].mxu0 %v210
    %v993 = vpop.f32.mrb[0].mxu0
    %v994 = vadd.f32 %v897, %v993
    %v995 = vpop.f32.mrb[0].mxu0
    %v996 = vpop.f32.mrb[0].mxu0
    %v997 = vadd.f32 %v900, %v996
    %v998 = vpop.f32.mrb[0].mxu0
    %999 = vmatprep.mubr.bf16.mxu0 %v220
    %1000 = vmatmul.mubr.bf16.gmra.mrb[0].mxu0 %v219
    %v1001 = vpop.f32.mrb[0].mxu0
    %v1002 = vadd.f32 %v905, %v1001
    %v1003 = vpop.f32.mrb[0].mxu0
    %v1004 = vpop.f32.mrb[0].mxu0
    %v1005 = vadd.f32 %v908, %v1004
    %v1006 = vpop.f32.mrb[0].mxu0
    %1007 = vmatprep.mubr.bf16.mxu0 %v229
    %1008 = vmatmul.mubr.bf16.gmra.mrb[0].mxu0 %v228
    %v1009 = vpop.f32.mrb[0].mxu0
    %v1010 = vadd.f32 %v913, %v1009
    %v1011 = vpop.f32.mrb[0].mxu0
    %v1012 = vpop.f32.mrb[0].mxu0
    %v1013 = vadd.f32 %v916, %v1012
    %v1014 = vpop.f32.mrb[0].mxu0
    %1015 = vmatprep.mubr.bf16.mxu0 %v238
    %1016 = vmatmul.mubr.bf16.gmra.mrb[0].mxu0 %v237
    %v1017 = vpop.f32.mrb[0].mxu0
    %v1018 = vadd.f32 %v921, %v1017
    %v1019 = vpop.f32.mrb[0].mxu0
    %v1020 = vpop.f32.mrb[0].mxu0
    %v1021 = vadd.f32 %v924, %v1020
    %v1022 = vpop.f32.mrb[0].mxu0
    %1023 = vmatprep.mubr.bf16.mxu0 %v247
    %1024 = vmatmul.mubr.bf16.gmra.mrb[0].mxu0 %v246
    %v1025 = vpop.f32.mrb[0].mxu0
    %v1026 = vadd.f32 %v929, %v1025
    %v1027 = vpop.f32.mrb[0].mxu0
    %v1028 = vpop.f32.mrb[0].mxu0
    %v1029 = vadd.f32 %v932, %v1028
    %v1030 = vpop.f32.mrb[0].mxu0
    %1031 = vmatprep.mubr.bf16.mxu0 %v256
    %1032 = vmatmul.mubr.bf16.gmra.mrb[0].mxu0 %v255
    %v1033 = vpop.f32.mrb[0].mxu0
    %v1034 = vadd.f32 %v937, %v1033
    %v1035 = vpop.f32.mrb[0].mxu0
    %v1036 = vpop.f32.mrb[0].mxu0
    %v1037 = vadd.f32 %v940, %v1036
    %v1038 = vpop.f32.mrb[0].mxu0
    %1039 = vmatprep.mubr.bf16.mxu0 %v265
    %1040 = vmatmul.mubr.bf16.gmra.mrb[0].mxu0 %v264
    %v1041 = vpop.f32.mrb[0].mxu0
    %v1042 = vadd.f32 %v945, %v1041
    %v1043 = vpop.f32.mrb[0].mxu0
    %v1044 = vpop.f32.mrb[0].mxu0
    %v1045 = vadd.f32 %v948, %v1044
    %v1046 = vpop.f32.mrb[0].mxu0
    %1047 = vdwg.mxu0
    %1048 = vmatprep.subr.bf16.mxu0 0
    %1049 = vmatpush1.bf16.msra.mxu0 %v742
    %1050 = vmatprep.subr.bf16.mxu0 0
    %1051 = vmatpush1.bf16.msra.mxu0 %v743
    %1052 = vmatprep.subr.bf16.mxu0 0
    %1053 = vmatpush1.bf16.msra.mxu0 %v744
    %1054 = vmatprep.subr.bf16.mxu0 0
    %1055 = vmatpush1.bf16.msra.mxu0 %v745
    %1056 = vmatprep.subr.bf16.mxu0 0
    %1057 = vmatpush1.bf16.msra.mxu0 %v746
    %1058 = vmatprep.subr.bf16.mxu0 0
    %1059 = vmatpush1.bf16.msra.mxu0 %v747
    %1060 = vmatprep.subr.bf16.mxu0 0
    %1061 = vmatpush1.bf16.msra.mxu0 %v748
    %1062 = vmatprep.subr.bf16.mxu0 0
    %1063 = vmatpush1.bf16.msra.mxu0 %v749
    %1064 = vmatprep.subr.bf16.mxu0 0
    %1065 = vmatpush1.bf16.msra.mxu0 %v750
    %1066 = vmatprep.subr.bf16.mxu0 0
    %1067 = vmatpush1.bf16.msra.mxu0 %v751
    %1068 = vmatprep.subr.bf16.mxu0 0
    %1069 = vmatpush1.bf16.msra.mxu0 %v752
    %1070 = vmatprep.subr.bf16.mxu0 0
    %1071 = vmatpush1.bf16.msra.mxu0 %v753
    %1072 = vmatprep.subr.bf16.mxu0 0
    %1073 = vmatpush1.bf16.msra.mxu0 %v754
    %1074 = vmatprep.subr.bf16.mxu0 0
    %1075 = vmatpush1.bf16.msra.mxu0 %v755
    %1076 = vmatprep.subr.bf16.mxu0 0
    %1077 = vmatpush1.bf16.msra.mxu0 %v756
    %1078 = vmatprep.subr.bf16.mxu0 0
    %1079 = vmatpush1.bf16.msra.mxu0 %v757
    %1080 = vmatprep.mubr.bf16.mxu0 %v204
    %1081 = vmatmul.mubr.bf16.gmra.mrb[0].mxu0 %v203
    %v1082 = vpop.f32.mrb[0].mxu0
    %v1083 = vadd.f32 %v986, %v1082
    %v1084 = vpop.f32.mrb[0].mxu0
    %v1085 = vpop.f32.mrb[0].mxu0
    %v1086 = vadd.f32 %v989, %v1085
    %v1087 = vpop.f32.mrb[0].mxu0
    %1088 = vmatprep.mubr.bf16.mxu0 %v213
    %1089 = vmatmul.mubr.bf16.gmra.mrb[0].mxu0 %v212
    %v1090 = vpop.f32.mrb[0].mxu0
    %v1091 = vadd.f32 %v994, %v1090
    %v1092 = vpop.f32.mrb[0].mxu0
    %v1093 = vpop.f32.mrb[0].mxu0
    %v1094 = vadd.f32 %v997, %v1093
    %v1095 = vpop.f32.mrb[0].mxu0
    %1096 = vmatprep.mubr.bf16.mxu0 %v222
    %1097 = vmatmul.mubr.bf16.gmra.mrb[0].mxu0 %v221
    %v1098 = vpop.f32.mrb[0].mxu0
    %v1099 = vadd.f32 %v1002, %v1098
    %v1100 = vpop.f32.mrb[0].mxu0
    %v1101 = vpop.f32.mrb[0].mxu0
    %v1102 = vadd.f32 %v1005, %v1101
    %v1103 = vpop.f32.mrb[0].mxu0
    %1104 = vmatprep.mubr.bf16.mxu0 %v231
    %1105 = vmatmul.mubr.bf16.gmra.mrb[0].mxu0 %v230
    %v1106 = vpop.f32.mrb[0].mxu0
    %v1107 = vadd.f32 %v1010, %v1106
    %v1108 = vpop.f32.mrb[0].mxu0
    %v1109 = vpop.f32.mrb[0].mxu0
    %v1110 = vadd.f32 %v1013, %v1109
    %v1111 = vpop.f32.mrb[0].mxu0
    %1112 = vmatprep.mubr.bf16.mxu0 %v240
    %1113 = vmatmul.mubr.bf16.gmra.mrb[0].mxu0 %v239
    %v1114 = vpop.f32.mrb[0].mxu0
    %v1115 = vadd.f32 %v1018, %v1114
    %v1116 = vpop.f32.mrb[0].mxu0
    %v1117 = vpop.f32.mrb[0].mxu0
    %v1118 = vadd.f32 %v1021, %v1117
    %v1119 = vpop.f32.mrb[0].mxu0
    %1120 = vmatprep.mubr.bf16.mxu0 %v249
    %1121 = vmatmul.mubr.bf16.gmra.mrb[0].mxu0 %v248
    %v1122 = vpop.f32.mrb[0].mxu0
    %v1123 = vadd.f32 %v1026, %v1122
    %v1124 = vpop.f32.mrb[0].mxu0
    %v1125 = vpop.f32.mrb[0].mxu0
    %v1126 = vadd.f32 %v1029, %v1125
    %v1127 = vpop.f32.mrb[0].mxu0
    %1128 = vmatprep.mubr.bf16.mxu0 %v258
    %1129 = vmatmul.mubr.bf16.gmra.mrb[0].mxu0 %v257
    %v1130 = vpop.f32.mrb[0].mxu0
    %v1131 = vadd.f32 %v1034, %v1130
    %v1132 = vpop.f32.mrb[0].mxu0
    %v1133 = vpop.f32.mrb[0].mxu0
    %v1134 = vadd.f32 %v1037, %v1133
    %v1135 = vpop.f32.mrb[0].mxu0
    %1136 = vmatprep.mubr.bf16.mxu0 %v267
    %1137 = vmatmul.mubr.bf16.gmra.mrb[0].mxu0 %v266
    %v1138 = vpop.f32.mrb[0].mxu0
    %v1139 = vadd.f32 %v1042, %v1138
    %v1140 = vpop.f32.mrb[0].mxu0
    %v1141 = vpop.f32.mrb[0].mxu0
    %v1142 = vadd.f32 %v1045, %v1141
    %v1143 = vpop.f32.mrb[0].mxu0
    %1144 = vdwg.mxu0
    %1145 = vmatprep.subr.bf16.mxu0 0
    %1146 = vmatpush1.bf16.msra.mxu0 %v758
    %1147 = vmatprep.subr.bf16.mxu0 0
    %1148 = vmatpush1.bf16.msra.mxu0 %v759
    %1149 = vmatprep.subr.bf16.mxu0 0
    %1150 = vmatpush1.bf16.msra.mxu0 %v760
    %1151 = vmatprep.subr.bf16.mxu0 0
    %1152 = vmatpush1.bf16.msra.mxu0 %v761
    %1153 = vmatprep.subr.bf16.mxu0 0
    %1154 = vmatpush1.bf16.msra.mxu0 %v762
    %1155 = vmatprep.subr.bf16.mxu0 0
    %1156 = vmatpush1.bf16.msra.mxu0 %v763
    %1157 = vmatprep.subr.bf16.mxu0 0
    %1158 = vmatpush1.bf16.msra.mxu0 %v764
    %1159 = vmatprep.subr.bf16.mxu0 0
    %1160 = vmatpush1.bf16.msra.mxu0 %v765
    %1161 = vmatprep.subr.bf16.mxu0 0
    %1162 = vmatpush1.bf16.msra.mxu0 %v766
    %1163 = vmatprep.subr.bf16.mxu0 0
    %1164 = vmatpush1.bf16.msra.mxu0 %v767
    %1165 = vmatprep.subr.bf16.mxu0 0
    %1166 = vmatpush1.bf16.msra.mxu0 %v768
    %1167 = vmatprep.subr.bf16.mxu0 0
    %1168 = vmatpush1.bf16.msra.mxu0 %v769
    %1169 = vmatprep.subr.bf16.mxu0 0
    %1170 = vmatpush1.bf16.msra.mxu0 %v770
    %1171 = vmatprep.subr.bf16.mxu0 0
    %1172 = vmatpush1.bf16.msra.mxu0 %v771
    %1173 = vmatprep.subr.bf16.mxu0 0
    %1174 = vmatpush1.bf16.msra.mxu0 %v772
    %1175 = vmatprep.subr.bf16.mxu0 0
    %1176 = vmatpush1.bf16.msra.mxu0 %v773
    %1177 = vmatprep.mubr.bf16.mxu0 %v206
    %1178 = vmatmul.mubr.bf16.gmra.mrb[0].mxu0 %v205
    %v1179 = vpop.f32.mrb[0].mxu0
    %v1180 = vadd.f32 %v1083, %v1179
    %v1181 = vpop.f32.mrb[0].mxu0
    %v1182 = vpop.f32.mrb[0].mxu0
    %v1183 = vadd.f32 %v1086, %v1182
    %v1184 = vpop.f32.mrb[0].mxu0
    %1185 = vmatprep.mubr.bf16.mxu0 %v215
    %1186 = vmatmul.mubr.bf16.gmra.mrb[0].mxu0 %v214
    %v1187 = vpop.f32.mrb[0].mxu0
    %v1188 = vadd.f32 %v1091, %v1187
    %v1189 = vpop.f32.mrb[0].mxu0
    %v1190 = vpop.f32.mrb[0].mxu0
    %v1191 = vadd.f32 %v1094, %v1190
    %v1192 = vpop.f32.mrb[0].mxu0
    %1193 = vmatprep.mubr.bf16.mxu0 %v224
    %1194 = vmatmul.mubr.bf16.gmra.mrb[0].mxu0 %v223
    %v1195 = vpop.f32.mrb[0].mxu0
    %v1196 = vadd.f32 %v1099, %v1195
    %v1197 = vpop.f32.mrb[0].mxu0
    %v1198 = vpop.f32.mrb[0].mxu0
    %v1199 = vadd.f32 %v1102, %v1198
    %v1200 = vpop.f32.mrb[0].mxu0
    %1201 = vmatprep.mubr.bf16.mxu0 %v233
    %1202 = vmatmul.mubr.bf16.gmra.mrb[0].mxu0 %v232
    %v1203 = vpop.f32.mrb[0].mxu0
    %v1204 = vadd.f32 %v1107, %v1203
    %v1205 = vpop.f32.mrb[0].mxu0
    %v1206 = vpop.f32.mrb[0].mxu0
    %v1207 = vadd.f32 %v1110, %v1206
    %v1208 = vpop.f32.mrb[0].mxu0
    %1209 = vmatprep.mubr.bf16.mxu0 %v242
    %1210 = vmatmul.mubr.bf16.gmra.mrb[0].mxu0 %v241
    %v1211 = vpop.f32.mrb[0].mxu0
    %v1212 = vadd.f32 %v1115, %v1211
    %v1213 = vpop.f32.mrb[0].mxu0
    %v1214 = vpop.f32.mrb[0].mxu0
    %v1215 = vadd.f32 %v1118, %v1214
    %v1216 = vpop.f32.mrb[0].mxu0
    %1217 = vmatprep.mubr.bf16.mxu0 %v251
    %1218 = vmatmul.mubr.bf16.gmra.mrb[0].mxu0 %v250
    %v1219 = vpop.f32.mrb[0].mxu0
    %v1220 = vadd.f32 %v1123, %v1219
    %v1221 = vpop.f32.mrb[0].mxu0
    %v1222 = vpop.f32.mrb[0].mxu0
    %v1223 = vadd.f32 %v1126, %v1222
    %v1224 = vpop.f32.mrb[0].mxu0
    %1225 = vmatprep.mubr.bf16.mxu0 %v260
    %1226 = vmatmul.mubr.bf16.gmra.mrb[0].mxu0 %v259
    %v1227 = vpop.f32.mrb[0].mxu0
    %v1228 = vadd.f32 %v1131, %v1227
    %v1229 = vpop.f32.mrb[0].mxu0
    %v1230 = vpop.f32.mrb[0].mxu0
    %v1231 = vadd.f32 %v1134, %v1230
    %v1232 = vpop.f32.mrb[0].mxu0
    %1233 = vmatprep.mubr.bf16.mxu0 %v269
    %1234 = vmatmul.mubr.bf16.gmra.mrb[0].mxu0 %v268
    %v1235 = vpop.f32.mrb[0].mxu0
    %v1236 = vadd.f32 %v1139, %v1235
    %v1237 = vpop.f32.mrb[0].mxu0
    %v1238 = vpop.f32.mrb[0].mxu0
    %v1239 = vadd.f32 %v1142, %v1238
    %v1240 = vpop.f32.mrb[0].mxu0
    %1241 = vdwg.mxu0
    %1242 = vmatprep.subr.bf16.mxu0 0
    %1243 = vmatpush1.bf16.msra.mxu0 %v774
    %1244 = vmatprep.subr.bf16.mxu0 0
    %1245 = vmatpush1.bf16.msra.mxu0 %v775
    %1246 = vmatprep.subr.bf16.mxu0 0
    %1247 = vmatpush1.bf16.msra.mxu0 %v776
    %1248 = vmatprep.subr.bf16.mxu0 0
    %1249 = vmatpush1.bf16.msra.mxu0 %v777
    %1250 = vmatprep.subr.bf16.mxu0 0
    %1251 = vmatpush1.bf16.msra.mxu0 %v778
    %1252 = vmatprep.subr.bf16.mxu0 0
    %1253 = vmatpush1.bf16.msra.mxu0 %v779
    %1254 = vmatprep.subr.bf16.mxu0 0
    %1255 = vmatpush1.bf16.msra.mxu0 %v780
    %1256 = vmatprep.subr.bf16.mxu0 0
    %1257 = vmatpush1.bf16.msra.mxu0 %v781
    %1258 = vmatprep.subr.bf16.mxu0 0
    %1259 = vmatpush1.bf16.msra.mxu0 0
    %1260 = vmatprep.subr.bf16.mxu0 0
    %1261 = vmatpush1.bf16.msra.mxu0 0
    %1262 = vmatprep.subr.bf16.mxu0 0
    %1263 = vmatpush1.bf16.msra.mxu0 0
    %1264 = vmatprep.subr.bf16.mxu0 0
    %1265 = vmatpush1.bf16.msra.mxu0 0
    %1266 = vmatprep.subr.bf16.mxu0 0
    %1267 = vmatpush1.bf16.msra.mxu0 0
    %1268 = vmatprep.subr.bf16.mxu0 0
    %1269 = vmatpush1.bf16.msra.mxu0 0
    %1270 = vmatprep.subr.bf16.mxu0 0
    %1271 = vmatpush1.bf16.msra.mxu0 0
    %1272 = vmatprep.subr.bf16.mxu0 0
    %1273 = vmatpush1.bf16.msra.mxu0 0
    %1274 = vmatprep.mubr.bf16.mxu0 0
    %1275 = vmatmul.mubr.bf16.gmra.mrb[0].mxu0 %v207
    %v1276 = vpop.f32.mrb[0].mxu0
    %v1277 = vadd.f32 %v1180, %v1276
    %v1278 = vpop.f32.mrb[0].mxu0
    %v1279 = vpop.f32.mrb[0].mxu0
    %v1280 = vadd.f32 %v1183, %v1279
    %v1281 = vpop.f32.mrb[0].mxu0
    %1282 = vmatprep.mubr.bf16.mxu0 0
    %1283 = vmatmul.mubr.bf16.gmra.mrb[0].mxu0 %v216
    %v1284 = vpop.f32.mrb[0].mxu0
    %v1285 = vadd.f32 %v1188, %v1284
    %v1286 = vpop.f32.mrb[0].mxu0
    %v1287 = vpop.f32.mrb[0].mxu0
    %v1288 = vadd.f32 %v1191, %v1287
    %v1289 = vpop.f32.mrb[0].mxu0
    %1290 = vmatprep.mubr.bf16.mxu0 0
    %1291 = vmatmul.mubr.bf16.gmra.mrb[0].mxu0 %v225
    %v1292 = vpop.f32.mrb[0].mxu0
    %v1293 = vadd.f32 %v1196, %v1292
    %v1294 = vpop.f32.mrb[0].mxu0
    %v1295 = vpop.f32.mrb[0].mxu0
    %v1296 = vadd.f32 %v1199, %v1295
    %v1297 = vpop.f32.mrb[0].mxu0
    %1298 = vmatprep.mubr.bf16.mxu0 0
    %1299 = vmatmul.mubr.bf16.gmra.mrb[0].mxu0 %v234
    %v1300 = vpop.f32.mrb[0].mxu0
    %v1301 = vadd.f32 %v1204, %v1300
    %v1302 = vpop.f32.mrb[0].mxu0
    %v1303 = vpop.f32.mrb[0].mxu0
    %v1304 = vadd.f32 %v1207, %v1303
    %v1305 = vpop.f32.mrb[0].mxu0
    %1306 = vmatprep.mubr.bf16.mxu0 0
    %1307 = vmatmul.mubr.bf16.gmra.mrb[0].mxu0 %v243
    %v1308 = vpop.f32.mrb[0].mxu0
    %v1309 = vadd.f32 %v1212, %v1308
    %v1310 = vpop.f32.mrb[0].mxu0
    %v1311 = vpop.f32.mrb[0].mxu0
    %v1312 = vadd.f32 %v1215, %v1311
    %v1313 = vpop.f32.mrb[0].mxu0
    %1314 = vmatprep.mubr.bf16.mxu0 0
    %1315 = vmatmul.mubr.bf16.gmra.mrb[0].mxu0 %v252
    %v1316 = vpop.f32.mrb[0].mxu0
    %v1317 = vadd.f32 %v1220, %v1316
    %v1318 = vpop.f32.mrb[0].mxu0
    %v1319 = vpop.f32.mrb[0].mxu0
    %v1320 = vadd.f32 %v1223, %v1319
    %v1321 = vpop.f32.mrb[0].mxu0
    %1322 = vmatprep.mubr.bf16.mxu0 0
    %1323 = vmatmul.mubr.bf16.gmra.mrb[0].mxu0 %v261
    %v1324 = vpop.f32.mrb[0].mxu0
    %v1325 = vadd.f32 %v1228, %v1324
    %v1326 = vpop.f32.mrb[0].mxu0
    %v1327 = vpop.f32.mrb[0].mxu0
    %v1328 = vadd.f32 %v1231, %v1327
    %v1329 = vpop.f32.mrb[0].mxu0
    %1330 = vmatprep.mubr.bf16.mxu0 0
    %1331 = vmatmul.mubr.bf16.gmra.mrb[0].mxu0 %v270
    %v1332 = vpop.f32.mrb[0].mxu0
    %v1333 = vadd.f32 %v1236, %v1332
    %v1334 = vpop.f32.mrb[0].mxu0
    %v1335 = vpop.f32.mrb[0].mxu0
    %v1336 = vadd.f32 %v1239, %v1335
    %v1337 = vpop.f32.mrb[0].mxu0
    %1338 = vdwg.mxu0
    %1339 = vst [vmem:[#allocation8] sm:$0xff] %v1277
    %1340 = vst [vmem:[#allocation8 + $0x8] sm:$0xff] %v1280
    %1341 = vst [vmem:[#allocation8 + $0x10] sm:$0xff] %v1285
    %1342 = vst [vmem:[#allocation8 + $0x18] sm:$0xff] %v1288
    %1343 = vst [vmem:[#allocation8 + $0x20] sm:$0xff] %v1293
    %1344 = vst [vmem:[#allocation8 + $0x28] sm:$0xff] %v1296
    %1345 = vst [vmem:[#allocation8 + $0x30] sm:$0xff] %v1301
    %1346 = vst [vmem:[#allocation8 + $0x38] sm:$0xff] %v1304
    %1347 = vst [vmem:[#allocation8 + $0x40] sm:$0xff] %v1309
    %1348 = vst [vmem:[#allocation8 + $0x48] sm:$0xff] %v1312
    %1349 = vst [vmem:[#allocation8 + $0x50] sm:$0xff] %v1317
    %1350 = vst [vmem:[#allocation8 + $0x58] sm:$0xff] %v1320
    %1351 = vst [vmem:[#allocation8 + $0x60] sm:$0xff] %v1325
    %1352 = vst [vmem:[#allocation8 + $0x68] sm:$0xff] %v1328
    %1353 = vst [vmem:[#allocation8 + $0x70] sm:$0xff] %v1333
    %1354 = vst [vmem:[#allocation8 + $0x78] sm:$0xff] %v1336
    // Predicated region
    $region26: #{_lambda_.13} parent=1 // pred_check
      _
    $region27: #{_lambda_.13} parent=1 // pred_check_branch
      %1356 = sbr.rel (0) target = $region29
    $region28: #{_lambda_.13} parent=1 // pred_region
      %s1358 = ssub.s32 2048, 2048
      %1359 = vsyncadd [#allocation4], %s1358
      %s1360 = sshll.u32 [#allocation8], 4
      %s1361 = int_to_ptr.vmem [resolvable:$true] %s1360
      %1366 = dma.vmem_to_hbm [thread:$0]  %s1361, 2048, %s3, [#allocation4], 128, 128, 8
    $region29: #{_lambda_.13} parent=1 // pred_fallthru
      _
    // Predicated region
    $region30: #{_lambda_.13} parent=1 // pred_check
      _
    $region31: #{_lambda_.13} parent=1 // pred_check_branch
      %1368 = sbr.rel (0) target = $region33
    $region32: #{_lambda_.13} parent=1 // pred_region
      %1369 = dma.done [#allocation4], 2048
    $region33: #{_lambda_.13} parent=1 // pred_fallthru
      _
    %1370 = vsyncpa [#allocation3], 1
    %1371 = vsyncpa [#allocation6], 1
    %1372 = vsyncpa [#allocation4], 1

// kernel: _lambda_.14
$region0: #{_lambda_.14}
  #allocation0 [shape = 'u32[]', space=smem, size = 0x4, offset = 0x4, fixed_abs, tag = 'smem constant byte address 0x4 - core index']
  #allocation1 [shape = 'u32[144,128]{1,0:T(1,128)}', space=vmem, size = 0x12000, scoped, tag = 'internal scratch']
  %s0 = inlined_call_operand.hbm [shape: f32[32,1152], index: 0, kind: input, shape index: {}]
  %s1 = inlined_call_operand.hbm [shape: bf16[1152,128], index: 1, kind: input, shape index: {}]
  %s2 = inlined_call_operand.hbm [shape: f32[1,128], index: 2, kind: input, shape index: {}]
  %s3 = inlined_call_operand.hbm [shape: f32[32,128], index: 3, kind: output, shape index: {}]
  %s4 = sld [smem:[#allocation0]]
  $region34: #{_lambda_.14} parent=0
    _
  %s6 = ssub.s32 1, %s4
  %s7 = scalar_select 0, %s6, %s4
  $region1: #{_lambda_.14} parent=0
    #allocation2 [shape = 'u8[147456]{0}', space=vmem, size = 0x24000, scoped, tag = 'input window, operand 0, single buffered']
    #allocation3 [shape = 's32[1]{0}', space=sflag, size = 0x4, scoped, tag = 'scoped memory for _lambda_.14']
    #allocation4 [shape = 's32[1]{0}', space=sflag, size = 0x4, scoped, tag = 'scoped memory for _lambda_.14']
    #allocation5 [shape = 'u8[294912]{0}', space=vmem, size = 0x48000, scoped, tag = 'input window, operand 1, single buffered']
    #allocation6 [shape = 's32[1]{0}', space=sflag, size = 0x4, scoped, tag = 'scoped memory for _lambda_.14']
    #allocation7 [shape = 'u8[512]{0}', space=vmem, size = 0x400, scoped, tag = 'input window, operand 2, single buffered']
    #allocation8 [shape = 'u8[16384]{0}', space=vmem, size = 0x4000, scoped, tag = 'output window, operand 0, single buffered']
    %8 = vsyncpa [#allocation3], 0
    %9 = vsyncpa [#allocation6], 0
    %10 = vsyncpa [#allocation4], 0
    // Predicated region
    $region2: #{_lambda_.14} parent=1 // pred_check
      _
    $region3: #{_lambda_.14} parent=1 // pred_check_branch
      %12 = sbr.rel (0) target = $region5
    $region4: #{_lambda_.14} parent=1 // pred_region
      %s14 = ssub.s32 4608, 4608
      %15 = vsyncadd [#allocation3], %s14
      %s16 = sshll.u32 [#allocation2], 4
      %s17 = int_to_ptr.vmem [resolvable:$true] %s16
      %22 = dma.hbm_to_vmem [thread:$0]  %s0, 4608, %s17, [#allocation3], 1152, 1152, 72
    $region5: #{_lambda_.14} parent=1 // pred_fallthru
      _
    // Predicated region
    $region6: #{_lambda_.14} parent=1 // pred_check
      _
    $region7: #{_lambda_.14} parent=1 // pred_check_branch
      %24 = sbr.rel (0) target = $region9
    $region8: #{_lambda_.14} parent=1 // pred_region
      %s26 = ssub.s32 9216, 9216
      %27 = vsyncadd [#allocation6], %s26
      %s28 = sshll.u32 [#allocation5], 4
      %s29 = int_to_ptr.vmem [resolvable:$true] %s28
      %34 = dma.hbm_to_vmem [thread:$0]  %s1, 9216, %s29, [#allocation6], 64, 64, 4
    $region9: #{_lambda_.14} parent=1 // pred_fallthru
      _
    // Predicated region
    $region10: #{_lambda_.14} parent=1 // pred_check
      _
    $region11: #{_lambda_.14} parent=1 // pred_check_branch
      %36 = sbr.rel (0) target = $region13
    $region12: #{_lambda_.14} parent=1 // pred_region
      %s38 = ssub.s32 16, 16
      %39 = vsyncadd [#allocation6], %s38
      %s41 = sshll.u32 [#allocation7], 4
      %s42 = int_to_ptr.vmem [resolvable:$true] %s41
      %44 = dma.hbm_to_vmem [thread:$0]  %s2, 16, %s42, [#allocation6]
    $region13: #{_lambda_.14} parent=1 // pred_fallthru
      _
    // Predicated region
    $region14: #{_lambda_.14} parent=1 // pred_check
      _
    $region15: #{_lambda_.14} parent=1 // pred_check_branch
      %46 = sbr.rel (0) target = $region17
    $region16: #{_lambda_.14} parent=1 // pred_region
      %47 = dma.done [#allocation3], 4608
    $region17: #{_lambda_.14} parent=1 // pred_fallthru
      _
    // Predicated region
    $region18: #{_lambda_.14} parent=1 // pred_check
      _
    $region19: #{_lambda_.14} parent=1 // pred_check_branch
      %49 = sbr.rel (0) target = $region21
    $region20: #{_lambda_.14} parent=1 // pred_region
      %50 = dma.done [#allocation6], 9216
    $region21: #{_lambda_.14} parent=1 // pred_fallthru
      _
    // Predicated region
    $region22: #{_lambda_.14} parent=1 // pred_check
      _
    $region23: #{_lambda_.14} parent=1 // pred_check_branch
      %52 = sbr.rel (0) target = $region25
    $region24: #{_lambda_.14} parent=1 // pred_region
      %53 = dma.done [#allocation6], 16
    $region25: #{_lambda_.14} parent=1 // pred_fallthru
      _
    %v55 = vld [vmem:[#allocation2] sm:$0xff]
    %v56 = vld [vmem:[#allocation2 + $0x8] sm:$0xff]
    %v57 = vld [vmem:[#allocation2 + $0x10] sm:$0xff]
    %v58 = vld [vmem:[#allocation2 + $0x18] sm:$0xff]
    %v59 = vld [vmem:[#allocation2 + $0x20] sm:$0xff]
    %v60 = vld [vmem:[#allocation2 + $0x28] sm:$0xff]
    %v61 = vld [vmem:[#allocation2 + $0x30] sm:$0xff]
    %v62 = vld [vmem:[#allocation2 + $0x38] sm:$0xff]
    %v63 = vld [vmem:[#allocation2 + $0x40] sm:$0xff]
    %v64 = vld [vmem:[#allocation2 + $0x48] sm:$0xff]
    %v65 = vld [vmem:[#allocation2 + $0x50] sm:$0xff]
    %v66 = vld [vmem:[#allocation2 + $0x58] sm:$0xff]
    %v67 = vld [vmem:[#allocation2 + $0x60] sm:$0xff]
    %v68 = vld [vmem:[#allocation2 + $0x68] sm:$0xff]
    %v69 = vld [vmem:[#allocation2 + $0x70] sm:$0xff]
    %v70 = vld [vmem:[#allocation2 + $0x78] sm:$0xff]
    %v71 = vld [vmem:[#allocation2 + $0x80] sm:$0xff]
    %v72 = vld [vmem:[#allocation2 + $0x88] sm:$0xff]
    %v73 = vld [vmem:[#allocation2 + $0x90] sm:$0xff]
    %v74 = vld [vmem:[#allocation2 + $0x98] sm:$0xff]
    %v75 = vld [vmem:[#allocation2 + $0xa0] sm:$0xff]
    %v76 = vld [vmem:[#allocation2 + $0xa8] sm:$0xff]
    %v77 = vld [vmem:[#allocation2 + $0xb0] sm:$0xff]
    %v78 = vld [vmem:[#allocation2 + $0xb8] sm:$0xff]
    %v79 = vld [vmem:[#allocation2 + $0xc0] sm:$0xff]
    %v80 = vld [vmem:[#allocation2 + $0xc8] sm:$0xff]
    %v81 = vld [vmem:[#allocation2 + $0xd0] sm:$0xff]
    %v82 = vld [vmem:[#allocation2 + $0xd8] sm:$0xff]
    %v83 = vld [vmem:[#allocation2 + $0xe0] sm:$0xff]
    %v84 = vld [vmem:[#allocation2 + $0xe8] sm:$0xff]
    %v85 = vld [vmem:[#allocation2 + $0xf0] sm:$0xff]
    %v86 = vld [vmem:[#allocation2 + $0xf8] sm:$0xff]
    %v87 = vld [vmem:[#allocation2 + $0x100] sm:$0xff]
    %v88 = vld [vmem:[#allocation2 + $0x108] sm:$0xff]
    %v89 = vld [vmem:[#allocation2 + $0x110] sm:$0xff]
    %v90 = vld [vmem:[#allocation2 + $0x118] sm:$0xff]
    %v91 = vpack.c.bf16 %v64, %v55
    %v92 = vpack.c.bf16 %v65, %v56
    %v93 = vpack.c.bf16 %v66, %v57
    %v94 = vpack.c.bf16 %v67, %v58
    %v95 = vpack.c.bf16 %v68, %v59
    %v96 = vpack.c.bf16 %v69, %v60
    %v97 = vpack.c.bf16 %v70, %v61
    %v98 = vpack.c.bf16 %v71, %v62
    %v99 = vpack.c.bf16 %v72, %v63
    %v100 = vpack.c.bf16 %v82, %v73
    %v101 = vpack.c.bf16 %v83, %v74
    %v102 = vpack.c.bf16 %v84, %v75
    %v103 = vpack.c.bf16 %v85, %v76
    %v104 = vpack.c.bf16 %v86, %v77
    %v105 = vpack.c.bf16 %v87, %v78
    %v106 = vpack.c.bf16 %v88, %v79
    %v107 = vpack.c.bf16 %v89, %v80
    %v108 = vpack.c.bf16 %v90, %v81
    %v109 = vld [vmem:[#allocation5] sm:$0xf]
    %v110 = vld [vmem:[#allocation5 + $0x4] sm:$0xf]
    %v111 = vld [vmem:[#allocation5 + $0x8] sm:$0xf]
    %v112 = vld [vmem:[#allocation5 + $0xc] sm:$0xf]
    %v113 = vld [vmem:[#allocation5 + $0x10] sm:$0xf]
    %v114 = vld [vmem:[#allocation5 + $0x14] sm:$0xf]
    %v115 = vld [vmem:[#allocation5 + $0x18] sm:$0xf]
    %v116 = vld [vmem:[#allocation5 + $0x1c] sm:$0xf]
    %v117 = vld [vmem:[#allocation5 + $0x20] sm:$0xf]
    %v118 = vld [vmem:[#allocation5 + $0x24] sm:$0xf]
    %v119 = vld [vmem:[#allocation5 + $0x28] sm:$0xf]
    %v120 = vld [vmem:[#allocation5 + $0x2c] sm:$0xf]
    %v121 = vld [vmem:[#allocation5 + $0x30] sm:$0xf]
    %v122 = vld [vmem:[#allocation5 + $0x34] sm:$0xf]
    %v123 = vld [vmem:[#allocation5 + $0x38] sm:$0xf]
    %v124 = vld [vmem:[#allocation5 + $0x3c] sm:$0xf]
    %v125 = vld [vmem:[#allocation5 + $0x40] sm:$0xf]
    %v126 = vld [vmem:[#allocation5 + $0x44] sm:$0xf]
    %v127 = vld [vmem:[#allocation5 + $0x48] sm:$0xf]
    %v128 = vld [vmem:[#allocation5 + $0x4c] sm:$0xf]
    %v129 = vld [vmem:[#allocation5 + $0x50] sm:$0xf]
    %v130 = vld [vmem:[#allocation5 + $0x54] sm:$0xf]
    %v131 = vld [vmem:[#allocation5 + $0x58] sm:$0xf]
    %v132 = vld [vmem:[#allocation5 + $0x5c] sm:$0xf]
    %v133 = vld [vmem:[#allocation5 + $0x60] sm:$0xf]
    %v134 = vld [vmem:[#allocation5 + $0x64] sm:$0xf]
    %v135 = vld [vmem:[#allocation5 + $0x68] sm:$0xf]
    %v136 = vld [vmem:[#allocation5 + $0x6c] sm:$0xf]
    %v137 = vld [vmem:[#allocation5 + $0x70] sm:$0xf]
    %v138 = vld [vmem:[#allocation5 + $0x74] sm:$0xf]
    %v139 = vld [vmem:[#allocation5 + $0x78] sm:$0xf]
    %v140 = vld [vmem:[#allocation5 + $0x7c] sm:$0xf]
    %v141 = vld [vmem:[#allocation5 + $0x80] sm:$0xf]
    %v142 = vld [vmem:[#allocation5 + $0x84] sm:$0xf]
    %v143 = vld [vmem:[#allocation5 + $0x88] sm:$0xf]
    %v144 = vld [vmem:[#allocation5 + $0x8c] sm:$0xf]
    %v145 = vld [vmem:[#allocation5 + $0x90] sm:$0xf]
    %v146 = vld [vmem:[#allocation5 + $0x94] sm:$0xf]
    %v147 = vld [vmem:[#allocation5 + $0x98] sm:$0xf]
    %v148 = vld [vmem:[#allocation5 + $0x9c] sm:$0xf]
    %v149 = vld [vmem:[#allocation5 + $0xa0] sm:$0xf]
    %v150 = vld [vmem:[#allocation5 + $0xa4] sm:$0xf]
    %v151 = vld [vmem:[#allocation5 + $0xa8] sm:$0xf]
    %v152 = vld [vmem:[#allocation5 + $0xac] sm:$0xf]
    %v153 = vld [vmem:[#allocation5 + $0xb0] sm:$0xf]
    %v154 = vld [vmem:[#allocation5 + $0xb4] sm:$0xf]
    %v155 = vld [vmem:[#allocation5 + $0xb8] sm:$0xf]
    %v156 = vld [vmem:[#allocation5 + $0xbc] sm:$0xf]
    %v157 = vld [vmem:[#allocation5 + $0xc0] sm:$0xf]
    %v158 = vld [vmem:[#allocation5 + $0xc4] sm:$0xf]
    %v159 = vld [vmem:[#allocation5 + $0xc8] sm:$0xf]
    %v160 = vld [vmem:[#allocation5 + $0xcc] sm:$0xf]
    %v161 = vld [vmem:[#allocation5 + $0xd0] sm:$0xf]
    %v162 = vld [vmem:[#allocation5 + $0xd4] sm:$0xf]
    %v163 = vld [vmem:[#allocation5 + $0xd8] sm:$0xf]
    %v164 = vld [vmem:[#allocation5 + $0xdc] sm:$0xf]
    %v165 = vld [vmem:[#allocation5 + $0xe0] sm:$0xf]
    %v166 = vld [vmem:[#allocation5 + $0xe4] sm:$0xf]
    %v167 = vld [vmem:[#allocation5 + $0xe8] sm:$0xf]
    %v168 = vld [vmem:[#allocation5 + $0xec] sm:$0xf]
    %v169 = vld [vmem:[#allocation5 + $0xf0] sm:$0xf]
    %v170 = vld [vmem:[#allocation5 + $0xf4] sm:$0xf]
    %v171 = vld [vmem:[#allocation5 + $0xf8] sm:$0xf]
    %v172 = vld [vmem:[#allocation5 + $0xfc] sm:$0xf]
    %v173 = vld [vmem:[#allocation5 + $0x100] sm:$0xf]
    %v174 = vld [vmem:[#allocation5 + $0x104] sm:$0xf]
    %v175 = vld [vmem:[#allocation5 + $0x108] sm:$0xf]
    %v176 = vld [vmem:[#allocation5 + $0x10c] sm:$0xf]
    %v177 = vld [vmem:[#allocation5 + $0x110] sm:$0xf]
    %v178 = vld [vmem:[#allocation5 + $0x114] sm:$0xf]
    %v179 = vld [vmem:[#allocation5 + $0x118] sm:$0xf]
    %v180 = vld [vmem:[#allocation5 + $0x11c] sm:$0xf]
    %v181 = vld [vmem:[#allocation5 + $0x120] sm:$0xf]
    %v182 = vld [vmem:[#allocation5 + $0x124] sm:$0xf]
    %v183 = vld [vmem:[#allocation5 + $0x128] sm:$0xf]
    %v184 = vld [vmem:[#allocation5 + $0x12c] sm:$0xf]
    %v185 = vld [vmem:[#allocation5 + $0x130] sm:$0xf]
    %v186 = vld [vmem:[#allocation5 + $0x134] sm:$0xf]
    %v187 = vld [vmem:[#allocation5 + $0x138] sm:$0xf]
    %v188 = vld [vmem:[#allocation5 + $0x13c] sm:$0xf]
    %v189 = vld [vmem:[#allocation5 + $0x140] sm:$0xf]
    %v190 = vld [vmem:[#allocation5 + $0x144] sm:$0xf]
    %v191 = vld [vmem:[#allocation5 + $0x148] sm:$0xf]
    %v192 = vld [vmem:[#allocation5 + $0x14c] sm:$0xf]
    %v193 = vld [vmem:[#allocation5 + $0x150] sm:$0xf]
    %v194 = vld [vmem:[#allocation5 + $0x154] sm:$0xf]
    %v195 = vld [vmem:[#allocation5 + $0x158] sm:$0xf]
    %v196 = vld [vmem:[#allocation5 + $0x15c] sm:$0xf]
    %v197 = vld [vmem:[#allocation5 + $0x160] sm:$0xf]
    %v198 = vld [vmem:[#allocation5 + $0x164] sm:$0xf]
    %v199 = vld [vmem:[#allocation5 + $0x168] sm:$0xf]
    %v200 = vld [vmem:[#allocation5 + $0x16c] sm:$0xf]
    %v201 = vld [vmem:[#allocation5 + $0x170] sm:$0xf]
    %v202 = vld [vmem:[#allocation5 + $0x174] sm:$0xf]
    %v203 = vld [vmem:[#allocation5 + $0x178] sm:$0xf]
    %v204 = vld [vmem:[#allocation5 + $0x17c] sm:$0xf]
    %v205 = vld [vmem:[#allocation5 + $0x180] sm:$0xf]
    %v206 = vld [vmem:[#allocation5 + $0x184] sm:$0xf]
    %v207 = vld [vmem:[#allocation5 + $0x188] sm:$0xf]
    %v208 = vld [vmem:[#allocation5 + $0x18c] sm:$0xf]
    %v209 = vld [vmem:[#allocation5 + $0x190] sm:$0xf]
    %v210 = vld [vmem:[#allocation5 + $0x194] sm:$0xf]
    %v211 = vld [vmem:[#allocation5 + $0x198] sm:$0xf]
    %v212 = vld [vmem:[#allocation5 + $0x19c] sm:$0xf]
    %v213 = vld [vmem:[#allocation5 + $0x1a0] sm:$0xf]
    %v214 = vld [vmem:[#allocation5 + $0x1a4] sm:$0xf]
    %v215 = vld [vmem:[#allocation5 + $0x1a8] sm:$0xf]
    %v216 = vld [vmem:[#allocation5 + $0x1ac] sm:$0xf]
    %v217 = vld [vmem:[#allocation5 + $0x1b0] sm:$0xf]
    %v218 = vld [vmem:[#allocation5 + $0x1b4] sm:$0xf]
    %v219 = vld [vmem:[#allocation5 + $0x1b8] sm:$0xf]
    %v220 = vld [vmem:[#allocation5 + $0x1bc] sm:$0xf]
    %v221 = vld [vmem:[#allocation5 + $0x1c0] sm:$0xf]
    %v222 = vld [vmem:[#allocation5 + $0x1c4] sm:$0xf]
    %v223 = vld [vmem:[#allocation5 + $0x1c8] sm:$0xf]
    %v224 = vld [vmem:[#allocation5 + $0x1cc] sm:$0xf]
    %v225 = vld [vmem:[#allocation5 + $0x1d0] sm:$0xf]
    %v226 = vld [vmem:[#allocation5 + $0x1d4] sm:$0xf]
    %v227 = vld [vmem:[#allocation5 + $0x1d8] sm:$0xf]
    %v228 = vld [vmem:[#allocation5 + $0x1dc] sm:$0xf]
    %v229 = vld [vmem:[#allocation5 + $0x1e0] sm:$0xf]
    %v230 = vld [vmem:[#allocation5 + $0x1e4] sm:$0xf]
    %v231 = vld [vmem:[#allocation5 + $0x1e8] sm:$0xf]
    %v232 = vld [vmem:[#allocation5 + $0x1ec] sm:$0xf]
    %v233 = vld [vmem:[#allocation5 + $0x1f0] sm:$0xf]
    %v234 = vld [vmem:[#allocation5 + $0x1f4] sm:$0xf]
    %v235 = vld [vmem:[#allocation5 + $0x1f8] sm:$0xf]
    %v236 = vld [vmem:[#allocation5 + $0x1fc] sm:$0xf]
    %v237 = vld [vmem:[#allocation5 + $0x200] sm:$0xf]
    %v238 = vld [vmem:[#allocation5 + $0x204] sm:$0xf]
    %v239 = vld [vmem:[#allocation5 + $0x208] sm:$0xf]
    %v240 = vld [vmem:[#allocation5 + $0x20c] sm:$0xf]
    %v241 = vld [vmem:[#allocation5 + $0x210] sm:$0xf]
    %v242 = vld [vmem:[#allocation5 + $0x214] sm:$0xf]
    %v243 = vld [vmem:[#allocation5 + $0x218] sm:$0xf]
    %v244 = vld [vmem:[#allocation5 + $0x21c] sm:$0xf]
    %v245 = vld [vmem:[#allocation5 + $0x220] sm:$0xf]
    %v246 = vld [vmem:[#allocation5 + $0x224] sm:$0xf]
    %v247 = vld [vmem:[#allocation5 + $0x228] sm:$0xf]
    %v248 = vld [vmem:[#allocation5 + $0x22c] sm:$0xf]
    %v249 = vld [vmem:[#allocation5 + $0x230] sm:$0xf]
    %v250 = vld [vmem:[#allocation5 + $0x234] sm:$0xf]
    %v251 = vld [vmem:[#allocation5 + $0x238] sm:$0xf]
    %v252 = vld [vmem:[#allocation5 + $0x23c] sm:$0xf]
    %v253 = vld [vmem:[#allocation7] sm:$0x1]
    %v255 = vlaneseq
    %v256 = vshrl.u32 %v255, 7
    %v257 = vsub.s32 0, %v256
    %v258 = vrot.slane %v253, %v257
    %v404 = vunpack.c.l.b16 %v109
    %v405 = vunpack.c.l.b16 %v110
    %v406 = vunpack.c.l.b16 %v111
    %v407 = vunpack.c.l.b16 %v112
    %v408 = vunpack.c.l.b16 %v113
    %v409 = vunpack.c.l.b16 %v114
    %v410 = vunpack.c.l.b16 %v115
    %v411 = vunpack.c.l.b16 %v116
    %v412 = vunpack.c.l.b16 %v117
    %v413 = vunpack.c.l.b16 %v118
    %v414 = vunpack.c.l.b16 %v119
    %v415 = vunpack.c.l.b16 %v120
    %v416 = vunpack.c.l.b16 %v121
    %v417 = vunpack.c.l.b16 %v122
    %v418 = vunpack.c.l.b16 %v123
    %v419 = vunpack.c.l.b16 %v124
    %v420 = vunpack.c.l.b16 %v125
    %v421 = vunpack.c.l.b16 %v126
    %v422 = vunpack.c.l.b16 %v127
    %v423 = vunpack.c.l.b16 %v128
    %v424 = vunpack.c.l.b16 %v129
    %v425 = vunpack.c.l.b16 %v130
    %v426 = vunpack.c.l.b16 %v131
    %v427 = vunpack.c.l.b16 %v132
    %v428 = vunpack.c.l.b16 %v133
    %v429 = vunpack.c.l.b16 %v134
    %v430 = vunpack.c.l.b16 %v135
    %v431 = vunpack.c.l.b16 %v136
    %v432 = vunpack.c.l.b16 %v137
    %v433 = vunpack.c.l.b16 %v138
    %v434 = vunpack.c.l.b16 %v139
    %v435 = vunpack.c.l.b16 %v140
    %v436 = vunpack.c.l.b16 %v141
    %v437 = vunpack.c.l.b16 %v142
    %v438 = vunpack.c.l.b16 %v143
    %v439 = vunpack.c.l.b16 %v144
    %v440 = vunpack.c.l.b16 %v145
    %v441 = vunpack.c.l.b16 %v146
    %v442 = vunpack.c.l.b16 %v147
    %v443 = vunpack.c.l.b16 %v148
    %v444 = vunpack.c.l.b16 %v149
    %v445 = vunpack.c.l.b16 %v150
    %v446 = vunpack.c.l.b16 %v151
    %v447 = vunpack.c.l.b16 %v152
    %v448 = vunpack.c.l.b16 %v153
    %v449 = vunpack.c.l.b16 %v154
    %v450 = vunpack.c.l.b16 %v155
    %v451 = vunpack.c.l.b16 %v156
    %v452 = vunpack.c.l.b16 %v157
    %v453 = vunpack.c.l.b16 %v158
    %v454 = vunpack.c.l.b16 %v159
    %v455 = vunpack.c.l.b16 %v160
    %v456 = vunpack.c.l.b16 %v161
    %v457 = vunpack.c.l.b16 %v162
    %v458 = vunpack.c.l.b16 %v163
    %v459 = vunpack.c.l.b16 %v164
    %v460 = vunpack.c.l.b16 %v165
    %v461 = vunpack.c.l.b16 %v166
    %v462 = vunpack.c.l.b16 %v167
    %v463 = vunpack.c.l.b16 %v168
    %v464 = vunpack.c.l.b16 %v169
    %v465 = vunpack.c.l.b16 %v170
    %v466 = vunpack.c.l.b16 %v171
    %v467 = vunpack.c.l.b16 %v172
    %v468 = vunpack.c.l.b16 %v173
    %v469 = vunpack.c.l.b16 %v174
    %v470 = vunpack.c.l.b16 %v175
    %v471 = vunpack.c.l.b16 %v176
    %v472 = vunpack.c.l.b16 %v177
    %v473 = vunpack.c.l.b16 %v178
    %v474 = vunpack.c.l.b16 %v179
    %v475 = vunpack.c.l.b16 %v180
    %v476 = vunpack.c.l.b16 %v181
    %v477 = vunpack.c.l.b16 %v182
    %v478 = vunpack.c.l.b16 %v183
    %v479 = vunpack.c.l.b16 %v184
    %v480 = vunpack.c.l.b16 %v185
    %v481 = vunpack.c.l.b16 %v186
    %v482 = vunpack.c.l.b16 %v187
    %v483 = vunpack.c.l.b16 %v188
    %v484 = vunpack.c.l.b16 %v189
    %v485 = vunpack.c.l.b16 %v190
    %v486 = vunpack.c.l.b16 %v191
    %v487 = vunpack.c.l.b16 %v192
    %v488 = vunpack.c.l.b16 %v193
    %v489 = vunpack.c.l.b16 %v194
    %v490 = vunpack.c.l.b16 %v195
    %v491 = vunpack.c.l.b16 %v196
    %v492 = vunpack.c.l.b16 %v197
    %v493 = vunpack.c.l.b16 %v198
    %v494 = vunpack.c.l.b16 %v199
    %v495 = vunpack.c.l.b16 %v200
    %v496 = vunpack.c.l.b16 %v201
    %v497 = vunpack.c.l.b16 %v202
    %v498 = vunpack.c.l.b16 %v203
    %v499 = vunpack.c.l.b16 %v204
    %v500 = vunpack.c.l.b16 %v205
    %v501 = vunpack.c.l.b16 %v206
    %v502 = vunpack.c.l.b16 %v207
    %v503 = vunpack.c.l.b16 %v208
    %v504 = vunpack.c.l.b16 %v209
    %v505 = vunpack.c.l.b16 %v210
    %v506 = vunpack.c.l.b16 %v211
    %v507 = vunpack.c.l.b16 %v212
    %v508 = vunpack.c.l.b16 %v213
    %v509 = vunpack.c.l.b16 %v214
    %v510 = vunpack.c.l.b16 %v215
    %v511 = vunpack.c.l.b16 %v216
    %v512 = vunpack.c.l.b16 %v217
    %v513 = vunpack.c.l.b16 %v218
    %v514 = vunpack.c.l.b16 %v219
    %v515 = vunpack.c.l.b16 %v220
    %v516 = vunpack.c.l.b16 %v221
    %v517 = vunpack.c.l.b16 %v222
    %v518 = vunpack.c.l.b16 %v223
    %v519 = vunpack.c.l.b16 %v224
    %v520 = vunpack.c.l.b16 %v225
    %v521 = vunpack.c.l.b16 %v226
    %v522 = vunpack.c.l.b16 %v227
    %v523 = vunpack.c.l.b16 %v228
    %v524 = vunpack.c.l.b16 %v229
    %v525 = vunpack.c.l.b16 %v230
    %v526 = vunpack.c.l.b16 %v231
    %v527 = vunpack.c.l.b16 %v232
    %v528 = vunpack.c.l.b16 %v233
    %v529 = vunpack.c.l.b16 %v234
    %v530 = vunpack.c.l.b16 %v235
    %v531 = vunpack.c.l.b16 %v236
    %v532 = vunpack.c.l.b16 %v237
    %v533 = vunpack.c.l.b16 %v238
    %v534 = vunpack.c.l.b16 %v239
    %v535 = vunpack.c.l.b16 %v240
    %v536 = vunpack.c.l.b16 %v241
    %v537 = vunpack.c.l.b16 %v242
    %v538 = vunpack.c.l.b16 %v243
    %v539 = vunpack.c.l.b16 %v244
    %v540 = vunpack.c.l.b16 %v245
    %v541 = vunpack.c.l.b16 %v246
    %v542 = vunpack.c.l.b16 %v247
    %v543 = vunpack.c.l.b16 %v248
    %v544 = vunpack.c.l.b16 %v249
    %v545 = vunpack.c.l.b16 %v250
    %v546 = vunpack.c.l.b16 %v251
    %v547 = vunpack.c.l.b16 %v252
    %v548 = vpack.c.b16 %v405, %v404
    %v549 = vpack.c.b16 %v407, %v406
    %v550 = vpack.c.b16 %v409, %v408
    %v551 = vpack.c.b16 %v411, %v410
    %v552 = vpack.c.b16 %v413, %v412
    %v553 = vpack.c.b16 %v415, %v414
    %v554 = vpack.c.b16 %v417, %v416
    %v555 = vpack.c.b16 %v419, %v418
    %v556 = vpack.c.b16 %v421, %v420
    %v557 = vpack.c.b16 %v423, %v422
    %v558 = vpack.c.b16 %v425, %v424
    %v559 = vpack.c.b16 %v427, %v426
    %v560 = vpack.c.b16 %v429, %v428
    %v561 = vpack.c.b16 %v431, %v430
    %v562 = vpack.c.b16 %v433, %v432
    %v563 = vpack.c.b16 %v435, %v434
    %v564 = vpack.c.b16 %v437, %v436
    %v565 = vpack.c.b16 %v439, %v438
    %v566 = vpack.c.b16 %v441, %v440
    %v567 = vpack.c.b16 %v443, %v442
    %v568 = vpack.c.b16 %v445, %v444
    %v569 = vpack.c.b16 %v447, %v446
    %v570 = vpack.c.b16 %v449, %v448
    %v571 = vpack.c.b16 %v451, %v450
    %v572 = vpack.c.b16 %v453, %v452
    %v573 = vpack.c.b16 %v455, %v454
    %v574 = vpack.c.b16 %v457, %v456
    %v575 = vpack.c.b16 %v459, %v458
    %v576 = vpack.c.b16 %v461, %v460
    %v577 = vpack.c.b16 %v463, %v462
    %v578 = vpack.c.b16 %v465, %v464
    %v579 = vpack.c.b16 %v467, %v466
    %v580 = vpack.c.b16 %v469, %v468
    %v581 = vpack.c.b16 %v471, %v470
    %v582 = vpack.c.b16 %v473, %v472
    %v583 = vpack.c.b16 %v475, %v474
    %v584 = vpack.c.b16 %v477, %v476
    %v585 = vpack.c.b16 %v479, %v478
    %v586 = vpack.c.b16 %v481, %v480
    %v587 = vpack.c.b16 %v483, %v482
    %v588 = vpack.c.b16 %v485, %v484
    %v589 = vpack.c.b16 %v487, %v486
    %v590 = vpack.c.b16 %v489, %v488
    %v591 = vpack.c.b16 %v491, %v490
    %v592 = vpack.c.b16 %v493, %v492
    %v593 = vpack.c.b16 %v495, %v494
    %v594 = vpack.c.b16 %v497, %v496
    %v595 = vpack.c.b16 %v499, %v498
    %v596 = vpack.c.b16 %v501, %v500
    %v597 = vpack.c.b16 %v503, %v502
    %v598 = vpack.c.b16 %v505, %v504
    %v599 = vpack.c.b16 %v507, %v506
    %v600 = vpack.c.b16 %v509, %v508
    %v601 = vpack.c.b16 %v511, %v510
    %v602 = vpack.c.b16 %v513, %v512
    %v603 = vpack.c.b16 %v515, %v514
    %v604 = vpack.c.b16 %v517, %v516
    %v605 = vpack.c.b16 %v519, %v518
    %v606 = vpack.c.b16 %v521, %v520
    %v607 = vpack.c.b16 %v523, %v522
    %v608 = vpack.c.b16 %v525, %v524
    %v609 = vpack.c.b16 %v527, %v526
    %v610 = vpack.c.b16 %v529, %v528
    %v611 = vpack.c.b16 %v531, %v530
    %v612 = vpack.c.b16 %v533, %v532
    %v613 = vpack.c.b16 %v535, %v534
    %v614 = vpack.c.b16 %v537, %v536
    %v615 = vpack.c.b16 %v539, %v538
    %v616 = vpack.c.b16 %v541, %v540
    %v617 = vpack.c.b16 %v543, %v542
    %v618 = vpack.c.b16 %v545, %v544
    %v619 = vpack.c.b16 %v547, %v546
    %692 = vmatprep.subr.bf16.mxu0 0
    %693 = vmatpush1.bf16.msra.mxu0 %v548
    %694 = vmatprep.subr.bf16.mxu0 0
    %695 = vmatpush1.bf16.msra.mxu0 %v549
    %696 = vmatprep.subr.bf16.mxu0 0
    %697 = vmatpush1.bf16.msra.mxu0 %v550
    %698 = vmatprep.subr.bf16.mxu0 0
    %699 = vmatpush1.bf16.msra.mxu0 %v551
    %700 = vmatprep.subr.bf16.mxu0 0
    %701 = vmatpush1.bf16.msra.mxu0 %v552
    %702 = vmatprep.subr.bf16.mxu0 0
    %703 = vmatpush1.bf16.msra.mxu0 %v553
    %704 = vmatprep.subr.bf16.mxu0 0
    %705 = vmatpush1.bf16.msra.mxu0 %v554
    %706 = vmatprep.subr.bf16.mxu0 0
    %707 = vmatpush1.bf16.msra.mxu0 %v555
    %708 = vmatprep.subr.bf16.mxu0 0
    %709 = vmatpush1.bf16.msra.mxu0 %v556
    %710 = vmatprep.subr.bf16.mxu0 0
    %711 = vmatpush1.bf16.msra.mxu0 %v557
    %712 = vmatprep.subr.bf16.mxu0 0
    %713 = vmatpush1.bf16.msra.mxu0 %v558
    %714 = vmatprep.subr.bf16.mxu0 0
    %715 = vmatpush1.bf16.msra.mxu0 %v559
    %716 = vmatprep.subr.bf16.mxu0 0
    %717 = vmatpush1.bf16.msra.mxu0 %v560
    %718 = vmatprep.subr.bf16.mxu0 0
    %719 = vmatpush1.bf16.msra.mxu0 %v561
    %720 = vmatprep.subr.bf16.mxu0 0
    %721 = vmatpush1.bf16.msra.mxu0 %v562
    %722 = vmatprep.subr.bf16.mxu0 0
    %723 = vmatpush1.bf16.msra.mxu0 %v563
    %724 = vmatprep.mubr.bf16.mxu0 %v92
    %725 = vmatmul.mubr.bf16.gmra.mrb[0].mxu0 %v91
    %v726 = vpop.f32.mrb[0].mxu0
    %v727 = vadd.f32 %v258, %v726
    %v728 = vpop.f32.mrb[0].mxu0
    %v729 = vpop.f32.mrb[0].mxu0
    %v730 = vadd.f32 %v258, %v729
    %v731 = vpop.f32.mrb[0].mxu0
    %732 = vmatprep.mubr.bf16.mxu0 %v101
    %733 = vmatmul.mubr.bf16.gmra.mrb[0].mxu0 %v100
    %v734 = vpop.f32.mrb[0].mxu0
    %v735 = vadd.f32 %v258, %v734
    %v736 = vpop.f32.mrb[0].mxu0
    %v737 = vpop.f32.mrb[0].mxu0
    %v738 = vadd.f32 %v258, %v737
    %v739 = vpop.f32.mrb[0].mxu0
    %740 = vdwg.mxu0
    %741 = vmatprep.subr.bf16.mxu0 0
    %742 = vmatpush1.bf16.msra.mxu0 %v564
    %743 = vmatprep.subr.bf16.mxu0 0
    %744 = vmatpush1.bf16.msra.mxu0 %v565
    %745 = vmatprep.subr.bf16.mxu0 0
    %746 = vmatpush1.bf16.msra.mxu0 %v566
    %747 = vmatprep.subr.bf16.mxu0 0
    %748 = vmatpush1.bf16.msra.mxu0 %v567
    %749 = vmatprep.subr.bf16.mxu0 0
    %750 = vmatpush1.bf16.msra.mxu0 %v568
    %751 = vmatprep.subr.bf16.mxu0 0
    %752 = vmatpush1.bf16.msra.mxu0 %v569
    %753 = vmatprep.subr.bf16.mxu0 0
    %754 = vmatpush1.bf16.msra.mxu0 %v570
    %755 = vmatprep.subr.bf16.mxu0 0
    %756 = vmatpush1.bf16.msra.mxu0 %v571
    %757 = vmatprep.subr.bf16.mxu0 0
    %758 = vmatpush1.bf16.msra.mxu0 %v572
    %759 = vmatprep.subr.bf16.mxu0 0
    %760 = vmatpush1.bf16.msra.mxu0 %v573
    %761 = vmatprep.subr.bf16.mxu0 0
    %762 = vmatpush1.bf16.msra.mxu0 %v574
    %763 = vmatprep.subr.bf16.mxu0 0
    %764 = vmatpush1.bf16.msra.mxu0 %v575
    %765 = vmatprep.subr.bf16.mxu0 0
    %766 = vmatpush1.bf16.msra.mxu0 %v576
    %767 = vmatprep.subr.bf16.mxu0 0
    %768 = vmatpush1.bf16.msra.mxu0 %v577
    %769 = vmatprep.subr.bf16.mxu0 0
    %770 = vmatpush1.bf16.msra.mxu0 %v578
    %771 = vmatprep.subr.bf16.mxu0 0
    %772 = vmatpush1.bf16.msra.mxu0 %v579
    %773 = vmatprep.mubr.bf16.mxu0 %v94
    %774 = vmatmul.mubr.bf16.gmra.mrb[0].mxu0 %v93
    %v775 = vpop.f32.mrb[0].mxu0
    %v776 = vadd.f32 %v727, %v775
    %v777 = vpop.f32.mrb[0].mxu0
    %v778 = vpop.f32.mrb[0].mxu0
    %v779 = vadd.f32 %v730, %v778
    %v780 = vpop.f32.mrb[0].mxu0
    %781 = vmatprep.mubr.bf16.mxu0 %v103
    %782 = vmatmul.mubr.bf16.gmra.mrb[0].mxu0 %v102
    %v783 = vpop.f32.mrb[0].mxu0
    %v784 = vadd.f32 %v735, %v783
    %v785 = vpop.f32.mrb[0].mxu0
    %v786 = vpop.f32.mrb[0].mxu0
    %v787 = vadd.f32 %v738, %v786
    %v788 = vpop.f32.mrb[0].mxu0
    %789 = vdwg.mxu0
    %790 = vmatprep.subr.bf16.mxu0 0
    %791 = vmatpush1.bf16.msra.mxu0 %v580
    %792 = vmatprep.subr.bf16.mxu0 0
    %793 = vmatpush1.bf16.msra.mxu0 %v581
    %794 = vmatprep.subr.bf16.mxu0 0
    %795 = vmatpush1.bf16.msra.mxu0 %v582
    %796 = vmatprep.subr.bf16.mxu0 0
    %797 = vmatpush1.bf16.msra.mxu0 %v583
    %798 = vmatprep.subr.bf16.mxu0 0
    %799 = vmatpush1.bf16.msra.mxu0 %v584
    %800 = vmatprep.subr.bf16.mxu0 0
    %801 = vmatpush1.bf16.msra.mxu0 %v585
    %802 = vmatprep.subr.bf16.mxu0 0
    %803 = vmatpush1.bf16.msra.mxu0 %v586
    %804 = vmatprep.subr.bf16.mxu0 0
    %805 = vmatpush1.bf16.msra.mxu0 %v587
    %806 = vmatprep.subr.bf16.mxu0 0
    %807 = vmatpush1.bf16.msra.mxu0 %v588
    %808 = vmatprep.subr.bf16.mxu0 0
    %809 = vmatpush1.bf16.msra.mxu0 %v589
    %810 = vmatprep.subr.bf16.mxu0 0
    %811 = vmatpush1.bf16.msra.mxu0 %v590
    %812 = vmatprep.subr.bf16.mxu0 0
    %813 = vmatpush1.bf16.msra.mxu0 %v591
    %814 = vmatprep.subr.bf16.mxu0 0
    %815 = vmatpush1.bf16.msra.mxu0 %v592
    %816 = vmatprep.subr.bf16.mxu0 0
    %817 = vmatpush1.bf16.msra.mxu0 %v593
    %818 = vmatprep.subr.bf16.mxu0 0
    %819 = vmatpush1.bf16.msra.mxu0 %v594
    %820 = vmatprep.subr.bf16.mxu0 0
    %821 = vmatpush1.bf16.msra.mxu0 %v595
    %822 = vmatprep.mubr.bf16.mxu0 %v96
    %823 = vmatmul.mubr.bf16.gmra.mrb[0].mxu0 %v95
    %v824 = vpop.f32.mrb[0].mxu0
    %v825 = vadd.f32 %v776, %v824
    %v826 = vpop.f32.mrb[0].mxu0
    %v827 = vpop.f32.mrb[0].mxu0
    %v828 = vadd.f32 %v779, %v827
    %v829 = vpop.f32.mrb[0].mxu0
    %830 = vmatprep.mubr.bf16.mxu0 %v105
    %831 = vmatmul.mubr.bf16.gmra.mrb[0].mxu0 %v104
    %v832 = vpop.f32.mrb[0].mxu0
    %v833 = vadd.f32 %v784, %v832
    %v834 = vpop.f32.mrb[0].mxu0
    %v835 = vpop.f32.mrb[0].mxu0
    %v836 = vadd.f32 %v787, %v835
    %v837 = vpop.f32.mrb[0].mxu0
    %838 = vdwg.mxu0
    %839 = vmatprep.subr.bf16.mxu0 0
    %840 = vmatpush1.bf16.msra.mxu0 %v596
    %841 = vmatprep.subr.bf16.mxu0 0
    %842 = vmatpush1.bf16.msra.mxu0 %v597
    %843 = vmatprep.subr.bf16.mxu0 0
    %844 = vmatpush1.bf16.msra.mxu0 %v598
    %845 = vmatprep.subr.bf16.mxu0 0
    %846 = vmatpush1.bf16.msra.mxu0 %v599
    %847 = vmatprep.subr.bf16.mxu0 0
    %848 = vmatpush1.bf16.msra.mxu0 %v600
    %849 = vmatprep.subr.bf16.mxu0 0
    %850 = vmatpush1.bf16.msra.mxu0 %v601
    %851 = vmatprep.subr.bf16.mxu0 0
    %852 = vmatpush1.bf16.msra.mxu0 %v602
    %853 = vmatprep.subr.bf16.mxu0 0
    %854 = vmatpush1.bf16.msra.mxu0 %v603
    %855 = vmatprep.subr.bf16.mxu0 0
    %856 = vmatpush1.bf16.msra.mxu0 %v604
    %857 = vmatprep.subr.bf16.mxu0 0
    %858 = vmatpush1.bf16.msra.mxu0 %v605
    %859 = vmatprep.subr.bf16.mxu0 0
    %860 = vmatpush1.bf16.msra.mxu0 %v606
    %861 = vmatprep.subr.bf16.mxu0 0
    %862 = vmatpush1.bf16.msra.mxu0 %v607
    %863 = vmatprep.subr.bf16.mxu0 0
    %864 = vmatpush1.bf16.msra.mxu0 %v608
    %865 = vmatprep.subr.bf16.mxu0 0
    %866 = vmatpush1.bf16.msra.mxu0 %v609
    %867 = vmatprep.subr.bf16.mxu0 0
    %868 = vmatpush1.bf16.msra.mxu0 %v610
    %869 = vmatprep.subr.bf16.mxu0 0
    %870 = vmatpush1.bf16.msra.mxu0 %v611
    %871 = vmatprep.mubr.bf16.mxu0 %v98
    %872 = vmatmul.mubr.bf16.gmra.mrb[0].mxu0 %v97
    %v873 = vpop.f32.mrb[0].mxu0
    %v874 = vadd.f32 %v825, %v873
    %v875 = vpop.f32.mrb[0].mxu0
    %v876 = vpop.f32.mrb[0].mxu0
    %v877 = vadd.f32 %v828, %v876
    %v878 = vpop.f32.mrb[0].mxu0
    %879 = vmatprep.mubr.bf16.mxu0 %v107
    %880 = vmatmul.mubr.bf16.gmra.mrb[0].mxu0 %v106
    %v881 = vpop.f32.mrb[0].mxu0
    %v882 = vadd.f32 %v833, %v881
    %v883 = vpop.f32.mrb[0].mxu0
    %v884 = vpop.f32.mrb[0].mxu0
    %v885 = vadd.f32 %v836, %v884
    %v886 = vpop.f32.mrb[0].mxu0
    %887 = vdwg.mxu0
    %888 = vmatprep.subr.bf16.mxu0 0
    %889 = vmatpush1.bf16.msra.mxu0 %v612
    %890 = vmatprep.subr.bf16.mxu0 0
    %891 = vmatpush1.bf16.msra.mxu0 %v613
    %892 = vmatprep.subr.bf16.mxu0 0
    %893 = vmatpush1.bf16.msra.mxu0 %v614
    %894 = vmatprep.subr.bf16.mxu0 0
    %895 = vmatpush1.bf16.msra.mxu0 %v615
    %896 = vmatprep.subr.bf16.mxu0 0
    %897 = vmatpush1.bf16.msra.mxu0 %v616
    %898 = vmatprep.subr.bf16.mxu0 0
    %899 = vmatpush1.bf16.msra.mxu0 %v617
    %900 = vmatprep.subr.bf16.mxu0 0
    %901 = vmatpush1.bf16.msra.mxu0 %v618
    %902 = vmatprep.subr.bf16.mxu0 0
    %903 = vmatpush1.bf16.msra.mxu0 %v619
    %904 = vmatprep.subr.bf16.mxu0 0
    %905 = vmatpush1.bf16.msra.mxu0 0
    %906 = vmatprep.subr.bf16.mxu0 0
    %907 = vmatpush1.bf16.msra.mxu0 0
    %908 = vmatprep.subr.bf16.mxu0 0
    %909 = vmatpush1.bf16.msra.mxu0 0
    %910 = vmatprep.subr.bf16.mxu0 0
    %911 = vmatpush1.bf16.msra.mxu0 0
    %912 = vmatprep.subr.bf16.mxu0 0
    %913 = vmatpush1.bf16.msra.mxu0 0
    %914 = vmatprep.subr.bf16.mxu0 0
    %915 = vmatpush1.bf16.msra.mxu0 0
    %916 = vmatprep.subr.bf16.mxu0 0
    %917 = vmatpush1.bf16.msra.mxu0 0
    %918 = vmatprep.subr.bf16.mxu0 0
    %919 = vmatpush1.bf16.msra.mxu0 0
    %920 = vmatprep.mubr.bf16.mxu0 0
    %921 = vmatmul.mubr.bf16.gmra.mrb[0].mxu0 %v99
    %v922 = vpop.f32.mrb[0].mxu0
    %v923 = vadd.f32 %v874, %v922
    %v924 = vpop.f32.mrb[0].mxu0
    %v925 = vpop.f32.mrb[0].mxu0
    %v926 = vadd.f32 %v877, %v925
    %v927 = vpop.f32.mrb[0].mxu0
    %928 = vmatprep.mubr.bf16.mxu0 0
    %929 = vmatmul.mubr.bf16.gmra.mrb[0].mxu0 %v108
    %v930 = vpop.f32.mrb[0].mxu0
    %v931 = vadd.f32 %v882, %v930
    %v932 = vpop.f32.mrb[0].mxu0
    %v933 = vpop.f32.mrb[0].mxu0
    %v934 = vadd.f32 %v885, %v933
    %v935 = vpop.f32.mrb[0].mxu0
    %936 = vdwg.mxu0
    %937 = vst [vmem:[#allocation8] sm:$0xff] %v923
    %938 = vst [vmem:[#allocation8 + $0x8] sm:$0xff] %v926
    %939 = vst [vmem:[#allocation8 + $0x10] sm:$0xff] %v931
    %940 = vst [vmem:[#allocation8 + $0x18] sm:$0xff] %v934
    // Predicated region
    $region26: #{_lambda_.14} parent=1 // pred_check
      _
    $region27: #{_lambda_.14} parent=1 // pred_check_branch
      %942 = sbr.rel (0) target = $region29
    $region28: #{_lambda_.14} parent=1 // pred_region
      %s944 = ssub.s32 512, 512
      %945 = vsyncadd [#allocation4], %s944
      %s946 = sshll.u32 [#allocation8], 4
      %s947 = int_to_ptr.vmem [resolvable:$true] %s946
      %952 = dma.vmem_to_hbm [thread:$0]  %s947, 512, %s3, [#allocation4], 128, 128, 8
    $region29: #{_lambda_.14} parent=1 // pred_fallthru
      _
    // Predicated region
    $region30: #{_lambda_.14} parent=1 // pred_check
      _
    $region31: #{_lambda_.14} parent=1 // pred_check_branch
      %954 = sbr.rel (0) target = $region33
    $region32: #{_lambda_.14} parent=1 // pred_region
      %955 = dma.done [#allocation4], 512
    $region33: #{_lambda_.14} parent=1 // pred_fallthru
      _
    %956 = vsyncpa [#allocation3], 1
    %957 = vsyncpa [#allocation6], 1
    %958 = vsyncpa [#allocation4], 1

// kernel: _lambda_.12
$region0: #{_lambda_.12}
  #allocation0 [shape = 'u32[]', space=smem, size = 0x4, offset = 0x4, fixed_abs, tag = 'smem constant byte address 0x4 - core index']
  #allocation1 [shape = 'u32[144,128]{1,0:T(1,128)}', space=vmem, size = 0x12000, scoped, tag = 'internal scratch']
  %s0 = inlined_call_operand.hbm [shape: f32[512,1152], index: 0, kind: input, shape index: {}]
  %s1 = inlined_call_operand.hbm [shape: bf16[1152,128], index: 1, kind: input, shape index: {}]
  %s2 = inlined_call_operand.hbm [shape: f32[1,128], index: 2, kind: input, shape index: {}]
  %s3 = inlined_call_operand.hbm [shape: f32[512,128], index: 3, kind: output, shape index: {}]
  %s4 = sld [smem:[#allocation0]]
  $region34: #{_lambda_.12} parent=0
    _
  %s6 = ssub.s32 1, %s4
  %s7 = scalar_select 0, %s6, %s4
  $region1: #{_lambda_.12} parent=0
    #allocation2 [shape = 'u8[2359296]{0}', space=vmem, size = 0x240000, scoped, tag = 'input window, operand 0, single buffered']
    #allocation3 [shape = 's32[1]{0}', space=sflag, size = 0x4, scoped, tag = 'scoped memory for _lambda_.12']
    #allocation4 [shape = 's32[1]{0}', space=sflag, size = 0x4, scoped, tag = 'scoped memory for _lambda_.12']
    #allocation5 [shape = 'u8[294912]{0}', space=vmem, size = 0x48000, scoped, tag = 'input window, operand 1, single buffered']
    #allocation6 [shape = 's32[1]{0}', space=sflag, size = 0x4, scoped, tag = 'scoped memory for _lambda_.12']
    #allocation7 [shape = 'u8[512]{0}', space=vmem, size = 0x400, scoped, tag = 'input window, operand 2, single buffered']
    #allocation8 [shape = 'u8[262144]{0}', space=vmem, size = 0x40000, scoped, tag = 'output window, operand 0, single buffered']
    %8 = vsyncpa [#allocation3], 0
    %9 = vsyncpa [#allocation6], 0
    %10 = vsyncpa [#allocation4], 0
    // Predicated region
    $region2: #{_lambda_.12} parent=1 // pred_check
      _
    $region3: #{_lambda_.12} parent=1 // pred_check_branch
      %12 = sbr.rel (0) target = $region5
    $region4: #{_lambda_.12} parent=1 // pred_region
      %s14 = ssub.s32 73728, 73728
      %15 = vsyncadd [#allocation3], %s14
      %s16 = sshll.u32 [#allocation2], 4
      %s17 = int_to_ptr.vmem [resolvable:$true] %s16
      %22 = dma.hbm_to_vmem [thread:$0]  %s0, 73728, %s17, [#allocation3], 1152, 1152, 72
    $region5: #{_lambda_.12} parent=1 // pred_fallthru
      _
    // Predicated region
    $region6: #{_lambda_.12} parent=1 // pred_check
      _
    $region7: #{_lambda_.12} parent=1 // pred_check_branch
      %24 = sbr.rel (0) target = $region9
    $region8: #{_lambda_.12} parent=1 // pred_region
      %s26 = ssub.s32 9216, 9216
      %27 = vsyncadd [#allocation6], %s26
      %s28 = sshll.u32 [#allocation5], 4
      %s29 = int_to_ptr.vmem [resolvable:$true] %s28
      %34 = dma.hbm_to_vmem [thread:$0]  %s1, 9216, %s29, [#allocation6], 64, 64, 4
    $region9: #{_lambda_.12} parent=1 // pred_fallthru
      _
    // Predicated region
    $region10: #{_lambda_.12} parent=1 // pred_check
      _
    $region11: #{_lambda_.12} parent=1 // pred_check_branch
      %36 = sbr.rel (0) target = $region13
    $region12: #{_lambda_.12} parent=1 // pred_region
      %s38 = ssub.s32 16, 16
      %39 = vsyncadd [#allocation6], %s38
      %s41 = sshll.u32 [#allocation7], 4
      %s42 = int_to_ptr.vmem [resolvable:$true] %s41
      %44 = dma.hbm_to_vmem [thread:$0]  %s2, 16, %s42, [#allocation6]
    $region13: #{_lambda_.12} parent=1 // pred_fallthru
      _
    // Predicated region
    $region14: #{_lambda_.12} parent=1 // pred_check
      _
    $region15: #{_lambda_.12} parent=1 // pred_check_branch
      %46 = sbr.rel (0) target = $region17
    $region16: #{_lambda_.12} parent=1 // pred_region
      %47 = dma.done [#allocation3], 73728
    $region17: #{_lambda_.12} parent=1 // pred_fallthru
      _
    // Predicated region
    $region18: #{_lambda_.12} parent=1 // pred_check
      _
    $region19: #{_lambda_.12} parent=1 // pred_check_branch
      %49 = sbr.rel (0) target = $region21
    $region20: #{_lambda_.12} parent=1 // pred_region
      %50 = dma.done [#allocation6], 9216
    $region21: #{_lambda_.12} parent=1 // pred_fallthru
      _
    // Predicated region
    $region22: #{_lambda_.12} parent=1 // pred_check
      _
    $region23: #{_lambda_.12} parent=1 // pred_check_branch
      %52 = sbr.rel (0) target = $region25
    $region24: #{_lambda_.12} parent=1 // pred_region
      %53 = dma.done [#allocation6], 16
    $region25: #{_lambda_.12} parent=1 // pred_fallthru
      _
    %v55 = vld [vmem:[#allocation2] sm:$0xff]
    %v56 = vld [vmem:[#allocation2 + $0x8] sm:$0xff]
    %v57 = vld [vmem:[#allocation2 + $0x10] sm:$0xff]
    %v58 = vld [vmem:[#allocation2 + $0x18] sm:$0xff]
    %v59 = vld [vmem:[#allocation2 + $0x20] sm:$0xff]
    %v60 = vld [vmem:[#allocation2 + $0x28] sm:$0xff]
    %v61 = vld [vmem:[#allocation2 + $0x30] sm:$0xff]
    %v62 = vld [vmem:[#allocation2 + $0x38] sm:$0xff]
    %v63 = vld [vmem:[#allocation2 + $0x40] sm:$0xff]
    %v64 = vld [vmem:[#allocation2 + $0x48] sm:$0xff]
    %v65 = vld [vmem:[#allocation2 + $0x50] sm:$0xff]
    %v66 = vld [vmem:[#allocation2 + $0x58] sm:$0xff]
    %v67 = vld [vmem:[#allocation2 + $0x60] sm:$0xff]
    %v68 = vld [vmem:[#allocation2 + $0x68] sm:$0xff]
    %v69 = vld [vmem:[#allocation2 + $0x70] sm:$0xff]
    %v70 = vld [vmem:[#allocation2 + $0x78] sm:$0xff]
    %v71 = vld [vmem:[#allocation2 + $0x80] sm:$0xff]
    %v72 = vld [vmem:[#allocation2 + $0x88] sm:$0xff]
    %v73 = vld [vmem:[#allocation2 + $0x90] sm:$0xff]
    %v74 = vld [vmem:[#allocation2 + $0x98] sm:$0xff]
    %v75 = vld [vmem:[#allocation2 + $0xa0] sm:$0xff]
    %v76 = vld [vmem:[#allocation2 + $0xa8] sm:$0xff]
    %v77 = vld [vmem:[#allocation2 + $0xb0] sm:$0xff]
    %v78 = vld [vmem:[#allocation2 + $0xb8] sm:$0xff]
    %v79 = vld [vmem:[#allocation2 + $0xc0] sm:$0xff]
    %v80 = vld [vmem:[#allocation2 + $0xc8] sm:$0xff]
    %v81 = vld [vmem:[#allocation2 + $0xd0] sm:$0xff]
    %v82 = vld [vmem:[#allocation2 + $0xd8] sm:$0xff]
    %v83 = vld [vmem:[#allocation2 + $0xe0] sm:$0xff]
    %v84 = vld [vmem:[#allocation2 + $0xe8] sm:$0xff]
    %v85 = vld [vmem:[#allocation2 + $0xf0] sm:$0xff]
    %v86 = vld [vmem:[#allocation2 + $0xf8] sm:$0xff]
    %v87 = vld [vmem:[#allocation2 + $0x100] sm:$0xff]
    %v88 = vld [vmem:[#allocation2 + $0x108] sm:$0xff]
    %v89 = vld [vmem:[#allocation2 + $0x110] sm:$0xff]
    %v90 = vld [vmem:[#allocation2 + $0x118] sm:$0xff]
    %v91 = vld [vmem:[#allocation2 + $0x120] sm:$0xff]
    %v92 = vld [vmem:[#allocation2 + $0x128] sm:$0xff]
    %v93 = vld [vmem:[#allocation2 + $0x130] sm:$0xff]
    %v94 = vld [vmem:[#allocation2 + $0x138] sm:$0xff]
    %v95 = vld [vmem:[#allocation2 + $0x140] sm:$0xff]
    %v96 = vld [vmem:[#allocation2 + $0x148] sm:$0xff]
    %v97 = vld [vmem:[#allocation2 + $0x150] sm:$0xff]
    %v98 = vld [vmem:[#allocation2 + $0x158] sm:$0xff]
    %v99 = vld [vmem:[#allocation2 + $0x160] sm:$0xff]
    %v100 = vld [vmem:[#allocation2 + $0x168] sm:$0xff]
    %v101 = vld [vmem:[#allocation2 + $0x170] sm:$0xff]
    %v102 = vld [vmem:[#allocation2 + $0x178] sm:$0xff]
    %v103 = vld [vmem:[#allocation2 + $0x180] sm:$0xff]
    %v104 = vld [vmem:[#allocation2 + $0x188] sm:$0xff]
    %v105 = vld [vmem:[#allocation2 + $0x190] sm:$0xff]
    %v106 = vld [vmem:[#allocation2 + $0x198] sm:$0xff]
    %v107 = vld [vmem:[#allocation2 + $0x1a0] sm:$0xff]
    %v108 = vld [vmem:[#allocation2 + $0x1a8] sm:$0xff]
    %v109 = vld [vmem:[#allocation2 + $0x1b0] sm:$0xff]
    %v110 = vld [vmem:[#allocation2 + $0x1b8] sm:$0xff]
    %v111 = vld [vmem:[#allocation2 + $0x1c0] sm:$0xff]
    %v112 = vld [vmem:[#allocation2 + $0x1c8] sm:$0xff]
    %v113 = vld [vmem:[#allocation2 + $0x1d0] sm:$0xff]
    %v114 = vld [vmem:[#allocation2 + $0x1d8] sm:$0xff]
    %v115 = vld [vmem:[#allocation2 + $0x1e0] sm:$0xff]
    %v116 = vld [vmem:[#allocation2 + $0x1e8] sm:$0xff]
    %v117 = vld [vmem:[#allocation2 + $0x1f0] sm:$0xff]
    %v118 = vld [vmem:[#allocation2 + $0x1f8] sm:$0xff]
    %v119 = vld [vmem:[#allocation2 + $0x200] sm:$0xff]
    %v120 = vld [vmem:[#allocation2 + $0x208] sm:$0xff]
    %v121 = vld [vmem:[#allocation2 + $0x210] sm:$0xff]
    %v122 = vld [vmem:[#allocation2 + $0x218] sm:$0xff]
    %v123 = vld [vmem:[#allocation2 + $0x220] sm:$0xff]
    %v124 = vld [vmem:[#allocation2 + $0x228] sm:$0xff]
    %v125 = vld [vmem:[#allocation2 + $0x230] sm:$0xff]
    %v126 = vld [vmem:[#allocation2 + $0x238] sm:$0xff]
    %v127 = vld [vmem:[#allocation2 + $0x240] sm:$0xff]
    %v128 = vld [vmem:[#allocation2 + $0x248] sm:$0xff]
    %v129 = vld [vmem:[#allocation2 + $0x250] sm:$0xff]
    %v130 = vld [vmem:[#allocation2 + $0x258] sm:$0xff]
    %v131 = vld [vmem:[#allocation2 + $0x260] sm:$0xff]
    %v132 = vld [vmem:[#allocation2 + $0x268] sm:$0xff]
    %v133 = vld [vmem:[#allocation2 + $0x270] sm:$0xff]
    %v134 = vld [vmem:[#allocation2 + $0x278] sm:$0xff]
    %v135 = vld [vmem:[#allocation2 + $0x280] sm:$0xff]
    %v136 = vld [vmem:[#allocation2 + $0x288] sm:$0xff]
    %v137 = vld [vmem:[#allocation2 + $0x290] sm:$0xff]
    %v138 = vld [vmem:[#allocation2 + $0x298] sm:$0xff]
    %v139 = vld [vmem:[#allocation2 + $0x2a0] sm:$0xff]
    %v140 = vld [vmem:[#allocation2 + $0x2a8] sm:$0xff]
    %v141 = vld [vmem:[#allocation2 + $0x2b0] sm:$0xff]
    %v142 = vld [vmem:[#allocation2 + $0x2b8] sm:$0xff]
    %v143 = vld [vmem:[#allocation2 + $0x2c0] sm:$0xff]
    %v144 = vld [vmem:[#allocation2 + $0x2c8] sm:$0xff]
    %v145 = vld [vmem:[#allocation2 + $0x2d0] sm:$0xff]
    %v146 = vld [vmem:[#allocation2 + $0x2d8] sm:$0xff]
    %v147 = vld [vmem:[#allocation2 + $0x2e0] sm:$0xff]
    %v148 = vld [vmem:[#allocation2 + $0x2e8] sm:$0xff]
    %v149 = vld [vmem:[#allocation2 + $0x2f0] sm:$0xff]
    %v150 = vld [vmem:[#allocation2 + $0x2f8] sm:$0xff]
    %v151 = vld [vmem:[#allocation2 + $0x300] sm:$0xff]
    %v152 = vld [vmem:[#allocation2 + $0x308] sm:$0xff]
    %v153 = vld [vmem:[#allocation2 + $0x310] sm:$0xff]
    %v154 = vld [vmem:[#allocation2 + $0x318] sm:$0xff]
    %v155 = vld [vmem:[#allocation2 + $0x320] sm:$0xff]
    %v156 = vld [vmem:[#allocation2 + $0x328] sm:$0xff]
    %v157 = vld [vmem:[#allocation2 + $0x330] sm:$0xff]
    %v158 = vld [vmem:[#allocation2 + $0x338] sm:$0xff]
    %v159 = vld [vmem:[#allocation2 + $0x340] sm:$0xff]
    %v160 = vld [vmem:[#allocation2 + $0x348] sm:$0xff]
    %v161 = vld [vmem:[#allocation2 + $0x350] sm:$0xff]
    %v162 = vld [vmem:[#allocation2 + $0x358] sm:$0xff]
    %v163 = vld [vmem:[#allocation2 + $0x360] sm:$0xff]
    %v164 = vld [vmem:[#allocation2 + $0x368] sm:$0xff]
    %v165 = vld [vmem:[#allocation2 + $0x370] sm:$0xff]
    %v166 = vld [vmem:[#allocation2 + $0x378] sm:$0xff]
    %v167 = vld [vmem:[#allocation2 + $0x380] sm:$0xff]
    %v168 = vld [vmem:[#allocation2 + $0x388] sm:$0xff]
    %v169 = vld [vmem:[#allocation2 + $0x390] sm:$0xff]
    %v170 = vld [vmem:[#allocation2 + $0x398] sm:$0xff]
    %v171 = vld [vmem:[#allocation2 + $0x3a0] sm:$0xff]
    %v172 = vld [vmem:[#allocation2 + $0x3a8] sm:$0xff]
    %v173 = vld [vmem:[#allocation2 + $0x3b0] sm:$0xff]
    %v174 = vld [vmem:[#allocation2 + $0x3b8] sm:$0xff]
    %v175 = vld [vmem:[#allocation2 + $0x3c0] sm:$0xff]
    %v176 = vld [vmem:[#allocation2 + $0x3c8] sm:$0xff]
    %v177 = vld [vmem:[#allocation2 + $0x3d0] sm:$0xff]
    %v178 = vld [vmem:[#allocation2 + $0x3d8] sm:$0xff]
    %v179 = vld [vmem:[#allocation2 + $0x3e0] sm:$0xff]
    %v180 = vld [vmem:[#allocation2 + $0x3e8] sm:$0xff]
    %v181 = vld [vmem:[#allocation2 + $0x3f0] sm:$0xff]
    %v182 = vld [vmem:[#allocation2 + $0x3f8] sm:$0xff]
    %v183 = vld [vmem:[#allocation2 + $0x400] sm:$0xff]
    %v184 = vld [vmem:[#allocation2 + $0x408] sm:$0xff]
    %v185 = vld [vmem:[#allocation2 + $0x410] sm:$0xff]
    %v186 = vld [vmem:[#allocation2 + $0x418] sm:$0xff]
    %v187 = vld [vmem:[#allocation2 + $0x420] sm:$0xff]
    %v188 = vld [vmem:[#allocation2 + $0x428] sm:$0xff]
    %v189 = vld [vmem:[#allocation2 + $0x430] sm:$0xff]
    %v190 = vld [vmem:[#allocation2 + $0x438] sm:$0xff]
    %v191 = vld [vmem:[#allocation2 + $0x440] sm:$0xff]
    %v192 = vld [vmem:[#allocation2 + $0x448] sm:$0xff]
    %v193 = vld [vmem:[#allocation2 + $0x450] sm:$0xff]
    %v194 = vld [vmem:[#allocation2 + $0x458] sm:$0xff]
    %v195 = vld [vmem:[#allocation2 + $0x460] sm:$0xff]
    %v196 = vld [vmem:[#allocation2 + $0x468] sm:$0xff]
    %v197 = vld [vmem:[#allocation2 + $0x470] sm:$0xff]
    %v198 = vld [vmem:[#allocation2 + $0x478] sm:$0xff]
    %v199 = vld [vmem:[#allocation2 + $0x480] sm:$0xff]
    %v200 = vld [vmem:[#allocation2 + $0x488] sm:$0xff]
    %v201 = vld [vmem:[#allocation2 + $0x490] sm:$0xff]
    %v202 = vld [vmem:[#allocation2 + $0x498] sm:$0xff]
    %v203 = vld [vmem:[#allocation2 + $0x4a0] sm:$0xff]
    %v204 = vld [vmem:[#allocation2 + $0x4a8] sm:$0xff]
    %v205 = vld [vmem:[#allocation2 + $0x4b0] sm:$0xff]
    %v206 = vld [vmem:[#allocation2 + $0x4b8] sm:$0xff]
    %v207 = vld [vmem:[#allocation2 + $0x4c0] sm:$0xff]
    %v208 = vld [vmem:[#allocation2 + $0x4c8] sm:$0xff]
    %v209 = vld [vmem:[#allocation2 + $0x4d0] sm:$0xff]
    %v210 = vld [vmem:[#allocation2 + $0x4d8] sm:$0xff]
    %v211 = vld [vmem:[#allocation2 + $0x4e0] sm:$0xff]
    %v212 = vld [vmem:[#allocation2 + $0x4e8] sm:$0xff]
    %v213 = vld [vmem:[#allocation2 + $0x4f0] sm:$0xff]
    %v214 = vld [vmem:[#allocation2 + $0x4f8] sm:$0xff]
    %v215 = vld [vmem:[#allocation2 + $0x500] sm:$0xff]
    %v216 = vld [vmem:[#allocation2 + $0x508] sm:$0xff]
    %v217 = vld [vmem:[#allocation2 + $0x510] sm:$0xff]
    %v218 = vld [vmem:[#allocation2 + $0x518] sm:$0xff]
    %v219 = vld [vmem:[#allocation2 + $0x520] sm:$0xff]
    %v220 = vld [vmem:[#allocation2 + $0x528] sm:$0xff]
    %v221 = vld [vmem:[#allocation2 + $0x530] sm:$0xff]
    %v222 = vld [vmem:[#allocation2 + $0x538] sm:$0xff]
    %v223 = vld [vmem:[#allocation2 + $0x540] sm:$0xff]
    %v224 = vld [vmem:[#allocation2 + $0x548] sm:$0xff]
    %v225 = vld [vmem:[#allocation2 + $0x550] sm:$0xff]
    %v226 = vld [vmem:[#allocation2 + $0x558] sm:$0xff]
    %v227 = vld [vmem:[#allocation2 + $0x560] sm:$0xff]
    %v228 = vld [vmem:[#allocation2 + $0x568] sm:$0xff]
    %v229 = vld [vmem:[#allocation2 + $0x570] sm:$0xff]
    %v230 = vld [vmem:[#allocation2 + $0x578] sm:$0xff]
    %v231 = vld [vmem:[#allocation2 + $0x580] sm:$0xff]
    %v232 = vld [vmem:[#allocation2 + $0x588] sm:$0xff]
    %v233 = vld [vmem:[#allocation2 + $0x590] sm:$0xff]
    %v234 = vld [vmem:[#allocation2 + $0x598] sm:$0xff]
    %v235 = vld [vmem:[#allocation2 + $0x5a0] sm:$0xff]
    %v236 = vld [vmem:[#allocation2 + $0x5a8] sm:$0xff]
    %v237 = vld [vmem:[#allocation2 + $0x5b0] sm:$0xff]
    %v238 = vld [vmem:[#allocation2 + $0x5b8] sm:$0xff]
    %v239 = vld [vmem:[#allocation2 + $0x5c0] sm:$0xff]
    %v240 = vld [vmem:[#allocation2 + $0x5c8] sm:$0xff]
    %v241 = vld [vmem:[#allocation2 + $0x5d0] sm:$0xff]
    %v242 = vld [vmem:[#allocation2 + $0x5d8] sm:$0xff]
    %v243 = vld [vmem:[#allocation2 + $0x5e0] sm:$0xff]
    %v244 = vld [vmem:[#allocation2 + $0x5e8] sm:$0xff]
    %v245 = vld [vmem:[#allocation2 + $0x5f0] sm:$0xff]
    %v246 = vld [vmem:[#allocation2 + $0x5f8] sm:$0xff]
    %v247 = vld [vmem:[#allocation2 + $0x600] sm:$0xff]
    %v248 = vld [vmem:[#allocation2 + $0x608] sm:$0xff]
    %v249 = vld [vmem:[#allocation2 + $0x610] sm:$0xff]
    %v250 = vld [vmem:[#allocation2 + $0x618] sm:$0xff]
    %v251 = vld [vmem:[#allocation2 + $0x620] sm:$0xff]
    %v252 = vld [vmem:[#allocation2 + $0x628] sm:$0xff]
    %v253 = vld [vmem:[#allocation2 + $0x630] sm:$0xff]
    %v254 = vld [vmem:[#allocation2 + $0x638] sm:$0xff]
    %v255 = vld [vmem:[#allocation2 + $0x640] sm:$0xff]
    %v256 = vld [vmem:[#allocation2 + $0x648] sm:$0xff]
    %v257 = vld [vmem:[#allocation2 + $0x650] sm:$0xff]
    %v258 = vld [vmem:[#allocation2 + $0x658] sm:$0xff]
    %v259 = vld [vmem:[#allocation2 + $0x660] sm:$0xff]
    %v260 = vld [vmem:[#allocation2 + $0x668] sm:$0xff]
    %v261 = vld [vmem:[#allocation2 + $0x670] sm:$0xff]
    %v262 = vld [vmem:[#allocation2 + $0x678] sm:$0xff]
    %v263 = vld [vmem:[#allocation2 + $0x680] sm:$0xff]
    %v264 = vld [vmem:[#allocation2 + $0x688] sm:$0xff]
    %v265 = vld [vmem:[#allocation2 + $0x690] sm:$0xff]
    %v266 = vld [vmem:[#allocation2 + $0x698] sm:$0xff]
    %v267 = vld [vmem:[#allocation2 + $0x6a0] sm:$0xff]
    %v268 = vld [vmem:[#allocation2 + $0x6a8] sm:$0xff]
    %v269 = vld [vmem:[#allocation2 + $0x6b0] sm:$0xff]
    %v270 = vld [vmem:[#allocation2 + $0x6b8] sm:$0xff]
    %v271 = vld [vmem:[#allocation2 + $0x6c0] sm:$0xff]
    %v272 = vld [vmem:[#allocation2 + $0x6c8] sm:$0xff]
    %v273 = vld [vmem:[#allocation2 + $0x6d0] sm:$0xff]
    %v274 = vld [vmem:[#allocation2 + $0x6d8] sm:$0xff]
    %v275 = vld [vmem:[#allocation2 + $0x6e0] sm:$0xff]
    %v276 = vld [vmem:[#allocation2 + $0x6e8] sm:$0xff]
    %v277 = vld [vmem:[#allocation2 + $0x6f0] sm:$0xff]
    %v278 = vld [vmem:[#allocation2 + $0x6f8] sm:$0xff]
    %v279 = vld [vmem:[#allocation2 + $0x700] sm:$0xff]
    %v280 = vld [vmem:[#allocation2 + $0x708] sm:$0xff]
    %v281 = vld [vmem:[#allocation2 + $0x710] sm:$0xff]
    %v282 = vld [vmem:[#allocation2 + $0x718] sm:$0xff]
    %v283 = vld [vmem:[#allocation2 + $0x720] sm:$0xff]
    %v284 = vld [vmem:[#allocation2 + $0x728] sm:$0xff]
    %v285 = vld [vmem:[#allocation2 + $0x730] sm:$0xff]
    %v286 = vld [vmem:[#allocation2 + $0x738] sm:$0xff]
    %v287 = vld [vmem:[#allocation2 + $0x740] sm:$0xff]
    %v288 = vld [vmem:[#allocation2 + $0x748] sm:$0xff]
    %v289 = vld [vmem:[#allocation2 + $0x750] sm:$0xff]
    %v290 = vld [vmem:[#allocation2 + $0x758] sm:$0xff]
    %v291 = vld [vmem:[#allocation2 + $0x760] sm:$0xff]
    %v292 = vld [vmem:[#allocation2 + $0x768] sm:$0xff]
    %v293 = vld [vmem:[#allocation2 + $0x770] sm:$0xff]
    %v294 = vld [vmem:[#allocation2 + $0x778] sm:$0xff]
    %v295 = vld [vmem:[#allocation2 + $0x780] sm:$0xff]
    %v296 = vld [vmem:[#allocation2 + $0x788] sm:$0xff]
    %v297 = vld [vmem:[#allocation2 + $0x790] sm:$0xff]
    %v298 = vld [vmem:[#allocation2 + $0x798] sm:$0xff]
    %v299 = vld [vmem:[#allocation2 + $0x7a0] sm:$0xff]
    %v300 = vld [vmem:[#allocation2 + $0x7a8] sm:$0xff]
    %v301 = vld [vmem:[#allocation2 + $0x7b0] sm:$0xff]
    %v302 = vld [vmem:[#allocation2 + $0x7b8] sm:$0xff]
    %v303 = vld [vmem:[#allocation2 + $0x7c0] sm:$0xff]
    %v304 = vld [vmem:[#allocation2 + $0x7c8] sm:$0xff]
    %v305 = vld [vmem:[#allocation2 + $0x7d0] sm:$0xff]
    %v306 = vld [vmem:[#allocation2 + $0x7d8] sm:$0xff]
    %v307 = vld [vmem:[#allocation2 + $0x7e0] sm:$0xff]
    %v308 = vld [vmem:[#allocation2 + $0x7e8] sm:$0xff]
    %v309 = vld [vmem:[#allocation2 + $0x7f0] sm:$0xff]
    %v310 = vld [vmem:[#allocation2 + $0x7f8] sm:$0xff]
    %v311 = vld [vmem:[#allocation2 + $0x800] sm:$0xff]
    %v312 = vld [vmem:[#allocation2 + $0x808] sm:$0xff]
    %v313 = vld [vmem:[#allocation2 + $0x810] sm:$0xff]
    %v314 = vld [vmem:[#allocation2 + $0x818] sm:$0xff]
    %v315 = vld [vmem:[#allocation2 + $0x820] sm:$0xff]
    %v316 = vld [vmem:[#allocation2 + $0x828] sm:$0xff]
    %v317 = vld [vmem:[#allocation2 + $0x830] sm:$0xff]
    %v318 = vld [vmem:[#allocation2 + $0x838] sm:$0xff]
    %v319 = vld [vmem:[#allocation2 + $0x840] sm:$0xff]
    %v320 = vld [vmem:[#allocation2 + $0x848] sm:$0xff]
    %v321 = vld [vmem:[#allocation2 + $0x850] sm:$0xff]
    %v322 = vld [vmem:[#allocation2 + $0x858] sm:$0xff]
    %v323 = vld [vmem:[#allocation2 + $0x860] sm:$0xff]
    %v324 = vld [vmem:[#allocation2 + $0x868] sm:$0xff]
    %v325 = vld [vmem:[#allocation2 + $0x870] sm:$0xff]
    %v326 = vld [vmem:[#allocation2 + $0x878] sm:$0xff]
    %v327 = vld [vmem:[#allocation2 + $0x880] sm:$0xff]
    %v328 = vld [vmem:[#allocation2 + $0x888] sm:$0xff]
    %v329 = vld [vmem:[#allocation2 + $0x890] sm:$0xff]
    %v330 = vld [vmem:[#allocation2 + $0x898] sm:$0xff]
    %v331 = vld [vmem:[#allocation2 + $0x8a0] sm:$0xff]
    %v332 = vld [vmem:[#allocation2 + $0x8a8] sm:$0xff]
    %v333 = vld [vmem:[#allocation2 + $0x8b0] sm:$0xff]
    %v334 = vld [vmem:[#allocation2 + $0x8b8] sm:$0xff]
    %v335 = vld [vmem:[#allocation2 + $0x8c0] sm:$0xff]
    %v336 = vld [vmem:[#allocation2 + $0x8c8] sm:$0xff]
    %v337 = vld [vmem:[#allocation2 + $0x8d0] sm:$0xff]
    %v338 = vld [vmem:[#allocation2 + $0x8d8] sm:$0xff]
    %v339 = vld [vmem:[#allocation2 + $0x8e0] sm:$0xff]
    %v340 = vld [vmem:[#allocation2 + $0x8e8] sm:$0xff]
    %v341 = vld [vmem:[#allocation2 + $0x8f0] sm:$0xff]
    %v342 = vld [vmem:[#allocation2 + $0x8f8] sm:$0xff]
    %v343 = vld [vmem:[#allocation2 + $0x900] sm:$0xff]
    %v344 = vld [vmem:[#allocation2 + $0x908] sm:$0xff]
    %v345 = vld [vmem:[#allocation2 + $0x910] sm:$0xff]
    %v346 = vld [vmem:[#allocation2 + $0x918] sm:$0xff]
    %v347 = vld [vmem:[#allocation2 + $0x920] sm:$0xff]
    %v348 = vld [vmem:[#allocation2 + $0x928] sm:$0xff]
    %v349 = vld [vmem:[#allocation2 + $0x930] sm:$0xff]
    %v350 = vld [vmem:[#allocation2 + $0x938] sm:$0xff]
    %v351 = vld [vmem:[#allocation2 + $0x940] sm:$0xff]
    %v352 = vld [vmem:[#allocation2 + $0x948] sm:$0xff]
    %v353 = vld [vmem:[#allocation2 + $0x950] sm:$0xff]
    %v354 = vld [vmem:[#allocation2 + $0x958] sm:$0xff]
    %v355 = vld [vmem:[#allocation2 + $0x960] sm:$0xff]
    %v356 = vld [vmem:[#allocation2 + $0x968] sm:$0xff]
    %v357 = vld [vmem:[#allocation2 + $0x970] sm:$0xff]
    %v358 = vld [vmem:[#allocation2 + $0x978] sm:$0xff]
    %v359 = vld [vmem:[#allocation2 + $0x980] sm:$0xff]
    %v360 = vld [vmem:[#allocation2 + $0x988] sm:$0xff]
    %v361 = vld [vmem:[#allocation2 + $0x990] sm:$0xff]
    %v362 = vld [vmem:[#allocation2 + $0x998] sm:$0xff]
    %v363 = vld [vmem:[#allocation2 + $0x9a0] sm:$0xff]
    %v364 = vld [vmem:[#allocation2 + $0x9a8] sm:$0xff]
    %v365 = vld [vmem:[#allocation2 + $0x9b0] sm:$0xff]
    %v366 = vld [vmem:[#allocation2 + $0x9b8] sm:$0xff]
    %v367 = vld [vmem:[#allocation2 + $0x9c0] sm:$0xff]
    %v368 = vld [vmem:[#allocation2 + $0x9c8] sm:$0xff]
    %v369 = vld [vmem:[#allocation2 + $0x9d0] sm:$0xff]
    %v370 = vld [vmem:[#allocation2 + $0x9d8] sm:$0xff]
    %v371 = vld [vmem:[#allocation2 + $0x9e0] sm:$0xff]
    %v372 = vld [vmem:[#allocation2 + $0x9e8] sm:$0xff]
    %v373 = vld [vmem:[#allocation2 + $0x9f0] sm:$0xff]
    %v374 = vld [vmem:[#allocation2 + $0x9f8] sm:$0xff]
    %v375 = vld [vmem:[#allocation2 + $0xa00] sm:$0xff]
    %v376 = vld [vmem:[#allocation2 + $0xa08] sm:$0xff]
    %v377 = vld [vmem:[#allocation2 + $0xa10] sm:$0xff]
    %v378 = vld [vmem:[#allocation2 + $0xa18] sm:$0xff]
    %v379 = vld [vmem:[#allocation2 + $0xa20] sm:$0xff]
    %v380 = vld [vmem:[#allocation2 + $0xa28] sm:$0xff]
    %v381 = vld [vmem:[#allocation2 + $0xa30] sm:$0xff]
    %v382 = vld [vmem:[#allocation2 + $0xa38] sm:$0xff]
    %v383 = vld [vmem:[#allocation2 + $0xa40] sm:$0xff]
    %v384 = vld [vmem:[#allocation2 + $0xa48] sm:$0xff]
    %v385 = vld [vmem:[#allocation2 + $0xa50] sm:$0xff]
    %v386 = vld [vmem:[#allocation2 + $0xa58] sm:$0xff]
    %v387 = vld [vmem:[#allocation2 + $0xa60] sm:$0xff]
    %v388 = vld [vmem:[#allocation2 + $0xa68] sm:$0xff]
    %v389 = vld [vmem:[#allocation2 + $0xa70] sm:$0xff]
    %v390 = vld [vmem:[#allocation2 + $0xa78] sm:$0xff]
    %v391 = vld [vmem:[#allocation2 + $0xa80] sm:$0xff]
    %v392 = vld [vmem:[#allocation2 + $0xa88] sm:$0xff]
    %v393 = vld [vmem:[#allocation2 + $0xa90] sm:$0xff]
    %v394 = vld [vmem:[#allocation2 + $0xa98] sm:$0xff]
    %v395 = vld [vmem:[#allocation2 + $0xaa0] sm:$0xff]
    %v396 = vld [vmem:[#allocation2 + $0xaa8] sm:$0xff]
    %v397 = vld [vmem:[#allocation2 + $0xab0] sm:$0xff]
    %v398 = vld [vmem:[#allocation2 + $0xab8] sm:$0xff]
    %v399 = vld [vmem:[#allocation2 + $0xac0] sm:$0xff]
    %v400 = vld [vmem:[#allocation2 + $0xac8] sm:$0xff]
    %v401 = vld [vmem:[#allocation2 + $0xad0] sm:$0xff]
    %v402 = vld [vmem:[#allocation2 + $0xad8] sm:$0xff]
    %v403 = vld [vmem:[#allocation2 + $0xae0] sm:$0xff]
    %v404 = vld [vmem:[#allocation2 + $0xae8] sm:$0xff]
    %v405 = vld [vmem:[#allocation2 + $0xaf0] sm:$0xff]
    %v406 = vld [vmem:[#allocation2 + $0xaf8] sm:$0xff]
    %v407 = vld [vmem:[#allocation2 + $0xb00] sm:$0xff]
    %v408 = vld [vmem:[#allocation2 + $0xb08] sm:$0xff]
    %v409 = vld [vmem:[#allocation2 + $0xb10] sm:$0xff]
    %v410 = vld [vmem:[#allocation2 + $0xb18] sm:$0xff]
    %v411 = vld [vmem:[#allocation2 + $0xb20] sm:$0xff]
    %v412 = vld [vmem:[#allocation2 + $0xb28] sm:$0xff]
    %v413 = vld [vmem:[#allocation2 + $0xb30] sm:$0xff]
    %v414 = vld [vmem:[#allocation2 + $0xb38] sm:$0xff]
    %v415 = vld [vmem:[#allocation2 + $0xb40] sm:$0xff]
    %v416 = vld [vmem:[#allocation2 + $0xb48] sm:$0xff]
    %v417 = vld [vmem:[#allocation2 + $0xb50] sm:$0xff]
    %v418 = vld [vmem:[#allocation2 + $0xb58] sm:$0xff]
    %v419 = vld [vmem:[#allocation2 + $0xb60] sm:$0xff]
    %v420 = vld [vmem:[#allocation2 + $0xb68] sm:$0xff]
    %v421 = vld [vmem:[#allocation2 + $0xb70] sm:$0xff]
    %v422 = vld [vmem:[#allocation2 + $0xb78] sm:$0xff]
    %v423 = vld [vmem:[#allocation2 + $0xb80] sm:$0xff]
    %v424 = vld [vmem:[#allocation2 + $0xb88] sm:$0xff]
    %v425 = vld [vmem:[#allocation2 + $0xb90] sm:$0xff]
    %v426 = vld [vmem:[#allocation2 + $0xb98] sm:$0xff]
    %v427 = vld [vmem:[#allocation2 + $0xba0] sm:$0xff]
    %v428 = vld [vmem:[#allocation2 + $0xba8] sm:$0xff]
    %v429 = vld [vmem:[#allocation2 + $0xbb0] sm:$0xff]
    %v430 = vld [vmem:[#allocation2 + $0xbb8] sm:$0xff]
    %v431 = vld [vmem:[#allocation2 + $0xbc0] sm:$0xff]
    %v432 = vld [vmem:[#allocation2 + $0xbc8] sm:$0xff]
    %v433 = vld [vmem:[#allocation2 + $0xbd0] sm:$0xff]
    %v434 = vld [vmem:[#allocation2 + $0xbd8] sm:$0xff]
    %v435 = vld [vmem:[#allocation2 + $0xbe0] sm:$0xff]
    %v436 = vld [vmem:[#allocation2 + $0xbe8] sm:$0xff]
    %v437 = vld [vmem:[#allocation2 + $0xbf0] sm:$0xff]
    %v438 = vld [vmem:[#allocation2 + $0xbf8] sm:$0xff]
    %v439 = vld [vmem:[#allocation2 + $0xc00] sm:$0xff]
    %v440 = vld [vmem:[#allocation2 + $0xc08] sm:$0xff]
    %v441 = vld [vmem:[#allocation2 + $0xc10] sm:$0xff]
    %v442 = vld [vmem:[#allocation2 + $0xc18] sm:$0xff]
    %v443 = vld [vmem:[#allocation2 + $0xc20] sm:$0xff]
    %v444 = vld [vmem:[#allocation2 + $0xc28] sm:$0xff]
    %v445 = vld [vmem:[#allocation2 + $0xc30] sm:$0xff]
    %v446 = vld [vmem:[#allocation2 + $0xc38] sm:$0xff]
    %v447 = vld [vmem:[#allocation2 + $0xc40] sm:$0xff]
    %v448 = vld [vmem:[#allocation2 + $0xc48] sm:$0xff]
    %v449 = vld [vmem:[#allocation2 + $0xc50] sm:$0xff]
    %v450 = vld [vmem:[#allocation2 + $0xc58] sm:$0xff]
    %v451 = vld [vmem:[#allocation2 + $0xc60] sm:$0xff]
    %v452 = vld [vmem:[#allocation2 + $0xc68] sm:$0xff]
    %v453 = vld [vmem:[#allocation2 + $0xc70] sm:$0xff]
    %v454 = vld [vmem:[#allocation2 + $0xc78] sm:$0xff]
    %v455 = vld [vmem:[#allocation2 + $0xc80] sm:$0xff]
    %v456 = vld [vmem:[#allocation2 + $0xc88] sm:$0xff]
    %v457 = vld [vmem:[#allocation2 + $0xc90] sm:$0xff]
    %v458 = vld [vmem:[#allocation2 + $0xc98] sm:$0xff]
    %v459 = vld [vmem:[#allocation2 + $0xca0] sm:$0xff]
    %v460 = vld [vmem:[#allocation2 + $0xca8] sm:$0xff]
    %v461 = vld [vmem:[#allocation2 + $0xcb0] sm:$0xff]
    %v462 = vld [vmem:[#allocation2 + $0xcb8] sm:$0xff]
    %v463 = vld [vmem:[#allocation2 + $0xcc0] sm:$0xff]
    %v464 = vld [vmem:[#allocation2 + $0xcc8] sm:$0xff]
    %v465 = vld [vmem:[#allocation2 + $0xcd0] sm:$0xff]
    %v466 = vld [vmem:[#allocation2 + $0xcd8] sm:$0xff]
    %v467 = vld [vmem:[#allocation2 + $0xce0] sm:$0xff]
    %v468 = vld [vmem:[#allocation2 + $0xce8] sm:$0xff]
    %v469 = vld [vmem:[#allocation2 + $0xcf0] sm:$0xff]
    %v470 = vld [vmem:[#allocation2 + $0xcf8] sm:$0xff]
    %v471 = vld [vmem:[#allocation2 + $0xd00] sm:$0xff]
    %v472 = vld [vmem:[#allocation2 + $0xd08] sm:$0xff]
    %v473 = vld [vmem:[#allocation2 + $0xd10] sm:$0xff]
    %v474 = vld [vmem:[#allocation2 + $0xd18] sm:$0xff]
    %v475 = vld [vmem:[#allocation2 + $0xd20] sm:$0xff]
    %v476 = vld [vmem:[#allocation2 + $0xd28] sm:$0xff]
    %v477 = vld [vmem:[#allocation2 + $0xd30] sm:$0xff]
    %v478 = vld [vmem:[#allocation2 + $0xd38] sm:$0xff]
    %v479 = vld [vmem:[#allocation2 + $0xd40] sm:$0xff]
    %v480 = vld [vmem:[#allocation2 + $0xd48] sm:$0xff]
    %v481 = vld [vmem:[#allocation2 + $0xd50] sm:$0xff]
    %v482 = vld [vmem:[#allocation2 + $0xd58] sm:$0xff]
    %v483 = vld [vmem:[#allocation2 + $0xd60] sm:$0xff]
    %v484 = vld [vmem:[#allocation2 + $0xd68] sm:$0xff]
    %v485 = vld [vmem:[#allocation2 + $0xd70] sm:$0xff]
    %v486 = vld [vmem:[#allocation2 + $0xd78] sm:$0xff]
    %v487 = vld [vmem:[#allocation2 + $0xd80] sm:$0xff]
    %v488 = vld [vmem:[#allocation2 + $0xd88] sm:$0xff]
    %v489 = vld [vmem:[#allocation2 + $0xd90] sm:$0xff]
    %v490 = vld [vmem:[#allocation2 + $0xd98] sm:$0xff]
    %v491 = vld [vmem:[#allocation2 + $0xda0] sm:$0xff]
    %v492 = vld [vmem:[#allocation2 + $0xda8] sm:$0xff]
    %v493 = vld [vmem:[#allocation2 + $0xdb0] sm:$0xff]
    %v494 = vld [vmem:[#allocation2 + $0xdb8] sm:$0xff]
    %v495 = vld [vmem:[#allocation2 + $0xdc0] sm:$0xff]
    %v496 = vld [vmem:[#allocation2 + $0xdc8] sm:$0xff]
    %v497 = vld [vmem:[#allocation2 + $0xdd0] sm:$0xff]
    %v498 = vld [vmem:[#allocation2 + $0xdd8] sm:$0xff]
    %v499 = vld [vmem:[#allocation2 + $0xde0] sm:$0xff]
    %v500 = vld [vmem:[#allocation2 + $0xde8] sm:$0xff]
    %v501 = vld [vmem:[#allocation2 + $0xdf0] sm:$0xff]
    %v502 = vld [vmem:[#allocation2 + $0xdf8] sm:$0xff]
    %v503 = vld [vmem:[#allocation2 + $0xe00] sm:$0xff]
    %v504 = vld [vmem:[#allocation2 + $0xe08] sm:$0xff]
    %v505 = vld [vmem:[#allocation2 + $0xe10] sm:$0xff]
    %v506 = vld [vmem:[#allocation2 + $0xe18] sm:$0xff]
    %v507 = vld [vmem:[#allocation2 + $0xe20] sm:$0xff]
    %v508 = vld [vmem:[#allocation2 + $0xe28] sm:$0xff]
    %v509 = vld [vmem:[#allocation2 + $0xe30] sm:$0xff]
    %v510 = vld [vmem:[#allocation2 + $0xe38] sm:$0xff]
    %v511 = vld [vmem:[#allocation2 + $0xe40] sm:$0xff]
    %v512 = vld [vmem:[#allocation2 + $0xe48] sm:$0xff]
    %v513 = vld [vmem:[#allocation2 + $0xe50] sm:$0xff]
    %v514 = vld [vmem:[#allocation2 + $0xe58] sm:$0xff]
    %v515 = vld [vmem:[#allocation2 + $0xe60] sm:$0xff]
    %v516 = vld [vmem:[#allocation2 + $0xe68] sm:$0xff]
    %v517 = vld [vmem:[#allocation2 + $0xe70] sm:$0xff]
    %v518 = vld [vmem:[#allocation2 + $0xe78] sm:$0xff]
    %v519 = vld [vmem:[#allocation2 + $0xe80] sm:$0xff]
    %v520 = vld [vmem:[#allocation2 + $0xe88] sm:$0xff]
    %v521 = vld [vmem:[#allocation2 + $0xe90] sm:$0xff]
    %v522 = vld [vmem:[#allocation2 + $0xe98] sm:$0xff]
    %v523 = vld [vmem:[#allocation2 + $0xea0] sm:$0xff]
    %v524 = vld [vmem:[#allocation2 + $0xea8] sm:$0xff]
    %v525 = vld [vmem:[#allocation2 + $0xeb0] sm:$0xff]
    %v526 = vld [vmem:[#allocation2 + $0xeb8] sm:$0xff]
    %v527 = vld [vmem:[#allocation2 + $0xec0] sm:$0xff]
    %v528 = vld [vmem:[#allocation2 + $0xec8] sm:$0xff]
    %v529 = vld [vmem:[#allocation2 + $0xed0] sm:$0xff]
    %v530 = vld [vmem:[#allocation2 + $0xed8] sm:$0xff]
    %v531 = vld [vmem:[#allocation2 + $0xee0] sm:$0xff]
    %v532 = vld [vmem:[#allocation2 + $0xee8] sm:$0xff]
    %v533 = vld [vmem:[#allocation2 + $0xef0] sm:$0xff]
    %v534 = vld [vmem:[#allocation2 + $0xef8] sm:$0xff]
    %v535 = vld [vmem:[#allocation2 + $0xf00] sm:$0xff]
    %v536 = vld [vmem:[#allocation2 + $0xf08] sm:$0xff]
    %v537 = vld [vmem:[#allocation2 + $0xf10] sm:$0xff]
    %v538 = vld [vmem:[#allocation2 + $0xf18] sm:$0xff]
    %v539 = vld [vmem:[#allocation2 + $0xf20] sm:$0xff]
    %v540 = vld [vmem:[#allocation2 + $0xf28] sm:$0xff]
    %v541 = vld [vmem:[#allocation2 + $0xf30] sm:$0xff]
    %v542 = vld [vmem:[#allocation2 + $0xf38] sm:$0xff]
    %v543 = vld [vmem:[#allocation2 + $0xf40] sm:$0xff]
    %v544 = vld [vmem:[#allocation2 + $0xf48] sm:$0xff]
    %v545 = vld [vmem:[#allocation2 + $0xf50] sm:$0xff]
    %v546 = vld [vmem:[#allocation2 + $0xf58] sm:$0xff]
    %v547 = vld [vmem:[#allocation2 + $0xf60] sm:$0xff]
    %v548 = vld [vmem:[#allocation2 + $0xf68] sm:$0xff]
    %v549 = vld [vmem:[#allocation2 + $0xf70] sm:$0xff]
    %v550 = vld [vmem:[#allocation2 + $0xf78] sm:$0xff]
    %v551 = vld [vmem:[#allocation2 + $0xf80] sm:$0xff]
    %v552 = vld [vmem:[#allocation2 + $0xf88] sm:$0xff]
    %v553 = vld [vmem:[#allocation2 + $0xf90] sm:$0xff]
    %v554 = vld [vmem:[#allocation2 + $0xf98] sm:$0xff]
    %v555 = vld [vmem:[#allocation2 + $0xfa0] sm:$0xff]
    %v556 = vld [vmem:[#allocation2 + $0xfa8] sm:$0xff]
    %v557 = vld [vmem:[#allocation2 + $0xfb0] sm:$0xff]
    %v558 = vld [vmem:[#allocation2 + $0xfb8] sm:$0xff]
    %v559 = vld [vmem:[#allocation2 + $0xfc0] sm:$0xff]
    %v560 = vld [vmem:[#allocation2 + $0xfc8] sm:$0xff]
    %v561 = vld [vmem:[#allocation2 + $0xfd0] sm:$0xff]
    %v562 = vld [vmem:[#allocation2 + $0xfd8] sm:$0xff]
    %v563 = vld [vmem:[#allocation2 + $0xfe0] sm:$0xff]
    %v564 = vld [vmem:[#allocation2 + $0xfe8] sm:$0xff]
    %v565 = vld [vmem:[#allocation2 + $0xff0] sm:$0xff]
    %v566 = vld [vmem:[#allocation2 + $0xff8] sm:$0xff]
    %v567 = vld [vmem:[#allocation2 + $0x1000] sm:$0xff]
    %v568 = vld [vmem:[#allocation2 + $0x1008] sm:$0xff]
    %v569 = vld [vmem:[#allocation2 + $0x1010] sm:$0xff]
    %v570 = vld [vmem:[#allocation2 + $0x1018] sm:$0xff]
    %v571 = vld [vmem:[#allocation2 + $0x1020] sm:$0xff]
    %v572 = vld [vmem:[#allocation2 + $0x1028] sm:$0xff]
    %v573 = vld [vmem:[#allocation2 + $0x1030] sm:$0xff]
    %v574 = vld [vmem:[#allocation2 + $0x1038] sm:$0xff]
    %v575 = vld [vmem:[#allocation2 + $0x1040] sm:$0xff]
    %v576 = vld [vmem:[#allocation2 + $0x1048] sm:$0xff]
    %v577 = vld [vmem:[#allocation2 + $0x1050] sm:$0xff]
    %v578 = vld [vmem:[#allocation2 + $0x1058] sm:$0xff]
    %v579 = vld [vmem:[#allocation2 + $0x1060] sm:$0xff]
    %v580 = vld [vmem:[#allocation2 + $0x1068] sm:$0xff]
    %v581 = vld [vmem:[#allocation2 + $0x1070] sm:$0xff]
    %v582 = vld [vmem:[#allocation2 + $0x1078] sm:$0xff]
    %v583 = vld [vmem:[#allocation2 + $0x1080] sm:$0xff]
    %v584 = vld [vmem:[#allocation2 + $0x1088] sm:$0xff]
    %v585 = vld [vmem:[#allocation2 + $0x1090] sm:$0xff]
    %v586 = vld [vmem:[#allocation2 + $0x1098] sm:$0xff]
    %v587 = vld [vmem:[#allocation2 + $0x10a0] sm:$0xff]
    %v588 = vld [vmem:[#allocation2 + $0x10a8] sm:$0xff]
    %v589 = vld [vmem:[#allocation2 + $0x10b0] sm:$0xff]
    %v590 = vld [vmem:[#allocation2 + $0x10b8] sm:$0xff]
    %v591 = vld [vmem:[#allocation2 + $0x10c0] sm:$0xff]
    %v592 = vld [vmem:[#allocation2 + $0x10c8] sm:$0xff]
    %v593 = vld [vmem:[#allocation2 + $0x10d0] sm:$0xff]
    %v594 = vld [vmem:[#allocation2 + $0x10d8] sm:$0xff]
    %v595 = vld [vmem:[#allocation2 + $0x10e0] sm:$0xff]
    %v596 = vld [vmem:[#allocation2 + $0x10e8] sm:$0xff]
    %v597 = vld [vmem:[#allocation2 + $0x10f0] sm:$0xff]
    %v598 = vld [vmem:[#allocation2 + $0x10f8] sm:$0xff]
    %v599 = vld [vmem:[#allocation2 + $0x1100] sm:$0xff]
    %v600 = vld [vmem:[#allocation2 + $0x1108] sm:$0xff]
    %v601 = vld [vmem:[#allocation2 + $0x1110] sm:$0xff]
    %v602 = vld [vmem:[#allocation2 + $0x1118] sm:$0xff]
    %v603 = vld [vmem:[#allocation2 + $0x1120] sm:$0xff]
    %v604 = vld [vmem:[#allocation2 + $0x1128] sm:$0xff]
    %v605 = vld [vmem:[#allocation2 + $0x1130] sm:$0xff]
    %v606 = vld [vmem:[#allocation2 + $0x1138] sm:$0xff]
    %v607 = vld [vmem:[#allocation2 + $0x1140] sm:$0xff]
    %v608 = vld [vmem:[#allocation2 + $0x1148] sm:$0xff]
    %v609 = vld [vmem:[#allocation2 + $0x1150] sm:$0xff]
    %v610 = vld [vmem:[#allocation2 + $0x1158] sm:$0xff]
    %v611 = vld [vmem:[#allocation2 + $0x1160] sm:$0xff]
    %v612 = vld [vmem:[#allocation2 + $0x1168] sm:$0xff]
    %v613 = vld [vmem:[#allocation2 + $0x1170] sm:$0xff]
    %v614 = vld [vmem:[#allocation2 + $0x1178] sm:$0xff]
    %v615 = vld [vmem:[#allocation2 + $0x1180] sm:$0xff]
    %v616 = vld [vmem:[#allocation2 + $0x1188] sm:$0xff]
    %v617 = vld [vmem:[#allocation2 + $0x1190] sm:$0xff]
    %v618 = vld [vmem:[#allocation2 + $0x1198] sm:$0xff]
    %v619 = vld [vmem:[#allocation2 + $0x11a0] sm:$0xff]
    %v620 = vld [vmem:[#allocation2 + $0x11a8] sm:$0xff]
    %v621 = vld [vmem:[#allocation2 + $0x11b0] sm:$0xff]
    %v622 = vld [vmem:[#allocation2 + $0x11b8] sm:$0xff]
    %v623 = vld [vmem:[#allocation2 + $0x11c0] sm:$0xff]
    %v624 = vld [vmem:[#allocation2 + $0x11c8] sm:$0xff]
    %v625 = vld [vmem:[#allocation2 + $0x11d0] sm:$0xff]
    %v626 = vld [vmem:[#allocation2 + $0x11d8] sm:$0xff]
    %v627 = vld [vmem:[#allocation2 + $0x11e0] sm:$0xff]
    %v628 = vld [vmem:[#allocation2 + $0x11e8] sm:$0xff]
    %v629 = vld [vmem:[#allocation2 + $0x11f0] sm:$0xff]
    %v630 = vld [vmem:[#allocation2 + $0x11f8] sm:$0xff]
    %v631 = vpack.c.bf16 %v64, %v55
    %v632 = vpack.c.bf16 %v65, %v56
    %v633 = vpack.c.bf16 %v66, %v57
    %v634 = vpack.c.bf16 %v67, %v58
    %v635 = vpack.c.bf16 %v68, %v59
    %v636 = vpack.c.bf16 %v69, %v60
    %v637 = vpack.c.bf16 %v70, %v61
    %v638 = vpack.c.bf16 %v71, %v62
    %v639 = vpack.c.bf16 %v72, %v63
    %v640 = vpack.c.bf16 %v82, %v73
    %v641 = vpack.c.bf16 %v83, %v74
    %v642 = vpack.c.bf16 %v84, %v75
    %v643 = vpack.c.bf16 %v85, %v76
    %v644 = vpack.c.bf16 %v86, %v77
    %v645 = vpack.c.bf16 %v87, %v78
    %v646 = vpack.c.bf16 %v88, %v79
    %v647 = vpack.c.bf16 %v89, %v80
    %v648 = vpack.c.bf16 %v90, %v81
    %v649 = vpack.c.bf16 %v100, %v91
    %v650 = vpack.c.bf16 %v101, %v92
    %v651 = vpack.c.bf16 %v102, %v93
    %v652 = vpack.c.bf16 %v103, %v94
    %v653 = vpack.c.bf16 %v104, %v95
    %v654 = vpack.c.bf16 %v105, %v96
    %v655 = vpack.c.bf16 %v106, %v97
    %v656 = vpack.c.bf16 %v107, %v98
    %v657 = vpack.c.bf16 %v108, %v99
    %v658 = vpack.c.bf16 %v118, %v109
    %v659 = vpack.c.bf16 %v119, %v110
    %v660 = vpack.c.bf16 %v120, %v111
    %v661 = vpack.c.bf16 %v121, %v112
    %v662 = vpack.c.bf16 %v122, %v113
    %v663 = vpack.c.bf16 %v123, %v114
    %v664 = vpack.c.bf16 %v124, %v115
    %v665 = vpack.c.bf16 %v125, %v116
    %v666 = vpack.c.bf16 %v126, %v117
    %v667 = vpack.c.bf16 %v136, %v127
    %v668 = vpack.c.bf16 %v137, %v128
    %v669 = vpack.c.bf16 %v138, %v129
    %v670 = vpack.c.bf16 %v139, %v130
    %v671 = vpack.c.bf16 %v140, %v131
    %v672 = vpack.c.bf16 %v141, %v132
    %v673 = vpack.c.bf16 %v142, %v133
    %v674 = vpack.c.bf16 %v143, %v134
    %v675 = vpack.c.bf16 %v144, %v135
    %v676 = vpack.c.bf16 %v154, %v145
    %v677 = vpack.c.bf16 %v155, %v146
    %v678 = vpack.c.bf16 %v156, %v147
    %v679 = vpack.c.bf16 %v157, %v148
    %v680 = vpack.c.bf16 %v158, %v149
    %v681 = vpack.c.bf16 %v159, %v150
    %v682 = vpack.c.bf16 %v160, %v151
    %v683 = vpack.c.bf16 %v161, %v152
    %v684 = vpack.c.bf16 %v162, %v153
    %v685 = vpack.c.bf16 %v172, %v163
    %v686 = vpack.c.bf16 %v173, %v164
    %v687 = vpack.c.bf16 %v174, %v165
    %v688 = vpack.c.bf16 %v175, %v166
    %v689 = vpack.c.bf16 %v176, %v167
    %v690 = vpack.c.bf16 %v177, %v168
    %v691 = vpack.c.bf16 %v178, %v169
    %v692 = vpack.c.bf16 %v179, %v170
    %v693 = vpack.c.bf16 %v180, %v171
    %v694 = vpack.c.bf16 %v190, %v181
    %v695 = vpack.c.bf16 %v191, %v182
    %v696 = vpack.c.bf16 %v192, %v183
    %v697 = vpack.c.bf16 %v193, %v184
    %v698 = vpack.c.bf16 %v194, %v185
    %v699 = vpack.c.bf16 %v195, %v186
    %v700 = vpack.c.bf16 %v196, %v187
    %v701 = vpack.c.bf16 %v197, %v188
    %v702 = vpack.c.bf16 %v198, %v189
    %v703 = vpack.c.bf16 %v208, %v199
    %v704 = vpack.c.bf16 %v209, %v200
    %v705 = vpack.c.bf16 %v210, %v201
    %v706 = vpack.c.bf16 %v211, %v202
    %v707 = vpack.c.bf16 %v212, %v203
    %v708 = vpack.c.bf16 %v213, %v204
    %v709 = vpack.c.bf16 %v214, %v205
    %v710 = vpack.c.bf16 %v215, %v206
    %v711 = vpack.c.bf16 %v216, %v207
    %v712 = vpack.c.bf16 %v226, %v217
    %v713 = vpack.c.bf16 %v227, %v218
    %v714 = vpack.c.bf16 %v228, %v219
    %v715 = vpack.c.bf16 %v229, %v220
    %v716 = vpack.c.bf16 %v230, %v221
    %v717 = vpack.c.bf16 %v231, %v222
    %v718 = vpack.c.bf16 %v232, %v223
    %v719 = vpack.c.bf16 %v233, %v224
    %v720 = vpack.c.bf16 %v234, %v225
    %v721 = vpack.c.bf16 %v244, %v235
    %v722 = vpack.c.bf16 %v245, %v236
    %v723 = vpack.c.bf16 %v246, %v237
    %v724 = vpack.c.bf16 %v247, %v238
    %v725 = vpack.c.bf16 %v248, %v239
    %v726 = vpack.c.bf16 %v249, %v240
    %v727 = vpack.c.bf16 %v250, %v241
    %v728 = vpack.c.bf16 %v251, %v242
    %v729 = vpack.c.bf16 %v252, %v243
    %v730 = vpack.c.bf16 %v262, %v253
    %v731 = vpack.c.bf16 %v263, %v254
    %v732 = vpack.c.bf16 %v264, %v255
    %v733 = vpack.c.bf16 %v265, %v256
    %v734 = vpack.c.bf16 %v266, %v257
    %v735 = vpack.c.bf16 %v267, %v258
    %v736 = vpack.c.bf16 %v268, %v259
    %v737 = vpack.c.bf16 %v269, %v260
    %v738 = vpack.c.bf16 %v270, %v261
    %v739 = vpack.c.bf16 %v280, %v271
    %v740 = vpack.c.bf16 %v281, %v272
    %v741 = vpack.c.bf16 %v282, %v273
    %v742 = vpack.c.bf16 %v283, %v274
    %v743 = vpack.c.bf16 %v284, %v275
    %v744 = vpack.c.bf16 %v285, %v276
    %v745 = vpack.c.bf16 %v286, %v277
    %v746 = vpack.c.bf16 %v287, %v278
    %v747 = vpack.c.bf16 %v288, %v279
    %v748 = vpack.c.bf16 %v298, %v289
    %v749 = vpack.c.bf16 %v299, %v290
    %v750 = vpack.c.bf16 %v300, %v291
    %v751 = vpack.c.bf16 %v301, %v292
    %v752 = vpack.c.bf16 %v302, %v293
    %v753 = vpack.c.bf16 %v303, %v294
    %v754 = vpack.c.bf16 %v304, %v295
    %v755 = vpack.c.bf16 %v305, %v296
    %v756 = vpack.c.bf16 %v306, %v297
    %v757 = vpack.c.bf16 %v316, %v307
    %v758 = vpack.c.bf16 %v317, %v308
    %v759 = vpack.c.bf16 %v318, %v309
    %v760 = vpack.c.bf16 %v319, %v310
    %v761 = vpack.c.bf16 %v320, %v311
    %v762 = vpack.c.bf16 %v321, %v312
    %v763 = vpack.c.bf16 %v322, %v313
    %v764 = vpack.c.bf16 %v323, %v314
    %v765 = vpack.c.bf16 %v324, %v315
    %v766 = vpack.c.bf16 %v334, %v325
    %v767 = vpack.c.bf16 %v335, %v326
    %v768 = vpack.c.bf16 %v336, %v327
    %v769 = vpack.c.bf16 %v337, %v328
    %v770 = vpack.c.bf16 %v338, %v329
    %v771 = vpack.c.bf16 %v339, %v330
    %v772 = vpack.c.bf16 %v340, %v331
    %v773 = vpack.c.bf16 %v341, %v332
    %v774 = vpack.c.bf16 %v342, %v333
    %v775 = vpack.c.bf16 %v352, %v343
    %v776 = vpack.c.bf16 %v353, %v344
    %v777 = vpack.c.bf16 %v354, %v345
    %v778 = vpack.c.bf16 %v355, %v346
    %v779 = vpack.c.bf16 %v356, %v347
    %v780 = vpack.c.bf16 %v357, %v348
    %v781 = vpack.c.bf16 %v358, %v349
    %v782 = vpack.c.bf16 %v359, %v350
    %v783 = vpack.c.bf16 %v360, %v351
    %v784 = vpack.c.bf16 %v370, %v361
    %v785 = vpack.c.bf16 %v371, %v362
    %v786 = vpack.c.bf16 %v372, %v363
    %v787 = vpack.c.bf16 %v373, %v364
    %v788 = vpack.c.bf16 %v374, %v365
    %v789 = vpack.c.bf16 %v375, %v366
    %v790 = vpack.c.bf16 %v376, %v367
    %v791 = vpack.c.bf16 %v377, %v368
    %v792 = vpack.c.bf16 %v378, %v369
    %v793 = vpack.c.bf16 %v388, %v379
    %v794 = vpack.c.bf16 %v389, %v380
    %v795 = vpack.c.bf16 %v390, %v381
    %v796 = vpack.c.bf16 %v391, %v382
    %v797 = vpack.c.bf16 %v392, %v383
    %v798 = vpack.c.bf16 %v393, %v384
    %v799 = vpack.c.bf16 %v394, %v385
    %v800 = vpack.c.bf16 %v395, %v386
    %v801 = vpack.c.bf16 %v396, %v387
    %v802 = vpack.c.bf16 %v406, %v397
    %v803 = vpack.c.bf16 %v407, %v398
    %v804 = vpack.c.bf16 %v408, %v399
    %v805 = vpack.c.bf16 %v409, %v400
    %v806 = vpack.c.bf16 %v410, %v401
    %v807 = vpack.c.bf16 %v411, %v402
    %v808 = vpack.c.bf16 %v412, %v403
    %v809 = vpack.c.bf16 %v413, %v404
    %v810 = vpack.c.bf16 %v414, %v405
    %v811 = vpack.c.bf16 %v424, %v415
    %v812 = vpack.c.bf16 %v425, %v416
    %v813 = vpack.c.bf16 %v426, %v417
    %v814 = vpack.c.bf16 %v427, %v418
    %v815 = vpack.c.bf16 %v428, %v419
    %v816 = vpack.c.bf16 %v429, %v420
    %v817 = vpack.c.bf16 %v430, %v421
    %v818 = vpack.c.bf16 %v431, %v422
    %v819 = vpack.c.bf16 %v432, %v423
    %v820 = vpack.c.bf16 %v442, %v433
    %v821 = vpack.c.bf16 %v443, %v434
    %v822 = vpack.c.bf16 %v444, %v435
    %v823 = vpack.c.bf16 %v445, %v436
    %v824 = vpack.c.bf16 %v446, %v437
    %v825 = vpack.c.bf16 %v447, %v438
    %v826 = vpack.c.bf16 %v448, %v439
    %v827 = vpack.c.bf16 %v449, %v440
    %v828 = vpack.c.bf16 %v450, %v441
    %v829 = vpack.c.bf16 %v460, %v451
    %v830 = vpack.c.bf16 %v461, %v452
    %v831 = vpack.c.bf16 %v462, %v453
    %v832 = vpack.c.bf16 %v463, %v454
    %v833 = vpack.c.bf16 %v464, %v455
    %v834 = vpack.c.bf16 %v465, %v456
    %v835 = vpack.c.bf16 %v466, %v457
    %v836 = vpack.c.bf16 %v467, %v458
    %v837 = vpack.c.bf16 %v468, %v459
    %v838 = vpack.c.bf16 %v478, %v469
    %v839 = vpack.c.bf16 %v479, %v470
    %v840 = vpack.c.bf16 %v480, %v471
    %v841 = vpack.c.bf16 %v481, %v472
    %v842 = vpack.c.bf16 %v482, %v473
    %v843 = vpack.c.bf16 %v483, %v474
    %v844 = vpack.c.bf16 %v484, %v475
    %v845 = vpack.c.bf16 %v485, %v476
    %v846 = vpack.c.bf16 %v486, %v477
    %v847 = vpack.c.bf16 %v496, %v487
    %v848 = vpack.c.bf16 %v497, %v488
    %v849 = vpack.c.bf16 %v498, %v489
    %v850 = vpack.c.bf16 %v499, %v490
    %v851 = vpack.c.bf16 %v500, %v491
    %v852 = vpack.c.bf16 %v501, %v492
    %v853 = vpack.c.bf16 %v502, %v493
    %v854 = vpack.c.bf16 %v503, %v494
    %v855 = vpack.c.bf16 %v504, %v495
    %v856 = vpack.c.bf16 %v514, %v505
    %v857 = vpack.c.bf16 %v515, %v506
    %v858 = vpack.c.bf16 %v516, %v507
    %v859 = vpack.c.bf16 %v517, %v508
    %v860 = vpack.c.bf16 %v518, %v509
    %v861 = vpack.c.bf16 %v519, %v510
    %v862 = vpack.c.bf16 %v520, %v511
    %v863 = vpack.c.bf16 %v521, %v512
    %v864 = vpack.c.bf16 %v522, %v513
    %v865 = vpack.c.bf16 %v532, %v523
    %v866 = vpack.c.bf16 %v533, %v524
    %v867 = vpack.c.bf16 %v534, %v525
    %v868 = vpack.c.bf16 %v535, %v526
    %v869 = vpack.c.bf16 %v536, %v527
    %v870 = vpack.c.bf16 %v537, %v528
    %v871 = vpack.c.bf16 %v538, %v529
    %v872 = vpack.c.bf16 %v539, %v530
    %v873 = vpack.c.bf16 %v540, %v531
    %v874 = vpack.c.bf16 %v550, %v541
    %v875 = vpack.c.bf16 %v551, %v542
    %v876 = vpack.c.bf16 %v552, %v543
    %v877 = vpack.c.bf16 %v553, %v544
    %v878 = vpack.c.bf16 %v554, %v545
    %v879 = vpack.c.bf16 %v555, %v546
    %v880 = vpack.c.bf16 %v556, %v547
    %v881 = vpack.c.bf16 %v557, %v548
    %v882 = vpack.c.bf16 %v558, %v549
    %v883 = vpack.c.bf16 %v568, %v559
    %v884 = vpack.c.bf16 %v569, %v560
    %v885 = vpack.c.bf16 %v570, %v561
    %v886 = vpack.c.bf16 %v571, %v562
    %v887 = vpack.c.bf16 %v572, %v563
    %v888 = vpack.c.bf16 %v573, %v564
    %v889 = vpack.c.bf16 %v574, %v565
    %v890 = vpack.c.bf16 %v575, %v566
    %v891 = vpack.c.bf16 %v576, %v567
    %v892 = vpack.c.bf16 %v586, %v577
    %v893 = vpack.c.bf16 %v587, %v578
    %v894 = vpack.c.bf16 %v588, %v579
    %v895 = vpack.c.bf16 %v589, %v580
    %v896 = vpack.c.bf16 %v590, %v581
    %v897 = vpack.c.bf16 %v591, %v582
    %v898 = vpack.c.bf16 %v592, %v583
    %v899 = vpack.c.bf16 %v593, %v584
    %v900 = vpack.c.bf16 %v594, %v585
    %v901 = vpack.c.bf16 %v604, %v595
    %v902 = vpack.c.bf16 %v605, %v596
    %v903 = vpack.c.bf16 %v606, %v597
    %v904 = vpack.c.bf16 %v607, %v598
    %v905 = vpack.c.bf16 %v608, %v599
    %v906 = vpack.c.bf16 %v609, %v600
    %v907 = vpack.c.bf16 %v610, %v601
    %v908 = vpack.c.bf16 %v611, %v602
    %v909 = vpack.c.bf16 %v612, %v603
    %v910 = vpack.c.bf16 %v622, %v613
    %v911 = vpack.c.bf16 %v623, %v614
    %v912 = vpack.c.bf16 %v624, %v615
    %v913 = vpack.c.bf16 %v625, %v616
    %v914 = vpack.c.bf16 %v626, %v617
    %v915 = vpack.c.bf16 %v627, %v618
    %v916 = vpack.c.bf16 %v628, %v619
    %v917 = vpack.c.bf16 %v629, %v620
    %v918 = vpack.c.bf16 %v630, %v621
    %v919 = vld [vmem:[#allocation5] sm:$0xf]
    %v920 = vld [vmem:[#allocation5 + $0x4] sm:$0xf]
    %v921 = vld [vmem:[#allocation5 + $0x8] sm:$0xf]
    %v922 = vld [vmem:[#allocation5 + $0xc] sm:$0xf]
    %v923 = vld [vmem:[#allocation5 + $0x10] sm:$0xf]
    %v924 = vld [vmem:[#allocation5 + $0x14] sm:$0xf]
    %v925 = vld [vmem:[#allocation5 + $0x18] sm:$0xf]
    %v926 = vld [vmem:[#allocation5 + $0x1c] sm:$0xf]
    %v927 = vld [vmem:[#allocation5 + $0x20] sm:$0xf]
    %v928 = vld [vmem:[#allocation5 + $0x24] sm:$0xf]
    %v929 = vld [vmem:[#allocation5 + $0x28] sm:$0xf]
    %v930 = vld [vmem:[#allocation5 + $0x2c] sm:$0xf]
    %v931 = vld [vmem:[#allocation5 + $0x30] sm:$0xf]
    %v932 = vld [vmem:[#allocation5 + $0x34] sm:$0xf]
    %v933 = vld [vmem:[#allocation5 + $0x38] sm:$0xf]
    %v934 = vld [vmem:[#allocation5 + $0x3c] sm:$0xf]
    %v935 = vld [vmem:[#allocation5 + $0x40] sm:$0xf]
    %v936 = vld [vmem:[#allocation5 + $0x44] sm:$0xf]
    %v937 = vld [vmem:[#allocation5 + $0x48] sm:$0xf]
    %v938 = vld [vmem:[#allocation5 + $0x4c] sm:$0xf]
    %v939 = vld [vmem:[#allocation5 + $0x50] sm:$0xf]
    %v940 = vld [vmem:[#allocation5 + $0x54] sm:$0xf]
    %v941 = vld [vmem:[#allocation5 + $0x58] sm:$0xf]
    %v942 = vld [vmem:[#allocation5 + $0x5c] sm:$0xf]
    %v943 = vld [vmem:[#allocation5 + $0x60] sm:$0xf]
    %v944 = vld [vmem:[#allocation5 + $0x64] sm:$0xf]
    %v945 = vld [vmem:[#allocation5 + $0x68] sm:$0xf]
    %v946 = vld [vmem:[#allocation5 + $0x6c] sm:$0xf]
    %v947 = vld [vmem:[#allocation5 + $0x70] sm:$0xf]
    %v948 = vld [vmem:[#allocation5 + $0x74] sm:$0xf]
    %v949 = vld [vmem:[#allocation5 + $0x78] sm:$0xf]
    %v950 = vld [vmem:[#allocation5 + $0x7c] sm:$0xf]
    %v951 = vld [vmem:[#allocation5 + $0x80] sm:$0xf]
    %v952 = vld [vmem:[#allocation5 + $0x84] sm:$0xf]
    %v953 = vld [vmem:[#allocation5 + $0x88] sm:$0xf]
    %v954 = vld [vmem:[#allocation5 + $0x8c] sm:$0xf]
    %v955 = vld [vmem:[#allocation5 + $0x90] sm:$0xf]
    %v956 = vld [vmem:[#allocation5 + $0x94] sm:$0xf]
    %v957 = vld [vmem:[#allocation5 + $0x98] sm:$0xf]
    %v958 = vld [vmem:[#allocation5 + $0x9c] sm:$0xf]
    %v959 = vld [vmem:[#allocation5 + $0xa0] sm:$0xf]
    %v960 = vld [vmem:[#allocation5 + $0xa4] sm:$0xf]
    %v961 = vld [vmem:[#allocation5 + $0xa8] sm:$0xf]
    %v962 = vld [vmem:[#allocation5 + $0xac] sm:$0xf]
    %v963 = vld [vmem:[#allocation5 + $0xb0] sm:$0xf]
    %v964 = vld [vmem:[#allocation5 + $0xb4] sm:$0xf]
    %v965 = vld [vmem:[#allocation5 + $0xb8] sm:$0xf]
    %v966 = vld [vmem:[#allocation5 + $0xbc] sm:$0xf]
    %v967 = vld [vmem:[#allocation5 + $0xc0] sm:$0xf]
    %v968 = vld [vmem:[#allocation5 + $0xc4] sm:$0xf]
    %v969 = vld [vmem:[#allocation5 + $0xc8] sm:$0xf]
    %v970 = vld [vmem:[#allocation5 + $0xcc] sm:$0xf]
    %v971 = vld [vmem:[#allocation5 + $0xd0] sm:$0xf]
    %v972 = vld [vmem:[#allocation5 + $0xd4] sm:$0xf]
    %v973 = vld [vmem:[#allocation5 + $0xd8] sm:$0xf]
    %v974 = vld [vmem:[#allocation5 + $0xdc] sm:$0xf]
    %v975 = vld [vmem:[#allocation5 + $0xe0] sm:$0xf]
    %v976 = vld [vmem:[#allocation5 + $0xe4] sm:$0xf]
    %v977 = vld [vmem:[#allocation5 + $0xe8] sm:$0xf]
    %v978 = vld [vmem:[#allocation5 + $0xec] sm:$0xf]
    %v979 = vld [vmem:[#allocation5 + $0xf0] sm:$0xf]
    %v980 = vld [vmem:[#allocation5 + $0xf4] sm:$0xf]
    %v981 = vld [vmem:[#allocation5 + $0xf8] sm:$0xf]
    %v982 = vld [vmem:[#allocation5 + $0xfc] sm:$0xf]
    %v983 = vld [vmem:[#allocation5 + $0x100] sm:$0xf]
    %v984 = vld [vmem:[#allocation5 + $0x104] sm:$0xf]
    %v985 = vld [vmem:[#allocation5 + $0x108] sm:$0xf]
    %v986 = vld [vmem:[#allocation5 + $0x10c] sm:$0xf]
    %v987 = vld [vmem:[#allocation5 + $0x110] sm:$0xf]
    %v988 = vld [vmem:[#allocation5 + $0x114] sm:$0xf]
    %v989 = vld [vmem:[#allocation5 + $0x118] sm:$0xf]
    %v990 = vld [vmem:[#allocation5 + $0x11c] sm:$0xf]
    %v991 = vld [vmem:[#allocation5 + $0x120] sm:$0xf]
    %v992 = vld [vmem:[#allocation5 + $0x124] sm:$0xf]
    %v993 = vld [vmem:[#allocation5 + $0x128] sm:$0xf]
    %v994 = vld [vmem:[#allocation5 + $0x12c] sm:$0xf]
    %v995 = vld [vmem:[#allocation5 + $0x130] sm:$0xf]
    %v996 = vld [vmem:[#allocation5 + $0x134] sm:$0xf]
    %v997 = vld [vmem:[#allocation5 + $0x138] sm:$0xf]
    %v998 = vld [vmem:[#allocation5 + $0x13c] sm:$0xf]
    %v999 = vld [vmem:[#allocation5 + $0x140] sm:$0xf]
    %v1000 = vld [vmem:[#allocation5 + $0x144] sm:$0xf]
    %v1001 = vld [vmem:[#allocation5 + $0x148] sm:$0xf]
    %v1002 = vld [vmem:[#allocation5 + $0x14c] sm:$0xf]
    %v1003 = vld [vmem:[#allocation5 + $0x150] sm:$0xf]
    %v1004 = vld [vmem:[#allocation5 + $0x154] sm:$0xf]
    %v1005 = vld [vmem:[#allocation5 + $0x158] sm:$0xf]
    %v1006 = vld [vmem:[#allocation5 + $0x15c] sm:$0xf]
    %v1007 = vld [vmem:[#allocation5 + $0x160] sm:$0xf]
    %v1008 = vld [vmem:[#allocation5 + $0x164] sm:$0xf]
    %v1009 = vld [vmem:[#allocation5 + $0x168] sm:$0xf]
    %v1010 = vld [vmem:[#allocation5 + $0x16c] sm:$0xf]
    %v1011 = vld [vmem:[#allocation5 + $0x170] sm:$0xf]
    %v1012 = vld [vmem:[#allocation5 + $0x174] sm:$0xf]
    %v1013 = vld [vmem:[#allocation5 + $0x178] sm:$0xf]
    %v1014 = vld [vmem:[#allocation5 + $0x17c] sm:$0xf]
    %v1015 = vld [vmem:[#allocation5 + $0x180] sm:$0xf]
    %v1016 = vld [vmem:[#allocation5 + $0x184] sm:$0xf]
    %v1017 = vld [vmem:[#allocation5 + $0x188] sm:$0xf]
    %v1018 = vld [vmem:[#allocation5 + $0x18c] sm:$0xf]
    %v1019 = vld [vmem:[#allocation5 + $0x190] sm:$0xf]
    %v1020 = vld [vmem:[#allocation5 + $0x194] sm:$0xf]
    %v1021 = vld [vmem:[#allocation5 + $0x198] sm:$0xf]
    %v1022 = vld [vmem:[#allocation5 + $0x19c] sm:$0xf]
    %v1023 = vld [vmem:[#allocation5 + $0x1a0] sm:$0xf]
    %v1024 = vld [vmem:[#allocation5 + $0x1a4] sm:$0xf]
    %v1025 = vld [vmem:[#allocation5 + $0x1a8] sm:$0xf]
    %v1026 = vld [vmem:[#allocation5 + $0x1ac] sm:$0xf]
    %v1027 = vld [vmem:[#allocation5 + $0x1b0] sm:$0xf]
    %v1028 = vld [vmem:[#allocation5 + $0x1b4] sm:$0xf]
    %v1029 = vld [vmem:[#allocation5 + $0x1b8] sm:$0xf]
    %v1030 = vld [vmem:[#allocation5 + $0x1bc] sm:$0xf]
    %v1031 = vld [vmem:[#allocation5 + $0x1c0] sm:$0xf]
    %v1032 = vld [vmem:[#allocation5 + $0x1c4] sm:$0xf]
    %v1033 = vld [vmem:[#allocation5 + $0x1c8] sm:$0xf]
    %v1034 = vld [vmem:[#allocation5 + $0x1cc] sm:$0xf]
    %v1035 = vld [vmem:[#allocation5 + $0x1d0] sm:$0xf]
    %v1036 = vld [vmem:[#allocation5 + $0x1d4] sm:$0xf]
    %v1037 = vld [vmem:[#allocation5 + $0x1d8] sm:$0xf]
    %v1038 = vld [vmem:[#allocation5 + $0x1dc] sm:$0xf]
    %v1039 = vld [vmem:[#allocation5 + $0x1e0] sm:$0xf]
    %v1040 = vld [vmem:[#allocation5 + $0x1e4] sm:$0xf]
    %v1041 = vld [vmem:[#allocation5 + $0x1e8] sm:$0xf]
    %v1042 = vld [vmem:[#allocation5 + $0x1ec] sm:$0xf]
    %v1043 = vld [vmem:[#allocation5 + $0x1f0] sm:$0xf]
    %v1044 = vld [vmem:[#allocation5 + $0x1f4] sm:$0xf]
    %v1045 = vld [vmem:[#allocation5 + $0x1f8] sm:$0xf]
    %v1046 = vld [vmem:[#allocation5 + $0x1fc] sm:$0xf]
    %v1047 = vld [vmem:[#allocation5 + $0x200] sm:$0xf]
    %v1048 = vld [vmem:[#allocation5 + $0x204] sm:$0xf]
    %v1049 = vld [vmem:[#allocation5 + $0x208] sm:$0xf]
    %v1050 = vld [vmem:[#allocation5 + $0x20c] sm:$0xf]
    %v1051 = vld [vmem:[#allocation5 + $0x210] sm:$0xf]
    %v1052 = vld [vmem:[#allocation5 + $0x214] sm:$0xf]
    %v1053 = vld [vmem:[#allocation5 + $0x218] sm:$0xf]
    %v1054 = vld [vmem:[#allocation5 + $0x21c] sm:$0xf]
    %v1055 = vld [vmem:[#allocation5 + $0x220] sm:$0xf]
    %v1056 = vld [vmem:[#allocation5 + $0x224] sm:$0xf]
    %v1057 = vld [vmem:[#allocation5 + $0x228] sm:$0xf]
    %v1058 = vld [vmem:[#allocation5 + $0x22c] sm:$0xf]
    %v1059 = vld [vmem:[#allocation5 + $0x230] sm:$0xf]
    %v1060 = vld [vmem:[#allocation5 + $0x234] sm:$0xf]
    %v1061 = vld [vmem:[#allocation5 + $0x238] sm:$0xf]
    %v1062 = vld [vmem:[#allocation5 + $0x23c] sm:$0xf]
    %v1063 = vld [vmem:[#allocation7] sm:$0x1]
    %v1065 = vlaneseq
    %v1066 = vshrl.u32 %v1065, 7
    %v1067 = vsub.s32 0, %v1066
    %v1068 = vrot.slane %v1063, %v1067
    %v1214 = vunpack.c.l.b16 %v919
    %v1215 = vunpack.c.l.b16 %v920
    %v1216 = vunpack.c.l.b16 %v921
    %v1217 = vunpack.c.l.b16 %v922
    %v1218 = vunpack.c.l.b16 %v923
    %v1219 = vunpack.c.l.b16 %v924
    %v1220 = vunpack.c.l.b16 %v925
    %v1221 = vunpack.c.l.b16 %v926
    %v1222 = vunpack.c.l.b16 %v927
    %v1223 = vunpack.c.l.b16 %v928
    %v1224 = vunpack.c.l.b16 %v929
    %v1225 = vunpack.c.l.b16 %v930
    %v1226 = vunpack.c.l.b16 %v931
    %v1227 = vunpack.c.l.b16 %v932
    %v1228 = vunpack.c.l.b16 %v933
    %v1229 = vunpack.c.l.b16 %v934
    %v1230 = vunpack.c.l.b16 %v935
    %v1231 = vunpack.c.l.b16 %v936
    %v1232 = vunpack.c.l.b16 %v937
    %v1233 = vunpack.c.l.b16 %v938
    %v1234 = vunpack.c.l.b16 %v939
    %v1235 = vunpack.c.l.b16 %v940
    %v1236 = vunpack.c.l.b16 %v941
    %v1237 = vunpack.c.l.b16 %v942
    %v1238 = vunpack.c.l.b16 %v943
    %v1239 = vunpack.c.l.b16 %v944
    %v1240 = vunpack.c.l.b16 %v945
    %v1241 = vunpack.c.l.b16 %v946
    %v1242 = vunpack.c.l.b16 %v947
    %v1243 = vunpack.c.l.b16 %v948
    %v1244 = vunpack.c.l.b16 %v949
    %v1245 = vunpack.c.l.b16 %v950
    %v1246 = vunpack.c.l.b16 %v951
    %v1247 = vunpack.c.l.b16 %v952
    %v1248 = vunpack.c.l.b16 %v953
    %v1249 = vunpack.c.l.b16 %v954
    %v1250 = vunpack.c.l.b16 %v955
    %v1251 = vunpack.c.l.b16 %v956
    %v1252 = vunpack.c.l.b16 %v957
    %v1253 = vunpack.c.l.b16 %v958
    %v1254 = vunpack.c.l.b16 %v959
    %v1255 = vunpack.c.l.b16 %v960
    %v1256 = vunpack.c.l.b16 %v961
    %v1257 = vunpack.c.l.b16 %v962
    %v1258 = vunpack.c.l.b16 %v963
    %v1259 = vunpack.c.l.b16 %v964
    %v1260 = vunpack.c.l.b16 %v965
    %v1261 = vunpack.c.l.b16 %v966
    %v1262 = vunpack.c.l.b16 %v967
    %v1263 = vunpack.c.l.b16 %v968
    %v1264 = vunpack.c.l.b16 %v969
    %v1265 = vunpack.c.l.b16 %v970
    %v1266 = vunpack.c.l.b16 %v971
    %v1267 = vunpack.c.l.b16 %v972
    %v1268 = vunpack.c.l.b16 %v973
    %v1269 = vunpack.c.l.b16 %v974
    %v1270 = vunpack.c.l.b16 %v975
    %v1271 = vunpack.c.l.b16 %v976
    %v1272 = vunpack.c.l.b16 %v977
    %v1273 = vunpack.c.l.b16 %v978
    %v1274 = vunpack.c.l.b16 %v979
    %v1275 = vunpack.c.l.b16 %v980
    %v1276 = vunpack.c.l.b16 %v981
    %v1277 = vunpack.c.l.b16 %v982
    %v1278 = vunpack.c.l.b16 %v983
    %v1279 = vunpack.c.l.b16 %v984
    %v1280 = vunpack.c.l.b16 %v985
    %v1281 = vunpack.c.l.b16 %v986
    %v1282 = vunpack.c.l.b16 %v987
    %v1283 = vunpack.c.l.b16 %v988
    %v1284 = vunpack.c.l.b16 %v989
    %v1285 = vunpack.c.l.b16 %v990
    %v1286 = vunpack.c.l.b16 %v991
    %v1287 = vunpack.c.l.b16 %v992
    %v1288 = vunpack.c.l.b16 %v993
    %v1289 = vunpack.c.l.b16 %v994
    %v1290 = vunpack.c.l.b16 %v995
    %v1291 = vunpack.c.l.b16 %v996
    %v1292 = vunpack.c.l.b16 %v997
    %v1293 = vunpack.c.l.b16 %v998
    %v1294 = vunpack.c.l.b16 %v999
    %v1295 = vunpack.c.l.b16 %v1000
    %v1296 = vunpack.c.l.b16 %v1001
    %v1297 = vunpack.c.l.b16 %v1002
    %v1298 = vunpack.c.l.b16 %v1003
    %v1299 = vunpack.c.l.b16 %v1004
    %v1300 = vunpack.c.l.b16 %v1005
    %v1301 = vunpack.c.l.b16 %v1006
    %v1302 = vunpack.c.l.b16 %v1007
    %v1303 = vunpack.c.l.b16 %v1008
    %v1304 = vunpack.c.l.b16 %v1009
    %v1305 = vunpack.c.l.b16 %v1010
    %v1306 = vunpack.c.l.b16 %v1011
    %v1307 = vunpack.c.l.b16 %v1012
    %v1308 = vunpack.c.l.b16 %v1013
    %v1309 = vunpack.c.l.b16 %v1014
    %v1310 = vunpack.c.l.b16 %v1015
    %v1311 = vunpack.c.l.b16 %v1016
    %v1312 = vunpack.c.l.b16 %v1017
    %v1313 = vunpack.c.l.b16 %v1018
    %v1314 = vunpack.c.l.b16 %v1019
    %v1315 = vunpack.c.l.b16 %v1020
    %v1316 = vunpack.c.l.b16 %v1021
    %v1317 = vunpack.c.l.b16 %v1022
    %v1318 = vunpack.c.l.b16 %v1023
    %v1319 = vunpack.c.l.b16 %v1024
    %v1320 = vunpack.c.l.b16 %v1025
    %v1321 = vunpack.c.l.b16 %v1026
    %v1322 = vunpack.c.l.b16 %v1027
    %v1323 = vunpack.c.l.b16 %v1028
    %v1324 = vunpack.c.l.b16 %v1029
    %v1325 = vunpack.c.l.b16 %v1030
    %v1326 = vunpack.c.l.b16 %v1031
    %v1327 = vunpack.c.l.b16 %v1032
    %v1328 = vunpack.c.l.b16 %v1033
    %v1329 = vunpack.c.l.b16 %v1034
    %v1330 = vunpack.c.l.b16 %v1035
    %v1331 = vunpack.c.l.b16 %v1036
    %v1332 = vunpack.c.l.b16 %v1037
    %v1333 = vunpack.c.l.b16 %v1038
    %v1334 = vunpack.c.l.b16 %v1039
    %v1335 = vunpack.c.l.b16 %v1040
    %v1336 = vunpack.c.l.b16 %v1041
    %v1337 = vunpack.c.l.b16 %v1042
    %v1338 = vunpack.c.l.b16 %v1043
    %v1339 = vunpack.c.l.b16 %v1044
    %v1340 = vunpack.c.l.b16 %v1045
    %v1341 = vunpack.c.l.b16 %v1046
    %v1342 = vunpack.c.l.b16 %v1047
    %v1343 = vunpack.c.l.b16 %v1048
    %v1344 = vunpack.c.l.b16 %v1049
    %v1345 = vunpack.c.l.b16 %v1050
    %v1346 = vunpack.c.l.b16 %v1051
    %v1347 = vunpack.c.l.b16 %v1052
    %v1348 = vunpack.c.l.b16 %v1053
    %v1349 = vunpack.c.l.b16 %v1054
    %v1350 = vunpack.c.l.b16 %v1055
    %v1351 = vunpack.c.l.b16 %v1056
    %v1352 = vunpack.c.l.b16 %v1057
    %v1353 = vunpack.c.l.b16 %v1058
    %v1354 = vunpack.c.l.b16 %v1059
    %v1355 = vunpack.c.l.b16 %v1060
    %v1356 = vunpack.c.l.b16 %v1061
    %v1357 = vunpack.c.l.b16 %v1062
    %v1358 = vpack.c.b16 %v1215, %v1214
    %v1359 = vpack.c.b16 %v1217, %v1216
    %v1360 = vpack.c.b16 %v1219, %v1218
    %v1361 = vpack.c.b16 %v1221, %v1220
    %v1362 = vpack.c.b16 %v1223, %v1222
    %v1363 = vpack.c.b16 %v1225, %v1224
    %v1364 = vpack.c.b16 %v1227, %v1226
    %v1365 = vpack.c.b16 %v1229, %v1228
    %v1366 = vpack.c.b16 %v1231, %v1230
    %v1367 = vpack.c.b16 %v1233, %v1232
    %v1368 = vpack.c.b16 %v1235, %v1234
    %v1369 = vpack.c.b16 %v1237, %v1236
    %v1370 = vpack.c.b16 %v1239, %v1238
    %v1371 = vpack.c.b16 %v1241, %v1240
    %v1372 = vpack.c.b16 %v1243, %v1242
    %v1373 = vpack.c.b16 %v1245, %v1244
    %v1374 = vpack.c.b16 %v1247, %v1246
    %v1375 = vpack.c.b16 %v1249, %v1248
    %v1376 = vpack.c.b16 %v1251, %v1250
    %v1377 = vpack.c.b16 %v1253, %v1252
    %v1378 = vpack.c.b16 %v1255, %v1254
    %v1379 = vpack.c.b16 %v1257, %v1256
    %v1380 = vpack.c.b16 %v1259, %v1258
    %v1381 = vpack.c.b16 %v1261, %v1260
    %v1382 = vpack.c.b16 %v1263, %v1262
    %v1383 = vpack.c.b16 %v1265, %v1264
    %v1384 = vpack.c.b16 %v1267, %v1266
    %v1385 = vpack.c.b16 %v1269, %v1268
    %v1386 = vpack.c.b16 %v1271, %v1270
    %v1387 = vpack.c.b16 %v1273, %v1272
    %v1388 = vpack.c.b16 %v1275, %v1274
    %v1389 = vpack.c.b16 %v1277, %v1276
    %v1390 = vpack.c.b16 %v1279, %v1278
    %v1391 = vpack.c.b16 %v1281, %v1280
    %v1392 = vpack.c.b16 %v1283, %v1282
    %v1393 = vpack.c.b16 %v1285, %v1284
    %v1394 = vpack.c.b16 %v1287, %v1286
    %v1395 = vpack.c.b16 %v1289, %v1288
    %v1396 = vpack.c.b16 %v1291, %v1290
    %v1397 = vpack.c.b16 %v1293, %v1292
    %v1398 = vpack.c.b16 %v1295, %v1294
    %v1399 = vpack.c.b16 %v1297, %v1296
    %v1400 = vpack.c.b16 %v1299, %v1298
    %v1401 = vpack.c.b16 %v1301, %v1300
    %v1402 = vpack.c.b16 %v1303, %v1302
    %v1403 = vpack.c.b16 %v1305, %v1304
    %v1404 = vpack.c.b16 %v1307, %v1306
    %v1405 = vpack.c.b16 %v1309, %v1308
    %v1406 = vpack.c.b16 %v1311, %v1310
    %v1407 = vpack.c.b16 %v1313, %v1312
    %v1408 = vpack.c.b16 %v1315, %v1314
    %v1409 = vpack.c.b16 %v1317, %v1316
    %v1410 = vpack.c.b16 %v1319, %v1318
    %v1411 = vpack.c.b16 %v1321, %v1320
    %v1412 = vpack.c.b16 %v1323, %v1322
    %v1413 = vpack.c.b16 %v1325, %v1324
    %v1414 = vpack.c.b16 %v1327, %v1326
    %v1415 = vpack.c.b16 %v1329, %v1328
    %v1416 = vpack.c.b16 %v1331, %v1330
    %v1417 = vpack.c.b16 %v1333, %v1332
    %v1418 = vpack.c.b16 %v1335, %v1334
    %v1419 = vpack.c.b16 %v1337, %v1336
    %v1420 = vpack.c.b16 %v1339, %v1338
    %v1421 = vpack.c.b16 %v1341, %v1340
    %v1422 = vpack.c.b16 %v1343, %v1342
    %v1423 = vpack.c.b16 %v1345, %v1344
    %v1424 = vpack.c.b16 %v1347, %v1346
    %v1425 = vpack.c.b16 %v1349, %v1348
    %v1426 = vpack.c.b16 %v1351, %v1350
    %v1427 = vpack.c.b16 %v1353, %v1352
    %v1428 = vpack.c.b16 %v1355, %v1354
    %v1429 = vpack.c.b16 %v1357, %v1356
    %1502 = vmatprep.subr.bf16.mxu0 0
    %1503 = vmatpush1.bf16.msra.mxu0 %v1358
    %1504 = vmatprep.subr.bf16.mxu0 0
    %1505 = vmatpush1.bf16.msra.mxu0 %v1359
    %1506 = vmatprep.subr.bf16.mxu0 0
    %1507 = vmatpush1.bf16.msra.mxu0 %v1360
    %1508 = vmatprep.subr.bf16.mxu0 0
    %1509 = vmatpush1.bf16.msra.mxu0 %v1361
    %1510 = vmatprep.subr.bf16.mxu0 0
    %1511 = vmatpush1.bf16.msra.mxu0 %v1362
    %1512 = vmatprep.subr.bf16.mxu0 0
    %1513 = vmatpush1.bf16.msra.mxu0 %v1363
    %1514 = vmatprep.subr.bf16.mxu0 0
    %1515 = vmatpush1.bf16.msra.mxu0 %v1364
    %1516 = vmatprep.subr.bf16.mxu0 0
    %1517 = vmatpush1.bf16.msra.mxu0 %v1365
    %1518 = vmatprep.subr.bf16.mxu0 0
    %1519 = vmatpush1.bf16.msra.mxu0 %v1366
    %1520 = vmatprep.subr.bf16.mxu0 0
    %1521 = vmatpush1.bf16.msra.mxu0 %v1367
    %1522 = vmatprep.subr.bf16.mxu0 0
    %1523 = vmatpush1.bf16.msra.mxu0 %v1368
    %1524 = vmatprep.subr.bf16.mxu0 0
    %1525 = vmatpush1.bf16.msra.mxu0 %v1369
    %1526 = vmatprep.subr.bf16.mxu0 0
    %1527 = vmatpush1.bf16.msra.mxu0 %v1370
    %1528 = vmatprep.subr.bf16.mxu0 0
    %1529 = vmatpush1.bf16.msra.mxu0 %v1371
    %1530 = vmatprep.subr.bf16.mxu0 0
    %1531 = vmatpush1.bf16.msra.mxu0 %v1372
    %1532 = vmatprep.subr.bf16.mxu0 0
    %1533 = vmatpush1.bf16.msra.mxu0 %v1373
    %1534 = vmatprep.mubr.bf16.mxu0 %v632
    %1535 = vmatmul.mubr.bf16.gmra.mrb[0].mxu0 %v631
    %v1536 = vpop.f32.mrb[0].mxu0
    %v1537 = vadd.f32 %v1068, %v1536
    %v1538 = vpop.f32.mrb[0].mxu0
    %v1539 = vpop.f32.mrb[0].mxu0
    %v1540 = vadd.f32 %v1068, %v1539
    %v1541 = vpop.f32.mrb[0].mxu0
    %1542 = vmatprep.mubr.bf16.mxu0 %v641
    %1543 = vmatmul.mubr.bf16.gmra.mrb[0].mxu0 %v640
    %v1544 = vpop.f32.mrb[0].mxu0
    %v1545 = vadd.f32 %v1068, %v1544
    %v1546 = vpop.f32.mrb[0].mxu0
    %v1547 = vpop.f32.mrb[0].mxu0
    %v1548 = vadd.f32 %v1068, %v1547
    %v1549 = vpop.f32.mrb[0].mxu0
    %1550 = vmatprep.mubr.bf16.mxu0 %v650
    %1551 = vmatmul.mubr.bf16.gmra.mrb[0].mxu0 %v649
    %v1552 = vpop.f32.mrb[0].mxu0
    %v1553 = vadd.f32 %v1068, %v1552
    %v1554 = vpop.f32.mrb[0].mxu0
    %v1555 = vpop.f32.mrb[0].mxu0
    %v1556 = vadd.f32 %v1068, %v1555
    %v1557 = vpop.f32.mrb[0].mxu0
    %1558 = vmatprep.mubr.bf16.mxu0 %v659
    %1559 = vmatmul.mubr.bf16.gmra.mrb[0].mxu0 %v658
    %v1560 = vpop.f32.mrb[0].mxu0
    %v1561 = vadd.f32 %v1068, %v1560
    %v1562 = vpop.f32.mrb[0].mxu0
    %v1563 = vpop.f32.mrb[0].mxu0
    %v1564 = vadd.f32 %v1068, %v1563
    %v1565 = vpop.f32.mrb[0].mxu0
    %1566 = vmatprep.mubr.bf16.mxu0 %v668
    %1567 = vmatmul.mubr.bf16.gmra.mrb[0].mxu0 %v667
    %v1568 = vpop.f32.mrb[0].mxu0
    %v1569 = vadd.f32 %v1068, %v1568
    %v1570 = vpop.f32.mrb[0].mxu0
    %v1571 = vpop.f32.mrb[0].mxu0
    %v1572 = vadd.f32 %v1068, %v1571
    %v1573 = vpop.f32.mrb[0].mxu0
    %1574 = vmatprep.mubr.bf16.mxu0 %v677
    %1575 = vmatmul.mubr.bf16.gmra.mrb[0].mxu0 %v676
    %v1576 = vpop.f32.mrb[0].mxu0
    %v1577 = vadd.f32 %v1068, %v1576
    %v1578 = vpop.f32.mrb[0].mxu0
    %v1579 = vpop.f32.mrb[0].mxu0
    %v1580 = vadd.f32 %v1068, %v1579
    %v1581 = vpop.f32.mrb[0].mxu0
    %1582 = vmatprep.mubr.bf16.mxu0 %v686
    %1583 = vmatmul.mubr.bf16.gmra.mrb[0].mxu0 %v685
    %v1584 = vpop.f32.mrb[0].mxu0
    %v1585 = vadd.f32 %v1068, %v1584
    %v1586 = vpop.f32.mrb[0].mxu0
    %v1587 = vpop.f32.mrb[0].mxu0
    %v1588 = vadd.f32 %v1068, %v1587
    %v1589 = vpop.f32.mrb[0].mxu0
    %1590 = vmatprep.mubr.bf16.mxu0 %v695
    %1591 = vmatmul.mubr.bf16.gmra.mrb[0].mxu0 %v694
    %v1592 = vpop.f32.mrb[0].mxu0
    %v1593 = vadd.f32 %v1068, %v1592
    %v1594 = vpop.f32.mrb[0].mxu0
    %v1595 = vpop.f32.mrb[0].mxu0
    %v1596 = vadd.f32 %v1068, %v1595
    %v1597 = vpop.f32.mrb[0].mxu0
    %1598 = vmatprep.mubr.bf16.mxu0 %v704
    %1599 = vmatmul.mubr.bf16.gmra.mrb[0].mxu0 %v703
    %v1600 = vpop.f32.mrb[0].mxu0
    %v1601 = vadd.f32 %v1068, %v1600
    %v1602 = vpop.f32.mrb[0].mxu0
    %v1603 = vpop.f32.mrb[0].mxu0
    %v1604 = vadd.f32 %v1068, %v1603
    %v1605 = vpop.f32.mrb[0].mxu0
    %1606 = vmatprep.mubr.bf16.mxu0 %v713
    %1607 = vmatmul.mubr.bf16.gmra.mrb[0].mxu0 %v712
    %v1608 = vpop.f32.mrb[0].mxu0
    %v1609 = vadd.f32 %v1068, %v1608
    %v1610 = vpop.f32.mrb[0].mxu0
    %v1611 = vpop.f32.mrb[0].mxu0
    %v1612 = vadd.f32 %v1068, %v1611
    %v1613 = vpop.f32.mrb[0].mxu0
    %1614 = vmatprep.mubr.bf16.mxu0 %v722
    %1615 = vmatmul.mubr.bf16.gmra.mrb[0].mxu0 %v721
    %v1616 = vpop.f32.mrb[0].mxu0
    %v1617 = vadd.f32 %v1068, %v1616
    %v1618 = vpop.f32.mrb[0].mxu0
    %v1619 = vpop.f32.mrb[0].mxu0
    %v1620 = vadd.f32 %v1068, %v1619
    %v1621 = vpop.f32.mrb[0].mxu0
    %1622 = vmatprep.mubr.bf16.mxu0 %v731
    %1623 = vmatmul.mubr.bf16.gmra.mrb[0].mxu0 %v730
    %v1624 = vpop.f32.mrb[0].mxu0
    %v1625 = vadd.f32 %v1068, %v1624
    %v1626 = vpop.f32.mrb[0].mxu0
    %v1627 = vpop.f32.mrb[0].mxu0
    %v1628 = vadd.f32 %v1068, %v1627
    %v1629 = vpop.f32.mrb[0].mxu0
    %1630 = vmatprep.mubr.bf16.mxu0 %v740
    %1631 = vmatmul.mubr.bf16.gmra.mrb[0].mxu0 %v739
    %v1632 = vpop.f32.mrb[0].mxu0
    %v1633 = vadd.f32 %v1068, %v1632
    %v1634 = vpop.f32.mrb[0].mxu0
    %v1635 = vpop.f32.mrb[0].mxu0
    %v1636 = vadd.f32 %v1068, %v1635
    %v1637 = vpop.f32.mrb[0].mxu0
    %1638 = vmatprep.mubr.bf16.mxu0 %v749
    %1639 = vmatmul.mubr.bf16.gmra.mrb[0].mxu0 %v748
    %v1640 = vpop.f32.mrb[0].mxu0
    %v1641 = vadd.f32 %v1068, %v1640
    %v1642 = vpop.f32.mrb[0].mxu0
    %v1643 = vpop.f32.mrb[0].mxu0
    %v1644 = vadd.f32 %v1068, %v1643
    %v1645 = vpop.f32.mrb[0].mxu0
    %1646 = vmatprep.mubr.bf16.mxu0 %v758
    %1647 = vmatmul.mubr.bf16.gmra.mrb[0].mxu0 %v757
    %v1648 = vpop.f32.mrb[0].mxu0
    %v1649 = vadd.f32 %v1068, %v1648
    %v1650 = vpop.f32.mrb[0].mxu0
    %v1651 = vpop.f32.mrb[0].mxu0
    %v1652 = vadd.f32 %v1068, %v1651
    %v1653 = vpop.f32.mrb[0].mxu0
    %1654 = vmatprep.mubr.bf16.mxu0 %v767
    %1655 = vmatmul.mubr.bf16.gmra.mrb[0].mxu0 %v766
    %v1656 = vpop.f32.mrb[0].mxu0
    %v1657 = vadd.f32 %v1068, %v1656
    %v1658 = vpop.f32.mrb[0].mxu0
    %v1659 = vpop.f32.mrb[0].mxu0
    %v1660 = vadd.f32 %v1068, %v1659
    %v1661 = vpop.f32.mrb[0].mxu0
    %1662 = vmatprep.mubr.bf16.mxu0 %v776
    %1663 = vmatmul.mubr.bf16.gmra.mrb[0].mxu0 %v775
    %v1664 = vpop.f32.mrb[0].mxu0
    %v1665 = vadd.f32 %v1068, %v1664
    %v1666 = vpop.f32.mrb[0].mxu0
    %v1667 = vpop.f32.mrb[0].mxu0
    %v1668 = vadd.f32 %v1068, %v1667
    %v1669 = vpop.f32.mrb[0].mxu0
    %1670 = vmatprep.mubr.bf16.mxu0 %v785
    %1671 = vmatmul.mubr.bf16.gmra.mrb[0].mxu0 %v784
    %v1672 = vpop.f32.mrb[0].mxu0
    %v1673 = vadd.f32 %v1068, %v1672
    %v1674 = vpop.f32.mrb[0].mxu0
    %v1675 = vpop.f32.mrb[0].mxu0
    %v1676 = vadd.f32 %v1068, %v1675
    %v1677 = vpop.f32.mrb[0].mxu0
    %1678 = vmatprep.mubr.bf16.mxu0 %v794
    %1679 = vmatmul.mubr.bf16.gmra.mrb[0].mxu0 %v793
    %v1680 = vpop.f32.mrb[0].mxu0
    %v1681 = vadd.f32 %v1068, %v1680
    %v1682 = vpop.f32.mrb[0].mxu0
    %v1683 = vpop.f32.mrb[0].mxu0
    %v1684 = vadd.f32 %v1068, %v1683
    %v1685 = vpop.f32.mrb[0].mxu0
    %1686 = vmatprep.mubr.bf16.mxu0 %v803
    %1687 = vmatmul.mubr.bf16.gmra.mrb[0].mxu0 %v802
    %v1688 = vpop.f32.mrb[0].mxu0
    %v1689 = vadd.f32 %v1068, %v1688
    %v1690 = vpop.f32.mrb[0].mxu0
    %v1691 = vpop.f32.mrb[0].mxu0
    %v1692 = vadd.f32 %v1068, %v1691
    %v1693 = vpop.f32.mrb[0].mxu0
    %1694 = vmatprep.mubr.bf16.mxu0 %v812
    %1695 = vmatmul.mubr.bf16.gmra.mrb[0].mxu0 %v811
    %v1696 = vpop.f32.mrb[0].mxu0
    %v1697 = vadd.f32 %v1068, %v1696
    %v1698 = vpop.f32.mrb[0].mxu0
    %v1699 = vpop.f32.mrb[0].mxu0
    %v1700 = vadd.f32 %v1068, %v1699
    %v1701 = vpop.f32.mrb[0].mxu0
    %1702 = vmatprep.mubr.bf16.mxu0 %v821
    %1703 = vmatmul.mubr.bf16.gmra.mrb[0].mxu0 %v820
    %v1704 = vpop.f32.mrb[0].mxu0
    %v1705 = vadd.f32 %v1068, %v1704
    %v1706 = vpop.f32.mrb[0].mxu0
    %v1707 = vpop.f32.mrb[0].mxu0
    %v1708 = vadd.f32 %v1068, %v1707
    %v1709 = vpop.f32.mrb[0].mxu0
    %1710 = vmatprep.mubr.bf16.mxu0 %v830
    %1711 = vmatmul.mubr.bf16.gmra.mrb[0].mxu0 %v829
    %v1712 = vpop.f32.mrb[0].mxu0
    %v1713 = vadd.f32 %v1068, %v1712
    %v1714 = vpop.f32.mrb[0].mxu0
    %v1715 = vpop.f32.mrb[0].mxu0
    %v1716 = vadd.f32 %v1068, %v1715
    %v1717 = vpop.f32.mrb[0].mxu0
    %1718 = vmatprep.mubr.bf16.mxu0 %v839
    %1719 = vmatmul.mubr.bf16.gmra.mrb[0].mxu0 %v838
    %v1720 = vpop.f32.mrb[0].mxu0
    %v1721 = vadd.f32 %v1068, %v1720
    %v1722 = vpop.f32.mrb[0].mxu0
    %v1723 = vpop.f32.mrb[0].mxu0
    %v1724 = vadd.f32 %v1068, %v1723
    %v1725 = vpop.f32.mrb[0].mxu0
    %1726 = vmatprep.mubr.bf16.mxu0 %v848
    %1727 = vmatmul.mubr.bf16.gmra.mrb[0].mxu0 %v847
    %v1728 = vpop.f32.mrb[0].mxu0
    %v1729 = vadd.f32 %v1068, %v1728
    %v1730 = vpop.f32.mrb[0].mxu0
    %v1731 = vpop.f32.mrb[0].mxu0
    %v1732 = vadd.f32 %v1068, %v1731
    %v1733 = vpop.f32.mrb[0].mxu0
    %1734 = vmatprep.mubr.bf16.mxu0 %v857
    %1735 = vmatmul.mubr.bf16.gmra.mrb[0].mxu0 %v856
    %v1736 = vpop.f32.mrb[0].mxu0
    %v1737 = vadd.f32 %v1068, %v1736
    %v1738 = vpop.f32.mrb[0].mxu0
    %v1739 = vpop.f32.mrb[0].mxu0
    %v1740 = vadd.f32 %v1068, %v1739
    %v1741 = vpop.f32.mrb[0].mxu0
    %1742 = vmatprep.mubr.bf16.mxu0 %v866
    %1743 = vmatmul.mubr.bf16.gmra.mrb[0].mxu0 %v865
    %v1744 = vpop.f32.mrb[0].mxu0
    %v1745 = vadd.f32 %v1068, %v1744
    %v1746 = vpop.f32.mrb[0].mxu0
    %v1747 = vpop.f32.mrb[0].mxu0
    %v1748 = vadd.f32 %v1068, %v1747
    %v1749 = vpop.f32.mrb[0].mxu0
    %1750 = vmatprep.mubr.bf16.mxu0 %v875
    %1751 = vmatmul.mubr.bf16.gmra.mrb[0].mxu0 %v874
    %v1752 = vpop.f32.mrb[0].mxu0
    %v1753 = vadd.f32 %v1068, %v1752
    %v1754 = vpop.f32.mrb[0].mxu0
    %v1755 = vpop.f32.mrb[0].mxu0
    %v1756 = vadd.f32 %v1068, %v1755
    %v1757 = vpop.f32.mrb[0].mxu0
    %1758 = vmatprep.mubr.bf16.mxu0 %v884
    %1759 = vmatmul.mubr.bf16.gmra.mrb[0].mxu0 %v883
    %v1760 = vpop.f32.mrb[0].mxu0
    %v1761 = vadd.f32 %v1068, %v1760
    %v1762 = vpop.f32.mrb[0].mxu0
    %v1763 = vpop.f32.mrb[0].mxu0
    %v1764 = vadd.f32 %v1068, %v1763
    %v1765 = vpop.f32.mrb[0].mxu0
    %1766 = vmatprep.mubr.bf16.mxu0 %v893
    %1767 = vmatmul.mubr.bf16.gmra.mrb[0].mxu0 %v892
    %v1768 = vpop.f32.mrb[0].mxu0
    %v1769 = vadd.f32 %v1068, %v1768
    %v1770 = vpop.f32.mrb[0].mxu0
    %v1771 = vpop.f32.mrb[0].mxu0
    %v1772 = vadd.f32 %v1068, %v1771
    %v1773 = vpop.f32.mrb[0].mxu0
    %1774 = vmatprep.mubr.bf16.mxu0 %v902
    %1775 = vmatmul.mubr.bf16.gmra.mrb[0].mxu0 %v901
    %v1776 = vpop.f32.mrb[0].mxu0
    %v1777 = vadd.f32 %v1068, %v1776
    %v1778 = vpop.f32.mrb[0].mxu0
    %v1779 = vpop.f32.mrb[0].mxu0
    %v1780 = vadd.f32 %v1068, %v1779
    %v1781 = vpop.f32.mrb[0].mxu0
    %1782 = vmatprep.mubr.bf16.mxu0 %v911
    %1783 = vmatmul.mubr.bf16.gmra.mrb[0].mxu0 %v910
    %v1784 = vpop.f32.mrb[0].mxu0
    %v1785 = vadd.f32 %v1068, %v1784
    %v1786 = vpop.f32.mrb[0].mxu0
    %v1787 = vpop.f32.mrb[0].mxu0
    %v1788 = vadd.f32 %v1068, %v1787
    %v1789 = vpop.f32.mrb[0].mxu0
    %1790 = vdwg.mxu0
    %1791 = vmatprep.subr.bf16.mxu0 0
    %1792 = vmatpush1.bf16.msra.mxu0 %v1374
    %1793 = vmatprep.subr.bf16.mxu0 0
    %1794 = vmatpush1.bf16.msra.mxu0 %v1375
    %1795 = vmatprep.subr.bf16.mxu0 0
    %1796 = vmatpush1.bf16.msra.mxu0 %v1376
    %1797 = vmatprep.subr.bf16.mxu0 0
    %1798 = vmatpush1.bf16.msra.mxu0 %v1377
    %1799 = vmatprep.subr.bf16.mxu0 0
    %1800 = vmatpush1.bf16.msra.mxu0 %v1378
    %1801 = vmatprep.subr.bf16.mxu0 0
    %1802 = vmatpush1.bf16.msra.mxu0 %v1379
    %1803 = vmatprep.subr.bf16.mxu0 0
    %1804 = vmatpush1.bf16.msra.mxu0 %v1380
    %1805 = vmatprep.subr.bf16.mxu0 0
    %1806 = vmatpush1.bf16.msra.mxu0 %v1381
    %1807 = vmatprep.subr.bf16.mxu0 0
    %1808 = vmatpush1.bf16.msra.mxu0 %v1382
    %1809 = vmatprep.subr.bf16.mxu0 0
    %1810 = vmatpush1.bf16.msra.mxu0 %v1383
    %1811 = vmatprep.subr.bf16.mxu0 0
    %1812 = vmatpush1.bf16.msra.mxu0 %v1384
    %1813 = vmatprep.subr.bf16.mxu0 0
    %1814 = vmatpush1.bf16.msra.mxu0 %v1385
    %1815 = vmatprep.subr.bf16.mxu0 0
    %1816 = vmatpush1.bf16.msra.mxu0 %v1386
    %1817 = vmatprep.subr.bf16.mxu0 0
    %1818 = vmatpush1.bf16.msra.mxu0 %v1387
    %1819 = vmatprep.subr.bf16.mxu0 0
    %1820 = vmatpush1.bf16.msra.mxu0 %v1388
    %1821 = vmatprep.subr.bf16.mxu0 0
    %1822 = vmatpush1.bf16.msra.mxu0 %v1389
    %1823 = vmatprep.mubr.bf16.mxu0 %v634
    %1824 = vmatmul.mubr.bf16.gmra.mrb[0].mxu0 %v633
    %v1825 = vpop.f32.mrb[0].mxu0
    %v1826 = vadd.f32 %v1537, %v1825
    %v1827 = vpop.f32.mrb[0].mxu0
    %v1828 = vpop.f32.mrb[0].mxu0
    %v1829 = vadd.f32 %v1540, %v1828
    %v1830 = vpop.f32.mrb[0].mxu0
    %1831 = vmatprep.mubr.bf16.mxu0 %v643
    %1832 = vmatmul.mubr.bf16.gmra.mrb[0].mxu0 %v642
    %v1833 = vpop.f32.mrb[0].mxu0
    %v1834 = vadd.f32 %v1545, %v1833
    %v1835 = vpop.f32.mrb[0].mxu0
    %v1836 = vpop.f32.mrb[0].mxu0
    %v1837 = vadd.f32 %v1548, %v1836
    %v1838 = vpop.f32.mrb[0].mxu0
    %1839 = vmatprep.mubr.bf16.mxu0 %v652
    %1840 = vmatmul.mubr.bf16.gmra.mrb[0].mxu0 %v651
    %v1841 = vpop.f32.mrb[0].mxu0
    %v1842 = vadd.f32 %v1553, %v1841
    %v1843 = vpop.f32.mrb[0].mxu0
    %v1844 = vpop.f32.mrb[0].mxu0
    %v1845 = vadd.f32 %v1556, %v1844
    %v1846 = vpop.f32.mrb[0].mxu0
    %1847 = vmatprep.mubr.bf16.mxu0 %v661
    %1848 = vmatmul.mubr.bf16.gmra.mrb[0].mxu0 %v660
    %v1849 = vpop.f32.mrb[0].mxu0
    %v1850 = vadd.f32 %v1561, %v1849
    %v1851 = vpop.f32.mrb[0].mxu0
    %v1852 = vpop.f32.mrb[0].mxu0
    %v1853 = vadd.f32 %v1564, %v1852
    %v1854 = vpop.f32.mrb[0].mxu0
    %1855 = vmatprep.mubr.bf16.mxu0 %v670
    %1856 = vmatmul.mubr.bf16.gmra.mrb[0].mxu0 %v669
    %v1857 = vpop.f32.mrb[0].mxu0
    %v1858 = vadd.f32 %v1569, %v1857
    %v1859 = vpop.f32.mrb[0].mxu0
    %v1860 = vpop.f32.mrb[0].mxu0
    %v1861 = vadd.f32 %v1572, %v1860
    %v1862 = vpop.f32.mrb[0].mxu0
    %1863 = vmatprep.mubr.bf16.mxu0 %v679
    %1864 = vmatmul.mubr.bf16.gmra.mrb[0].mxu0 %v678
    %v1865 = vpop.f32.mrb[0].mxu0
    %v1866 = vadd.f32 %v1577, %v1865
    %v1867 = vpop.f32.mrb[0].mxu0
    %v1868 = vpop.f32.mrb[0].mxu0
    %v1869 = vadd.f32 %v1580, %v1868
    %v1870 = vpop.f32.mrb[0].mxu0
    %1871 = vmatprep.mubr.bf16.mxu0 %v688
    %1872 = vmatmul.mubr.bf16.gmra.mrb[0].mxu0 %v687
    %v1873 = vpop.f32.mrb[0].mxu0
    %v1874 = vadd.f32 %v1585, %v1873
    %v1875 = vpop.f32.mrb[0].mxu0
    %v1876 = vpop.f32.mrb[0].mxu0
    %v1877 = vadd.f32 %v1588, %v1876
    %v1878 = vpop.f32.mrb[0].mxu0
    %1879 = vmatprep.mubr.bf16.mxu0 %v697
    %1880 = vmatmul.mubr.bf16.gmra.mrb[0].mxu0 %v696
    %v1881 = vpop.f32.mrb[0].mxu0
    %v1882 = vadd.f32 %v1593, %v1881
    %v1883 = vpop.f32.mrb[0].mxu0
    %v1884 = vpop.f32.mrb[0].mxu0
    %v1885 = vadd.f32 %v1596, %v1884
    %v1886 = vpop.f32.mrb[0].mxu0
    %1887 = vmatprep.mubr.bf16.mxu0 %v706
    %1888 = vmatmul.mubr.bf16.gmra.mrb[0].mxu0 %v705
    %v1889 = vpop.f32.mrb[0].mxu0
    %v1890 = vadd.f32 %v1601, %v1889
    %v1891 = vpop.f32.mrb[0].mxu0
    %v1892 = vpop.f32.mrb[0].mxu0
    %v1893 = vadd.f32 %v1604, %v1892
    %v1894 = vpop.f32.mrb[0].mxu0
    %1895 = vmatprep.mubr.bf16.mxu0 %v715
    %1896 = vmatmul.mubr.bf16.gmra.mrb[0].mxu0 %v714
    %v1897 = vpop.f32.mrb[0].mxu0
    %v1898 = vadd.f32 %v1609, %v1897
    %v1899 = vpop.f32.mrb[0].mxu0
    %v1900 = vpop.f32.mrb[0].mxu0
    %v1901 = vadd.f32 %v1612, %v1900
    %v1902 = vpop.f32.mrb[0].mxu0
    %1903 = vmatprep.mubr.bf16.mxu0 %v724
    %1904 = vmatmul.mubr.bf16.gmra.mrb[0].mxu0 %v723
    %v1905 = vpop.f32.mrb[0].mxu0
    %v1906 = vadd.f32 %v1617, %v1905
    %v1907 = vpop.f32.mrb[0].mxu0
    %v1908 = vpop.f32.mrb[0].mxu0
    %v1909 = vadd.f32 %v1620, %v1908
    %v1910 = vpop.f32.mrb[0].mxu0
    %1911 = vmatprep.mubr.bf16.mxu0 %v733
    %1912 = vmatmul.mubr.bf16.gmra.mrb[0].mxu0 %v732
    %v1913 = vpop.f32.mrb[0].mxu0
    %v1914 = vadd.f32 %v1625, %v1913
    %v1915 = vpop.f32.mrb[0].mxu0
    %v1916 = vpop.f32.mrb[0].mxu0
    %v1917 = vadd.f32 %v1628, %v1916
    %v1918 = vpop.f32.mrb[0].mxu0
    %1919 = vmatprep.mubr.bf16.mxu0 %v742
    %1920 = vmatmul.mubr.bf16.gmra.mrb[0].mxu0 %v741
    %v1921 = vpop.f32.mrb[0].mxu0
    %v1922 = vadd.f32 %v1633, %v1921
    %v1923 = vpop.f32.mrb[0].mxu0
    %v1924 = vpop.f32.mrb[0].mxu0
    %v1925 = vadd.f32 %v1636, %v1924
    %v1926 = vpop.f32.mrb[0].mxu0
    %1927 = vmatprep.mubr.bf16.mxu0 %v751
    %1928 = vmatmul.mubr.bf16.gmra.mrb[0].mxu0 %v750
    %v1929 = vpop.f32.mrb[0].mxu0
    %v1930 = vadd.f32 %v1641, %v1929
    %v1931 = vpop.f32.mrb[0].mxu0
    %v1932 = vpop.f32.mrb[0].mxu0
    %v1933 = vadd.f32 %v1644, %v1932
    %v1934 = vpop.f32.mrb[0].mxu0
    %1935 = vmatprep.mubr.bf16.mxu0 %v760
    %1936 = vmatmul.mubr.bf16.gmra.mrb[0].mxu0 %v759
    %v1937 = vpop.f32.mrb[0].mxu0
    %v1938 = vadd.f32 %v1649, %v1937
    %v1939 = vpop.f32.mrb[0].mxu0
    %v1940 = vpop.f32.mrb[0].mxu0
    %v1941 = vadd.f32 %v1652, %v1940
    %v1942 = vpop.f32.mrb[0].mxu0
    %1943 = vmatprep.mubr.bf16.mxu0 %v769
    %1944 = vmatmul.mubr.bf16.gmra.mrb[0].mxu0 %v768
    %v1945 = vpop.f32.mrb[0].mxu0
    %v1946 = vadd.f32 %v1657, %v1945
    %v1947 = vpop.f32.mrb[0].mxu0
    %v1948 = vpop.f32.mrb[0].mxu0
    %v1949 = vadd.f32 %v1660, %v1948
    %v1950 = vpop.f32.mrb[0].mxu0
    %1951 = vmatprep.mubr.bf16.mxu0 %v778
    %1952 = vmatmul.mubr.bf16.gmra.mrb[0].mxu0 %v777
    %v1953 = vpop.f32.mrb[0].mxu0
    %v1954 = vadd.f32 %v1665, %v1953
    %v1955 = vpop.f32.mrb[0].mxu0
    %v1956 = vpop.f32.mrb[0].mxu0
    %v1957 = vadd.f32 %v1668, %v1956
    %v1958 = vpop.f32.mrb[0].mxu0
    %1959 = vmatprep.mubr.bf16.mxu0 %v787
    %1960 = vmatmul.mubr.bf16.gmra.mrb[0].mxu0 %v786
    %v1961 = vpop.f32.mrb[0].mxu0
    %v1962 = vadd.f32 %v1673, %v1961
    %v1963 = vpop.f32.mrb[0].mxu0
    %v1964 = vpop.f32.mrb[0].mxu0
    %v1965 = vadd.f32 %v1676, %v1964
    %v1966 = vpop.f32.mrb[0].mxu0
    %1967 = vmatprep.mubr.bf16.mxu0 %v796
    %1968 = vmatmul.mubr.bf16.gmra.mrb[0].mxu0 %v795
    %v1969 = vpop.f32.mrb[0].mxu0
    %v1970 = vadd.f32 %v1681, %v1969
    %v1971 = vpop.f32.mrb[0].mxu0
    %v1972 = vpop.f32.mrb[0].mxu0
    %v1973 = vadd.f32 %v1684, %v1972
    %v1974 = vpop.f32.mrb[0].mxu0
    %1975 = vmatprep.mubr.bf16.mxu0 %v805
    %1976 = vmatmul.mubr.bf16.gmra.mrb[0].mxu0 %v804
    %v1977 = vpop.f32.mrb[0].mxu0
    %v1978 = vadd.f32 %v1689, %v1977
    %v1979 = vpop.f32.mrb[0].mxu0
    %v1980 = vpop.f32.mrb[0].mxu0
    %v1981 = vadd.f32 %v1692, %v1980
    %v1982 = vpop.f32.mrb[0].mxu0
    %1983 = vmatprep.mubr.bf16.mxu0 %v814
    %1984 = vmatmul.mubr.bf16.gmra.mrb[0].mxu0 %v813
    %v1985 = vpop.f32.mrb[0].mxu0
    %v1986 = vadd.f32 %v1697, %v1985
    %v1987 = vpop.f32.mrb[0].mxu0
    %v1988 = vpop.f32.mrb[0].mxu0
    %v1989 = vadd.f32 %v1700, %v1988
    %v1990 = vpop.f32.mrb[0].mxu0
    %1991 = vmatprep.mubr.bf16.mxu0 %v823
    %1992 = vmatmul.mubr.bf16.gmra.mrb[0].mxu0 %v822
    %v1993 = vpop.f32.mrb[0].mxu0
    %v1994 = vadd.f32 %v1705, %v1993
    %v1995 = vpop.f32.mrb[0].mxu0
    %v1996 = vpop.f32.mrb[0].mxu0
    %v1997 = vadd.f32 %v1708, %v1996
    %v1998 = vpop.f32.mrb[0].mxu0
    %1999 = vmatprep.mubr.bf16.mxu0 %v832
    %2000 = vmatmul.mubr.bf16.gmra.mrb[0].mxu0 %v831
    %v2001 = vpop.f32.mrb[0].mxu0
    %v2002 = vadd.f32 %v1713, %v2001
    %v2003 = vpop.f32.mrb[0].mxu0
    %v2004 = vpop.f32.mrb[0].mxu0
    %v2005 = vadd.f32 %v1716, %v2004
    %v2006 = vpop.f32.mrb[0].mxu0
    %2007 = vmatprep.mubr.bf16.mxu0 %v841
    %2008 = vmatmul.mubr.bf16.gmra.mrb[0].mxu0 %v840
    %v2009 = vpop.f32.mrb[0].mxu0
    %v2010 = vadd.f32 %v1721, %v2009
    %v2011 = vpop.f32.mrb[0].mxu0
    %v2012 = vpop.f32.mrb[0].mxu0
    %v2013 = vadd.f32 %v1724, %v2012
    %v2014 = vpop.f32.mrb[0].mxu0
    %2015 = vmatprep.mubr.bf16.mxu0 %v850
    %2016 = vmatmul.mubr.bf16.gmra.mrb[0].mxu0 %v849
    %v2017 = vpop.f32.mrb[0].mxu0
    %v2018 = vadd.f32 %v1729, %v2017
    %v2019 = vpop.f32.mrb[0].mxu0
    %v2020 = vpop.f32.mrb[0].mxu0
    %v2021 = vadd.f32 %v1732, %v2020
    %v2022 = vpop.f32.mrb[0].mxu0
    %2023 = vmatprep.mubr.bf16.mxu0 %v859
    %2024 = vmatmul.mubr.bf16.gmra.mrb[0].mxu0 %v858
    %v2025 = vpop.f32.mrb[0].mxu0
    %v2026 = vadd.f32 %v1737, %v2025
    %v2027 = vpop.f32.mrb[0].mxu0
    %v2028 = vpop.f32.mrb[0].mxu0
    %v2029 = vadd.f32 %v1740, %v2028
    %v2030 = vpop.f32.mrb[0].mxu0
    %2031 = vmatprep.mubr.bf16.mxu0 %v868
    %2032 = vmatmul.mubr.bf16.gmra.mrb[0].mxu0 %v867
    %v2033 = vpop.f32.mrb[0].mxu0
    %v2034 = vadd.f32 %v1745, %v2033
    %v2035 = vpop.f32.mrb[0].mxu0
    %v2036 = vpop.f32.mrb[0].mxu0
    %v2037 = vadd.f32 %v1748, %v2036
    %v2038 = vpop.f32.mrb[0].mxu0
    %2039 = vmatprep.mubr.bf16.mxu0 %v877
    %2040 = vmatmul.mubr.bf16.gmra.mrb[0].mxu0 %v876
    %v2041 = vpop.f32.mrb[0].mxu0
    %v2042 = vadd.f32 %v1753, %v2041
    %v2043 = vpop.f32.mrb[0].mxu0
    %v2044 = vpop.f32.mrb[0].mxu0
    %v2045 = vadd.f32 %v1756, %v2044
    %v2046 = vpop.f32.mrb[0].mxu0
    %2047 = vmatprep.mubr.bf16.mxu0 %v886
    %2048 = vmatmul.mubr.bf16.gmra.mrb[0].mxu0 %v885
    %v2049 = vpop.f32.mrb[0].mxu0
    %v2050 = vadd.f32 %v1761, %v2049
    %v2051 = vpop.f32.mrb[0].mxu0
    %v2052 = vpop.f32.mrb[0].mxu0
    %v2053 = vadd.f32 %v1764, %v2052
    %v2054 = vpop.f32.mrb[0].mxu0
    %2055 = vmatprep.mubr.bf16.mxu0 %v895
    %2056 = vmatmul.mubr.bf16.gmra.mrb[0].mxu0 %v894
    %v2057 = vpop.f32.mrb[0].mxu0
    %v2058 = vadd.f32 %v1769, %v2057
    %v2059 = vpop.f32.mrb[0].mxu0
    %v2060 = vpop.f32.mrb[0].mxu0
    %v2061 = vadd.f32 %v1772, %v2060
    %v2062 = vpop.f32.mrb[0].mxu0
    %2063 = vmatprep.mubr.bf16.mxu0 %v904
    %2064 = vmatmul.mubr.bf16.gmra.mrb[0].mxu0 %v903
    %v2065 = vpop.f32.mrb[0].mxu0
    %v2066 = vadd.f32 %v1777, %v2065
    %v2067 = vpop.f32.mrb[0].mxu0
    %v2068 = vpop.f32.mrb[0].mxu0
    %v2069 = vadd.f32 %v1780, %v2068
    %v2070 = vpop.f32.mrb[0].mxu0
    %2071 = vmatprep.mubr.bf16.mxu0 %v913
    %2072 = vmatmul.mubr.bf16.gmra.mrb[0].mxu0 %v912
    %v2073 = vpop.f32.mrb[0].mxu0
    %v2074 = vadd.f32 %v1785, %v2073
    %v2075 = vpop.f32.mrb[0].mxu0
    %v2076 = vpop.f32.mrb[0].mxu0
    %v2077 = vadd.f32 %v1788, %v2076
    %v2078 = vpop.f32.mrb[0].mxu0
    %2079 = vdwg.mxu0
    %2080 = vmatprep.subr.bf16.mxu0 0
    %2081 = vmatpush1.bf16.msra.mxu0 %v1390
    %2082 = vmatprep.subr.bf16.mxu0 0
    %2083 = vmatpush1.bf16.msra.mxu0 %v1391
    %2084 = vmatprep.subr.bf16.mxu0 0
    %2085 = vmatpush1.bf16.msra.mxu0 %v1392
    %2086 = vmatprep.subr.bf16.mxu0 0
    %2087 = vmatpush1.bf16.msra.mxu0 %v1393
    %2088 = vmatprep.subr.bf16.mxu0 0
    %2089 = vmatpush1.bf16.msra.mxu0 %v1394
    %2090 = vmatprep.subr.bf16.mxu0 0
    %2091 = vmatpush1.bf16.msra.mxu0 %v1395
    %2092 = vmatprep.subr.bf16.mxu0 0
    %2093 = vmatpush1.bf16.msra.mxu0 %v1396
    %2094 = vmatprep.subr.bf16.mxu0 0
    %2095 = vmatpush1.bf16.msra.mxu0 %v1397
    %2096 = vmatprep.subr.bf16.mxu0 0
    %2097 = vmatpush1.bf16.msra.mxu0 %v1398
    %2098 = vmatprep.subr.bf16.mxu0 0
    %2099 = vmatpush1.bf16.msra.mxu0 %v1399
    %2100 = vmatprep.subr.bf16.mxu0 0
    %2101 = vmatpush1.bf16.msra.mxu0 %v1400
    %2102 = vmatprep.subr.bf16.mxu0 0
    %2103 = vmatpush1.bf16.msra.mxu0 %v1401
    %2104 = vmatprep.subr.bf16.mxu0 0
    %2105 = vmatpush1.bf16.msra.mxu0 %v1402
    %2106 = vmatprep.subr.bf16.mxu0 0
    %2107 = vmatpush1.bf16.msra.mxu0 %v1403
    %2108 = vmatprep.subr.bf16.mxu0 0
    %2109 = vmatpush1.bf16.msra.mxu0 %v1404
    %2110 = vmatprep.subr.bf16.mxu0 0
    %2111 = vmatpush1.bf16.msra.mxu0 %v1405
    %2112 = vmatprep.mubr.bf16.mxu0 %v636
    %2113 = vmatmul.mubr.bf16.gmra.mrb[0].mxu0 %v635
    %v2114 = vpop.f32.mrb[0].mxu0
    %v2115 = vadd.f32 %v1826, %v2114
    %v2116 = vpop.f32.mrb[0].mxu0
    %v2117 = vpop.f32.mrb[0].mxu0
    %v2118 = vadd.f32 %v1829, %v2117
    %v2119 = vpop.f32.mrb[0].mxu0
    %2120 = vmatprep.mubr.bf16.mxu0 %v645
    %2121 = vmatmul.mubr.bf16.gmra.mrb[0].mxu0 %v644
    %v2122 = vpop.f32.mrb[0].mxu0
    %v2123 = vadd.f32 %v1834, %v2122
    %v2124 = vpop.f32.mrb[0].mxu0
    %v2125 = vpop.f32.mrb[0].mxu0
    %v2126 = vadd.f32 %v1837, %v2125
    %v2127 = vpop.f32.mrb[0].mxu0
    %2128 = vmatprep.mubr.bf16.mxu0 %v654
    %2129 = vmatmul.mubr.bf16.gmra.mrb[0].mxu0 %v653
    %v2130 = vpop.f32.mrb[0].mxu0
    %v2131 = vadd.f32 %v1842, %v2130
    %v2132 = vpop.f32.mrb[0].mxu0
    %v2133 = vpop.f32.mrb[0].mxu0
    %v2134 = vadd.f32 %v1845, %v2133
    %v2135 = vpop.f32.mrb[0].mxu0
    %2136 = vmatprep.mubr.bf16.mxu0 %v663
    %2137 = vmatmul.mubr.bf16.gmra.mrb[0].mxu0 %v662
    %v2138 = vpop.f32.mrb[0].mxu0
    %v2139 = vadd.f32 %v1850, %v2138
    %v2140 = vpop.f32.mrb[0].mxu0
    %v2141 = vpop.f32.mrb[0].mxu0
    %v2142 = vadd.f32 %v1853, %v2141
    %v2143 = vpop.f32.mrb[0].mxu0
    %2144 = vmatprep.mubr.bf16.mxu0 %v672
    %2145 = vmatmul.mubr.bf16.gmra.mrb[0].mxu0 %v671
    %v2146 = vpop.f32.mrb[0].mxu0
    %v2147 = vadd.f32 %v1858, %v2146
    %v2148 = vpop.f32.mrb[0].mxu0
    %v2149 = vpop.f32.mrb[0].mxu0
    %v2150 = vadd.f32 %v1861, %v2149
    %v2151 = vpop.f32.mrb[0].mxu0
    %2152 = vmatprep.mubr.bf16.mxu0 %v681
    %2153 = vmatmul.mubr.bf16.gmra.mrb[0].mxu0 %v680
    %v2154 = vpop.f32.mrb[0].mxu0
    %v2155 = vadd.f32 %v1866, %v2154
    %v2156 = vpop.f32.mrb[0].mxu0
    %v2157 = vpop.f32.mrb[0].mxu0
    %v2158 = vadd.f32 %v1869, %v2157
    %v2159 = vpop.f32.mrb[0].mxu0
    %2160 = vmatprep.mubr.bf16.mxu0 %v690
    %2161 = vmatmul.mubr.bf16.gmra.mrb[0].mxu0 %v689
    %v2162 = vpop.f32.mrb[0].mxu0
    %v2163 = vadd.f32 %v1874, %v2162
    %v2164 = vpop.f32.mrb[0].mxu0
    %v2165 = vpop.f32.mrb[0].mxu0
    %v2166 = vadd.f32 %v1877, %v2165
    %v2167 = vpop.f32.mrb[0].mxu0
    %2168 = vmatprep.mubr.bf16.mxu0 %v699
    %2169 = vmatmul.mubr.bf16.gmra.mrb[0].mxu0 %v698
    %v2170 = vpop.f32.mrb[0].mxu0
    %v2171 = vadd.f32 %v1882, %v2170
    %v2172 = vpop.f32.mrb[0].mxu0
    %v2173 = vpop.f32.mrb[0].mxu0
    %v2174 = vadd.f32 %v1885, %v2173
    %v2175 = vpop.f32.mrb[0].mxu0
    %2176 = vmatprep.mubr.bf16.mxu0 %v708
    %2177 = vmatmul.mubr.bf16.gmra.mrb[0].mxu0 %v707
    %v2178 = vpop.f32.mrb[0].mxu0
    %v2179 = vadd.f32 %v1890, %v2178
    %v2180 = vpop.f32.mrb[0].mxu0
    %v2181 = vpop.f32.mrb[0].mxu0
    %v2182 = vadd.f32 %v1893, %v2181
    %v2183 = vpop.f32.mrb[0].mxu0
    %2184 = vmatprep.mubr.bf16.mxu0 %v717
    %2185 = vmatmul.mubr.bf16.gmra.mrb[0].mxu0 %v716
    %v2186 = vpop.f32.mrb[0].mxu0
    %v2187 = vadd.f32 %v1898, %v2186
    %v2188 = vpop.f32.mrb[0].mxu0
    %v2189 = vpop.f32.mrb[0].mxu0
    %v2190 = vadd.f32 %v1901, %v2189
    %v2191 = vpop.f32.mrb[0].mxu0
    %2192 = vmatprep.mubr.bf16.mxu0 %v726
    %2193 = vmatmul.mubr.bf16.gmra.mrb[0].mxu0 %v725
    %v2194 = vpop.f32.mrb[0].mxu0
    %v2195 = vadd.f32 %v1906, %v2194
    %v2196 = vpop.f32.mrb[0].mxu0
    %v2197 = vpop.f32.mrb[0].mxu0
    %v2198 = vadd.f32 %v1909, %v2197
    %v2199 = vpop.f32.mrb[0].mxu0
    %2200 = vmatprep.mubr.bf16.mxu0 %v735
    %2201 = vmatmul.mubr.bf16.gmra.mrb[0].mxu0 %v734
    %v2202 = vpop.f32.mrb[0].mxu0
    %v2203 = vadd.f32 %v1914, %v2202
    %v2204 = vpop.f32.mrb[0].mxu0
    %v2205 = vpop.f32.mrb[0].mxu0
    %v2206 = vadd.f32 %v1917, %v2205
    %v2207 = vpop.f32.mrb[0].mxu0
    %2208 = vmatprep.mubr.bf16.mxu0 %v744
    %2209 = vmatmul.mubr.bf16.gmra.mrb[0].mxu0 %v743
    %v2210 = vpop.f32.mrb[0].mxu0
    %v2211 = vadd.f32 %v1922, %v2210
    %v2212 = vpop.f32.mrb[0].mxu0
    %v2213 = vpop.f32.mrb[0].mxu0
    %v2214 = vadd.f32 %v1925, %v2213
    %v2215 = vpop.f32.mrb[0].mxu0
    %2216 = vmatprep.mubr.bf16.mxu0 %v753
    %2217 = vmatmul.mubr.bf16.gmra.mrb[0].mxu0 %v752
    %v2218 = vpop.f32.mrb[0].mxu0
    %v2219 = vadd.f32 %v1930, %v2218
    %v2220 = vpop.f32.mrb[0].mxu0
    %v2221 = vpop.f32.mrb[0].mxu0
    %v2222 = vadd.f32 %v1933, %v2221
    %v2223 = vpop.f32.mrb[0].mxu0
    %2224 = vmatprep.mubr.bf16.mxu0 %v762
    %2225 = vmatmul.mubr.bf16.gmra.mrb[0].mxu0 %v761
    %v2226 = vpop.f32.mrb[0].mxu0
    %v2227 = vadd.f32 %v1938, %v2226
    %v2228 = vpop.f32.mrb[0].mxu0
    %v2229 = vpop.f32.mrb[0].mxu0
    %v2230 = vadd.f32 %v1941, %v2229
    %v2231 = vpop.f32.mrb[0].mxu0
    %2232 = vmatprep.mubr.bf16.mxu0 %v771
    %2233 = vmatmul.mubr.bf16.gmra.mrb[0].mxu0 %v770
    %v2234 = vpop.f32.mrb[0].mxu0
    %v2235 = vadd.f32 %v1946, %v2234
    %v2236 = vpop.f32.mrb[0].mxu0
    %v2237 = vpop.f32.mrb[0].mxu0
    %v2238 = vadd.f32 %v1949, %v2237
    %v2239 = vpop.f32.mrb[0].mxu0
    %2240 = vmatprep.mubr.bf16.mxu0 %v780
    %2241 = vmatmul.mubr.bf16.gmra.mrb[0].mxu0 %v779
    %v2242 = vpop.f32.mrb[0].mxu0
    %v2243 = vadd.f32 %v1954, %v2242
    %v2244 = vpop.f32.mrb[0].mxu0
    %v2245 = vpop.f32.mrb[0].mxu0
    %v2246 = vadd.f32 %v1957, %v2245
    %v2247 = vpop.f32.mrb[0].mxu0
    %2248 = vmatprep.mubr.bf16.mxu0 %v789
    %2249 = vmatmul.mubr.bf16.gmra.mrb[0].mxu0 %v788
    %v2250 = vpop.f32.mrb[0].mxu0
    %v2251 = vadd.f32 %v1962, %v2250
    %v2252 = vpop.f32.mrb[0].mxu0
    %v2253 = vpop.f32.mrb[0].mxu0
    %v2254 = vadd.f32 %v1965, %v2253
    %v2255 = vpop.f32.mrb[0].mxu0
    %2256 = vmatprep.mubr.bf16.mxu0 %v798
    %2257 = vmatmul.mubr.bf16.gmra.mrb[0].mxu0 %v797
    %v2258 = vpop.f32.mrb[0].mxu0
    %v2259 = vadd.f32 %v1970, %v2258
    %v2260 = vpop.f32.mrb[0].mxu0
    %v2261 = vpop.f32.mrb[0].mxu0
    %v2262 = vadd.f32 %v1973, %v2261
    %v2263 = vpop.f32.mrb[0].mxu0
    %2264 = vmatprep.mubr.bf16.mxu0 %v807
    %2265 = vmatmul.mubr.bf16.gmra.mrb[0].mxu0 %v806
    %v2266 = vpop.f32.mrb[0].mxu0
    %v2267 = vadd.f32 %v1978, %v2266
    %v2268 = vpop.f32.mrb[0].mxu0
    %v2269 = vpop.f32.mrb[0].mxu0
    %v2270 = vadd.f32 %v1981, %v2269
    %v2271 = vpop.f32.mrb[0].mxu0
    %2272 = vmatprep.mubr.bf16.mxu0 %v816
    %2273 = vmatmul.mubr.bf16.gmra.mrb[0].mxu0 %v815
    %v2274 = vpop.f32.mrb[0].mxu0
    %v2275 = vadd.f32 %v1986, %v2274
    %v2276 = vpop.f32.mrb[0].mxu0
    %v2277 = vpop.f32.mrb[0].mxu0
    %v2278 = vadd.f32 %v1989, %v2277
    %v2279 = vpop.f32.mrb[0].mxu0
    %2280 = vmatprep.mubr.bf16.mxu0 %v825
    %2281 = vmatmul.mubr.bf16.gmra.mrb[0].mxu0 %v824
    %v2282 = vpop.f32.mrb[0].mxu0
    %v2283 = vadd.f32 %v1994, %v2282
    %v2284 = vpop.f32.mrb[0].mxu0
    %v2285 = vpop.f32.mrb[0].mxu0
    %v2286 = vadd.f32 %v1997, %v2285
    %v2287 = vpop.f32.mrb[0].mxu0
    %2288 = vmatprep.mubr.bf16.mxu0 %v834
    %2289 = vmatmul.mubr.bf16.gmra.mrb[0].mxu0 %v833
    %v2290 = vpop.f32.mrb[0].mxu0
    %v2291 = vadd.f32 %v2002, %v2290
    %v2292 = vpop.f32.mrb[0].mxu0
    %v2293 = vpop.f32.mrb[0].mxu0
    %v2294 = vadd.f32 %v2005, %v2293
    %v2295 = vpop.f32.mrb[0].mxu0
    %2296 = vmatprep.mubr.bf16.mxu0 %v843
    %2297 = vmatmul.mubr.bf16.gmra.mrb[0].mxu0 %v842
    %v2298 = vpop.f32.mrb[0].mxu0
    %v2299 = vadd.f32 %v2010, %v2298
    %v2300 = vpop.f32.mrb[0].mxu0
    %v2301 = vpop.f32.mrb[0].mxu0
    %v2302 = vadd.f32 %v2013, %v2301
    %v2303 = vpop.f32.mrb[0].mxu0
    %2304 = vmatprep.mubr.bf16.mxu0 %v852
    %2305 = vmatmul.mubr.bf16.gmra.mrb[0].mxu0 %v851
    %v2306 = vpop.f32.mrb[0].mxu0
    %v2307 = vadd.f32 %v2018, %v2306
    %v2308 = vpop.f32.mrb[0].mxu0
    %v2309 = vpop.f32.mrb[0].mxu0
    %v2310 = vadd.f32 %v2021, %v2309
    %v2311 = vpop.f32.mrb[0].mxu0
    %2312 = vmatprep.mubr.bf16.mxu0 %v861
    %2313 = vmatmul.mubr.bf16.gmra.mrb[0].mxu0 %v860
    %v2314 = vpop.f32.mrb[0].mxu0
    %v2315 = vadd.f32 %v2026, %v2314
    %v2316 = vpop.f32.mrb[0].mxu0
    %v2317 = vpop.f32.mrb[0].mxu0
    %v2318 = vadd.f32 %v2029, %v2317
    %v2319 = vpop.f32.mrb[0].mxu0
    %2320 = vmatprep.mubr.bf16.mxu0 %v870
    %2321 = vmatmul.mubr.bf16.gmra.mrb[0].mxu0 %v869
    %v2322 = vpop.f32.mrb[0].mxu0
    %v2323 = vadd.f32 %v2034, %v2322
    %v2324 = vpop.f32.mrb[0].mxu0
    %v2325 = vpop.f32.mrb[0].mxu0
    %v2326 = vadd.f32 %v2037, %v2325
    %v2327 = vpop.f32.mrb[0].mxu0
    %2328 = vmatprep.mubr.bf16.mxu0 %v879
    %2329 = vmatmul.mubr.bf16.gmra.mrb[0].mxu0 %v878
    %v2330 = vpop.f32.mrb[0].mxu0
    %v2331 = vadd.f32 %v2042, %v2330
    %v2332 = vpop.f32.mrb[0].mxu0
    %v2333 = vpop.f32.mrb[0].mxu0
    %v2334 = vadd.f32 %v2045, %v2333
    %v2335 = vpop.f32.mrb[0].mxu0
    %2336 = vmatprep.mubr.bf16.mxu0 %v888
    %2337 = vmatmul.mubr.bf16.gmra.mrb[0].mxu0 %v887
    %v2338 = vpop.f32.mrb[0].mxu0
    %v2339 = vadd.f32 %v2050, %v2338
    %v2340 = vpop.f32.mrb[0].mxu0
    %v2341 = vpop.f32.mrb[0].mxu0
    %v2342 = vadd.f32 %v2053, %v2341
    %v2343 = vpop.f32.mrb[0].mxu0
    %2344 = vmatprep.mubr.bf16.mxu0 %v897
    %2345 = vmatmul.mubr.bf16.gmra.mrb[0].mxu0 %v896
    %v2346 = vpop.f32.mrb[0].mxu0
    %v2347 = vadd.f32 %v2058, %v2346
    %v2348 = vpop.f32.mrb[0].mxu0
    %v2349 = vpop.f32.mrb[0].mxu0
    %v2350 = vadd.f32 %v2061, %v2349
    %v2351 = vpop.f32.mrb[0].mxu0
    %2352 = vmatprep.mubr.bf16.mxu0 %v906
    %2353 = vmatmul.mubr.bf16.gmra.mrb[0].mxu0 %v905
    %v2354 = vpop.f32.mrb[0].mxu0
    %v2355 = vadd.f32 %v2066, %v2354
    %v2356 = vpop.f32.mrb[0].mxu0
    %v2357 = vpop.f32.mrb[0].mxu0
    %v2358 = vadd.f32 %v2069, %v2357
    %v2359 = vpop.f32.mrb[0].mxu0
    %2360 = vmatprep.mubr.bf16.mxu0 %v915
    %2361 = vmatmul.mubr.bf16.gmra.mrb[0].mxu0 %v914
    %v2362 = vpop.f32.mrb[0].mxu0
    %v2363 = vadd.f32 %v2074, %v2362
    %v2364 = vpop.f32.mrb[0].mxu0
    %v2365 = vpop.f32.mrb[0].mxu0
    %v2366 = vadd.f32 %v2077, %v2365
    %v2367 = vpop.f32.mrb[0].mxu0
    %2368 = vdwg.mxu0
    %2369 = vmatprep.subr.bf16.mxu0 0
    %2370 = vmatpush1.bf16.msra.mxu0 %v1406
    %2371 = vmatprep.subr.bf16.mxu0 0
    %2372 = vmatpush1.bf16.msra.mxu0 %v1407
    %2373 = vmatprep.subr.bf16.mxu0 0
    %2374 = vmatpush1.bf16.msra.mxu0 %v1408
    %2375 = vmatprep.subr.bf16.mxu0 0
    %2376 = vmatpush1.bf16.msra.mxu0 %v1409
    %2377 = vmatprep.subr.bf16.mxu0 0
    %2378 = vmatpush1.bf16.msra.mxu0 %v1410
    %2379 = vmatprep.subr.bf16.mxu0 0
    %2380 = vmatpush1.bf16.msra.mxu0 %v1411
    %2381 = vmatprep.subr.bf16.mxu0 0
    %2382 = vmatpush1.bf16.msra.mxu0 %v1412
    %2383 = vmatprep.subr.bf16.mxu0 0
    %2384 = vmatpush1.bf16.msra.mxu0 %v1413
    %2385 = vmatprep.subr.bf16.mxu0 0
    %2386 = vmatpush1.bf16.msra.mxu0 %v1414
    %2387 = vmatprep.subr.bf16.mxu0 0
    %2388 = vmatpush1.bf16.msra.mxu0 %v1415
    %2389 = vmatprep.subr.bf16.mxu0 0
    %2390 = vmatpush1.bf16.msra.mxu0 %v1416
    %2391 = vmatprep.subr.bf16.mxu0 0
    %2392 = vmatpush1.bf16.msra.mxu0 %v1417
    %2393 = vmatprep.subr.bf16.mxu0 0
    %2394 = vmatpush1.bf16.msra.mxu0 %v1418
    %2395 = vmatprep.subr.bf16.mxu0 0
    %2396 = vmatpush1.bf16.msra.mxu0 %v1419
    %2397 = vmatprep.subr.bf16.mxu0 0
    %2398 = vmatpush1.bf16.msra.mxu0 %v1420
    %2399 = vmatprep.subr.bf16.mxu0 0
    %2400 = vmatpush1.bf16.msra.mxu0 %v1421
    %2401 = vmatprep.mubr.bf16.mxu0 %v638
    %2402 = vmatmul.mubr.bf16.gmra.mrb[0].mxu0 %v637
    %v2403 = vpop.f32.mrb[0].mxu0
    %v2404 = vadd.f32 %v2115, %v2403
    %v2405 = vpop.f32.mrb[0].mxu0
    %v2406 = vpop.f32.mrb[0].mxu0
    %v2407 = vadd.f32 %v2118, %v2406
    %v2408 = vpop.f32.mrb[0].mxu0
    %2409 = vmatprep.mubr.bf16.mxu0 %v647
    %2410 = vmatmul.mubr.bf16.gmra.mrb[0].mxu0 %v646
    %v2411 = vpop.f32.mrb[0].mxu0
    %v2412 = vadd.f32 %v2123, %v2411
    %v2413 = vpop.f32.mrb[0].mxu0
    %v2414 = vpop.f32.mrb[0].mxu0
    %v2415 = vadd.f32 %v2126, %v2414
    %v2416 = vpop.f32.mrb[0].mxu0
    %2417 = vmatprep.mubr.bf16.mxu0 %v656
    %2418 = vmatmul.mubr.bf16.gmra.mrb[0].mxu0 %v655
    %v2419 = vpop.f32.mrb[0].mxu0
    %v2420 = vadd.f32 %v2131, %v2419
    %v2421 = vpop.f32.mrb[0].mxu0
    %v2422 = vpop.f32.mrb[0].mxu0
    %v2423 = vadd.f32 %v2134, %v2422
    %v2424 = vpop.f32.mrb[0].mxu0
    %2425 = vmatprep.mubr.bf16.mxu0 %v665
    %2426 = vmatmul.mubr.bf16.gmra.mrb[0].mxu0 %v664
    %v2427 = vpop.f32.mrb[0].mxu0
    %v2428 = vadd.f32 %v2139, %v2427
    %v2429 = vpop.f32.mrb[0].mxu0
    %v2430 = vpop.f32.mrb[0].mxu0
    %v2431 = vadd.f32 %v2142, %v2430
    %v2432 = vpop.f32.mrb[0].mxu0
    %2433 = vmatprep.mubr.bf16.mxu0 %v674
    %2434 = vmatmul.mubr.bf16.gmra.mrb[0].mxu0 %v673
    %v2435 = vpop.f32.mrb[0].mxu0
    %v2436 = vadd.f32 %v2147, %v2435
    %v2437 = vpop.f32.mrb[0].mxu0
    %v2438 = vpop.f32.mrb[0].mxu0
    %v2439 = vadd.f32 %v2150, %v2438
    %v2440 = vpop.f32.mrb[0].mxu0
    %2441 = vmatprep.mubr.bf16.mxu0 %v683
    %2442 = vmatmul.mubr.bf16.gmra.mrb[0].mxu0 %v682
    %v2443 = vpop.f32.mrb[0].mxu0
    %v2444 = vadd.f32 %v2155, %v2443
    %v2445 = vpop.f32.mrb[0].mxu0
    %v2446 = vpop.f32.mrb[0].mxu0
    %v2447 = vadd.f32 %v2158, %v2446
    %v2448 = vpop.f32.mrb[0].mxu0
    %2449 = vmatprep.mubr.bf16.mxu0 %v692
    %2450 = vmatmul.mubr.bf16.gmra.mrb[0].mxu0 %v691
    %v2451 = vpop.f32.mrb[0].mxu0
    %v2452 = vadd.f32 %v2163, %v2451
    %v2453 = vpop.f32.mrb[0].mxu0
    %v2454 = vpop.f32.mrb[0].mxu0
    %v2455 = vadd.f32 %v2166, %v2454
    %v2456 = vpop.f32.mrb[0].mxu0
    %2457 = vmatprep.mubr.bf16.mxu0 %v701
    %2458 = vmatmul.mubr.bf16.gmra.mrb[0].mxu0 %v700
    %v2459 = vpop.f32.mrb[0].mxu0
    %v2460 = vadd.f32 %v2171, %v2459
    %v2461 = vpop.f32.mrb[0].mxu0
    %v2462 = vpop.f32.mrb[0].mxu0
    %v2463 = vadd.f32 %v2174, %v2462
    %v2464 = vpop.f32.mrb[0].mxu0
    %2465 = vmatprep.mubr.bf16.mxu0 %v710
    %2466 = vmatmul.mubr.bf16.gmra.mrb[0].mxu0 %v709
    %v2467 = vpop.f32.mrb[0].mxu0
    %v2468 = vadd.f32 %v2179, %v2467
    %v2469 = vpop.f32.mrb[0].mxu0
    %v2470 = vpop.f32.mrb[0].mxu0
    %v2471 = vadd.f32 %v2182, %v2470
    %v2472 = vpop.f32.mrb[0].mxu0
    %2473 = vmatprep.mubr.bf16.mxu0 %v719
    %2474 = vmatmul.mubr.bf16.gmra.mrb[0].mxu0 %v718
    %v2475 = vpop.f32.mrb[0].mxu0
    %v2476 = vadd.f32 %v2187, %v2475
    %v2477 = vpop.f32.mrb[0].mxu0
    %v2478 = vpop.f32.mrb[0].mxu0
    %v2479 = vadd.f32 %v2190, %v2478
    %v2480 = vpop.f32.mrb[0].mxu0
    %2481 = vmatprep.mubr.bf16.mxu0 %v728
    %2482 = vmatmul.mubr.bf16.gmra.mrb[0].mxu0 %v727
    %v2483 = vpop.f32.mrb[0].mxu0
    %v2484 = vadd.f32 %v2195, %v2483
    %v2485 = vpop.f32.mrb[0].mxu0
    %v2486 = vpop.f32.mrb[0].mxu0
    %v2487 = vadd.f32 %v2198, %v2486
    %v2488 = vpop.f32.mrb[0].mxu0
    %2489 = vmatprep.mubr.bf16.mxu0 %v737
    %2490 = vmatmul.mubr.bf16.gmra.mrb[0].mxu0 %v736
    %v2491 = vpop.f32.mrb[0].mxu0
    %v2492 = vadd.f32 %v2203, %v2491
    %v2493 = vpop.f32.mrb[0].mxu0
    %v2494 = vpop.f32.mrb[0].mxu0
    %v2495 = vadd.f32 %v2206, %v2494
    %v2496 = vpop.f32.mrb[0].mxu0
    %2497 = vmatprep.mubr.bf16.mxu0 %v746
    %2498 = vmatmul.mubr.bf16.gmra.mrb[0].mxu0 %v745
    %v2499 = vpop.f32.mrb[0].mxu0
    %v2500 = vadd.f32 %v2211, %v2499
    %v2501 = vpop.f32.mrb[0].mxu0
    %v2502 = vpop.f32.mrb[0].mxu0
    %v2503 = vadd.f32 %v2214, %v2502
    %v2504 = vpop.f32.mrb[0].mxu0
    %2505 = vmatprep.mubr.bf16.mxu0 %v755
    %2506 = vmatmul.mubr.bf16.gmra.mrb[0].mxu0 %v754
    %v2507 = vpop.f32.mrb[0].mxu0
    %v2508 = vadd.f32 %v2219, %v2507
    %v2509 = vpop.f32.mrb[0].mxu0
    %v2510 = vpop.f32.mrb[0].mxu0
    %v2511 = vadd.f32 %v2222, %v2510
    %v2512 = vpop.f32.mrb[0].mxu0
    %2513 = vmatprep.mubr.bf16.mxu0 %v764
    %2514 = vmatmul.mubr.bf16.gmra.mrb[0].mxu0 %v763
    %v2515 = vpop.f32.mrb[0].mxu0
    %v2516 = vadd.f32 %v2227, %v2515
    %v2517 = vpop.f32.mrb[0].mxu0
    %v2518 = vpop.f32.mrb[0].mxu0
    %v2519 = vadd.f32 %v2230, %v2518
    %v2520 = vpop.f32.mrb[0].mxu0
    %2521 = vmatprep.mubr.bf16.mxu0 %v773
    %2522 = vmatmul.mubr.bf16.gmra.mrb[0].mxu0 %v772
    %v2523 = vpop.f32.mrb[0].mxu0
    %v2524 = vadd.f32 %v2235, %v2523
    %v2525 = vpop.f32.mrb[0].mxu0
    %v2526 = vpop.f32.mrb[0].mxu0
    %v2527 = vadd.f32 %v2238, %v2526
    %v2528 = vpop.f32.mrb[0].mxu0
    %2529 = vmatprep.mubr.bf16.mxu0 %v782
    %2530 = vmatmul.mubr.bf16.gmra.mrb[0].mxu0 %v781
    %v2531 = vpop.f32.mrb[0].mxu0
    %v2532 = vadd.f32 %v2243, %v2531
    %v2533 = vpop.f32.mrb[0].mxu0
    %v2534 = vpop.f32.mrb[0].mxu0
    %v2535 = vadd.f32 %v2246, %v2534
    %v2536 = vpop.f32.mrb[0].mxu0
    %2537 = vmatprep.mubr.bf16.mxu0 %v791
    %2538 = vmatmul.mubr.bf16.gmra.mrb[0].mxu0 %v790
    %v2539 = vpop.f32.mrb[0].mxu0
    %v2540 = vadd.f32 %v2251, %v2539
    %v2541 = vpop.f32.mrb[0].mxu0
    %v2542 = vpop.f32.mrb[0].mxu0
    %v2543 = vadd.f32 %v2254, %v2542
    %v2544 = vpop.f32.mrb[0].mxu0
    %2545 = vmatprep.mubr.bf16.mxu0 %v800
    %2546 = vmatmul.mubr.bf16.gmra.mrb[0].mxu0 %v799
    %v2547 = vpop.f32.mrb[0].mxu0
    %v2548 = vadd.f32 %v2259, %v2547
    %v2549 = vpop.f32.mrb[0].mxu0
    %v2550 = vpop.f32.mrb[0].mxu0
    %v2551 = vadd.f32 %v2262, %v2550
    %v2552 = vpop.f32.mrb[0].mxu0
    %2553 = vmatprep.mubr.bf16.mxu0 %v809
    %2554 = vmatmul.mubr.bf16.gmra.mrb[0].mxu0 %v808
    %v2555 = vpop.f32.mrb[0].mxu0
    %v2556 = vadd.f32 %v2267, %v2555
    %v2557 = vpop.f32.mrb[0].mxu0
    %v2558 = vpop.f32.mrb[0].mxu0
    %v2559 = vadd.f32 %v2270, %v2558
    %v2560 = vpop.f32.mrb[0].mxu0
    %2561 = vmatprep.mubr.bf16.mxu0 %v818
    %2562 = vmatmul.mubr.bf16.gmra.mrb[0].mxu0 %v817
    %v2563 = vpop.f32.mrb[0].mxu0
    %v2564 = vadd.f32 %v2275, %v2563
    %v2565 = vpop.f32.mrb[0].mxu0
    %v2566 = vpop.f32.mrb[0].mxu0
    %v2567 = vadd.f32 %v2278, %v2566
    %v2568 = vpop.f32.mrb[0].mxu0
    %2569 = vmatprep.mubr.bf16.mxu0 %v827
    %2570 = vmatmul.mubr.bf16.gmra.mrb[0].mxu0 %v826
    %v2571 = vpop.f32.mrb[0].mxu0
    %v2572 = vadd.f32 %v2283, %v2571
    %v2573 = vpop.f32.mrb[0].mxu0
    %v2574 = vpop.f32.mrb[0].mxu0
    %v2575 = vadd.f32 %v2286, %v2574
    %v2576 = vpop.f32.mrb[0].mxu0
    %2577 = vmatprep.mubr.bf16.mxu0 %v836
    %2578 = vmatmul.mubr.bf16.gmra.mrb[0].mxu0 %v835
    %v2579 = vpop.f32.mrb[0].mxu0
    %v2580 = vadd.f32 %v2291, %v2579
    %v2581 = vpop.f32.mrb[0].mxu0
    %v2582 = vpop.f32.mrb[0].mxu0
    %v2583 = vadd.f32 %v2294, %v2582
    %v2584 = vpop.f32.mrb[0].mxu0
    %2585 = vmatprep.mubr.bf16.mxu0 %v845
    %2586 = vmatmul.mubr.bf16.gmra.mrb[0].mxu0 %v844
    %v2587 = vpop.f32.mrb[0].mxu0
    %v2588 = vadd.f32 %v2299, %v2587
    %v2589 = vpop.f32.mrb[0].mxu0
    %v2590 = vpop.f32.mrb[0].mxu0
    %v2591 = vadd.f32 %v2302, %v2590
    %v2592 = vpop.f32.mrb[0].mxu0
    %2593 = vmatprep.mubr.bf16.mxu0 %v854
    %2594 = vmatmul.mubr.bf16.gmra.mrb[0].mxu0 %v853
    %v2595 = vpop.f32.mrb[0].mxu0
    %v2596 = vadd.f32 %v2307, %v2595
    %v2597 = vpop.f32.mrb[0].mxu0
    %v2598 = vpop.f32.mrb[0].mxu0
    %v2599 = vadd.f32 %v2310, %v2598
    %v2600 = vpop.f32.mrb[0].mxu0
    %2601 = vmatprep.mubr.bf16.mxu0 %v863
    %2602 = vmatmul.mubr.bf16.gmra.mrb[0].mxu0 %v862
    %v2603 = vpop.f32.mrb[0].mxu0
    %v2604 = vadd.f32 %v2315, %v2603
    %v2605 = vpop.f32.mrb[0].mxu0
    %v2606 = vpop.f32.mrb[0].mxu0
    %v2607 = vadd.f32 %v2318, %v2606
    %v2608 = vpop.f32.mrb[0].mxu0
    %2609 = vmatprep.mubr.bf16.mxu0 %v872
    %2610 = vmatmul.mubr.bf16.gmra.mrb[0].mxu0 %v871
    %v2611 = vpop.f32.mrb[0].mxu0
    %v2612 = vadd.f32 %v2323, %v2611
    %v2613 = vpop.f32.mrb[0].mxu0
    %v2614 = vpop.f32.mrb[0].mxu0
    %v2615 = vadd.f32 %v2326, %v2614
    %v2616 = vpop.f32.mrb[0].mxu0
    %2617 = vmatprep.mubr.bf16.mxu0 %v881
    %2618 = vmatmul.mubr.bf16.gmra.mrb[0].mxu0 %v880
    %v2619 = vpop.f32.mrb[0].mxu0
    %v2620 = vadd.f32 %v2331, %v2619
    %v2621 = vpop.f32.mrb[0].mxu0
    %v2622 = vpop.f32.mrb[0].mxu0
    %v2623 = vadd.f32 %v2334, %v2622
    %v2624 = vpop.f32.mrb[0].mxu0
    %2625 = vmatprep.mubr.bf16.mxu0 %v890
    %2626 = vmatmul.mubr.bf16.gmra.mrb[0].mxu0 %v889
    %v2627 = vpop.f32.mrb[0].mxu0
    %v2628 = vadd.f32 %v2339, %v2627
    %v2629 = vpop.f32.mrb[0].mxu0
    %v2630 = vpop.f32.mrb[0].mxu0
    %v2631 = vadd.f32 %v2342, %v2630
    %v2632 = vpop.f32.mrb[0].mxu0
    %2633 = vmatprep.mubr.bf16.mxu0 %v899
    %2634 = vmatmul.mubr.bf16.gmra.mrb[0].mxu0 %v898
    %v2635 = vpop.f32.mrb[0].mxu0
    %v2636 = vadd.f32 %v2347, %v2635
    %v2637 = vpop.f32.mrb[0].mxu0
    %v2638 = vpop.f32.mrb[0].mxu0
    %v2639 = vadd.f32 %v2350, %v2638
    %v2640 = vpop.f32.mrb[0].mxu0
    %2641 = vmatprep.mubr.bf16.mxu0 %v908
    %2642 = vmatmul.mubr.bf16.gmra.mrb[0].mxu0 %v907
    %v2643 = vpop.f32.mrb[0].mxu0
    %v2644 = vadd.f32 %v2355, %v2643
    %v2645 = vpop.f32.mrb[0].mxu0
    %v2646 = vpop.f32.mrb[0].mxu0
    %v2647 = vadd.f32 %v2358, %v2646
    %v2648 = vpop.f32.mrb[0].mxu0
    %2649 = vmatprep.mubr.bf16.mxu0 %v917
    %2650 = vmatmul.mubr.bf16.gmra.mrb[0].mxu0 %v916
    %v2651 = vpop.f32.mrb[0].mxu0
    %v2652 = vadd.f32 %v2363, %v2651
    %v2653 = vpop.f32.mrb[0].mxu0
    %v2654 = vpop.f32.mrb[0].mxu0
    %v2655 = vadd.f32 %v2366, %v2654
    %v2656 = vpop.f32.mrb[0].mxu0
    %2657 = vdwg.mxu0
    %2658 = vmatprep.subr.bf16.mxu0 0
    %2659 = vmatpush1.bf16.msra.mxu0 %v1422
    %2660 = vmatprep.subr.bf16.mxu0 0
    %2661 = vmatpush1.bf16.msra.mxu0 %v1423
    %2662 = vmatprep.subr.bf16.mxu0 0
    %2663 = vmatpush1.bf16.msra.mxu0 %v1424
    %2664 = vmatprep.subr.bf16.mxu0 0
    %2665 = vmatpush1.bf16.msra.mxu0 %v1425
    %2666 = vmatprep.subr.bf16.mxu0 0
    %2667 = vmatpush1.bf16.msra.mxu0 %v1426
    %2668 = vmatprep.subr.bf16.mxu0 0
    %2669 = vmatpush1.bf16.msra.mxu0 %v1427
    %2670 = vmatprep.subr.bf16.mxu0 0
    %2671 = vmatpush1.bf16.msra.mxu0 %v1428
    %2672 = vmatprep.subr.bf16.mxu0 0
    %2673 = vmatpush1.bf16.msra.mxu0 %v1429
    %2674 = vmatprep.subr.bf16.mxu0 0
    %2675 = vmatpush1.bf16.msra.mxu0 0
    %2676 = vmatprep.subr.bf16.mxu0 0
    %2677 = vmatpush1.bf16.msra.mxu0 0
    %2678 = vmatprep.subr.bf16.mxu0 0
    %2679 = vmatpush1.bf16.msra.mxu0 0
    %2680 = vmatprep.subr.bf16.mxu0 0
    %2681 = vmatpush1.bf16.msra.mxu0 0
    %2682 = vmatprep.subr.bf16.mxu0 0
    %2683 = vmatpush1.bf16.msra.mxu0 0
    %2684 = vmatprep.subr.bf16.mxu0 0
    %2685 = vmatpush1.bf16.msra.mxu0 0
    %2686 = vmatprep.subr.bf16.mxu0 0
    %2687 = vmatpush1.bf16.msra.mxu0 0
    %2688 = vmatprep.subr.bf16.mxu0 0
    %2689 = vmatpush1.bf16.msra.mxu0 0
    %2690 = vmatprep.mubr.bf16.mxu0 0
    %2691 = vmatmul.mubr.bf16.gmra.mrb[0].mxu0 %v639
    %v2692 = vpop.f32.mrb[0].mxu0
    %v2693 = vadd.f32 %v2404, %v2692
    %v2694 = vpop.f32.mrb[0].mxu0
    %v2695 = vpop.f32.mrb[0].mxu0
    %v2696 = vadd.f32 %v2407, %v2695
    %v2697 = vpop.f32.mrb[0].mxu0
    %2698 = vmatprep.mubr.bf16.mxu0 0
    %2699 = vmatmul.mubr.bf16.gmra.mrb[0].mxu0 %v648
    %v2700 = vpop.f32.mrb[0].mxu0
    %v2701 = vadd.f32 %v2412, %v2700
    %v2702 = vpop.f32.mrb[0].mxu0
    %v2703 = vpop.f32.mrb[0].mxu0
    %v2704 = vadd.f32 %v2415, %v2703
    %v2705 = vpop.f32.mrb[0].mxu0
    %2706 = vmatprep.mubr.bf16.mxu0 0
    %2707 = vmatmul.mubr.bf16.gmra.mrb[0].mxu0 %v657
    %v2708 = vpop.f32.mrb[0].mxu0
    %v2709 = vadd.f32 %v2420, %v2708
    %v2710 = vpop.f32.mrb[0].mxu0
    %v2711 = vpop.f32.mrb[0].mxu0
    %v2712 = vadd.f32 %v2423, %v2711
    %v2713 = vpop.f32.mrb[0].mxu0
    %2714 = vmatprep.mubr.bf16.mxu0 0
    %2715 = vmatmul.mubr.bf16.gmra.mrb[0].mxu0 %v666
    %v2716 = vpop.f32.mrb[0].mxu0
    %v2717 = vadd.f32 %v2428, %v2716
    %v2718 = vpop.f32.mrb[0].mxu0
    %v2719 = vpop.f32.mrb[0].mxu0
    %v2720 = vadd.f32 %v2431, %v2719
    %v2721 = vpop.f32.mrb[0].mxu0
    %2722 = vmatprep.mubr.bf16.mxu0 0
    %2723 = vmatmul.mubr.bf16.gmra.mrb[0].mxu0 %v675
    %v2724 = vpop.f32.mrb[0].mxu0
    %v2725 = vadd.f32 %v2436, %v2724
    %v2726 = vpop.f32.mrb[0].mxu0
    %v2727 = vpop.f32.mrb[0].mxu0
    %v2728 = vadd.f32 %v2439, %v2727
    %v2729 = vpop.f32.mrb[0].mxu0
    %2730 = vmatprep.mubr.bf16.mxu0 0
    %2731 = vmatmul.mubr.bf16.gmra.mrb[0].mxu0 %v684
    %v2732 = vpop.f32.mrb[0].mxu0
    %v2733 = vadd.f32 %v2444, %v2732
    %v2734 = vpop.f32.mrb[0].mxu0
    %v2735 = vpop.f32.mrb[0].mxu0
    %v2736 = vadd.f32 %v2447, %v2735
    %v2737 = vpop.f32.mrb[0].mxu0
    %2738 = vmatprep.mubr.bf16.mxu0 0
    %2739 = vmatmul.mubr.bf16.gmra.mrb[0].mxu0 %v693
    %v2740 = vpop.f32.mrb[0].mxu0
    %v2741 = vadd.f32 %v2452, %v2740
    %v2742 = vpop.f32.mrb[0].mxu0
    %v2743 = vpop.f32.mrb[0].mxu0
    %v2744 = vadd.f32 %v2455, %v2743
    %v2745 = vpop.f32.mrb[0].mxu0
    %2746 = vmatprep.mubr.bf16.mxu0 0
    %2747 = vmatmul.mubr.bf16.gmra.mrb[0].mxu0 %v702
    %v2748 = vpop.f32.mrb[0].mxu0
    %v2749 = vadd.f32 %v2460, %v2748
    %v2750 = vpop.f32.mrb[0].mxu0
    %v2751 = vpop.f32.mrb[0].mxu0
    %v2752 = vadd.f32 %v2463, %v2751
    %v2753 = vpop.f32.mrb[0].mxu0
    %2754 = vmatprep.mubr.bf16.mxu0 0
    %2755 = vmatmul.mubr.bf16.gmra.mrb[0].mxu0 %v711
    %v2756 = vpop.f32.mrb[0].mxu0
    %v2757 = vadd.f32 %v2468, %v2756
    %v2758 = vpop.f32.mrb[0].mxu0
    %v2759 = vpop.f32.mrb[0].mxu0
    %v2760 = vadd.f32 %v2471, %v2759
    %v2761 = vpop.f32.mrb[0].mxu0
    %2762 = vmatprep.mubr.bf16.mxu0 0
    %2763 = vmatmul.mubr.bf16.gmra.mrb[0].mxu0 %v720
    %v2764 = vpop.f32.mrb[0].mxu0
    %v2765 = vadd.f32 %v2476, %v2764
    %v2766 = vpop.f32.mrb[0].mxu0
    %v2767 = vpop.f32.mrb[0].mxu0
    %v2768 = vadd.f32 %v2479, %v2767
    %v2769 = vpop.f32.mrb[0].mxu0
    %2770 = vmatprep.mubr.bf16.mxu0 0
    %2771 = vmatmul.mubr.bf16.gmra.mrb[0].mxu0 %v729
    %v2772 = vpop.f32.mrb[0].mxu0
    %v2773 = vadd.f32 %v2484, %v2772
    %v2774 = vpop.f32.mrb[0].mxu0
    %v2775 = vpop.f32.mrb[0].mxu0
    %v2776 = vadd.f32 %v2487, %v2775
    %v2777 = vpop.f32.mrb[0].mxu0
    %2778 = vmatprep.mubr.bf16.mxu0 0
    %2779 = vmatmul.mubr.bf16.gmra.mrb[0].mxu0 %v738
    %v2780 = vpop.f32.mrb[0].mxu0
    %v2781 = vadd.f32 %v2492, %v2780
    %v2782 = vpop.f32.mrb[0].mxu0
    %v2783 = vpop.f32.mrb[0].mxu0
    %v2784 = vadd.f32 %v2495, %v2783
    %v2785 = vpop.f32.mrb[0].mxu0
    %2786 = vmatprep.mubr.bf16.mxu0 0
    %2787 = vmatmul.mubr.bf16.gmra.mrb[0].mxu0 %v747
    %v2788 = vpop.f32.mrb[0].mxu0
    %v2789 = vadd.f32 %v2500, %v2788
    %v2790 = vpop.f32.mrb[0].mxu0
    %v2791 = vpop.f32.mrb[0].mxu0
    %v2792 = vadd.f32 %v2503, %v2791
    %v2793 = vpop.f32.mrb[0].mxu0
    %2794 = vmatprep.mubr.bf16.mxu0 0
    %2795 = vmatmul.mubr.bf16.gmra.mrb[0].mxu0 %v756
    %v2796 = vpop.f32.mrb[0].mxu0
    %v2797 = vadd.f32 %v2508, %v2796
    %v2798 = vpop.f32.mrb[0].mxu0
    %v2799 = vpop.f32.mrb[0].mxu0
    %v2800 = vadd.f32 %v2511, %v2799
    %v2801 = vpop.f32.mrb[0].mxu0
    %2802 = vmatprep.mubr.bf16.mxu0 0
    %2803 = vmatmul.mubr.bf16.gmra.mrb[0].mxu0 %v765
    %v2804 = vpop.f32.mrb[0].mxu0
    %v2805 = vadd.f32 %v2516, %v2804
    %v2806 = vpop.f32.mrb[0].mxu0
    %v2807 = vpop.f32.mrb[0].mxu0
    %v2808 = vadd.f32 %v2519, %v2807
    %v2809 = vpop.f32.mrb[0].mxu0
    %2810 = vmatprep.mubr.bf16.mxu0 0
    %2811 = vmatmul.mubr.bf16.gmra.mrb[0].mxu0 %v774
    %v2812 = vpop.f32.mrb[0].mxu0
    %v2813 = vadd.f32 %v2524, %v2812
    %v2814 = vpop.f32.mrb[0].mxu0
    %v2815 = vpop.f32.mrb[0].mxu0
    %v2816 = vadd.f32 %v2527, %v2815
    %v2817 = vpop.f32.mrb[0].mxu0
    %2818 = vmatprep.mubr.bf16.mxu0 0
    %2819 = vmatmul.mubr.bf16.gmra.mrb[0].mxu0 %v783
    %v2820 = vpop.f32.mrb[0].mxu0
    %v2821 = vadd.f32 %v2532, %v2820
    %v2822 = vpop.f32.mrb[0].mxu0
    %v2823 = vpop.f32.mrb[0].mxu0
    %v2824 = vadd.f32 %v2535, %v2823
    %v2825 = vpop.f32.mrb[0].mxu0
    %2826 = vmatprep.mubr.bf16.mxu0 0
    %2827 = vmatmul.mubr.bf16.gmra.mrb[0].mxu0 %v792
    %v2828 = vpop.f32.mrb[0].mxu0
    %v2829 = vadd.f32 %v2540, %v2828
    %v2830 = vpop.f32.mrb[0].mxu0
    %v2831 = vpop.f32.mrb[0].mxu0
    %v2832 = vadd.f32 %v2543, %v2831
    %v2833 = vpop.f32.mrb[0].mxu0
    %2834 = vmatprep.mubr.bf16.mxu0 0
    %2835 = vmatmul.mubr.bf16.gmra.mrb[0].mxu0 %v801
    %v2836 = vpop.f32.mrb[0].mxu0
    %v2837 = vadd.f32 %v2548, %v2836
    %v2838 = vpop.f32.mrb[0].mxu0
    %v2839 = vpop.f32.mrb[0].mxu0
    %v2840 = vadd.f32 %v2551, %v2839
    %v2841 = vpop.f32.mrb[0].mxu0
    %2842 = vmatprep.mubr.bf16.mxu0 0
    %2843 = vmatmul.mubr.bf16.gmra.mrb[0].mxu0 %v810
    %v2844 = vpop.f32.mrb[0].mxu0
    %v2845 = vadd.f32 %v2556, %v2844
    %v2846 = vpop.f32.mrb[0].mxu0
    %v2847 = vpop.f32.mrb[0].mxu0
    %v2848 = vadd.f32 %v2559, %v2847
    %v2849 = vpop.f32.mrb[0].mxu0
    %2850 = vmatprep.mubr.bf16.mxu0 0
    %2851 = vmatmul.mubr.bf16.gmra.mrb[0].mxu0 %v819
    %v2852 = vpop.f32.mrb[0].mxu0
    %v2853 = vadd.f32 %v2564, %v2852
    %v2854 = vpop.f32.mrb[0].mxu0
    %v2855 = vpop.f32.mrb[0].mxu0
    %v2856 = vadd.f32 %v2567, %v2855
    %v2857 = vpop.f32.mrb[0].mxu0
    %2858 = vmatprep.mubr.bf16.mxu0 0
    %2859 = vmatmul.mubr.bf16.gmra.mrb[0].mxu0 %v828
    %v2860 = vpop.f32.mrb[0].mxu0
    %v2861 = vadd.f32 %v2572, %v2860
    %v2862 = vpop.f32.mrb[0].mxu0
    %v2863 = vpop.f32.mrb[0].mxu0
    %v2864 = vadd.f32 %v2575, %v2863
    %v2865 = vpop.f32.mrb[0].mxu0
    %2866 = vmatprep.mubr.bf16.mxu0 0
    %2867 = vmatmul.mubr.bf16.gmra.mrb[0].mxu0 %v837
    %v2868 = vpop.f32.mrb[0].mxu0
    %v2869 = vadd.f32 %v2580, %v2868
    %v2870 = vpop.f32.mrb[0].mxu0
    %v2871 = vpop.f32.mrb[0].mxu0
    %v2872 = vadd.f32 %v2583, %v2871
    %v2873 = vpop.f32.mrb[0].mxu0
    %2874 = vmatprep.mubr.bf16.mxu0 0
    %2875 = vmatmul.mubr.bf16.gmra.mrb[0].mxu0 %v846
    %v2876 = vpop.f32.mrb[0].mxu0
    %v2877 = vadd.f32 %v2588, %v2876
    %v2878 = vpop.f32.mrb[0].mxu0
    %v2879 = vpop.f32.mrb[0].mxu0
    %v2880 = vadd.f32 %v2591, %v2879
    %v2881 = vpop.f32.mrb[0].mxu0
    %2882 = vmatprep.mubr.bf16.mxu0 0
    %2883 = vmatmul.mubr.bf16.gmra.mrb[0].mxu0 %v855
    %v2884 = vpop.f32.mrb[0].mxu0
    %v2885 = vadd.f32 %v2596, %v2884
    %v2886 = vpop.f32.mrb[0].mxu0
    %v2887 = vpop.f32.mrb[0].mxu0
    %v2888 = vadd.f32 %v2599, %v2887
    %v2889 = vpop.f32.mrb[0].mxu0
    %2890 = vmatprep.mubr.bf16.mxu0 0
    %2891 = vmatmul.mubr.bf16.gmra.mrb[0].mxu0 %v864
    %v2892 = vpop.f32.mrb[0].mxu0
    %v2893 = vadd.f32 %v2604, %v2892
    %v2894 = vpop.f32.mrb[0].mxu0
    %v2895 = vpop.f32.mrb[0].mxu0
    %v2896 = vadd.f32 %v2607, %v2895
    %v2897 = vpop.f32.mrb[0].mxu0
    %2898 = vmatprep.mubr.bf16.mxu0 0
    %2899 = vmatmul.mubr.bf16.gmra.mrb[0].mxu0 %v873
    %v2900 = vpop.f32.mrb[0].mxu0
    %v2901 = vadd.f32 %v2612, %v2900
    %v2902 = vpop.f32.mrb[0].mxu0
    %v2903 = vpop.f32.mrb[0].mxu0
    %v2904 = vadd.f32 %v2615, %v2903
    %v2905 = vpop.f32.mrb[0].mxu0
    %2906 = vmatprep.mubr.bf16.mxu0 0
    %2907 = vmatmul.mubr.bf16.gmra.mrb[0].mxu0 %v882
    %v2908 = vpop.f32.mrb[0].mxu0
    %v2909 = vadd.f32 %v2620, %v2908
    %v2910 = vpop.f32.mrb[0].mxu0
    %v2911 = vpop.f32.mrb[0].mxu0
    %v2912 = vadd.f32 %v2623, %v2911
    %v2913 = vpop.f32.mrb[0].mxu0
    %2914 = vmatprep.mubr.bf16.mxu0 0
    %2915 = vmatmul.mubr.bf16.gmra.mrb[0].mxu0 %v891
    %v2916 = vpop.f32.mrb[0].mxu0
    %v2917 = vadd.f32 %v2628, %v2916
    %v2918 = vpop.f32.mrb[0].mxu0
    %v2919 = vpop.f32.mrb[0].mxu0
    %v2920 = vadd.f32 %v2631, %v2919
    %v2921 = vpop.f32.mrb[0].mxu0
    %2922 = vmatprep.mubr.bf16.mxu0 0
    %2923 = vmatmul.mubr.bf16.gmra.mrb[0].mxu0 %v900
    %v2924 = vpop.f32.mrb[0].mxu0
    %v2925 = vadd.f32 %v2636, %v2924
    %v2926 = vpop.f32.mrb[0].mxu0
    %v2927 = vpop.f32.mrb[0].mxu0
    %v2928 = vadd.f32 %v2639, %v2927
    %v2929 = vpop.f32.mrb[0].mxu0
    %2930 = vmatprep.mubr.bf16.mxu0 0
    %2931 = vmatmul.mubr.bf16.gmra.mrb[0].mxu0 %v909
    %v2932 = vpop.f32.mrb[0].mxu0
    %v2933 = vadd.f32 %v2644, %v2932
    %v2934 = vpop.f32.mrb[0].mxu0
    %v2935 = vpop.f32.mrb[0].mxu0
    %v2936 = vadd.f32 %v2647, %v2935
    %v2937 = vpop.f32.mrb[0].mxu0
    %2938 = vmatprep.mubr.bf16.mxu0 0
    %2939 = vmatmul.mubr.bf16.gmra.mrb[0].mxu0 %v918
    %v2940 = vpop.f32.mrb[0].mxu0
    %v2941 = vadd.f32 %v2652, %v2940
    %v2942 = vpop.f32.mrb[0].mxu0
    %v2943 = vpop.f32.mrb[0].mxu0
    %v2944 = vadd.f32 %v2655, %v2943
    %v2945 = vpop.f32.mrb[0].mxu0
    %2946 = vdwg.mxu0
    %2947 = vst [vmem:[#allocation8] sm:$0xff] %v2693
    %2948 = vst [vmem:[#allocation8 + $0x8] sm:$0xff] %v2696
    %2949 = vst [vmem:[#allocation8 + $0x10] sm:$0xff] %v2701
    %2950 = vst [vmem:[#allocation8 + $0x18] sm:$0xff] %v2704
    %2951 = vst [vmem:[#allocation8 + $0x20] sm:$0xff] %v2709
    %2952 = vst [vmem:[#allocation8 + $0x28] sm:$0xff] %v2712
    %2953 = vst [vmem:[#allocation8 + $0x30] sm:$0xff] %v2717
    %2954 = vst [vmem:[#allocation8 + $0x38] sm:$0xff] %v2720
    %2955 = vst [vmem:[#allocation8 + $0x40] sm:$0xff] %v2725
    %2956 = vst [vmem:[#allocation8 + $0x48] sm:$0xff] %v2728
    %2957 = vst [vmem:[#allocation8 + $0x50] sm:$0xff] %v2733
    %2958 = vst [vmem:[#allocation8 + $0x58] sm:$0xff] %v2736
    %2959 = vst [vmem:[#allocation8 + $0x60] sm:$0xff] %v2741
    %2960 = vst [vmem:[#allocation8 + $0x68] sm:$0xff] %v2744
    %2961 = vst [vmem:[#allocation8 + $0x70] sm:$0xff] %v2749
    %2962 = vst [vmem:[#allocation8 + $0x78] sm:$0xff] %v2752
    %2963 = vst [vmem:[#allocation8 + $0x80] sm:$0xff] %v2757
    %2964 = vst [vmem:[#allocation8 + $0x88] sm:$0xff] %v2760
    %2965 = vst [vmem:[#allocation8 + $0x90] sm:$0xff] %v2765
    %2966 = vst [vmem:[#allocation8 + $0x98] sm:$0xff] %v2768
    %2967 = vst [vmem:[#allocation8 + $0xa0] sm:$0xff] %v2773
    %2968 = vst [vmem:[#allocation8 + $0xa8] sm:$0xff] %v2776
    %2969 = vst [vmem:[#allocation8 + $0xb0] sm:$0xff] %v2781
    %2970 = vst [vmem:[#allocation8 + $0xb8] sm:$0xff] %v2784
    %2971 = vst [vmem:[#allocation8 + $0xc0] sm:$0xff] %v2789
    %2972 = vst [vmem:[#allocation8 + $0xc8] sm:$0xff] %v2792
    %2973 = vst [vmem:[#allocation8 + $0xd0] sm:$0xff] %v2797
    %2974 = vst [vmem:[#allocation8 + $0xd8] sm:$0xff] %v2800
    %2975 = vst [vmem:[#allocation8 + $0xe0] sm:$0xff] %v2805
    %2976 = vst [vmem:[#allocation8 + $0xe8] sm:$0xff] %v2808
    %2977 = vst [vmem:[#allocation8 + $0xf0] sm:$0xff] %v2813
    %2978 = vst [vmem:[#allocation8 + $0xf8] sm:$0xff] %v2816
    %2979 = vst [vmem:[#allocation8 + $0x100] sm:$0xff] %v2821
    %2980 = vst [vmem:[#allocation8 + $0x108] sm:$0xff] %v2824
    %2981 = vst [vmem:[#allocation8 + $0x110] sm:$0xff] %v2829
    %2982 = vst [vmem:[#allocation8 + $0x118] sm:$0xff] %v2832
    %2983 = vst [vmem:[#allocation8 + $0x120] sm:$0xff] %v2837
    %2984 = vst [vmem:[#allocation8 + $0x128] sm:$0xff] %v2840
    %2985 = vst [vmem:[#allocation8 + $0x130] sm:$0xff] %v2845
    %2986 = vst [vmem:[#allocation8 + $0x138] sm:$0xff] %v2848
    %2987 = vst [vmem:[#allocation8 + $0x140] sm:$0xff] %v2853
    %2988 = vst [vmem:[#allocation8 + $0x148] sm:$0xff] %v2856
    %2989 = vst [vmem:[#allocation8 + $0x150] sm:$0xff] %v2861
    %2990 = vst [vmem:[#allocation8 + $0x158] sm:$0xff] %v2864
    %2991 = vst [vmem:[#allocation8 + $0x160] sm:$0xff] %v2869
    %2992 = vst [vmem:[#allocation8 + $0x168] sm:$0xff] %v2872
    %2993 = vst [vmem:[#allocation8 + $0x170] sm:$0xff] %v2877
    %2994 = vst [vmem:[#allocation8 + $0x178] sm:$0xff] %v2880
    %2995 = vst [vmem:[#allocation8 + $0x180] sm:$0xff] %v2885
    %2996 = vst [vmem:[#allocation8 + $0x188] sm:$0xff] %v2888
    %2997 = vst [vmem:[#allocation8 + $0x190] sm:$0xff] %v2893
    %2998 = vst [vmem:[#allocation8 + $0x198] sm:$0xff] %v2896
    %2999 = vst [vmem:[#allocation8 + $0x1a0] sm:$0xff] %v2901
    %3000 = vst [vmem:[#allocation8 + $0x1a8] sm:$0xff] %v2904
    %3001 = vst [vmem:[#allocation8 + $0x1b0] sm:$0xff] %v2909
    %3002 = vst [vmem:[#allocation8 + $0x1b8] sm:$0xff] %v2912
    %3003 = vst [vmem:[#allocation8 + $0x1c0] sm:$0xff] %v2917
    %3004 = vst [vmem:[#allocation8 + $0x1c8] sm:$0xff] %v2920
    %3005 = vst [vmem:[#allocation8 + $0x1d0] sm:$0xff] %v2925
    %3006 = vst [vmem:[#allocation8 + $0x1d8] sm:$0xff] %v2928
    %3007 = vst [vmem:[#allocation8 + $0x1e0] sm:$0xff] %v2933
    %3008 = vst [vmem:[#allocation8 + $0x1e8] sm:$0xff] %v2936
    %3009 = vst [vmem:[#allocation8 + $0x1f0] sm:$0xff] %v2941
    %3010 = vst [vmem:[#allocation8 + $0x1f8] sm:$0xff] %v2944
    // Predicated region
    $region26: #{_lambda_.12} parent=1 // pred_check
      _
    $region27: #{_lambda_.12} parent=1 // pred_check_branch
      %3012 = sbr.rel (0) target = $region29
    $region28: #{_lambda_.12} parent=1 // pred_region
      %s3014 = ssub.s32 8192, 8192
      %3015 = vsyncadd [#allocation4], %s3014
      %s3016 = sshll.u32 [#allocation8], 4
      %s3017 = int_to_ptr.vmem [resolvable:$true] %s3016
      %3022 = dma.vmem_to_hbm [thread:$0]  %s3017, 8192, %s3, [#allocation4], 128, 128, 8
    $region29: #{_lambda_.12} parent=1 // pred_fallthru
      _
    // Predicated region
    $region30: #{_lambda_.12} parent=1 // pred_check
      _
    $region31: #{_lambda_.12} parent=1 // pred_check_branch
      %3024 = sbr.rel (0) target = $region33
    $region32: #{_lambda_.12} parent=1 // pred_region
      %3025 = dma.done [#allocation4], 8192
    $region33: #{_lambda_.12} parent=1 // pred_fallthru
      _
    %3026 = vsyncpa [#allocation3], 1
    %3027 = vsyncpa [#allocation6], 1
    %3028 = vsyncpa [#allocation4], 1

// kernel: _lambda_.15
$region0: #{_lambda_.15}
  #allocation0 [shape = 'u32[]', space=smem, size = 0x4, offset = 0x4, fixed_abs, tag = 'smem constant byte address 0x4 - core index']
  #allocation1 [shape = 'u32[144,128]{1,0:T(1,128)}', space=vmem, size = 0x12000, scoped, tag = 'internal scratch']
  %s0 = inlined_call_operand.hbm [shape: f32[8,1152], index: 0, kind: input, shape index: {}]
  %s1 = inlined_call_operand.hbm [shape: bf16[1152,128], index: 1, kind: input, shape index: {}]
  %s2 = inlined_call_operand.hbm [shape: f32[1,128], index: 2, kind: input, shape index: {}]
  %s3 = inlined_call_operand.hbm [shape: f32[8,128], index: 3, kind: output, shape index: {}]
  %s4 = sld [smem:[#allocation0]]
  $region34: #{_lambda_.15} parent=0
    _
  %s6 = ssub.s32 1, %s4
  %s7 = scalar_select 0, %s6, %s4
  $region1: #{_lambda_.15} parent=0
    #allocation2 [shape = 'u8[36864]{0}', space=vmem, size = 0x9000, scoped, tag = 'input window, operand 0, single buffered']
    #allocation3 [shape = 's32[1]{0}', space=sflag, size = 0x4, scoped, tag = 'scoped memory for _lambda_.15']
    #allocation4 [shape = 's32[1]{0}', space=sflag, size = 0x4, scoped, tag = 'scoped memory for _lambda_.15']
    #allocation5 [shape = 'u8[294912]{0}', space=vmem, size = 0x48000, scoped, tag = 'input window, operand 1, single buffered']
    #allocation6 [shape = 's32[1]{0}', space=sflag, size = 0x4, scoped, tag = 'scoped memory for _lambda_.15']
    #allocation7 [shape = 'u8[512]{0}', space=vmem, size = 0x400, scoped, tag = 'input window, operand 2, single buffered']
    #allocation8 [shape = 'u8[4096]{0}', space=vmem, size = 0x1000, scoped, tag = 'output window, operand 0, single buffered']
    %8 = vsyncpa [#allocation3], 0
    %9 = vsyncpa [#allocation6], 0
    %10 = vsyncpa [#allocation4], 0
    // Predicated region
    $region2: #{_lambda_.15} parent=1 // pred_check
      _
    $region3: #{_lambda_.15} parent=1 // pred_check_branch
      %12 = sbr.rel (0) target = $region5
    $region4: #{_lambda_.15} parent=1 // pred_region
      %s14 = ssub.s32 1152, 1152
      %15 = vsyncadd [#allocation3], %s14
      %s17 = sshll.u32 [#allocation2], 4
      %s18 = int_to_ptr.vmem [resolvable:$true] %s17
      %20 = dma.hbm_to_vmem [thread:$0]  %s0, 1152, %s18, [#allocation3]
    $region5: #{_lambda_.15} parent=1 // pred_fallthru
      _
    // Predicated region
    $region6: #{_lambda_.15} parent=1 // pred_check
      _
    $region7: #{_lambda_.15} parent=1 // pred_check_branch
      %22 = sbr.rel (0) target = $region9
    $region8: #{_lambda_.15} parent=1 // pred_region
      %s24 = ssub.s32 9216, 9216
      %25 = vsyncadd [#allocation6], %s24
      %s26 = sshll.u32 [#allocation5], 4
      %s27 = int_to_ptr.vmem [resolvable:$true] %s26
      %32 = dma.hbm_to_vmem [thread:$0]  %s1, 9216, %s27, [#allocation6], 64, 64, 4
    $region9: #{_lambda_.15} parent=1 // pred_fallthru
      _
    // Predicated region
    $region10: #{_lambda_.15} parent=1 // pred_check
      _
    $region11: #{_lambda_.15} parent=1 // pred_check_branch
      %34 = sbr.rel (0) target = $region13
    $region12: #{_lambda_.15} parent=1 // pred_region
      %s36 = ssub.s32 16, 16
      %37 = vsyncadd [#allocation6], %s36
      %s39 = sshll.u32 [#allocation7], 4
      %s40 = int_to_ptr.vmem [resolvable:$true] %s39
      %42 = dma.hbm_to_vmem [thread:$0]  %s2, 16, %s40, [#allocation6]
    $region13: #{_lambda_.15} parent=1 // pred_fallthru
      _
    // Predicated region
    $region14: #{_lambda_.15} parent=1 // pred_check
      _
    $region15: #{_lambda_.15} parent=1 // pred_check_branch
      %44 = sbr.rel (0) target = $region17
    $region16: #{_lambda_.15} parent=1 // pred_region
      %45 = dma.done [#allocation3], 1152
    $region17: #{_lambda_.15} parent=1 // pred_fallthru
      _
    // Predicated region
    $region18: #{_lambda_.15} parent=1 // pred_check
      _
    $region19: #{_lambda_.15} parent=1 // pred_check_branch
      %47 = sbr.rel (0) target = $region21
    $region20: #{_lambda_.15} parent=1 // pred_region
      %48 = dma.done [#allocation6], 9216
    $region21: #{_lambda_.15} parent=1 // pred_fallthru
      _
    // Predicated region
    $region22: #{_lambda_.15} parent=1 // pred_check
      _
    $region23: #{_lambda_.15} parent=1 // pred_check_branch
      %50 = sbr.rel (0) target = $region25
    $region24: #{_lambda_.15} parent=1 // pred_region
      %51 = dma.done [#allocation6], 16
    $region25: #{_lambda_.15} parent=1 // pred_fallthru
      _
    %v53 = vld [vmem:[#allocation2] sm:$0xff]
    %v54 = vld [vmem:[#allocation2 + $0x8] sm:$0xff]
    %v55 = vld [vmem:[#allocation2 + $0x10] sm:$0xff]
    %v56 = vld [vmem:[#allocation2 + $0x18] sm:$0xff]
    %v57 = vld [vmem:[#allocation2 + $0x20] sm:$0xff]
    %v58 = vld [vmem:[#allocation2 + $0x28] sm:$0xff]
    %v59 = vld [vmem:[#allocation2 + $0x30] sm:$0xff]
    %v60 = vld [vmem:[#allocation2 + $0x38] sm:$0xff]
    %v61 = vld [vmem:[#allocation2 + $0x40] sm:$0xff]
    %v62 = vpack.c.bf16 %v53, %v53
    %v63 = vpack.c.bf16 %v54, %v54
    %v64 = vpack.c.bf16 %v55, %v55
    %v65 = vpack.c.bf16 %v56, %v56
    %v66 = vpack.c.bf16 %v57, %v57
    %v67 = vpack.c.bf16 %v58, %v58
    %v68 = vpack.c.bf16 %v59, %v59
    %v69 = vpack.c.bf16 %v60, %v60
    %v70 = vpack.c.bf16 %v61, %v61
    %v71 = vld [vmem:[#allocation5] sm:$0xf]
    %v72 = vld [vmem:[#allocation5 + $0x4] sm:$0xf]
    %v73 = vld [vmem:[#allocation5 + $0x8] sm:$0xf]
    %v74 = vld [vmem:[#allocation5 + $0xc] sm:$0xf]
    %v75 = vld [vmem:[#allocation5 + $0x10] sm:$0xf]
    %v76 = vld [vmem:[#allocation5 + $0x14] sm:$0xf]
    %v77 = vld [vmem:[#allocation5 + $0x18] sm:$0xf]
    %v78 = vld [vmem:[#allocation5 + $0x1c] sm:$0xf]
    %v79 = vld [vmem:[#allocation5 + $0x20] sm:$0xf]
    %v80 = vld [vmem:[#allocation5 + $0x24] sm:$0xf]
    %v81 = vld [vmem:[#allocation5 + $0x28] sm:$0xf]
    %v82 = vld [vmem:[#allocation5 + $0x2c] sm:$0xf]
    %v83 = vld [vmem:[#allocation5 + $0x30] sm:$0xf]
    %v84 = vld [vmem:[#allocation5 + $0x34] sm:$0xf]
    %v85 = vld [vmem:[#allocation5 + $0x38] sm:$0xf]
    %v86 = vld [vmem:[#allocation5 + $0x3c] sm:$0xf]
    %v87 = vld [vmem:[#allocation5 + $0x40] sm:$0xf]
    %v88 = vld [vmem:[#allocation5 + $0x44] sm:$0xf]
    %v89 = vld [vmem:[#allocation5 + $0x48] sm:$0xf]
    %v90 = vld [vmem:[#allocation5 + $0x4c] sm:$0xf]
    %v91 = vld [vmem:[#allocation5 + $0x50] sm:$0xf]
    %v92 = vld [vmem:[#allocation5 + $0x54] sm:$0xf]
    %v93 = vld [vmem:[#allocation5 + $0x58] sm:$0xf]
    %v94 = vld [vmem:[#allocation5 + $0x5c] sm:$0xf]
    %v95 = vld [vmem:[#allocation5 + $0x60] sm:$0xf]
    %v96 = vld [vmem:[#allocation5 + $0x64] sm:$0xf]
    %v97 = vld [vmem:[#allocation5 + $0x68] sm:$0xf]
    %v98 = vld [vmem:[#allocation5 + $0x6c] sm:$0xf]
    %v99 = vld [vmem:[#allocation5 + $0x70] sm:$0xf]
    %v100 = vld [vmem:[#allocation5 + $0x74] sm:$0xf]
    %v101 = vld [vmem:[#allocation5 + $0x78] sm:$0xf]
    %v102 = vld [vmem:[#allocation5 + $0x7c] sm:$0xf]
    %v103 = vld [vmem:[#allocation5 + $0x80] sm:$0xf]
    %v104 = vld [vmem:[#allocation5 + $0x84] sm:$0xf]
    %v105 = vld [vmem:[#allocation5 + $0x88] sm:$0xf]
    %v106 = vld [vmem:[#allocation5 + $0x8c] sm:$0xf]
    %v107 = vld [vmem:[#allocation5 + $0x90] sm:$0xf]
    %v108 = vld [vmem:[#allocation5 + $0x94] sm:$0xf]
    %v109 = vld [vmem:[#allocation5 + $0x98] sm:$0xf]
    %v110 = vld [vmem:[#allocation5 + $0x9c] sm:$0xf]
    %v111 = vld [vmem:[#allocation5 + $0xa0] sm:$0xf]
    %v112 = vld [vmem:[#allocation5 + $0xa4] sm:$0xf]
    %v113 = vld [vmem:[#allocation5 + $0xa8] sm:$0xf]
    %v114 = vld [vmem:[#allocation5 + $0xac] sm:$0xf]
    %v115 = vld [vmem:[#allocation5 + $0xb0] sm:$0xf]
    %v116 = vld [vmem:[#allocation5 + $0xb4] sm:$0xf]
    %v117 = vld [vmem:[#allocation5 + $0xb8] sm:$0xf]
    %v118 = vld [vmem:[#allocation5 + $0xbc] sm:$0xf]
    %v119 = vld [vmem:[#allocation5 + $0xc0] sm:$0xf]
    %v120 = vld [vmem:[#allocation5 + $0xc4] sm:$0xf]
    %v121 = vld [vmem:[#allocation5 + $0xc8] sm:$0xf]
    %v122 = vld [vmem:[#allocation5 + $0xcc] sm:$0xf]
    %v123 = vld [vmem:[#allocation5 + $0xd0] sm:$0xf]
    %v124 = vld [vmem:[#allocation5 + $0xd4] sm:$0xf]
    %v125 = vld [vmem:[#allocation5 + $0xd8] sm:$0xf]
    %v126 = vld [vmem:[#allocation5 + $0xdc] sm:$0xf]
    %v127 = vld [vmem:[#allocation5 + $0xe0] sm:$0xf]
    %v128 = vld [vmem:[#allocation5 + $0xe4] sm:$0xf]
    %v129 = vld [vmem:[#allocation5 + $0xe8] sm:$0xf]
    %v130 = vld [vmem:[#allocation5 + $0xec] sm:$0xf]
    %v131 = vld [vmem:[#allocation5 + $0xf0] sm:$0xf]
    %v132 = vld [vmem:[#allocation5 + $0xf4] sm:$0xf]
    %v133 = vld [vmem:[#allocation5 + $0xf8] sm:$0xf]
    %v134 = vld [vmem:[#allocation5 + $0xfc] sm:$0xf]
    %v135 = vld [vmem:[#allocation5 + $0x100] sm:$0xf]
    %v136 = vld [vmem:[#allocation5 + $0x104] sm:$0xf]
    %v137 = vld [vmem:[#allocation5 + $0x108] sm:$0xf]
    %v138 = vld [vmem:[#allocation5 + $0x10c] sm:$0xf]
    %v139 = vld [vmem:[#allocation5 + $0x110] sm:$0xf]
    %v140 = vld [vmem:[#allocation5 + $0x114] sm:$0xf]
    %v141 = vld [vmem:[#allocation5 + $0x118] sm:$0xf]
    %v142 = vld [vmem:[#allocation5 + $0x11c] sm:$0xf]
    %v143 = vld [vmem:[#allocation5 + $0x120] sm:$0xf]
    %v144 = vld [vmem:[#allocation5 + $0x124] sm:$0xf]
    %v145 = vld [vmem:[#allocation5 + $0x128] sm:$0xf]
    %v146 = vld [vmem:[#allocation5 + $0x12c] sm:$0xf]
    %v147 = vld [vmem:[#allocation5 + $0x130] sm:$0xf]
    %v148 = vld [vmem:[#allocation5 + $0x134] sm:$0xf]
    %v149 = vld [vmem:[#allocation5 + $0x138] sm:$0xf]
    %v150 = vld [vmem:[#allocation5 + $0x13c] sm:$0xf]
    %v151 = vld [vmem:[#allocation5 + $0x140] sm:$0xf]
    %v152 = vld [vmem:[#allocation5 + $0x144] sm:$0xf]
    %v153 = vld [vmem:[#allocation5 + $0x148] sm:$0xf]
    %v154 = vld [vmem:[#allocation5 + $0x14c] sm:$0xf]
    %v155 = vld [vmem:[#allocation5 + $0x150] sm:$0xf]
    %v156 = vld [vmem:[#allocation5 + $0x154] sm:$0xf]
    %v157 = vld [vmem:[#allocation5 + $0x158] sm:$0xf]
    %v158 = vld [vmem:[#allocation5 + $0x15c] sm:$0xf]
    %v159 = vld [vmem:[#allocation5 + $0x160] sm:$0xf]
    %v160 = vld [vmem:[#allocation5 + $0x164] sm:$0xf]
    %v161 = vld [vmem:[#allocation5 + $0x168] sm:$0xf]
    %v162 = vld [vmem:[#allocation5 + $0x16c] sm:$0xf]
    %v163 = vld [vmem:[#allocation5 + $0x170] sm:$0xf]
    %v164 = vld [vmem:[#allocation5 + $0x174] sm:$0xf]
    %v165 = vld [vmem:[#allocation5 + $0x178] sm:$0xf]
    %v166 = vld [vmem:[#allocation5 + $0x17c] sm:$0xf]
    %v167 = vld [vmem:[#allocation5 + $0x180] sm:$0xf]
    %v168 = vld [vmem:[#allocation5 + $0x184] sm:$0xf]
    %v169 = vld [vmem:[#allocation5 + $0x188] sm:$0xf]
    %v170 = vld [vmem:[#allocation5 + $0x18c] sm:$0xf]
    %v171 = vld [vmem:[#allocation5 + $0x190] sm:$0xf]
    %v172 = vld [vmem:[#allocation5 + $0x194] sm:$0xf]
    %v173 = vld [vmem:[#allocation5 + $0x198] sm:$0xf]
    %v174 = vld [vmem:[#allocation5 + $0x19c] sm:$0xf]
    %v175 = vld [vmem:[#allocation5 + $0x1a0] sm:$0xf]
    %v176 = vld [vmem:[#allocation5 + $0x1a4] sm:$0xf]
    %v177 = vld [vmem:[#allocation5 + $0x1a8] sm:$0xf]
    %v178 = vld [vmem:[#allocation5 + $0x1ac] sm:$0xf]
    %v179 = vld [vmem:[#allocation5 + $0x1b0] sm:$0xf]
    %v180 = vld [vmem:[#allocation5 + $0x1b4] sm:$0xf]
    %v181 = vld [vmem:[#allocation5 + $0x1b8] sm:$0xf]
    %v182 = vld [vmem:[#allocation5 + $0x1bc] sm:$0xf]
    %v183 = vld [vmem:[#allocation5 + $0x1c0] sm:$0xf]
    %v184 = vld [vmem:[#allocation5 + $0x1c4] sm:$0xf]
    %v185 = vld [vmem:[#allocation5 + $0x1c8] sm:$0xf]
    %v186 = vld [vmem:[#allocation5 + $0x1cc] sm:$0xf]
    %v187 = vld [vmem:[#allocation5 + $0x1d0] sm:$0xf]
    %v188 = vld [vmem:[#allocation5 + $0x1d4] sm:$0xf]
    %v189 = vld [vmem:[#allocation5 + $0x1d8] sm:$0xf]
    %v190 = vld [vmem:[#allocation5 + $0x1dc] sm:$0xf]
    %v191 = vld [vmem:[#allocation5 + $0x1e0] sm:$0xf]
    %v192 = vld [vmem:[#allocation5 + $0x1e4] sm:$0xf]
    %v193 = vld [vmem:[#allocation5 + $0x1e8] sm:$0xf]
    %v194 = vld [vmem:[#allocation5 + $0x1ec] sm:$0xf]
    %v195 = vld [vmem:[#allocation5 + $0x1f0] sm:$0xf]
    %v196 = vld [vmem:[#allocation5 + $0x1f4] sm:$0xf]
    %v197 = vld [vmem:[#allocation5 + $0x1f8] sm:$0xf]
    %v198 = vld [vmem:[#allocation5 + $0x1fc] sm:$0xf]
    %v199 = vld [vmem:[#allocation5 + $0x200] sm:$0xf]
    %v200 = vld [vmem:[#allocation5 + $0x204] sm:$0xf]
    %v201 = vld [vmem:[#allocation5 + $0x208] sm:$0xf]
    %v202 = vld [vmem:[#allocation5 + $0x20c] sm:$0xf]
    %v203 = vld [vmem:[#allocation5 + $0x210] sm:$0xf]
    %v204 = vld [vmem:[#allocation5 + $0x214] sm:$0xf]
    %v205 = vld [vmem:[#allocation5 + $0x218] sm:$0xf]
    %v206 = vld [vmem:[#allocation5 + $0x21c] sm:$0xf]
    %v207 = vld [vmem:[#allocation5 + $0x220] sm:$0xf]
    %v208 = vld [vmem:[#allocation5 + $0x224] sm:$0xf]
    %v209 = vld [vmem:[#allocation5 + $0x228] sm:$0xf]
    %v210 = vld [vmem:[#allocation5 + $0x22c] sm:$0xf]
    %v211 = vld [vmem:[#allocation5 + $0x230] sm:$0xf]
    %v212 = vld [vmem:[#allocation5 + $0x234] sm:$0xf]
    %v213 = vld [vmem:[#allocation5 + $0x238] sm:$0xf]
    %v214 = vld [vmem:[#allocation5 + $0x23c] sm:$0xf]
    %v215 = vld [vmem:[#allocation7] sm:$0x1]
    %v217 = vlaneseq
    %v218 = vshrl.u32 %v217, 7
    %v219 = vsub.s32 0, %v218
    %v220 = vrot.slane %v215, %v219
    %v366 = vunpack.c.l.b16 %v71
    %v367 = vunpack.c.l.b16 %v72
    %v368 = vunpack.c.l.b16 %v73
    %v369 = vunpack.c.l.b16 %v74
    %v370 = vunpack.c.l.b16 %v75
    %v371 = vunpack.c.l.b16 %v76
    %v372 = vunpack.c.l.b16 %v77
    %v373 = vunpack.c.l.b16 %v78
    %v374 = vunpack.c.l.b16 %v79
    %v375 = vunpack.c.l.b16 %v80
    %v376 = vunpack.c.l.b16 %v81
    %v377 = vunpack.c.l.b16 %v82
    %v378 = vunpack.c.l.b16 %v83
    %v379 = vunpack.c.l.b16 %v84
    %v380 = vunpack.c.l.b16 %v85
    %v381 = vunpack.c.l.b16 %v86
    %v382 = vunpack.c.l.b16 %v87
    %v383 = vunpack.c.l.b16 %v88
    %v384 = vunpack.c.l.b16 %v89
    %v385 = vunpack.c.l.b16 %v90
    %v386 = vunpack.c.l.b16 %v91
    %v387 = vunpack.c.l.b16 %v92
    %v388 = vunpack.c.l.b16 %v93
    %v389 = vunpack.c.l.b16 %v94
    %v390 = vunpack.c.l.b16 %v95
    %v391 = vunpack.c.l.b16 %v96
    %v392 = vunpack.c.l.b16 %v97
    %v393 = vunpack.c.l.b16 %v98
    %v394 = vunpack.c.l.b16 %v99
    %v395 = vunpack.c.l.b16 %v100
    %v396 = vunpack.c.l.b16 %v101
    %v397 = vunpack.c.l.b16 %v102
    %v398 = vunpack.c.l.b16 %v103
    %v399 = vunpack.c.l.b16 %v104
    %v400 = vunpack.c.l.b16 %v105
    %v401 = vunpack.c.l.b16 %v106
    %v402 = vunpack.c.l.b16 %v107
    %v403 = vunpack.c.l.b16 %v108
    %v404 = vunpack.c.l.b16 %v109
    %v405 = vunpack.c.l.b16 %v110
    %v406 = vunpack.c.l.b16 %v111
    %v407 = vunpack.c.l.b16 %v112
    %v408 = vunpack.c.l.b16 %v113
    %v409 = vunpack.c.l.b16 %v114
    %v410 = vunpack.c.l.b16 %v115
    %v411 = vunpack.c.l.b16 %v116
    %v412 = vunpack.c.l.b16 %v117
    %v413 = vunpack.c.l.b16 %v118
    %v414 = vunpack.c.l.b16 %v119
    %v415 = vunpack.c.l.b16 %v120
    %v416 = vunpack.c.l.b16 %v121
    %v417 = vunpack.c.l.b16 %v122
    %v418 = vunpack.c.l.b16 %v123
    %v419 = vunpack.c.l.b16 %v124
    %v420 = vunpack.c.l.b16 %v125
    %v421 = vunpack.c.l.b16 %v126
    %v422 = vunpack.c.l.b16 %v127
    %v423 = vunpack.c.l.b16 %v128
    %v424 = vunpack.c.l.b16 %v129
    %v425 = vunpack.c.l.b16 %v130
    %v426 = vunpack.c.l.b16 %v131
    %v427 = vunpack.c.l.b16 %v132
    %v428 = vunpack.c.l.b16 %v133
    %v429 = vunpack.c.l.b16 %v134
    %v430 = vunpack.c.l.b16 %v135
    %v431 = vunpack.c.l.b16 %v136
    %v432 = vunpack.c.l.b16 %v137
    %v433 = vunpack.c.l.b16 %v138
    %v434 = vunpack.c.l.b16 %v139
    %v435 = vunpack.c.l.b16 %v140
    %v436 = vunpack.c.l.b16 %v141
    %v437 = vunpack.c.l.b16 %v142
    %v438 = vunpack.c.l.b16 %v143
    %v439 = vunpack.c.l.b16 %v144
    %v440 = vunpack.c.l.b16 %v145
    %v441 = vunpack.c.l.b16 %v146
    %v442 = vunpack.c.l.b16 %v147
    %v443 = vunpack.c.l.b16 %v148
    %v444 = vunpack.c.l.b16 %v149
    %v445 = vunpack.c.l.b16 %v150
    %v446 = vunpack.c.l.b16 %v151
    %v447 = vunpack.c.l.b16 %v152
    %v448 = vunpack.c.l.b16 %v153
    %v449 = vunpack.c.l.b16 %v154
    %v450 = vunpack.c.l.b16 %v155
    %v451 = vunpack.c.l.b16 %v156
    %v452 = vunpack.c.l.b16 %v157
    %v453 = vunpack.c.l.b16 %v158
    %v454 = vunpack.c.l.b16 %v159
    %v455 = vunpack.c.l.b16 %v160
    %v456 = vunpack.c.l.b16 %v161
    %v457 = vunpack.c.l.b16 %v162
    %v458 = vunpack.c.l.b16 %v163
    %v459 = vunpack.c.l.b16 %v164
    %v460 = vunpack.c.l.b16 %v165
    %v461 = vunpack.c.l.b16 %v166
    %v462 = vunpack.c.l.b16 %v167
    %v463 = vunpack.c.l.b16 %v168
    %v464 = vunpack.c.l.b16 %v169
    %v465 = vunpack.c.l.b16 %v170
    %v466 = vunpack.c.l.b16 %v171
    %v467 = vunpack.c.l.b16 %v172
    %v468 = vunpack.c.l.b16 %v173
    %v469 = vunpack.c.l.b16 %v174
    %v470 = vunpack.c.l.b16 %v175
    %v471 = vunpack.c.l.b16 %v176
    %v472 = vunpack.c.l.b16 %v177
    %v473 = vunpack.c.l.b16 %v178
    %v474 = vunpack.c.l.b16 %v179
    %v475 = vunpack.c.l.b16 %v180
    %v476 = vunpack.c.l.b16 %v181
    %v477 = vunpack.c.l.b16 %v182
    %v478 = vunpack.c.l.b16 %v183
    %v479 = vunpack.c.l.b16 %v184
    %v480 = vunpack.c.l.b16 %v185
    %v481 = vunpack.c.l.b16 %v186
    %v482 = vunpack.c.l.b16 %v187
    %v483 = vunpack.c.l.b16 %v188
    %v484 = vunpack.c.l.b16 %v189
    %v485 = vunpack.c.l.b16 %v190
    %v486 = vunpack.c.l.b16 %v191
    %v487 = vunpack.c.l.b16 %v192
    %v488 = vunpack.c.l.b16 %v193
    %v489 = vunpack.c.l.b16 %v194
    %v490 = vunpack.c.l.b16 %v195
    %v491 = vunpack.c.l.b16 %v196
    %v492 = vunpack.c.l.b16 %v197
    %v493 = vunpack.c.l.b16 %v198
    %v494 = vunpack.c.l.b16 %v199
    %v495 = vunpack.c.l.b16 %v200
    %v496 = vunpack.c.l.b16 %v201
    %v497 = vunpack.c.l.b16 %v202
    %v498 = vunpack.c.l.b16 %v203
    %v499 = vunpack.c.l.b16 %v204
    %v500 = vunpack.c.l.b16 %v205
    %v501 = vunpack.c.l.b16 %v206
    %v502 = vunpack.c.l.b16 %v207
    %v503 = vunpack.c.l.b16 %v208
    %v504 = vunpack.c.l.b16 %v209
    %v505 = vunpack.c.l.b16 %v210
    %v506 = vunpack.c.l.b16 %v211
    %v507 = vunpack.c.l.b16 %v212
    %v508 = vunpack.c.l.b16 %v213
    %v509 = vunpack.c.l.b16 %v214
    %v510 = vpack.c.b16 %v367, %v366
    %v511 = vpack.c.b16 %v369, %v368
    %v512 = vpack.c.b16 %v371, %v370
    %v513 = vpack.c.b16 %v373, %v372
    %v514 = vpack.c.b16 %v375, %v374
    %v515 = vpack.c.b16 %v377, %v376
    %v516 = vpack.c.b16 %v379, %v378
    %v517 = vpack.c.b16 %v381, %v380
    %v518 = vpack.c.b16 %v383, %v382
    %v519 = vpack.c.b16 %v385, %v384
    %v520 = vpack.c.b16 %v387, %v386
    %v521 = vpack.c.b16 %v389, %v388
    %v522 = vpack.c.b16 %v391, %v390
    %v523 = vpack.c.b16 %v393, %v392
    %v524 = vpack.c.b16 %v395, %v394
    %v525 = vpack.c.b16 %v397, %v396
    %v526 = vpack.c.b16 %v399, %v398
    %v527 = vpack.c.b16 %v401, %v400
    %v528 = vpack.c.b16 %v403, %v402
    %v529 = vpack.c.b16 %v405, %v404
    %v530 = vpack.c.b16 %v407, %v406
    %v531 = vpack.c.b16 %v409, %v408
    %v532 = vpack.c.b16 %v411, %v410
    %v533 = vpack.c.b16 %v413, %v412
    %v534 = vpack.c.b16 %v415, %v414
    %v535 = vpack.c.b16 %v417, %v416
    %v536 = vpack.c.b16 %v419, %v418
    %v537 = vpack.c.b16 %v421, %v420
    %v538 = vpack.c.b16 %v423, %v422
    %v539 = vpack.c.b16 %v425, %v424
    %v540 = vpack.c.b16 %v427, %v426
    %v541 = vpack.c.b16 %v429, %v428
    %v542 = vpack.c.b16 %v431, %v430
    %v543 = vpack.c.b16 %v433, %v432
    %v544 = vpack.c.b16 %v435, %v434
    %v545 = vpack.c.b16 %v437, %v436
    %v546 = vpack.c.b16 %v439, %v438
    %v547 = vpack.c.b16 %v441, %v440
    %v548 = vpack.c.b16 %v443, %v442
    %v549 = vpack.c.b16 %v445, %v444
    %v550 = vpack.c.b16 %v447, %v446
    %v551 = vpack.c.b16 %v449, %v448
    %v552 = vpack.c.b16 %v451, %v450
    %v553 = vpack.c.b16 %v453, %v452
    %v554 = vpack.c.b16 %v455, %v454
    %v555 = vpack.c.b16 %v457, %v456
    %v556 = vpack.c.b16 %v459, %v458
    %v557 = vpack.c.b16 %v461, %v460
    %v558 = vpack.c.b16 %v463, %v462
    %v559 = vpack.c.b16 %v465, %v464
    %v560 = vpack.c.b16 %v467, %v466
    %v561 = vpack.c.b16 %v469, %v468
    %v562 = vpack.c.b16 %v471, %v470
    %v563 = vpack.c.b16 %v473, %v472
    %v564 = vpack.c.b16 %v475, %v474
    %v565 = vpack.c.b16 %v477, %v476
    %v566 = vpack.c.b16 %v479, %v478
    %v567 = vpack.c.b16 %v481, %v480
    %v568 = vpack.c.b16 %v483, %v482
    %v569 = vpack.c.b16 %v485, %v484
    %v570 = vpack.c.b16 %v487, %v486
    %v571 = vpack.c.b16 %v489, %v488
    %v572 = vpack.c.b16 %v491, %v490
    %v573 = vpack.c.b16 %v493, %v492
    %v574 = vpack.c.b16 %v495, %v494
    %v575 = vpack.c.b16 %v497, %v496
    %v576 = vpack.c.b16 %v499, %v498
    %v577 = vpack.c.b16 %v501, %v500
    %v578 = vpack.c.b16 %v503, %v502
    %v579 = vpack.c.b16 %v505, %v504
    %v580 = vpack.c.b16 %v507, %v506
    %v581 = vpack.c.b16 %v509, %v508
    %654 = vmatprep.subr.bf16.mxu0 0
    %655 = vmatpush1.bf16.msra.mxu0 %v510
    %656 = vmatprep.subr.bf16.mxu0 0
    %657 = vmatpush1.bf16.msra.mxu0 %v511
    %658 = vmatprep.subr.bf16.mxu0 0
    %659 = vmatpush1.bf16.msra.mxu0 %v512
    %660 = vmatprep.subr.bf16.mxu0 0
    %661 = vmatpush1.bf16.msra.mxu0 %v513
    %662 = vmatprep.subr.bf16.mxu0 0
    %663 = vmatpush1.bf16.msra.mxu0 %v514
    %664 = vmatprep.subr.bf16.mxu0 0
    %665 = vmatpush1.bf16.msra.mxu0 %v515
    %666 = vmatprep.subr.bf16.mxu0 0
    %667 = vmatpush1.bf16.msra.mxu0 %v516
    %668 = vmatprep.subr.bf16.mxu0 0
    %669 = vmatpush1.bf16.msra.mxu0 %v517
    %670 = vmatprep.subr.bf16.mxu0 0
    %671 = vmatpush1.bf16.msra.mxu0 %v518
    %672 = vmatprep.subr.bf16.mxu0 0
    %673 = vmatpush1.bf16.msra.mxu0 %v519
    %674 = vmatprep.subr.bf16.mxu0 0
    %675 = vmatpush1.bf16.msra.mxu0 %v520
    %676 = vmatprep.subr.bf16.mxu0 0
    %677 = vmatpush1.bf16.msra.mxu0 %v521
    %678 = vmatprep.subr.bf16.mxu0 0
    %679 = vmatpush1.bf16.msra.mxu0 %v522
    %680 = vmatprep.subr.bf16.mxu0 0
    %681 = vmatpush1.bf16.msra.mxu0 %v523
    %682 = vmatprep.subr.bf16.mxu0 0
    %683 = vmatpush1.bf16.msra.mxu0 %v524
    %684 = vmatprep.subr.bf16.mxu0 0
    %685 = vmatpush1.bf16.msra.mxu0 %v525
    %686 = vmatprep.mubr.bf16.mxu0 %v63
    %687 = vmatmul.mubr.bf16.gmra.mrb[0].mxu0 %v62
    %v688 = vpop.f32.mrb[0].mxu0
    %v689 = vadd.f32 %v220, %v688
    %v690 = vpop.f32.mrb[0].mxu0
    %v691 = vpop.f32.mrb[0].mxu0
    %v692 = vpop.f32.mrb[0].mxu0
    %693 = vdwg.mxu0
    %694 = vmatprep.subr.bf16.mxu0 0
    %695 = vmatpush1.bf16.msra.mxu0 %v526
    %696 = vmatprep.subr.bf16.mxu0 0
    %697 = vmatpush1.bf16.msra.mxu0 %v527
    %698 = vmatprep.subr.bf16.mxu0 0
    %699 = vmatpush1.bf16.msra.mxu0 %v528
    %700 = vmatprep.subr.bf16.mxu0 0
    %701 = vmatpush1.bf16.msra.mxu0 %v529
    %702 = vmatprep.subr.bf16.mxu0 0
    %703 = vmatpush1.bf16.msra.mxu0 %v530
    %704 = vmatprep.subr.bf16.mxu0 0
    %705 = vmatpush1.bf16.msra.mxu0 %v531
    %706 = vmatprep.subr.bf16.mxu0 0
    %707 = vmatpush1.bf16.msra.mxu0 %v532
    %708 = vmatprep.subr.bf16.mxu0 0
    %709 = vmatpush1.bf16.msra.mxu0 %v533
    %710 = vmatprep.subr.bf16.mxu0 0
    %711 = vmatpush1.bf16.msra.mxu0 %v534
    %712 = vmatprep.subr.bf16.mxu0 0
    %713 = vmatpush1.bf16.msra.mxu0 %v535
    %714 = vmatprep.subr.bf16.mxu0 0
    %715 = vmatpush1.bf16.msra.mxu0 %v536
    %716 = vmatprep.subr.bf16.mxu0 0
    %717 = vmatpush1.bf16.msra.mxu0 %v537
    %718 = vmatprep.subr.bf16.mxu0 0
    %719 = vmatpush1.bf16.msra.mxu0 %v538
    %720 = vmatprep.subr.bf16.mxu0 0
    %721 = vmatpush1.bf16.msra.mxu0 %v539
    %722 = vmatprep.subr.bf16.mxu0 0
    %723 = vmatpush1.bf16.msra.mxu0 %v540
    %724 = vmatprep.subr.bf16.mxu0 0
    %725 = vmatpush1.bf16.msra.mxu0 %v541
    %726 = vmatprep.mubr.bf16.mxu0 %v65
    %727 = vmatmul.mubr.bf16.gmra.mrb[0].mxu0 %v64
    %v728 = vpop.f32.mrb[0].mxu0
    %v729 = vadd.f32 %v689, %v728
    %v730 = vpop.f32.mrb[0].mxu0
    %v731 = vpop.f32.mrb[0].mxu0
    %v732 = vpop.f32.mrb[0].mxu0
    %733 = vdwg.mxu0
    %734 = vmatprep.subr.bf16.mxu0 0
    %735 = vmatpush1.bf16.msra.mxu0 %v542
    %736 = vmatprep.subr.bf16.mxu0 0
    %737 = vmatpush1.bf16.msra.mxu0 %v543
    %738 = vmatprep.subr.bf16.mxu0 0
    %739 = vmatpush1.bf16.msra.mxu0 %v544
    %740 = vmatprep.subr.bf16.mxu0 0
    %741 = vmatpush1.bf16.msra.mxu0 %v545
    %742 = vmatprep.subr.bf16.mxu0 0
    %743 = vmatpush1.bf16.msra.mxu0 %v546
    %744 = vmatprep.subr.bf16.mxu0 0
    %745 = vmatpush1.bf16.msra.mxu0 %v547
    %746 = vmatprep.subr.bf16.mxu0 0
    %747 = vmatpush1.bf16.msra.mxu0 %v548
    %748 = vmatprep.subr.bf16.mxu0 0
    %749 = vmatpush1.bf16.msra.mxu0 %v549
    %750 = vmatprep.subr.bf16.mxu0 0
    %751 = vmatpush1.bf16.msra.mxu0 %v550
    %752 = vmatprep.subr.bf16.mxu0 0
    %753 = vmatpush1.bf16.msra.mxu0 %v551
    %754 = vmatprep.subr.bf16.mxu0 0
    %755 = vmatpush1.bf16.msra.mxu0 %v552
    %756 = vmatprep.subr.bf16.mxu0 0
    %757 = vmatpush1.bf16.msra.mxu0 %v553
    %758 = vmatprep.subr.bf16.mxu0 0
    %759 = vmatpush1.bf16.msra.mxu0 %v554
    %760 = vmatprep.subr.bf16.mxu0 0
    %761 = vmatpush1.bf16.msra.mxu0 %v555
    %762 = vmatprep.subr.bf16.mxu0 0
    %763 = vmatpush1.bf16.msra.mxu0 %v556
    %764 = vmatprep.subr.bf16.mxu0 0
    %765 = vmatpush1.bf16.msra.mxu0 %v557
    %766 = vmatprep.mubr.bf16.mxu0 %v67
    %767 = vmatmul.mubr.bf16.gmra.mrb[0].mxu0 %v66
    %v768 = vpop.f32.mrb[0].mxu0
    %v769 = vadd.f32 %v729, %v768
    %v770 = vpop.f32.mrb[0].mxu0
    %v771 = vpop.f32.mrb[0].mxu0
    %v772 = vpop.f32.mrb[0].mxu0
    %773 = vdwg.mxu0
    %774 = vmatprep.subr.bf16.mxu0 0
    %775 = vmatpush1.bf16.msra.mxu0 %v558
    %776 = vmatprep.subr.bf16.mxu0 0
    %777 = vmatpush1.bf16.msra.mxu0 %v559
    %778 = vmatprep.subr.bf16.mxu0 0
    %779 = vmatpush1.bf16.msra.mxu0 %v560
    %780 = vmatprep.subr.bf16.mxu0 0
    %781 = vmatpush1.bf16.msra.mxu0 %v561
    %782 = vmatprep.subr.bf16.mxu0 0
    %783 = vmatpush1.bf16.msra.mxu0 %v562
    %784 = vmatprep.subr.bf16.mxu0 0
    %785 = vmatpush1.bf16.msra.mxu0 %v563
    %786 = vmatprep.subr.bf16.mxu0 0
    %787 = vmatpush1.bf16.msra.mxu0 %v564
    %788 = vmatprep.subr.bf16.mxu0 0
    %789 = vmatpush1.bf16.msra.mxu0 %v565
    %790 = vmatprep.subr.bf16.mxu0 0
    %791 = vmatpush1.bf16.msra.mxu0 %v566
    %792 = vmatprep.subr.bf16.mxu0 0
    %793 = vmatpush1.bf16.msra.mxu0 %v567
    %794 = vmatprep.subr.bf16.mxu0 0
    %795 = vmatpush1.bf16.msra.mxu0 %v568
    %796 = vmatprep.subr.bf16.mxu0 0
    %797 = vmatpush1.bf16.msra.mxu0 %v569
    %798 = vmatprep.subr.bf16.mxu0 0
    %799 = vmatpush1.bf16.msra.mxu0 %v570
    %800 = vmatprep.subr.bf16.mxu0 0
    %801 = vmatpush1.bf16.msra.mxu0 %v571
    %802 = vmatprep.subr.bf16.mxu0 0
    %803 = vmatpush1.bf16.msra.mxu0 %v572
    %804 = vmatprep.subr.bf16.mxu0 0
    %805 = vmatpush1.bf16.msra.mxu0 %v573
    %806 = vmatprep.mubr.bf16.mxu0 %v69
    %807 = vmatmul.mubr.bf16.gmra.mrb[0].mxu0 %v68
    %v808 = vpop.f32.mrb[0].mxu0
    %v809 = vadd.f32 %v769, %v808
    %v810 = vpop.f32.mrb[0].mxu0
    %v811 = vpop.f32.mrb[0].mxu0
    %v812 = vpop.f32.mrb[0].mxu0
    %813 = vdwg.mxu0
    %814 = vmatprep.subr.bf16.mxu0 0
    %815 = vmatpush1.bf16.msra.mxu0 %v574
    %816 = vmatprep.subr.bf16.mxu0 0
    %817 = vmatpush1.bf16.msra.mxu0 %v575
    %818 = vmatprep.subr.bf16.mxu0 0
    %819 = vmatpush1.bf16.msra.mxu0 %v576
    %820 = vmatprep.subr.bf16.mxu0 0
    %821 = vmatpush1.bf16.msra.mxu0 %v577
    %822 = vmatprep.subr.bf16.mxu0 0
    %823 = vmatpush1.bf16.msra.mxu0 %v578
    %824 = vmatprep.subr.bf16.mxu0 0
    %825 = vmatpush1.bf16.msra.mxu0 %v579
    %826 = vmatprep.subr.bf16.mxu0 0
    %827 = vmatpush1.bf16.msra.mxu0 %v580
    %828 = vmatprep.subr.bf16.mxu0 0
    %829 = vmatpush1.bf16.msra.mxu0 %v581
    %830 = vmatprep.subr.bf16.mxu0 0
    %831 = vmatpush1.bf16.msra.mxu0 0
    %832 = vmatprep.subr.bf16.mxu0 0
    %833 = vmatpush1.bf16.msra.mxu0 0
    %834 = vmatprep.subr.bf16.mxu0 0
    %835 = vmatpush1.bf16.msra.mxu0 0
    %836 = vmatprep.subr.bf16.mxu0 0
    %837 = vmatpush1.bf16.msra.mxu0 0
    %838 = vmatprep.subr.bf16.mxu0 0
    %839 = vmatpush1.bf16.msra.mxu0 0
    %840 = vmatprep.subr.bf16.mxu0 0
    %841 = vmatpush1.bf16.msra.mxu0 0
    %842 = vmatprep.subr.bf16.mxu0 0
    %843 = vmatpush1.bf16.msra.mxu0 0
    %844 = vmatprep.subr.bf16.mxu0 0
    %845 = vmatpush1.bf16.msra.mxu0 0
    %846 = vmatprep.mubr.bf16.mxu0 0
    %847 = vmatmul.mubr.bf16.gmra.mrb[0].mxu0 %v70
    %v848 = vpop.f32.mrb[0].mxu0
    %v849 = vadd.f32 %v809, %v848
    %v850 = vpop.f32.mrb[0].mxu0
    %v851 = vpop.f32.mrb[0].mxu0
    %v852 = vpop.f32.mrb[0].mxu0
    %853 = vdwg.mxu0
    %854 = vst [vmem:[#allocation8] sm:$0xff] %v849
    // Predicated region
    $region26: #{_lambda_.15} parent=1 // pred_check
      _
    $region27: #{_lambda_.15} parent=1 // pred_check_branch
      %856 = sbr.rel (0) target = $region29
    $region28: #{_lambda_.15} parent=1 // pred_region
      %s858 = ssub.s32 128, 128
      %859 = vsyncadd [#allocation4], %s858
      %s861 = sshll.u32 [#allocation8], 4
      %s862 = int_to_ptr.vmem [resolvable:$true] %s861
      %864 = dma.vmem_to_hbm [thread:$0]  %s862, 128, %s3, [#allocation4]
    $region29: #{_lambda_.15} parent=1 // pred_fallthru
      _
    // Predicated region
    $region30: #{_lambda_.15} parent=1 // pred_check
      _
    $region31: #{_lambda_.15} parent=1 // pred_check_branch
      %866 = sbr.rel (0) target = $region33
    $region32: #{_lambda_.15} parent=1 // pred_region
      %867 = dma.done [#allocation4], 128
    $region33: #{_lambda_.15} parent=1 // pred_fallthru
      _
    %868 = vsyncpa [#allocation3], 1
    %869 = vsyncpa [#allocation6], 1
    %870 = vsyncpa [#allocation4], 1

</llo_original>
